<compile_context>
chip_gen: v6e
topology: v6e:2x2x1
jax: 0.10.0
libtpu: 0.0.40
codegen_flags: <defaults>
</compile_context>

<pallas_src>
import jax
import jax.numpy as jnp
from jax.experimental import pallas as pl
from jax.experimental.pallas import tpu as pltpu


def _make_kernel(T):
    """Build the kernel closed over the per-sample time length T."""

    def kernel(x_ref, wb1_ref, wb2_ref, wb3_ref, wpT_ref, bp_ref, pool_ref,
               o_ref):
        TBT = x_ref.shape[-1]          # TB * T (batch stacked on the lane axis)
        tb = o_ref.shape[0]            # samples per grid step
        x0 = x_ref[0].astype(jnp.float32)                    # (1, TBT)

        # --- hoisted per-sample column index and shift masks (built once) ---
        col = jax.lax.broadcasted_iota(jnp.int32, (1, TBT), 1) % T
        masks = {}
        for s in range(-3, 4):                                # covers k=7,5,3
            if s != 0:
                valid = jnp.logical_and(col + s >= 0, col + s < T)
                masks[s] = valid.astype(jnp.float32)          # (1, TBT) 0/1

        ones_row = jnp.ones((1, TBT), jnp.float32)

        def shifted(h, s):
            # y[:, t] = h[:, t + s] within each sample, zero at sample edges.
            if s == 0:
                return h
            rolled = pltpu.roll(h, shift=(-s) % TBT, axis=1)
            return rolled * masks[s]

        def conv_relu(h, wb_ref, K):
            # One fused MXU matmul: (Cout, K*Cin+1) @ (K*Cin+1, TBT).
            pad = K // 2
            parts = [shifted(h, k - pad) for k in range(K)] + [ones_row]
            stacked = jnp.concatenate(parts, axis=0)
            acc = jnp.dot(wb_ref[...], stacked,
                          preferred_element_type=jnp.float32)
            return jnp.maximum(acc, 0.0)

        h1 = conv_relu(x0, wb1_ref, 7)        # (32,  TBT)
        h2 = conv_relu(h1, wb2_ref, 5)        # (64,  TBT)
        h3 = conv_relu(h2, wb3_ref, 3)        # (out_dim, TBT)

        # --- AdaptiveAvgPool1d(1): segmented mean over time via the MXU ---
        # pool_ref is (TBT, 128) with column s = (1/T) indicator of sample s.
        pooled_c = jnp.dot(h3, pool_ref[...],
                           preferred_element_type=jnp.float32)  # (out_dim,128)
        pooled_r = jnp.transpose(pooled_c)[:tb, :]               # (tb, out_dim)

        # --- per-sample channel normalization (torch unbiased std) ---
        C = pooled_r.shape[1]
        mean = jnp.sum(pooled_r, axis=1, keepdims=True) * (1.0 / C)
        centered = pooled_r - mean
        var = jnp.sum(centered * centered, axis=1, keepdims=True) \
            * (1.0 / (C - 1))
        # exact divide kept for parity with the reference (tiny (tb,1) tensor)
        pnorm = centered / (jnp.sqrt(var) + 1e-6)                # (tb, out_dim)

        # --- projection (row form) + ReLU -> lane-dense (tb, out_dim) ---
        proj = jnp.dot(pnorm, wpT_ref[...],
                       preferred_element_type=jnp.float32) + bp_ref[...]
        o_ref[...] = jnp.maximum(proj, 0.0).astype(o_ref.dtype)

    return kernel


def eeg1dcnn_forward(x, params, tb=8):
    """x: (B, T) float32 -> (B, out_dim) float32."""
    B, T = x.shape
    w1, b1, w2, b2, w3, b3, wp, bp = params
    out_dim = wp.shape[0]

    # --- kernel-friendly weight layouts (lane-dense, bias folded in) ---
    def pack(w, b):
        cout, cin, k = w.shape
        wf = jnp.transpose(w, (0, 2, 1)).reshape(cout, k * cin)
        return jnp.concatenate([wf, b[:, None]], axis=1).astype(jnp.float32)

    wb1 = pack(w1, b1)                               # (32, 7*1 + 1)
    wb2 = pack(w2, b2)                               # (64, 5*32 + 1)
    wb3 = pack(w3, b3)                               # (out_dim, 3*64 + 1)
    wpT = jnp.transpose(wp).astype(jnp.float32)      # (out_dim, out_dim)
    bp_row = bp[None, :].astype(jnp.float32)         # (1, out_dim)

    # --- pad batch to a multiple of tb and stack tb samples on the lane axis ---
    nb = -(-B // tb)                                 # number of grid steps
    Bp = nb * tb
    xp = jnp.pad(x, ((0, Bp - B), (0, 0))) if Bp != B else x
    TBT = tb * T
    x3 = xp.reshape(nb, 1, TBT).astype(jnp.float32)

    # segmented mean-pool matrix, padded to 128 sample columns so the in-kernel
    # transpose is tile-aligned
    SPAD = 128
    assert tb <= SPAD, "tb must be <= 128"
    t_seg = jnp.arange(TBT, dtype=jnp.int32) // T
    pool = (t_seg[:, None] == jnp.arange(SPAD, dtype=jnp.int32)[None, :])
    pool = pool.astype(jnp.float32) * (1.0 / T)      # (TBT, 128)

    def full_spec(shape):
        nd = len(shape)
        return pl.BlockSpec(shape, lambda i, _nd=nd: (0,) * _nd)

    out = pl.pallas_call(
        _make_kernel(T),
        out_shape=jax.ShapeDtypeStruct((Bp, out_dim), jnp.float32),
        grid_spec=pltpu.PrefetchScalarGridSpec(
            num_scalar_prefetch=0,
            grid=(nb,),
            in_specs=[
                pl.BlockSpec((1, 1, TBT), lambda i: (i, 0, 0)),
                full_spec(wb1.shape), full_spec(wb2.shape),
                full_spec(wb3.shape), full_spec(wpT.shape),
                full_spec(bp_row.shape), full_spec(pool.shape),
            ],
            out_specs=pl.BlockSpec((tb, out_dim), lambda i: (i, 0)),
        ),
        compiler_params=pltpu.CompilerParams(
            dimension_semantics=("parallel",)),
    )(x3, wb1, wb2, wb3, wpT, bp_row, pool)
    return out[:B]


def ref_forward(x, params):
    """Pure-JAX reference mirroring the PyTorch forward."""
    w1, b1, w2, b2, w3, b3, wp, bp = params

    def conv_relu(h, w, b):
        out = jax.lax.conv_general_dilated(
            h, w, window_strides=(1,), padding="SAME",
            dimension_numbers=("NCH", "OIH", "NCH"))
        return jax.nn.relu(out + b[None, :, None])

    h = x[:, None, :]
    h = conv_relu(h, w1, b1)
    h = conv_relu(h, w2, b2)
    h = conv_relu(h, w3, b3)
    pooled = jnp.mean(h, axis=-1)                          # (B, C)
    mean = jnp.mean(pooled, axis=1, keepdims=True)
    std = jnp.std(pooled, axis=1, ddof=1, keepdims=True)   # torch unbiased std
    pooled = (pooled - mean) / (std + 1e-6)
    return jax.nn.relu(pooled @ wp.T + bp[None, :])


if __name__ == "__main__":
    B, T, out_dim = 16, 256, 128          # 2 grid steps at tb=8 (feeds 2 TCs)
    key = jax.random.PRNGKey(0)
    ks = jax.random.split(key, 9)

    def init(k, shape, scale):
        return (scale * jax.random.normal(k, shape)).astype(jnp.float32)

    # shapes follow nn.Conv1d / nn.Linear weight conventions
    w1 = init(ks[0], (32, 1, 7), 0.3)
    b1 = init(ks[1], (32,), 0.1)
    w2 = init(ks[2], (64, 32, 5), 0.1)
    b2 = init(ks[3], (64,), 0.1)
    w3 = init(ks[4], (out_dim, 64, 3), 0.1)
    b3 = init(ks[5], (out_dim,), 0.1)
    wp = init(ks[6], (out_dim, out_dim), 0.1)
    bp = init(ks[7], (out_dim,), 0.1)
    x = jax.random.normal(ks[8], (B, T), jnp.float32)
    params = (w1, b1, w2, b2, w3, b3, wp, bp)

    out = jax.block_until_ready(eeg1dcnn_forward(x, params, tb=8))
    ref = ref_forward(x, params)

    assert out.shape == (B, out_dim), out.shape
    err = float(jnp.max(jnp.abs(out - ref)))
    if err > 1e-3:
        raise AssertionError(f"Pallas kernel mismatch vs reference: max abs err={err}")
    print("KERNEL_OK")
</pallas_src>

<mosaic_0001>
module attributes {stable_mosaic.version = 11 : i64} {
  func.func @kernel(%arg0: i32, %arg1: memref<1x1x2048xf32, #tpu.memory_space<vmem>>, %arg2: memref<32x8xf32, #tpu.memory_space<vmem>>, %arg3: memref<64x161xf32, #tpu.memory_space<vmem>>, %arg4: memref<128x193xf32, #tpu.memory_space<vmem>>, %arg5: memref<128x128xf32, #tpu.memory_space<vmem>>, %arg6: memref<1x128xf32, #tpu.memory_space<vmem>>, %arg7: memref<2048x128xf32, #tpu.memory_space<vmem>>, %arg8: memref<8x128xf32, #tpu.memory_space<vmem>>) attributes {dimension_semantics = [#tpu.dimension_semantics<parallel>], iteration_bounds = array<i64: 2>, scalar_prefetch = 0 : i64, scratch_operands = 0 : i64, tpu.core_type = #tpu.core_type<tc>, window_params = [{transform_indices = @transform_0, window_bounds = array<i64: 1, 1, 2048>}, {pipeline_mode = #tpu.pipeline_mode<synchronous>, transform_indices = @transform_1, window_bounds = array<i64: 32, 8>}, {pipeline_mode = #tpu.pipeline_mode<synchronous>, transform_indices = @transform_2, window_bounds = array<i64: 64, 161>}, {pipeline_mode = #tpu.pipeline_mode<synchronous>, transform_indices = @transform_3, window_bounds = array<i64: 128, 193>}, {pipeline_mode = #tpu.pipeline_mode<synchronous>, transform_indices = @transform_4, window_bounds = array<i64: 128, 128>}, {pipeline_mode = #tpu.pipeline_mode<synchronous>, transform_indices = @transform_5, window_bounds = array<i64: 1, 128>}, {pipeline_mode = #tpu.pipeline_mode<synchronous>, transform_indices = @transform_6, window_bounds = array<i64: 2048, 128>}, {transform_indices = @transform_7, window_bounds = array<i64: 8, 128>}]} {
    %c0 = arith.constant 0 : index
    %c0_0 = arith.constant 0 : index
    %c0_1 = arith.constant 0 : index
    %0 = vector.load %arg1[%c0, %c0_0, %c0_1] : memref<1x1x2048xf32, #tpu.memory_space<vmem>>, vector<1x1x2048xf32>
    %1 = vector.shape_cast %0 : vector<1x1x2048xf32> to vector<1x2048xf32>
    %2 = tpu.iota {dimensions = array<i32: 1>} : vector<1x2048xi32>
    %c256_i32 = arith.constant 256 : i32
    %c0_i32 = arith.constant 0 : i32
    %3 = arith.cmpi eq, %c256_i32, %c0_i32 : i32
    %c1_i32 = arith.constant 1 : i32
    %4 = arith.select %3, %c1_i32, %c256_i32 : i32
    %5 = vector.broadcast %4 : i32 to vector<1x2048xi32>
    %6 = arith.remsi %2, %5 : vector<1x2048xi32>
    %c0_i32_2 = arith.constant 0 : i32
    %7 = vector.broadcast %c0_i32_2 : i32 to vector<1x2048xi32>
    %8 = arith.cmpi ne, %6, %7 : vector<1x2048xi32>
    %c0_i32_3 = arith.constant 0 : i32
    %9 = vector.broadcast %c0_i32_3 : i32 to vector<1x2048xi32>
    %10 = arith.cmpi slt, %6, %9 : vector<1x2048xi32>
    %c0_i32_4 = arith.constant 0 : i32
    %11 = arith.cmpi slt, %4, %c0_i32_4 : i32
    %12 = vector.broadcast %11 : i1 to vector<1x2048xi1>
    %13 = vector.broadcast %12 : vector<1x2048xi1> to vector<1x2048xi1>
    %14 = arith.xori %10, %13 : vector<1x2048xi1>
    %15 = arith.andi %14, %8 : vector<1x2048xi1>
    %16 = vector.broadcast %4 : i32 to vector<1x2048xi32>
    %17 = arith.addi %6, %16 : vector<1x2048xi32>
    %18 = arith.select %15, %17, %6 : vector<1x2048xi1>, vector<1x2048xi32>
    %c-3_i32 = arith.constant -3 : i32
    %19 = vector.broadcast %c-3_i32 : i32 to vector<1x2048xi32>
    %20 = arith.addi %18, %19 : vector<1x2048xi32>
    %c0_i32_5 = arith.constant 0 : i32
    %21 = vector.broadcast %c0_i32_5 : i32 to vector<1x2048xi32>
    %22 = arith.cmpi sge, %20, %21 : vector<1x2048xi32>
    %c-3_i32_6 = arith.constant -3 : i32
    %23 = vector.broadcast %c-3_i32_6 : i32 to vector<1x2048xi32>
    %24 = arith.addi %18, %23 : vector<1x2048xi32>
    %c256_i32_7 = arith.constant 256 : i32
    %25 = vector.broadcast %c256_i32_7 : i32 to vector<1x2048xi32>
    %26 = arith.cmpi slt, %24, %25 : vector<1x2048xi32>
    %27 = arith.andi %22, %26 : vector<1x2048xi1>
    %28 = arith.extui %27 : vector<1x2048xi1> to vector<1x2048xi32>
    %29 = arith.sitofp %28 : vector<1x2048xi32> to vector<1x2048xf32>
    %c-2_i32 = arith.constant -2 : i32
    %30 = vector.broadcast %c-2_i32 : i32 to vector<1x2048xi32>
    %31 = arith.addi %18, %30 : vector<1x2048xi32>
    %c0_i32_8 = arith.constant 0 : i32
    %32 = vector.broadcast %c0_i32_8 : i32 to vector<1x2048xi32>
    %33 = arith.cmpi sge, %31, %32 : vector<1x2048xi32>
    %c-2_i32_9 = arith.constant -2 : i32
    %34 = vector.broadcast %c-2_i32_9 : i32 to vector<1x2048xi32>
    %35 = arith.addi %18, %34 : vector<1x2048xi32>
    %c256_i32_10 = arith.constant 256 : i32
    %36 = vector.broadcast %c256_i32_10 : i32 to vector<1x2048xi32>
    %37 = arith.cmpi slt, %35, %36 : vector<1x2048xi32>
    %38 = arith.andi %33, %37 : vector<1x2048xi1>
    %39 = arith.extui %38 : vector<1x2048xi1> to vector<1x2048xi32>
    %40 = arith.sitofp %39 : vector<1x2048xi32> to vector<1x2048xf32>
    %c-1_i32 = arith.constant -1 : i32
    %41 = vector.broadcast %c-1_i32 : i32 to vector<1x2048xi32>
    %42 = arith.addi %18, %41 : vector<1x2048xi32>
    %c0_i32_11 = arith.constant 0 : i32
    %43 = vector.broadcast %c0_i32_11 : i32 to vector<1x2048xi32>
    %44 = arith.cmpi sge, %42, %43 : vector<1x2048xi32>
    %c-1_i32_12 = arith.constant -1 : i32
    %45 = vector.broadcast %c-1_i32_12 : i32 to vector<1x2048xi32>
    %46 = arith.addi %18, %45 : vector<1x2048xi32>
    %c256_i32_13 = arith.constant 256 : i32
    %47 = vector.broadcast %c256_i32_13 : i32 to vector<1x2048xi32>
    %48 = arith.cmpi slt, %46, %47 : vector<1x2048xi32>
    %49 = arith.andi %44, %48 : vector<1x2048xi1>
    %50 = arith.extui %49 : vector<1x2048xi1> to vector<1x2048xi32>
    %51 = arith.sitofp %50 : vector<1x2048xi32> to vector<1x2048xf32>
    %c1_i32_14 = arith.constant 1 : i32
    %52 = vector.broadcast %c1_i32_14 : i32 to vector<1x2048xi32>
    %53 = arith.addi %18, %52 : vector<1x2048xi32>
    %c0_i32_15 = arith.constant 0 : i32
    %54 = vector.broadcast %c0_i32_15 : i32 to vector<1x2048xi32>
    %55 = arith.cmpi sge, %53, %54 : vector<1x2048xi32>
    %c1_i32_16 = arith.constant 1 : i32
    %56 = vector.broadcast %c1_i32_16 : i32 to vector<1x2048xi32>
    %57 = arith.addi %18, %56 : vector<1x2048xi32>
    %c256_i32_17 = arith.constant 256 : i32
    %58 = vector.broadcast %c256_i32_17 : i32 to vector<1x2048xi32>
    %59 = arith.cmpi slt, %57, %58 : vector<1x2048xi32>
    %60 = arith.andi %55, %59 : vector<1x2048xi1>
    %61 = arith.extui %60 : vector<1x2048xi1> to vector<1x2048xi32>
    %62 = arith.sitofp %61 : vector<1x2048xi32> to vector<1x2048xf32>
    %c2_i32 = arith.constant 2 : i32
    %63 = vector.broadcast %c2_i32 : i32 to vector<1x2048xi32>
    %64 = arith.addi %18, %63 : vector<1x2048xi32>
    %c0_i32_18 = arith.constant 0 : i32
    %65 = vector.broadcast %c0_i32_18 : i32 to vector<1x2048xi32>
    %66 = arith.cmpi sge, %64, %65 : vector<1x2048xi32>
    %c2_i32_19 = arith.constant 2 : i32
    %67 = vector.broadcast %c2_i32_19 : i32 to vector<1x2048xi32>
    %68 = arith.addi %18, %67 : vector<1x2048xi32>
    %c256_i32_20 = arith.constant 256 : i32
    %69 = vector.broadcast %c256_i32_20 : i32 to vector<1x2048xi32>
    %70 = arith.cmpi slt, %68, %69 : vector<1x2048xi32>
    %71 = arith.andi %66, %70 : vector<1x2048xi1>
    %72 = arith.extui %71 : vector<1x2048xi1> to vector<1x2048xi32>
    %73 = arith.sitofp %72 : vector<1x2048xi32> to vector<1x2048xf32>
    %c3_i32 = arith.constant 3 : i32
    %74 = vector.broadcast %c3_i32 : i32 to vector<1x2048xi32>
    %75 = arith.addi %18, %74 : vector<1x2048xi32>
    %c0_i32_21 = arith.constant 0 : i32
    %76 = vector.broadcast %c0_i32_21 : i32 to vector<1x2048xi32>
    %77 = arith.cmpi sge, %75, %76 : vector<1x2048xi32>
    %c3_i32_22 = arith.constant 3 : i32
    %78 = vector.broadcast %c3_i32_22 : i32 to vector<1x2048xi32>
    %79 = arith.addi %18, %78 : vector<1x2048xi32>
    %c256_i32_23 = arith.constant 256 : i32
    %80 = vector.broadcast %c256_i32_23 : i32 to vector<1x2048xi32>
    %81 = arith.cmpi slt, %79, %80 : vector<1x2048xi32>
    %82 = arith.andi %77, %81 : vector<1x2048xi1>
    %83 = arith.extui %82 : vector<1x2048xi1> to vector<1x2048xi32>
    %84 = arith.sitofp %83 : vector<1x2048xi32> to vector<1x2048xf32>
    %cst = arith.constant 1.000000e+00 : f32
    %85 = vector.broadcast %cst : f32 to vector<1x2048xf32>
    %c3_i32_24 = arith.constant 3 : i32
    %86 = tpu.dynamic_rotate %1 by %c3_i32_24 dim 1 : vector<1x2048xf32>, i32 -> vector<1x2048xf32>
    %87 = arith.mulf %86, %29 : vector<1x2048xf32>
    %c2_i32_25 = arith.constant 2 : i32
    %88 = tpu.dynamic_rotate %1 by %c2_i32_25 dim 1 : vector<1x2048xf32>, i32 -> vector<1x2048xf32>
    %89 = arith.mulf %88, %40 : vector<1x2048xf32>
    %c1_i32_26 = arith.constant 1 : i32
    %90 = tpu.dynamic_rotate %1 by %c1_i32_26 dim 1 : vector<1x2048xf32>, i32 -> vector<1x2048xf32>
    %91 = arith.mulf %90, %51 : vector<1x2048xf32>
    %c2047_i32 = arith.constant 2047 : i32
    %92 = tpu.dynamic_rotate %1 by %c2047_i32 dim 1 : vector<1x2048xf32>, i32 -> vector<1x2048xf32>
    %93 = arith.mulf %92, %62 : vector<1x2048xf32>
    %c2046_i32 = arith.constant 2046 : i32
    %94 = tpu.dynamic_rotate %1 by %c2046_i32 dim 1 : vector<1x2048xf32>, i32 -> vector<1x2048xf32>
    %95 = arith.mulf %94, %73 : vector<1x2048xf32>
    %c2045_i32 = arith.constant 2045 : i32
    %96 = tpu.dynamic_rotate %1 by %c2045_i32 dim 1 : vector<1x2048xf32>, i32 -> vector<1x2048xf32>
    %97 = arith.mulf %96, %84 : vector<1x2048xf32>
    %98 = tpu.concatenate %87, %89, %91, %1, %93, %95, %97, %85 in 0 : vector<1x2048xf32>, vector<1x2048xf32>, vector<1x2048xf32>, vector<1x2048xf32>, vector<1x2048xf32>, vector<1x2048xf32>, vector<1x2048xf32>, vector<1x2048xf32> -> vector<8x2048xf32>
    %c0_27 = arith.constant 0 : index
    %c0_28 = arith.constant 0 : index
    %99 = vector.load %arg2[%c0_27, %c0_28] : memref<32x8xf32, #tpu.memory_space<vmem>>, vector<32x8xf32>
    %cst_29 = arith.constant dense<0.000000e+00> : vector<32x2048xf32>
    %100 = tpu.matmul %99, %98, %cst_29 {dimension_numbers = #tpu.dot_dimension_numbers<[1], [0], [0], [1], [0, 0, 1, 1], [], []>} : vector<32x8xf32>, vector<8x2048xf32>, vector<32x2048xf32> -> vector<32x2048xf32>
    %cst_30 = arith.constant 0.000000e+00 : f32
    %101 = vector.broadcast %cst_30 : f32 to vector<32x2048xf32>
    %102 = arith.maximumf %100, %101 : vector<32x2048xf32>
    %c2_i32_31 = arith.constant 2 : i32
    %103 = tpu.dynamic_rotate %102 by %c2_i32_31 dim 1 : vector<32x2048xf32>, i32 -> vector<32x2048xf32>
    %104 = vector.broadcast %40 : vector<1x2048xf32> to vector<32x2048xf32>
    %105 = arith.mulf %103, %104 : vector<32x2048xf32>
    %c1_i32_32 = arith.constant 1 : i32
    %106 = tpu.dynamic_rotate %102 by %c1_i32_32 dim 1 : vector<32x2048xf32>, i32 -> vector<32x2048xf32>
    %107 = vector.broadcast %51 : vector<1x2048xf32> to vector<32x2048xf32>
    %108 = arith.mulf %106, %107 : vector<32x2048xf32>
    %c2047_i32_33 = arith.constant 2047 : i32
    %109 = tpu.dynamic_rotate %102 by %c2047_i32_33 dim 1 : vector<32x2048xf32>, i32 -> vector<32x2048xf32>
    %110 = vector.broadcast %62 : vector<1x2048xf32> to vector<32x2048xf32>
    %111 = arith.mulf %109, %110 : vector<32x2048xf32>
    %c2046_i32_34 = arith.constant 2046 : i32
    %112 = tpu.dynamic_rotate %102 by %c2046_i32_34 dim 1 : vector<32x2048xf32>, i32 -> vector<32x2048xf32>
    %113 = vector.broadcast %73 : vector<1x2048xf32> to vector<32x2048xf32>
    %114 = arith.mulf %112, %113 : vector<32x2048xf32>
    %115 = tpu.concatenate %105, %108, %102, %111, %114, %85 in 0 : vector<32x2048xf32>, vector<32x2048xf32>, vector<32x2048xf32>, vector<32x2048xf32>, vector<32x2048xf32>, vector<1x2048xf32> -> vector<161x2048xf32>
    %c0_35 = arith.constant 0 : index
    %c0_36 = arith.constant 0 : index
    %116 = vector.load %arg3[%c0_35, %c0_36] : memref<64x161xf32, #tpu.memory_space<vmem>>, vector<64x161xf32>
    %cst_37 = arith.constant dense<0.000000e+00> : vector<64x2048xf32>
    %117 = tpu.matmul %116, %115, %cst_37 {dimension_numbers = #tpu.dot_dimension_numbers<[1], [0], [0], [1], [0, 0, 1, 1], [], []>} : vector<64x161xf32>, vector<161x2048xf32>, vector<64x2048xf32> -> vector<64x2048xf32>
    %cst_38 = arith.constant 0.000000e+00 : f32
    %118 = vector.broadcast %cst_38 : f32 to vector<64x2048xf32>
    %119 = arith.maximumf %117, %118 : vector<64x2048xf32>
    %c1_i32_39 = arith.constant 1 : i32
    %120 = tpu.dynamic_rotate %119 by %c1_i32_39 dim 1 : vector<64x2048xf32>, i32 -> vector<64x2048xf32>
    %121 = vector.broadcast %51 : vector<1x2048xf32> to vector<64x2048xf32>
    %122 = arith.mulf %120, %121 : vector<64x2048xf32>
    %c2047_i32_40 = arith.constant 2047 : i32
    %123 = tpu.dynamic_rotate %119 by %c2047_i32_40 dim 1 : vector<64x2048xf32>, i32 -> vector<64x2048xf32>
    %124 = vector.broadcast %62 : vector<1x2048xf32> to vector<64x2048xf32>
    %125 = arith.mulf %123, %124 : vector<64x2048xf32>
    %126 = tpu.concatenate %122, %119, %125, %85 in 0 : vector<64x2048xf32>, vector<64x2048xf32>, vector<64x2048xf32>, vector<1x2048xf32> -> vector<193x2048xf32>
    %c0_41 = arith.constant 0 : index
    %c0_42 = arith.constant 0 : index
    %127 = vector.load %arg4[%c0_41, %c0_42] : memref<128x193xf32, #tpu.memory_space<vmem>>, vector<128x193xf32>
    %cst_43 = arith.constant dense<0.000000e+00> : vector<128x2048xf32>
    %128 = tpu.matmul %127, %126, %cst_43 {dimension_numbers = #tpu.dot_dimension_numbers<[1], [0], [0], [1], [0, 0, 1, 1], [], []>} : vector<128x193xf32>, vector<193x2048xf32>, vector<128x2048xf32> -> vector<128x2048xf32>
    %cst_44 = arith.constant 0.000000e+00 : f32
    %129 = vector.broadcast %cst_44 : f32 to vector<128x2048xf32>
    %130 = arith.maximumf %128, %129 : vector<128x2048xf32>
    %c0_45 = arith.constant 0 : index
    %c0_46 = arith.constant 0 : index
    %131 = vector.load %arg7[%c0_45, %c0_46] : memref<2048x128xf32, #tpu.memory_space<vmem>>, vector<2048x128xf32>
    %cst_47 = arith.constant dense<0.000000e+00> : vector<128x128xf32>
    %132 = tpu.matmul %130, %131, %cst_47 {dimension_numbers = #tpu.dot_dimension_numbers<[1], [0], [0], [1], [0, 0, 1, 1], [], []>} : vector<128x2048xf32>, vector<2048x128xf32>, vector<128x128xf32> -> vector<128x128xf32>
    %133 = tpu.transpose %132, [1, 0] : vector<128x128xf32> -> vector<128x128xf32>
    %134 = vector.extract_strided_slice %133 {offsets = [0, 0], sizes = [8, 128], strides = [1, 1]} : vector<128x128xf32> to vector<8x128xf32>
    %cst_48 = arith.constant dense<0.000000e+00> : vector<8xf32>
    %135 = vector.multi_reduction <add>, %134, %cst_48 [1] : vector<8x128xf32> to vector<8xf32>
    %136 = vector.shape_cast %135 : vector<8xf32> to vector<8x1xf32>
    %cst_49 = arith.constant 7.812500e-03 : f32
    %137 = vector.broadcast %cst_49 : f32 to vector<8x1xf32>
    %138 = arith.mulf %136, %137 : vector<8x1xf32>
    %139 = vector.broadcast %138 : vector<8x1xf32> to vector<8x128xf32>
    %140 = arith.subf %134, %139 : vector<8x128xf32>
    %141 = arith.mulf %140, %140 : vector<8x128xf32>
    %cst_50 = arith.constant dense<0.000000e+00> : vector<8xf32>
    %142 = vector.multi_reduction <add>, %141, %cst_50 [1] : vector<8x128xf32> to vector<8xf32>
    %143 = vector.shape_cast %142 : vector<8xf32> to vector<8x1xf32>
    %cst_51 = arith.constant 0.00787401571 : f32
    %144 = vector.broadcast %cst_51 : f32 to vector<8x1xf32>
    %145 = arith.mulf %143, %144 : vector<8x1xf32>
    %146 = math.sqrt %145 : vector<8x1xf32>
    %cst_52 = arith.constant 9.99999997E-7 : f32
    %147 = vector.broadcast %cst_52 : f32 to vector<8x1xf32>
    %148 = arith.addf %146, %147 : vector<8x1xf32>
    %149 = vector.broadcast %148 : vector<8x1xf32> to vector<8x128xf32>
    %150 = arith.divf %140, %149 : vector<8x128xf32>
    %c0_53 = arith.constant 0 : index
    %c0_54 = arith.constant 0 : index
    %151 = vector.load %arg5[%c0_53, %c0_54] : memref<128x128xf32, #tpu.memory_space<vmem>>, vector<128x128xf32>
    %cst_55 = arith.constant dense<0.000000e+00> : vector<8x128xf32>
    %152 = tpu.matmul %150, %151, %cst_55 {dimension_numbers = #tpu.dot_dimension_numbers<[1], [0], [0], [1], [0, 0, 1, 1], [], []>} : vector<8x128xf32>, vector<128x128xf32>, vector<8x128xf32> -> vector<8x128xf32>
    %c0_56 = arith.constant 0 : index
    %c0_57 = arith.constant 0 : index
    %153 = vector.load %arg6[%c0_56, %c0_57] : memref<1x128xf32, #tpu.memory_space<vmem>>, vector<1x128xf32>
    %154 = vector.broadcast %153 : vector<1x128xf32> to vector<8x128xf32>
    %155 = arith.addf %152, %154 : vector<8x128xf32>
    %cst_58 = arith.constant 0.000000e+00 : f32
    %156 = vector.broadcast %cst_58 : f32 to vector<8x128xf32>
    %157 = arith.maximumf %155, %156 : vector<8x128xf32>
    %c0_59 = arith.constant 0 : index
    %c0_60 = arith.constant 0 : index
    %158 = vector.load %arg8[%c0_59, %c0_60] : memref<8x128xf32, #tpu.memory_space<vmem>>, vector<8x128xf32>
    tpu.vector_store %arg8[%c0_59, %c0_60], %157 {strides = array<i32>} : memref<8x128xf32, #tpu.memory_space<vmem>>, vector<8x128xf32>,
    return
  }
  func.func @transform_0(%arg0: i32) -> (i32, i32, i32) {
    %c0_i32 = arith.constant 0 : i32
    %c0_i32_0 = arith.constant 0 : i32
    %c0_i32_1 = arith.constant 0 : i32
    return %arg0, %c0_i32, %c0_i32_0 : i32, i32, i32
  }
  func.func @transform_1(%arg0: i32) -> (i32, i32) {
    %c0_i32 = arith.constant 0 : i32
    %c0_i32_0 = arith.constant 0 : i32
    %c0_i32_1 = arith.constant 0 : i32
    return %c0_i32, %c0_i32_0 : i32, i32
  }
  func.func @transform_2(%arg0: i32) -> (i32, i32) {
    %c0_i32 = arith.constant 0 : i32
    %c0_i32_0 = arith.constant 0 : i32
    %c0_i32_1 = arith.constant 0 : i32
    return %c0_i32, %c0_i32_0 : i32, i32
  }
  func.func @transform_3(%arg0: i32) -> (i32, i32) {
    %c0_i32 = arith.constant 0 : i32
    %c0_i32_0 = arith.constant 0 : i32
    %c0_i32_1 = arith.constant 0 : i32
    return %c0_i32, %c0_i32_0 : i32, i32
  }
  func.func @transform_4(%arg0: i32) -> (i32, i32) {
    %c0_i32 = arith.constant 0 : i32
    %c0_i32_0 = arith.constant 0 : i32
    %c0_i32_1 = arith.constant 0 : i32
    return %c0_i32, %c0_i32_0 : i32, i32
  }
  func.func @transform_5(%arg0: i32) -> (i32, i32) {
    %c0_i32 = arith.constant 0 : i32
    %c0_i32_0 = arith.constant 0 : i32
    %c0_i32_1 = arith.constant 0 : i32
    return %c0_i32, %c0_i32_0 : i32, i32
  }
  func.func @transform_6(%arg0: i32) -> (i32, i32) {
    %c0_i32 = arith.constant 0 : i32
    %c0_i32_0 = arith.constant 0 : i32
    %c0_i32_1 = arith.constant 0 : i32
    return %c0_i32, %c0_i32_0 : i32, i32
  }
  func.func @transform_7(%arg0: i32) -> (i32, i32) {
    %c0_i32 = arith.constant 0 : i32
    %c0_i32_0 = arith.constant 0 : i32
    return %arg0, %c0_i32 : i32, i32
  }
}

</mosaic_0001>

<llo_original>
// kernel: tpu_custom_call.1
$region0: #{tpu_custom_call.1}
  #allocation0 [shape = 'u32[]', space=smem, size = 0x4, offset = 0x4, fixed_abs, tag = 'smem constant byte address 0x4 - core index']
  #allocation1 [shape = 'u32[144,128]{1,0:T(1,128)}', space=vmem, size = 0x12000, scoped, tag = 'internal scratch']
  %s0 = inlined_call_operand.vmem [shape: f32[2,1,2048], index: 0, kind: input, shape index: {}]
  %s1 = inlined_call_operand.vmem [shape: f32[32,8], index: 1, kind: input, shape index: {}]
  %s2 = inlined_call_operand.vmem [shape: f32[64,161], index: 2, kind: input, shape index: {}]
  %s3 = inlined_call_operand.vmem [shape: f32[128,193], index: 3, kind: input, shape index: {}]
  %s4 = inlined_call_operand.vmem [shape: f32[128,128], index: 4, kind: input, shape index: {}]
  %s5 = inlined_call_operand.vmem [shape: f32[1,128], index: 5, kind: input, shape index: {}]
  %s6 = inlined_call_operand.hbm [shape: f32[2048,128], index: 6, kind: input, shape index: {}]
  %s7 = inlined_call_operand.hbm [shape: f32[16,128], index: 7, kind: output, shape index: {}]
  %s8 = sld [smem:[#allocation0]]
  $region65: #{tpu_custom_call.1} parent=0
    _
  %s10 = ssub.s32 1, %s8
  %s11 = scalar_select 0, %s10, %s8
  $region1: #{tpu_custom_call.1} parent=0
    #allocation2 [shape = 'u8[1048576]{0}', space=vmem, size = 0x100000, scoped, tag = 'input window, operand 6, single buffered']
    #allocation3 [shape = 's32[2]{0}', space=sflag, size = 0x8, scoped, tag = 'scoped memory for tpu_custom_call.1']
    #allocation4 [shape = 's32[2]{0}', space=sflag, size = 0x8, scoped, tag = 'scoped memory for tpu_custom_call.1']
    #allocation5 [shape = 'u8[8192]{0}', space=vmem, size = 0x2000, scoped, tag = 'output window, operand 0']
    %12 = vsyncpa [#allocation3], 0
    %13 = vsyncpa [#allocation4], 0
    %s14 = scalar_lea.sflag [#allocation4], 1
    %15 = vsyncpa %s14, 0
    loop: start=0, step=1, limit=4
    $region2: #{tpu_custom_call.1} parent=1 // loop_pre_header
      _
    $region3: #{tpu_custom_call.1} parent=1 // loop_header
      %s17 = sphi 0, %s21
      %p18 = scmp.ge.s32.totalorder %s17, 4
      %s27 = sphi 0, %s29
      %s30 = sphi 0, %s27
      %s31 = sphi 0, %s30
      %s47 = sphi 0, %s31
      %s51 = sphi 0, %s51
      %s53 = sphi 0, %s51
      %s54 = sphi 0, %s53
      %s68 = sphi 0, %s54
      %s72 = sphi 0, %s72
      %s74 = sphi 0, %s72
      %s75 = sphi 0, %s74
      %s89 = sphi 0, %s75
      %s93 = sphi 0, %s93
      %s95 = sphi 0, %s93
      %s96 = sphi 0, %s95
      %s110 = sphi 0, %s96
      %s114 = sphi 0, %s114
      %s116 = sphi 0, %s114
      %s117 = sphi 0, %s116
      %s131 = sphi 0, %s117
      %s135 = sphi 0, %s135
      %s137 = sphi 0, %s135
      %s138 = sphi 0, %s137
      %s152 = sphi 0, %s138
      %s156 = sphi 0, %s156
      %s158 = sphi 0, %s156
      %s159 = sphi 0, %s158
      %s173 = sphi 0, %s159
      %s179 = sphi 0, %s181
      %s182 = sphi 0, %s179
      %s183 = sphi 0, %s182
      %s199 = sphi 0, %s183
    $region4: #{tpu_custom_call.1} parent=1 // loop_header_branch
      %20 = sbr.rel (%p18) target = $region8
    $region5: #{tpu_custom_call.1} parent=1 // loop_body
      %s22 = ssub.s32 %s17, 1
      %s23 = ssub.s32 %s17, 2
      %s24 = sadd.s32 %s17, 1
      %s25 = ssub.s32 %s17, %s24
      %p26 = scmp.eq.s32.totalorder %s25, 0
      %s28 = sadd.s32 %s27, 1
      %s29 = scalar_select %p26, %s27, %s28
      %p32 = pneg %p26
      %p33 = scmp.eq.s32.totalorder %s17, 1
      %p34 = por %p32, %p33
      %p35 = scmp.ne.s32.totalorder %s27, %s30
      %p36 = scmp.eq.s32.totalorder %s17, 0
      %p37 = por %p35, %p36
      %p38 = scmp.ne.s32.totalorder %s27, %s30
      %p39 = scmp.eq.s32.totalorder %s22, 1
      %p40 = por %p38, %p39
      %p41 = scmp.ne.s32.totalorder %s30, %s31
      %p42 = scmp.eq.s32.totalorder %s22, 0
      %p43 = por %p41, %p42
      %p44 = scmp.ne.s32.totalorder %s30, %s31
      %p45 = scmp.eq.s32.totalorder %s23, 1
      %p46 = por %p44, %p45
      %p48 = scmp.ne.s32.totalorder %s31, %s47
      %p49 = scmp.eq.s32.totalorder %s23, 0
      %p50 = por %p48, %p49
      %s52 = sadd.s32 %s51, 1
      %p55 = scmp.eq.s32.totalorder %s17, 1
      %p56 = scmp.ne.s32.totalorder %s51, %s53
      %p57 = scmp.eq.s32.totalorder %s17, 0
      %p58 = por %p56, %p57
      %p59 = scmp.ne.s32.totalorder %s51, %s53
      %p60 = scmp.eq.s32.totalorder %s22, 1
      %p61 = por %p59, %p60
      %p62 = scmp.ne.s32.totalorder %s53, %s54
      %p63 = scmp.eq.s32.totalorder %s22, 0
      %p64 = por %p62, %p63
      %p65 = scmp.ne.s32.totalorder %s53, %s54
      %p66 = scmp.eq.s32.totalorder %s23, 1
      %p67 = por %p65, %p66
      %p69 = scmp.ne.s32.totalorder %s54, %s68
      %p70 = scmp.eq.s32.totalorder %s23, 0
      %p71 = por %p69, %p70
      %s73 = sadd.s32 %s72, 1
      %p76 = scmp.eq.s32.totalorder %s17, 1
      %p77 = scmp.ne.s32.totalorder %s72, %s74
      %p78 = scmp.eq.s32.totalorder %s17, 0
      %p79 = por %p77, %p78
      %p80 = scmp.ne.s32.totalorder %s72, %s74
      %p81 = scmp.eq.s32.totalorder %s22, 1
      %p82 = por %p80, %p81
      %p83 = scmp.ne.s32.totalorder %s74, %s75
      %p84 = scmp.eq.s32.totalorder %s22, 0
      %p85 = por %p83, %p84
      %p86 = scmp.ne.s32.totalorder %s74, %s75
      %p87 = scmp.eq.s32.totalorder %s23, 1
      %p88 = por %p86, %p87
      %p90 = scmp.ne.s32.totalorder %s75, %s89
      %p91 = scmp.eq.s32.totalorder %s23, 0
      %p92 = por %p90, %p91
      %s94 = sadd.s32 %s93, 1
      %p97 = scmp.eq.s32.totalorder %s17, 1
      %p98 = scmp.ne.s32.totalorder %s93, %s95
      %p99 = scmp.eq.s32.totalorder %s17, 0
      %p100 = por %p98, %p99
      %p101 = scmp.ne.s32.totalorder %s93, %s95
      %p102 = scmp.eq.s32.totalorder %s22, 1
      %p103 = por %p101, %p102
      %p104 = scmp.ne.s32.totalorder %s95, %s96
      %p105 = scmp.eq.s32.totalorder %s22, 0
      %p106 = por %p104, %p105
      %p107 = scmp.ne.s32.totalorder %s95, %s96
      %p108 = scmp.eq.s32.totalorder %s23, 1
      %p109 = por %p107, %p108
      %p111 = scmp.ne.s32.totalorder %s96, %s110
      %p112 = scmp.eq.s32.totalorder %s23, 0
      %p113 = por %p111, %p112
      %s115 = sadd.s32 %s114, 1
      %p118 = scmp.eq.s32.totalorder %s17, 1
      %p119 = scmp.ne.s32.totalorder %s114, %s116
      %p120 = scmp.eq.s32.totalorder %s17, 0
      %p121 = por %p119, %p120
      %p122 = scmp.ne.s32.totalorder %s114, %s116
      %p123 = scmp.eq.s32.totalorder %s22, 1
      %p124 = por %p122, %p123
      %p125 = scmp.ne.s32.totalorder %s116, %s117
      %p126 = scmp.eq.s32.totalorder %s22, 0
      %p127 = por %p125, %p126
      %p128 = scmp.ne.s32.totalorder %s116, %s117
      %p129 = scmp.eq.s32.totalorder %s23, 1
      %p130 = por %p128, %p129
      %p132 = scmp.ne.s32.totalorder %s117, %s131
      %p133 = scmp.eq.s32.totalorder %s23, 0
      %p134 = por %p132, %p133
      %s136 = sadd.s32 %s135, 1
      %p139 = scmp.eq.s32.totalorder %s17, 1
      %p140 = scmp.ne.s32.totalorder %s135, %s137
      %p141 = scmp.eq.s32.totalorder %s17, 0
      %p142 = por %p140, %p141
      %p143 = scmp.ne.s32.totalorder %s135, %s137
      %p144 = scmp.eq.s32.totalorder %s22, 1
      %p145 = por %p143, %p144
      %p146 = scmp.ne.s32.totalorder %s137, %s138
      %p147 = scmp.eq.s32.totalorder %s22, 0
      %p148 = por %p146, %p147
      %p149 = scmp.ne.s32.totalorder %s137, %s138
      %p150 = scmp.eq.s32.totalorder %s23, 1
      %p151 = por %p149, %p150
      %p153 = scmp.ne.s32.totalorder %s138, %s152
      %p154 = scmp.eq.s32.totalorder %s23, 0
      %p155 = por %p153, %p154
      %s157 = sadd.s32 %s156, 1
      %p160 = scmp.eq.s32.totalorder %s17, 1
      %p161 = scmp.ne.s32.totalorder %s156, %s158
      %p162 = scmp.eq.s32.totalorder %s17, 0
      %p163 = por %p161, %p162
      %p164 = scmp.ne.s32.totalorder %s156, %s158
      %p165 = scmp.eq.s32.totalorder %s22, 1
      %p166 = por %p164, %p165
      %p167 = scmp.ne.s32.totalorder %s158, %s159
      %p168 = scmp.eq.s32.totalorder %s22, 0
      %p169 = por %p167, %p168
      %p170 = scmp.ne.s32.totalorder %s158, %s159
      %p171 = scmp.eq.s32.totalorder %s23, 1
      %p172 = por %p170, %p171
      %p174 = scmp.ne.s32.totalorder %s159, %s173
      %p175 = scmp.eq.s32.totalorder %s23, 0
      %p176 = por %p174, %p175
      %s177 = ssub.s32 %s17, %s24
      %p178 = scmp.eq.s32.totalorder %s177, 0
      %s180 = sadd.s32 %s179, 1
      %s181 = scalar_select %p178, %s179, %s180
      %p184 = pneg %p178
      %p185 = scmp.eq.s32.totalorder %s17, 1
      %p186 = por %p184, %p185
      %p187 = scmp.ne.s32.totalorder %s179, %s182
      %p188 = scmp.eq.s32.totalorder %s17, 0
      %p189 = por %p187, %p188
      %p190 = scmp.ne.s32.totalorder %s179, %s182
      %p191 = scmp.eq.s32.totalorder %s22, 1
      %p192 = por %p190, %p191
      %p193 = scmp.ne.s32.totalorder %s182, %s183
      %p194 = scmp.eq.s32.totalorder %s22, 0
      %p195 = por %p193, %p194
      %p196 = scmp.ne.s32.totalorder %s182, %s183
      %p197 = scmp.eq.s32.totalorder %s23, 1
      %p198 = por %p196, %p197
      %p200 = scmp.ne.s32.totalorder %s183, %s199
      %p201 = scmp.eq.s32.totalorder %s23, 0
      %p202 = por %p200, %p201
      %p203 = scmp.le.s32.totalorder 1, %s17
      %p204 = scmp.lt.s32.totalorder %s17, 3
      %p205 = pnand %p203, %p204
      %p206 = pneg %p205
      // Predicated region
      $region9: #{tpu_custom_call.1} parent=5 // pred_check
        _
      $region10: #{tpu_custom_call.1} parent=5 // pred_check_branch
        %208 = sbr.rel (%p205) target = $region12
      $region11: #{tpu_custom_call.1} parent=5 // pred_region
        %s209 = ssub.s32 %s17, 1
        // Predicated region
        $region13: #{tpu_custom_call.1} parent=11 // pred_check
          %p210 = pneg %p64
        $region14: #{tpu_custom_call.1} parent=11 // pred_check_branch
          %212 = sbr.rel (%p210) target = $region16
        $region15: #{tpu_custom_call.1} parent=11 // pred_region
          _
        $region16: #{tpu_custom_call.1} parent=11 // pred_fallthru
          _
        // Predicated region
        $region17: #{tpu_custom_call.1} parent=11 // pred_check
          %p213 = pneg %p85
        $region18: #{tpu_custom_call.1} parent=11 // pred_check_branch
          %215 = sbr.rel (%p213) target = $region20
        $region19: #{tpu_custom_call.1} parent=11 // pred_region
          _
        $region20: #{tpu_custom_call.1} parent=11 // pred_fallthru
          _
        // Predicated region
        $region21: #{tpu_custom_call.1} parent=11 // pred_check
          %p216 = pneg %p106
        $region22: #{tpu_custom_call.1} parent=11 // pred_check_branch
          %218 = sbr.rel (%p216) target = $region24
        $region23: #{tpu_custom_call.1} parent=11 // pred_region
          _
        $region24: #{tpu_custom_call.1} parent=11 // pred_fallthru
          _
        // Predicated region
        $region25: #{tpu_custom_call.1} parent=11 // pred_check
          %p219 = pneg %p127
        $region26: #{tpu_custom_call.1} parent=11 // pred_check_branch
          %221 = sbr.rel (%p219) target = $region28
        $region27: #{tpu_custom_call.1} parent=11 // pred_region
          _
        $region28: #{tpu_custom_call.1} parent=11 // pred_fallthru
          _
        // Predicated region
        $region29: #{tpu_custom_call.1} parent=11 // pred_check
          %p222 = pneg %p148
        $region30: #{tpu_custom_call.1} parent=11 // pred_check_branch
          %224 = sbr.rel (%p222) target = $region32
        $region31: #{tpu_custom_call.1} parent=11 // pred_region
          _
        $region32: #{tpu_custom_call.1} parent=11 // pred_fallthru
          _
        // Predicated region
        $region33: #{tpu_custom_call.1} parent=11 // pred_check
          %p225 = pneg %p169
        $region34: #{tpu_custom_call.1} parent=11 // pred_check_branch
          %227 = sbr.rel (%p225) target = $region36
        $region35: #{tpu_custom_call.1} parent=11 // pred_region
          %s229 = ssub.s32 32768, 32768
          %230 = vsyncadd [#allocation3], %s229
          %s231 = sshll.u32 [#allocation2], 4
          %s232 = int_to_ptr.vmem [resolvable:$true] %s231
          %237 = dma.hbm_to_vmem [thread:$0]  %s6, 32768, %s232, [#allocation3], 128, 128, 8
        $region36: #{tpu_custom_call.1} parent=11 // pred_fallthru
          _
      $region12: #{tpu_custom_call.1} parent=5 // pred_fallthru
        _
      %p238 = scmp.lt.s32.totalorder %s17, 2
      // Predicated region
      $region37: #{tpu_custom_call.1} parent=5 // pred_check
        %p239 = pneg %p238
      $region38: #{tpu_custom_call.1} parent=5 // pred_check_branch
        %241 = sbr.rel (%p239) target = $region40
      $region39: #{tpu_custom_call.1} parent=5 // pred_region
        // Predicated region
        $region41: #{tpu_custom_call.1} parent=39 // pred_check
          %p242 = pneg %p37
        $region42: #{tpu_custom_call.1} parent=39 // pred_check_branch
          %244 = sbr.rel (%p242) target = $region44
        $region43: #{tpu_custom_call.1} parent=39 // pred_region
          %p245 = scmp.lt.s32.totalorder %s17, 1
          %s246 = scalar_select %p245, %s17, 1
          %s247 = smul.addr %s246, 16
          %s248 = scalar_lea.vmem %s0, %s247
        $region44: #{tpu_custom_call.1} parent=39 // pred_fallthru
          _
      $region40: #{tpu_custom_call.1} parent=5 // pred_fallthru
        _
      %p249 = scmp.le.s32.totalorder 1, %s17
      %p250 = scmp.lt.s32.totalorder %s17, 3
      %p251 = pnand %p249, %p250
      %p252 = pneg %p251
      // Predicated region
      $region45: #{tpu_custom_call.1} parent=5 // pred_check
        _
      $region46: #{tpu_custom_call.1} parent=5 // pred_check_branch
        %254 = sbr.rel (%p251) target = $region48
      $region47: #{tpu_custom_call.1} parent=5 // pred_region
        %s255 = ssub.s32 %s17, 1
        // Predicated region
        $region49: #{tpu_custom_call.1} parent=47 // pred_check
          %p256 = pneg %p169
        $region50: #{tpu_custom_call.1} parent=47 // pred_check_branch
          %258 = sbr.rel (%p256) target = $region52
        $region51: #{tpu_custom_call.1} parent=47 // pred_region
          %259 = dma.done [#allocation3], 32768
        $region52: #{tpu_custom_call.1} parent=47 // pred_fallthru
          _
        %p260 = scmp.lt.s32.totalorder %s22, 1
        %s261 = scalar_select %p260, %s22, 1
        %s262 = smul.addr %s261, 16
        %s263 = scalar_lea.vmem %s0, %s262
        %p264 = pneg %p43
        %p265 = pneg %p40
        %p266 = pneg %p64
        %p267 = pneg %p61
        %p268 = pneg %p85
        %p269 = pneg %p82
        %p270 = pneg %p106
        %p271 = pneg %p103
        %p272 = pneg %p127
        %p273 = pneg %p124
        %p274 = pneg %p148
        %p275 = pneg %p145
        %p276 = pneg %p169
        %p277 = pneg %p166
        %p278 = pneg %p195
        %p279 = pneg %p192
        %s280 = sand.u32 %s182, 1
        %s281 = scalar_lea.sflag [#allocation4], %s280
        %s282 = sand.u32 %s182, 1
        %s283 = smul.addr %s282, 8
        %s284 = scalar_lea.vmem [#allocation5], %s283
        %p285 = scmp.lt.s32.totalorder %s22, 1
        %s286 = scalar_select %p285, %s22, 1
        %s287 = smul.addr %s286, 16
        %s288 = scalar_lea.vmem %s0, %s287
        %v289 = vld [vmem:[%s288] sm:$0xff]
        %v290 = vld [vmem:[%s288 + $0x8] sm:$0xff]
        %v291 = vlaneseq
        %v292 = vand.u32 %v291, 127
        %v293 = vadd.s32 %v292, 128
        %v294 = vadd.s32 %v292, 256
        %v295 = vadd.s32 %v292, 384
        %v296 = vadd.s32 %v292, 512
        %v297 = vadd.s32 %v292, 640
        %v298 = vadd.s32 %v292, 768
        %v299 = vadd.s32 %v292, 896
        %v300 = vadd.s32 %v292, 1024
        %v301 = vadd.s32 %v292, 1152
        %v302 = vadd.s32 %v292, 1280
        %v303 = vadd.s32 %v292, 1408
        %v304 = vadd.s32 %v292, 1536
        %v305 = vadd.s32 %v292, 1664
        %v306 = vadd.s32 %v292, 1792
        %v307 = vadd.s32 %v292, 1920
        %vm308 = vcmp.lt.s32.totalorder %v292, 0
        %v309 = vsub.s32 0, %v292
        %v310 = vsel %vm308, %v309, %v292
        %v311 = vshrl.u32 %v310, 8
        %v312 = vand.u32 %v310, 255
        %v313 = vsub.s32 0, %v312
        %v314 = vsel %vm308, %v313, %v312
        %vm315 = vcmp.lt.s32.totalorder %v293, 0
        %v316 = vsub.s32 0, %v293
        %v317 = vsel %vm315, %v316, %v293
        %v318 = vshrl.u32 %v317, 8
        %v319 = vand.u32 %v317, 255
        %v320 = vsub.s32 0, %v319
        %v321 = vsel %vm315, %v320, %v319
        %vm322 = vcmp.lt.s32.totalorder %v294, 0
        %v323 = vsub.s32 0, %v294
        %v324 = vsel %vm322, %v323, %v294
        %v325 = vshrl.u32 %v324, 8
        %v326 = vand.u32 %v324, 255
        %v327 = vsub.s32 0, %v326
        %v328 = vsel %vm322, %v327, %v326
        %vm329 = vcmp.lt.s32.totalorder %v295, 0
        %v330 = vsub.s32 0, %v295
        %v331 = vsel %vm329, %v330, %v295
        %v332 = vshrl.u32 %v331, 8
        %v333 = vand.u32 %v331, 255
        %v334 = vsub.s32 0, %v333
        %v335 = vsel %vm329, %v334, %v333
        %vm336 = vcmp.lt.s32.totalorder %v296, 0
        %v337 = vsub.s32 0, %v296
        %v338 = vsel %vm336, %v337, %v296
        %v339 = vshrl.u32 %v338, 8
        %v340 = vand.u32 %v338, 255
        %v341 = vsub.s32 0, %v340
        %v342 = vsel %vm336, %v341, %v340
        %vm343 = vcmp.lt.s32.totalorder %v297, 0
        %v344 = vsub.s32 0, %v297
        %v345 = vsel %vm343, %v344, %v297
        %v346 = vshrl.u32 %v345, 8
        %v347 = vand.u32 %v345, 255
        %v348 = vsub.s32 0, %v347
        %v349 = vsel %vm343, %v348, %v347
        %vm350 = vcmp.lt.s32.totalorder %v298, 0
        %v351 = vsub.s32 0, %v298
        %v352 = vsel %vm350, %v351, %v298
        %v353 = vshrl.u32 %v352, 8
        %v354 = vand.u32 %v352, 255
        %v355 = vsub.s32 0, %v354
        %v356 = vsel %vm350, %v355, %v354
        %vm357 = vcmp.lt.s32.totalorder %v299, 0
        %v358 = vsub.s32 0, %v299
        %v359 = vsel %vm357, %v358, %v299
        %v360 = vshrl.u32 %v359, 8
        %v361 = vand.u32 %v359, 255
        %v362 = vsub.s32 0, %v361
        %v363 = vsel %vm357, %v362, %v361
        %vm364 = vcmp.lt.s32.totalorder %v300, 0
        %v365 = vsub.s32 0, %v300
        %v366 = vsel %vm364, %v365, %v300
        %v367 = vshrl.u32 %v366, 8
        %v368 = vand.u32 %v366, 255
        %v369 = vsub.s32 0, %v368
        %v370 = vsel %vm364, %v369, %v368
        %vm371 = vcmp.lt.s32.totalorder %v301, 0
        %v372 = vsub.s32 0, %v301
        %v373 = vsel %vm371, %v372, %v301
        %v374 = vshrl.u32 %v373, 8
        %v375 = vand.u32 %v373, 255
        %v376 = vsub.s32 0, %v375
        %v377 = vsel %vm371, %v376, %v375
        %vm378 = vcmp.lt.s32.totalorder %v302, 0
        %v379 = vsub.s32 0, %v302
        %v380 = vsel %vm378, %v379, %v302
        %v381 = vshrl.u32 %v380, 8
        %v382 = vand.u32 %v380, 255
        %v383 = vsub.s32 0, %v382
        %v384 = vsel %vm378, %v383, %v382
        %vm385 = vcmp.lt.s32.totalorder %v303, 0
        %v386 = vsub.s32 0, %v303
        %v387 = vsel %vm385, %v386, %v303
        %v388 = vshrl.u32 %v387, 8
        %v389 = vand.u32 %v387, 255
        %v390 = vsub.s32 0, %v389
        %v391 = vsel %vm385, %v390, %v389
        %vm392 = vcmp.lt.s32.totalorder %v304, 0
        %v393 = vsub.s32 0, %v304
        %v394 = vsel %vm392, %v393, %v304
        %v395 = vshrl.u32 %v394, 8
        %v396 = vand.u32 %v394, 255
        %v397 = vsub.s32 0, %v396
        %v398 = vsel %vm392, %v397, %v396
        %vm399 = vcmp.lt.s32.totalorder %v305, 0
        %v400 = vsub.s32 0, %v305
        %v401 = vsel %vm399, %v400, %v305
        %v402 = vshrl.u32 %v401, 8
        %v403 = vand.u32 %v401, 255
        %v404 = vsub.s32 0, %v403
        %v405 = vsel %vm399, %v404, %v403
        %vm406 = vcmp.lt.s32.totalorder %v306, 0
        %v407 = vsub.s32 0, %v306
        %v408 = vsel %vm406, %v407, %v306
        %v409 = vshrl.u32 %v408, 8
        %v410 = vand.u32 %v408, 255
        %v411 = vsub.s32 0, %v410
        %v412 = vsel %vm406, %v411, %v410
        %vm413 = vcmp.lt.s32.totalorder %v307, 0
        %v414 = vsub.s32 0, %v307
        %v415 = vsel %vm413, %v414, %v307
        %v416 = vshrl.u32 %v415, 8
        %v417 = vand.u32 %v415, 255
        %v418 = vsub.s32 0, %v417
        %v419 = vsel %vm413, %v418, %v417
        %vm420 = vcmp.ne.s32.totalorder %v314, 0
        %vm421 = vcmp.ne.s32.totalorder %v321, 0
        %vm422 = vcmp.ne.s32.totalorder %v328, 0
        %vm423 = vcmp.ne.s32.totalorder %v335, 0
        %vm424 = vcmp.ne.s32.totalorder %v342, 0
        %vm425 = vcmp.ne.s32.totalorder %v349, 0
        %vm426 = vcmp.ne.s32.totalorder %v356, 0
        %vm427 = vcmp.ne.s32.totalorder %v363, 0
        %vm428 = vcmp.ne.s32.totalorder %v370, 0
        %vm429 = vcmp.ne.s32.totalorder %v377, 0
        %vm430 = vcmp.ne.s32.totalorder %v384, 0
        %vm431 = vcmp.ne.s32.totalorder %v391, 0
        %vm432 = vcmp.ne.s32.totalorder %v398, 0
        %vm433 = vcmp.ne.s32.totalorder %v405, 0
        %vm434 = vcmp.ne.s32.totalorder %v412, 0
        %vm435 = vcmp.ne.s32.totalorder %v419, 0
        %vm436 = vcmp.lt.s32.totalorder %v314, 0
        %vm437 = vcmp.lt.s32.totalorder %v321, 0
        %vm438 = vcmp.lt.s32.totalorder %v328, 0
        %vm439 = vcmp.lt.s32.totalorder %v335, 0
        %vm440 = vcmp.lt.s32.totalorder %v342, 0
        %vm441 = vcmp.lt.s32.totalorder %v349, 0
        %vm442 = vcmp.lt.s32.totalorder %v356, 0
        %vm443 = vcmp.lt.s32.totalorder %v363, 0
        %vm444 = vcmp.lt.s32.totalorder %v370, 0
        %vm445 = vcmp.lt.s32.totalorder %v377, 0
        %vm446 = vcmp.lt.s32.totalorder %v384, 0
        %vm447 = vcmp.lt.s32.totalorder %v391, 0
        %vm448 = vcmp.lt.s32.totalorder %v398, 0
        %vm449 = vcmp.lt.s32.totalorder %v405, 0
        %vm450 = vcmp.lt.s32.totalorder %v412, 0
        %vm451 = vcmp.lt.s32.totalorder %v419, 0
        %vm452 = vmand %vm436, %vm420
        %vm453 = vmand %vm437, %vm421
        %vm454 = vmand %vm438, %vm422
        %vm455 = vmand %vm439, %vm423
        %vm456 = vmand %vm440, %vm424
        %vm457 = vmand %vm441, %vm425
        %vm458 = vmand %vm442, %vm426
        %vm459 = vmand %vm443, %vm427
        %vm460 = vmand %vm444, %vm428
        %vm461 = vmand %vm445, %vm429
        %vm462 = vmand %vm446, %vm430
        %vm463 = vmand %vm447, %vm431
        %vm464 = vmand %vm448, %vm432
        %vm465 = vmand %vm449, %vm433
        %vm466 = vmand %vm450, %vm434
        %vm467 = vmand %vm451, %vm435
        %v468 = vadd.s32 %v314, 256
        %v469 = vadd.s32 %v321, 256
        %v470 = vadd.s32 %v328, 256
        %v471 = vadd.s32 %v335, 256
        %v472 = vadd.s32 %v342, 256
        %v473 = vadd.s32 %v349, 256
        %v474 = vadd.s32 %v356, 256
        %v475 = vadd.s32 %v363, 256
        %v476 = vadd.s32 %v370, 256
        %v477 = vadd.s32 %v377, 256
        %v478 = vadd.s32 %v384, 256
        %v479 = vadd.s32 %v391, 256
        %v480 = vadd.s32 %v398, 256
        %v481 = vadd.s32 %v405, 256
        %v482 = vadd.s32 %v412, 256
        %v483 = vadd.s32 %v419, 256
        %v484 = vsel %vm452, %v468, %v314
        %v485 = vsel %vm453, %v469, %v321
        %v486 = vsel %vm454, %v470, %v328
        %v487 = vsel %vm455, %v471, %v335
        %v488 = vsel %vm456, %v472, %v342
        %v489 = vsel %vm457, %v473, %v349
        %v490 = vsel %vm458, %v474, %v356
        %v491 = vsel %vm459, %v475, %v363
        %v492 = vsel %vm460, %v476, %v370
        %v493 = vsel %vm461, %v477, %v377
        %v494 = vsel %vm462, %v478, %v384
        %v495 = vsel %vm463, %v479, %v391
        %v496 = vsel %vm464, %v480, %v398
        %v497 = vsel %vm465, %v481, %v405
        %v498 = vsel %vm466, %v482, %v412
        %v499 = vsel %vm467, %v483, %v419
        %v500 = vadd.s32 %v484, 4294967293
        %v501 = vadd.s32 %v485, 4294967293
        %v502 = vadd.s32 %v486, 4294967293
        %v503 = vadd.s32 %v487, 4294967293
        %v504 = vadd.s32 %v488, 4294967293
        %v505 = vadd.s32 %v489, 4294967293
        %v506 = vadd.s32 %v490, 4294967293
        %v507 = vadd.s32 %v491, 4294967293
        %v508 = vadd.s32 %v492, 4294967293
        %v509 = vadd.s32 %v493, 4294967293
        %v510 = vadd.s32 %v494, 4294967293
        %v511 = vadd.s32 %v495, 4294967293
        %v512 = vadd.s32 %v496, 4294967293
        %v513 = vadd.s32 %v497, 4294967293
        %v514 = vadd.s32 %v498, 4294967293
        %v515 = vadd.s32 %v499, 4294967293
        %vm516 = vcmp.ge.s32.totalorder %v500, 0
        %vm517 = vcmp.ge.s32.totalorder %v501, 0
        %vm518 = vcmp.ge.s32.totalorder %v502, 0
        %vm519 = vcmp.ge.s32.totalorder %v503, 0
        %vm520 = vcmp.ge.s32.totalorder %v504, 0
        %vm521 = vcmp.ge.s32.totalorder %v505, 0
        %vm522 = vcmp.ge.s32.totalorder %v506, 0
        %vm523 = vcmp.ge.s32.totalorder %v507, 0
        %vm524 = vcmp.ge.s32.totalorder %v508, 0
        %vm525 = vcmp.ge.s32.totalorder %v509, 0
        %vm526 = vcmp.ge.s32.totalorder %v510, 0
        %vm527 = vcmp.ge.s32.totalorder %v511, 0
        %vm528 = vcmp.ge.s32.totalorder %v512, 0
        %vm529 = vcmp.ge.s32.totalorder %v513, 0
        %vm530 = vcmp.ge.s32.totalorder %v514, 0
        %vm531 = vcmp.ge.s32.totalorder %v515, 0
        %vm532 = vcmp.lt.s32.totalorder %v500, 256
        %vm533 = vcmp.lt.s32.totalorder %v501, 256
        %vm534 = vcmp.lt.s32.totalorder %v502, 256
        %vm535 = vcmp.lt.s32.totalorder %v503, 256
        %vm536 = vcmp.lt.s32.totalorder %v504, 256
        %vm537 = vcmp.lt.s32.totalorder %v505, 256
        %vm538 = vcmp.lt.s32.totalorder %v506, 256
        %vm539 = vcmp.lt.s32.totalorder %v507, 256
        %vm540 = vcmp.lt.s32.totalorder %v508, 256
        %vm541 = vcmp.lt.s32.totalorder %v509, 256
        %vm542 = vcmp.lt.s32.totalorder %v510, 256
        %vm543 = vcmp.lt.s32.totalorder %v511, 256
        %vm544 = vcmp.lt.s32.totalorder %v512, 256
        %vm545 = vcmp.lt.s32.totalorder %v513, 256
        %vm546 = vcmp.lt.s32.totalorder %v514, 256
        %vm547 = vcmp.lt.s32.totalorder %v515, 256
        %vm548 = vmand %vm516, %vm532
        %vm549 = vmand %vm517, %vm533
        %vm550 = vmand %vm518, %vm534
        %vm551 = vmand %vm519, %vm535
        %vm552 = vmand %vm520, %vm536
        %vm553 = vmand %vm521, %vm537
        %vm554 = vmand %vm522, %vm538
        %vm555 = vmand %vm523, %vm539
        %vm556 = vmand %vm524, %vm540
        %vm557 = vmand %vm525, %vm541
        %vm558 = vmand %vm526, %vm542
        %vm559 = vmand %vm527, %vm543
        %vm560 = vmand %vm528, %vm544
        %vm561 = vmand %vm529, %vm545
        %vm562 = vmand %vm530, %vm546
        %vm563 = vmand %vm531, %vm547
        %v564 = vsel %vm548, 1, 0
        %v565 = vsel %vm549, 1, 0
        %v566 = vsel %vm550, 1, 0
        %v567 = vsel %vm551, 1, 0
        %v568 = vsel %vm552, 1, 0
        %v569 = vsel %vm553, 1, 0
        %v570 = vsel %vm554, 1, 0
        %v571 = vsel %vm555, 1, 0
        %v572 = vsel %vm556, 1, 0
        %v573 = vsel %vm557, 1, 0
        %v574 = vsel %vm558, 1, 0
        %v575 = vsel %vm559, 1, 0
        %v576 = vsel %vm560, 1, 0
        %v577 = vsel %vm561, 1, 0
        %v578 = vsel %vm562, 1, 0
        %v579 = vsel %vm563, 1, 0
        %v580 = vcvt.s32.f32 %v564
        %v581 = vcvt.s32.f32 %v565
        %v582 = vcvt.s32.f32 %v566
        %v583 = vcvt.s32.f32 %v567
        %v584 = vcvt.s32.f32 %v568
        %v585 = vcvt.s32.f32 %v569
        %v586 = vcvt.s32.f32 %v570
        %v587 = vcvt.s32.f32 %v571
        %v588 = vcvt.s32.f32 %v572
        %v589 = vcvt.s32.f32 %v573
        %v590 = vcvt.s32.f32 %v574
        %v591 = vcvt.s32.f32 %v575
        %v592 = vcvt.s32.f32 %v576
        %v593 = vcvt.s32.f32 %v577
        %v594 = vcvt.s32.f32 %v578
        %v595 = vcvt.s32.f32 %v579
        %v596 = vadd.s32 %v484, 4294967294
        %v597 = vadd.s32 %v485, 4294967294
        %v598 = vadd.s32 %v486, 4294967294
        %v599 = vadd.s32 %v487, 4294967294
        %v600 = vadd.s32 %v488, 4294967294
        %v601 = vadd.s32 %v489, 4294967294
        %v602 = vadd.s32 %v490, 4294967294
        %v603 = vadd.s32 %v491, 4294967294
        %v604 = vadd.s32 %v492, 4294967294
        %v605 = vadd.s32 %v493, 4294967294
        %v606 = vadd.s32 %v494, 4294967294
        %v607 = vadd.s32 %v495, 4294967294
        %v608 = vadd.s32 %v496, 4294967294
        %v609 = vadd.s32 %v497, 4294967294
        %v610 = vadd.s32 %v498, 4294967294
        %v611 = vadd.s32 %v499, 4294967294
        %vm612 = vcmp.ge.s32.totalorder %v596, 0
        %vm613 = vcmp.ge.s32.totalorder %v597, 0
        %vm614 = vcmp.ge.s32.totalorder %v598, 0
        %vm615 = vcmp.ge.s32.totalorder %v599, 0
        %vm616 = vcmp.ge.s32.totalorder %v600, 0
        %vm617 = vcmp.ge.s32.totalorder %v601, 0
        %vm618 = vcmp.ge.s32.totalorder %v602, 0
        %vm619 = vcmp.ge.s32.totalorder %v603, 0
        %vm620 = vcmp.ge.s32.totalorder %v604, 0
        %vm621 = vcmp.ge.s32.totalorder %v605, 0
        %vm622 = vcmp.ge.s32.totalorder %v606, 0
        %vm623 = vcmp.ge.s32.totalorder %v607, 0
        %vm624 = vcmp.ge.s32.totalorder %v608, 0
        %vm625 = vcmp.ge.s32.totalorder %v609, 0
        %vm626 = vcmp.ge.s32.totalorder %v610, 0
        %vm627 = vcmp.ge.s32.totalorder %v611, 0
        %vm628 = vcmp.lt.s32.totalorder %v596, 256
        %vm629 = vcmp.lt.s32.totalorder %v597, 256
        %vm630 = vcmp.lt.s32.totalorder %v598, 256
        %vm631 = vcmp.lt.s32.totalorder %v599, 256
        %vm632 = vcmp.lt.s32.totalorder %v600, 256
        %vm633 = vcmp.lt.s32.totalorder %v601, 256
        %vm634 = vcmp.lt.s32.totalorder %v602, 256
        %vm635 = vcmp.lt.s32.totalorder %v603, 256
        %vm636 = vcmp.lt.s32.totalorder %v604, 256
        %vm637 = vcmp.lt.s32.totalorder %v605, 256
        %vm638 = vcmp.lt.s32.totalorder %v606, 256
        %vm639 = vcmp.lt.s32.totalorder %v607, 256
        %vm640 = vcmp.lt.s32.totalorder %v608, 256
        %vm641 = vcmp.lt.s32.totalorder %v609, 256
        %vm642 = vcmp.lt.s32.totalorder %v610, 256
        %vm643 = vcmp.lt.s32.totalorder %v611, 256
        %vm644 = vmand %vm612, %vm628
        %vm645 = vmand %vm613, %vm629
        %vm646 = vmand %vm614, %vm630
        %vm647 = vmand %vm615, %vm631
        %vm648 = vmand %vm616, %vm632
        %vm649 = vmand %vm617, %vm633
        %vm650 = vmand %vm618, %vm634
        %vm651 = vmand %vm619, %vm635
        %vm652 = vmand %vm620, %vm636
        %vm653 = vmand %vm621, %vm637
        %vm654 = vmand %vm622, %vm638
        %vm655 = vmand %vm623, %vm639
        %vm656 = vmand %vm624, %vm640
        %vm657 = vmand %vm625, %vm641
        %vm658 = vmand %vm626, %vm642
        %vm659 = vmand %vm627, %vm643
        %v660 = vsel %vm644, 1, 0
        %v661 = vsel %vm645, 1, 0
        %v662 = vsel %vm646, 1, 0
        %v663 = vsel %vm647, 1, 0
        %v664 = vsel %vm648, 1, 0
        %v665 = vsel %vm649, 1, 0
        %v666 = vsel %vm650, 1, 0
        %v667 = vsel %vm651, 1, 0
        %v668 = vsel %vm652, 1, 0
        %v669 = vsel %vm653, 1, 0
        %v670 = vsel %vm654, 1, 0
        %v671 = vsel %vm655, 1, 0
        %v672 = vsel %vm656, 1, 0
        %v673 = vsel %vm657, 1, 0
        %v674 = vsel %vm658, 1, 0
        %v675 = vsel %vm659, 1, 0
        %v676 = vcvt.s32.f32 %v660
        %v677 = vcvt.s32.f32 %v661
        %v678 = vcvt.s32.f32 %v662
        %v679 = vcvt.s32.f32 %v663
        %v680 = vcvt.s32.f32 %v664
        %v681 = vcvt.s32.f32 %v665
        %v682 = vcvt.s32.f32 %v666
        %v683 = vcvt.s32.f32 %v667
        %v684 = vcvt.s32.f32 %v668
        %v685 = vcvt.s32.f32 %v669
        %v686 = vcvt.s32.f32 %v670
        %v687 = vcvt.s32.f32 %v671
        %v688 = vcvt.s32.f32 %v672
        %v689 = vcvt.s32.f32 %v673
        %v690 = vcvt.s32.f32 %v674
        %v691 = vcvt.s32.f32 %v675
        %v692 = vadd.s32 %v484, 4294967295
        %v693 = vadd.s32 %v485, 4294967295
        %v694 = vadd.s32 %v486, 4294967295
        %v695 = vadd.s32 %v487, 4294967295
        %v696 = vadd.s32 %v488, 4294967295
        %v697 = vadd.s32 %v489, 4294967295
        %v698 = vadd.s32 %v490, 4294967295
        %v699 = vadd.s32 %v491, 4294967295
        %v700 = vadd.s32 %v492, 4294967295
        %v701 = vadd.s32 %v493, 4294967295
        %v702 = vadd.s32 %v494, 4294967295
        %v703 = vadd.s32 %v495, 4294967295
        %v704 = vadd.s32 %v496, 4294967295
        %v705 = vadd.s32 %v497, 4294967295
        %v706 = vadd.s32 %v498, 4294967295
        %v707 = vadd.s32 %v499, 4294967295
        %vm708 = vcmp.ge.s32.totalorder %v692, 0
        %vm709 = vcmp.ge.s32.totalorder %v693, 0
        %vm710 = vcmp.ge.s32.totalorder %v694, 0
        %vm711 = vcmp.ge.s32.totalorder %v695, 0
        %vm712 = vcmp.ge.s32.totalorder %v696, 0
        %vm713 = vcmp.ge.s32.totalorder %v697, 0
        %vm714 = vcmp.ge.s32.totalorder %v698, 0
        %vm715 = vcmp.ge.s32.totalorder %v699, 0
        %vm716 = vcmp.ge.s32.totalorder %v700, 0
        %vm717 = vcmp.ge.s32.totalorder %v701, 0
        %vm718 = vcmp.ge.s32.totalorder %v702, 0
        %vm719 = vcmp.ge.s32.totalorder %v703, 0
        %vm720 = vcmp.ge.s32.totalorder %v704, 0
        %vm721 = vcmp.ge.s32.totalorder %v705, 0
        %vm722 = vcmp.ge.s32.totalorder %v706, 0
        %vm723 = vcmp.ge.s32.totalorder %v707, 0
        %vm724 = vcmp.lt.s32.totalorder %v692, 256
        %vm725 = vcmp.lt.s32.totalorder %v693, 256
        %vm726 = vcmp.lt.s32.totalorder %v694, 256
        %vm727 = vcmp.lt.s32.totalorder %v695, 256
        %vm728 = vcmp.lt.s32.totalorder %v696, 256
        %vm729 = vcmp.lt.s32.totalorder %v697, 256
        %vm730 = vcmp.lt.s32.totalorder %v698, 256
        %vm731 = vcmp.lt.s32.totalorder %v699, 256
        %vm732 = vcmp.lt.s32.totalorder %v700, 256
        %vm733 = vcmp.lt.s32.totalorder %v701, 256
        %vm734 = vcmp.lt.s32.totalorder %v702, 256
        %vm735 = vcmp.lt.s32.totalorder %v703, 256
        %vm736 = vcmp.lt.s32.totalorder %v704, 256
        %vm737 = vcmp.lt.s32.totalorder %v705, 256
        %vm738 = vcmp.lt.s32.totalorder %v706, 256
        %vm739 = vcmp.lt.s32.totalorder %v707, 256
        %vm740 = vmand %vm708, %vm724
        %vm741 = vmand %vm709, %vm725
        %vm742 = vmand %vm710, %vm726
        %vm743 = vmand %vm711, %vm727
        %vm744 = vmand %vm712, %vm728
        %vm745 = vmand %vm713, %vm729
        %vm746 = vmand %vm714, %vm730
        %vm747 = vmand %vm715, %vm731
        %vm748 = vmand %vm716, %vm732
        %vm749 = vmand %vm717, %vm733
        %vm750 = vmand %vm718, %vm734
        %vm751 = vmand %vm719, %vm735
        %vm752 = vmand %vm720, %vm736
        %vm753 = vmand %vm721, %vm737
        %vm754 = vmand %vm722, %vm738
        %vm755 = vmand %vm723, %vm739
        %v756 = vsel %vm740, 1, 0
        %v757 = vsel %vm741, 1, 0
        %v758 = vsel %vm742, 1, 0
        %v759 = vsel %vm743, 1, 0
        %v760 = vsel %vm744, 1, 0
        %v761 = vsel %vm745, 1, 0
        %v762 = vsel %vm746, 1, 0
        %v763 = vsel %vm747, 1, 0
        %v764 = vsel %vm748, 1, 0
        %v765 = vsel %vm749, 1, 0
        %v766 = vsel %vm750, 1, 0
        %v767 = vsel %vm751, 1, 0
        %v768 = vsel %vm752, 1, 0
        %v769 = vsel %vm753, 1, 0
        %v770 = vsel %vm754, 1, 0
        %v771 = vsel %vm755, 1, 0
        %v772 = vcvt.s32.f32 %v756
        %v773 = vcvt.s32.f32 %v757
        %v774 = vcvt.s32.f32 %v758
        %v775 = vcvt.s32.f32 %v759
        %v776 = vcvt.s32.f32 %v760
        %v777 = vcvt.s32.f32 %v761
        %v778 = vcvt.s32.f32 %v762
        %v779 = vcvt.s32.f32 %v763
        %v780 = vcvt.s32.f32 %v764
        %v781 = vcvt.s32.f32 %v765
        %v782 = vcvt.s32.f32 %v766
        %v783 = vcvt.s32.f32 %v767
        %v784 = vcvt.s32.f32 %v768
        %v785 = vcvt.s32.f32 %v769
        %v786 = vcvt.s32.f32 %v770
        %v787 = vcvt.s32.f32 %v771
        %v788 = vadd.s32 %v484, 1
        %v789 = vadd.s32 %v485, 1
        %v790 = vadd.s32 %v486, 1
        %v791 = vadd.s32 %v487, 1
        %v792 = vadd.s32 %v488, 1
        %v793 = vadd.s32 %v489, 1
        %v794 = vadd.s32 %v490, 1
        %v795 = vadd.s32 %v491, 1
        %v796 = vadd.s32 %v492, 1
        %v797 = vadd.s32 %v493, 1
        %v798 = vadd.s32 %v494, 1
        %v799 = vadd.s32 %v495, 1
        %v800 = vadd.s32 %v496, 1
        %v801 = vadd.s32 %v497, 1
        %v802 = vadd.s32 %v498, 1
        %v803 = vadd.s32 %v499, 1
        %vm804 = vcmp.ge.s32.totalorder %v788, 0
        %vm805 = vcmp.ge.s32.totalorder %v789, 0
        %vm806 = vcmp.ge.s32.totalorder %v790, 0
        %vm807 = vcmp.ge.s32.totalorder %v791, 0
        %vm808 = vcmp.ge.s32.totalorder %v792, 0
        %vm809 = vcmp.ge.s32.totalorder %v793, 0
        %vm810 = vcmp.ge.s32.totalorder %v794, 0
        %vm811 = vcmp.ge.s32.totalorder %v795, 0
        %vm812 = vcmp.ge.s32.totalorder %v796, 0
        %vm813 = vcmp.ge.s32.totalorder %v797, 0
        %vm814 = vcmp.ge.s32.totalorder %v798, 0
        %vm815 = vcmp.ge.s32.totalorder %v799, 0
        %vm816 = vcmp.ge.s32.totalorder %v800, 0
        %vm817 = vcmp.ge.s32.totalorder %v801, 0
        %vm818 = vcmp.ge.s32.totalorder %v802, 0
        %vm819 = vcmp.ge.s32.totalorder %v803, 0
        %vm820 = vcmp.lt.s32.totalorder %v788, 256
        %vm821 = vcmp.lt.s32.totalorder %v789, 256
        %vm822 = vcmp.lt.s32.totalorder %v790, 256
        %vm823 = vcmp.lt.s32.totalorder %v791, 256
        %vm824 = vcmp.lt.s32.totalorder %v792, 256
        %vm825 = vcmp.lt.s32.totalorder %v793, 256
        %vm826 = vcmp.lt.s32.totalorder %v794, 256
        %vm827 = vcmp.lt.s32.totalorder %v795, 256
        %vm828 = vcmp.lt.s32.totalorder %v796, 256
        %vm829 = vcmp.lt.s32.totalorder %v797, 256
        %vm830 = vcmp.lt.s32.totalorder %v798, 256
        %vm831 = vcmp.lt.s32.totalorder %v799, 256
        %vm832 = vcmp.lt.s32.totalorder %v800, 256
        %vm833 = vcmp.lt.s32.totalorder %v801, 256
        %vm834 = vcmp.lt.s32.totalorder %v802, 256
        %vm835 = vcmp.lt.s32.totalorder %v803, 256
        %vm836 = vmand %vm804, %vm820
        %vm837 = vmand %vm805, %vm821
        %vm838 = vmand %vm806, %vm822
        %vm839 = vmand %vm807, %vm823
        %vm840 = vmand %vm808, %vm824
        %vm841 = vmand %vm809, %vm825
        %vm842 = vmand %vm810, %vm826
        %vm843 = vmand %vm811, %vm827
        %vm844 = vmand %vm812, %vm828
        %vm845 = vmand %vm813, %vm829
        %vm846 = vmand %vm814, %vm830
        %vm847 = vmand %vm815, %vm831
        %vm848 = vmand %vm816, %vm832
        %vm849 = vmand %vm817, %vm833
        %vm850 = vmand %vm818, %vm834
        %vm851 = vmand %vm819, %vm835
        %v852 = vsel %vm836, 1, 0
        %v853 = vsel %vm837, 1, 0
        %v854 = vsel %vm838, 1, 0
        %v855 = vsel %vm839, 1, 0
        %v856 = vsel %vm840, 1, 0
        %v857 = vsel %vm841, 1, 0
        %v858 = vsel %vm842, 1, 0
        %v859 = vsel %vm843, 1, 0
        %v860 = vsel %vm844, 1, 0
        %v861 = vsel %vm845, 1, 0
        %v862 = vsel %vm846, 1, 0
        %v863 = vsel %vm847, 1, 0
        %v864 = vsel %vm848, 1, 0
        %v865 = vsel %vm849, 1, 0
        %v866 = vsel %vm850, 1, 0
        %v867 = vsel %vm851, 1, 0
        %v868 = vcvt.s32.f32 %v852
        %v869 = vcvt.s32.f32 %v853
        %v870 = vcvt.s32.f32 %v854
        %v871 = vcvt.s32.f32 %v855
        %v872 = vcvt.s32.f32 %v856
        %v873 = vcvt.s32.f32 %v857
        %v874 = vcvt.s32.f32 %v858
        %v875 = vcvt.s32.f32 %v859
        %v876 = vcvt.s32.f32 %v860
        %v877 = vcvt.s32.f32 %v861
        %v878 = vcvt.s32.f32 %v862
        %v879 = vcvt.s32.f32 %v863
        %v880 = vcvt.s32.f32 %v864
        %v881 = vcvt.s32.f32 %v865
        %v882 = vcvt.s32.f32 %v866
        %v883 = vcvt.s32.f32 %v867
        %v884 = vadd.s32 %v484, 2
        %v885 = vadd.s32 %v485, 2
        %v886 = vadd.s32 %v486, 2
        %v887 = vadd.s32 %v487, 2
        %v888 = vadd.s32 %v488, 2
        %v889 = vadd.s32 %v489, 2
        %v890 = vadd.s32 %v490, 2
        %v891 = vadd.s32 %v491, 2
        %v892 = vadd.s32 %v492, 2
        %v893 = vadd.s32 %v493, 2
        %v894 = vadd.s32 %v494, 2
        %v895 = vadd.s32 %v495, 2
        %v896 = vadd.s32 %v496, 2
        %v897 = vadd.s32 %v497, 2
        %v898 = vadd.s32 %v498, 2
        %v899 = vadd.s32 %v499, 2
        %vm900 = vcmp.ge.s32.totalorder %v884, 0
        %vm901 = vcmp.ge.s32.totalorder %v885, 0
        %vm902 = vcmp.ge.s32.totalorder %v886, 0
        %vm903 = vcmp.ge.s32.totalorder %v887, 0
        %vm904 = vcmp.ge.s32.totalorder %v888, 0
        %vm905 = vcmp.ge.s32.totalorder %v889, 0
        %vm906 = vcmp.ge.s32.totalorder %v890, 0
        %vm907 = vcmp.ge.s32.totalorder %v891, 0
        %vm908 = vcmp.ge.s32.totalorder %v892, 0
        %vm909 = vcmp.ge.s32.totalorder %v893, 0
        %vm910 = vcmp.ge.s32.totalorder %v894, 0
        %vm911 = vcmp.ge.s32.totalorder %v895, 0
        %vm912 = vcmp.ge.s32.totalorder %v896, 0
        %vm913 = vcmp.ge.s32.totalorder %v897, 0
        %vm914 = vcmp.ge.s32.totalorder %v898, 0
        %vm915 = vcmp.ge.s32.totalorder %v899, 0
        %vm916 = vcmp.lt.s32.totalorder %v884, 256
        %vm917 = vcmp.lt.s32.totalorder %v885, 256
        %vm918 = vcmp.lt.s32.totalorder %v886, 256
        %vm919 = vcmp.lt.s32.totalorder %v887, 256
        %vm920 = vcmp.lt.s32.totalorder %v888, 256
        %vm921 = vcmp.lt.s32.totalorder %v889, 256
        %vm922 = vcmp.lt.s32.totalorder %v890, 256
        %vm923 = vcmp.lt.s32.totalorder %v891, 256
        %vm924 = vcmp.lt.s32.totalorder %v892, 256
        %vm925 = vcmp.lt.s32.totalorder %v893, 256
        %vm926 = vcmp.lt.s32.totalorder %v894, 256
        %vm927 = vcmp.lt.s32.totalorder %v895, 256
        %vm928 = vcmp.lt.s32.totalorder %v896, 256
        %vm929 = vcmp.lt.s32.totalorder %v897, 256
        %vm930 = vcmp.lt.s32.totalorder %v898, 256
        %vm931 = vcmp.lt.s32.totalorder %v899, 256
        %vm932 = vmand %vm900, %vm916
        %vm933 = vmand %vm901, %vm917
        %vm934 = vmand %vm902, %vm918
        %vm935 = vmand %vm903, %vm919
        %vm936 = vmand %vm904, %vm920
        %vm937 = vmand %vm905, %vm921
        %vm938 = vmand %vm906, %vm922
        %vm939 = vmand %vm907, %vm923
        %vm940 = vmand %vm908, %vm924
        %vm941 = vmand %vm909, %vm925
        %vm942 = vmand %vm910, %vm926
        %vm943 = vmand %vm911, %vm927
        %vm944 = vmand %vm912, %vm928
        %vm945 = vmand %vm913, %vm929
        %vm946 = vmand %vm914, %vm930
        %vm947 = vmand %vm915, %vm931
        %v948 = vsel %vm932, 1, 0
        %v949 = vsel %vm933, 1, 0
        %v950 = vsel %vm934, 1, 0
        %v951 = vsel %vm935, 1, 0
        %v952 = vsel %vm936, 1, 0
        %v953 = vsel %vm937, 1, 0
        %v954 = vsel %vm938, 1, 0
        %v955 = vsel %vm939, 1, 0
        %v956 = vsel %vm940, 1, 0
        %v957 = vsel %vm941, 1, 0
        %v958 = vsel %vm942, 1, 0
        %v959 = vsel %vm943, 1, 0
        %v960 = vsel %vm944, 1, 0
        %v961 = vsel %vm945, 1, 0
        %v962 = vsel %vm946, 1, 0
        %v963 = vsel %vm947, 1, 0
        %v964 = vcvt.s32.f32 %v948
        %v965 = vcvt.s32.f32 %v949
        %v966 = vcvt.s32.f32 %v950
        %v967 = vcvt.s32.f32 %v951
        %v968 = vcvt.s32.f32 %v952
        %v969 = vcvt.s32.f32 %v953
        %v970 = vcvt.s32.f32 %v954
        %v971 = vcvt.s32.f32 %v955
        %v972 = vcvt.s32.f32 %v956
        %v973 = vcvt.s32.f32 %v957
        %v974 = vcvt.s32.f32 %v958
        %v975 = vcvt.s32.f32 %v959
        %v976 = vcvt.s32.f32 %v960
        %v977 = vcvt.s32.f32 %v961
        %v978 = vcvt.s32.f32 %v962
        %v979 = vcvt.s32.f32 %v963
        %v980 = vadd.s32 %v484, 3
        %v981 = vadd.s32 %v485, 3
        %v982 = vadd.s32 %v486, 3
        %v983 = vadd.s32 %v487, 3
        %v984 = vadd.s32 %v488, 3
        %v985 = vadd.s32 %v489, 3
        %v986 = vadd.s32 %v490, 3
        %v987 = vadd.s32 %v491, 3
        %v988 = vadd.s32 %v492, 3
        %v989 = vadd.s32 %v493, 3
        %v990 = vadd.s32 %v494, 3
        %v991 = vadd.s32 %v495, 3
        %v992 = vadd.s32 %v496, 3
        %v993 = vadd.s32 %v497, 3
        %v994 = vadd.s32 %v498, 3
        %v995 = vadd.s32 %v499, 3
        %vm996 = vcmp.ge.s32.totalorder %v980, 0
        %vm997 = vcmp.ge.s32.totalorder %v981, 0
        %vm998 = vcmp.ge.s32.totalorder %v982, 0
        %vm999 = vcmp.ge.s32.totalorder %v983, 0
        %vm1000 = vcmp.ge.s32.totalorder %v984, 0
        %vm1001 = vcmp.ge.s32.totalorder %v985, 0
        %vm1002 = vcmp.ge.s32.totalorder %v986, 0
        %vm1003 = vcmp.ge.s32.totalorder %v987, 0
        %vm1004 = vcmp.ge.s32.totalorder %v988, 0
        %vm1005 = vcmp.ge.s32.totalorder %v989, 0
        %vm1006 = vcmp.ge.s32.totalorder %v990, 0
        %vm1007 = vcmp.ge.s32.totalorder %v991, 0
        %vm1008 = vcmp.ge.s32.totalorder %v992, 0
        %vm1009 = vcmp.ge.s32.totalorder %v993, 0
        %vm1010 = vcmp.ge.s32.totalorder %v994, 0
        %vm1011 = vcmp.ge.s32.totalorder %v995, 0
        %vm1012 = vcmp.lt.s32.totalorder %v980, 256
        %vm1013 = vcmp.lt.s32.totalorder %v981, 256
        %vm1014 = vcmp.lt.s32.totalorder %v982, 256
        %vm1015 = vcmp.lt.s32.totalorder %v983, 256
        %vm1016 = vcmp.lt.s32.totalorder %v984, 256
        %vm1017 = vcmp.lt.s32.totalorder %v985, 256
        %vm1018 = vcmp.lt.s32.totalorder %v986, 256
        %vm1019 = vcmp.lt.s32.totalorder %v987, 256
        %vm1020 = vcmp.lt.s32.totalorder %v988, 256
        %vm1021 = vcmp.lt.s32.totalorder %v989, 256
        %vm1022 = vcmp.lt.s32.totalorder %v990, 256
        %vm1023 = vcmp.lt.s32.totalorder %v991, 256
        %vm1024 = vcmp.lt.s32.totalorder %v992, 256
        %vm1025 = vcmp.lt.s32.totalorder %v993, 256
        %vm1026 = vcmp.lt.s32.totalorder %v994, 256
        %vm1027 = vcmp.lt.s32.totalorder %v995, 256
        %vm1028 = vmand %vm996, %vm1012
        %vm1029 = vmand %vm997, %vm1013
        %vm1030 = vmand %vm998, %vm1014
        %vm1031 = vmand %vm999, %vm1015
        %vm1032 = vmand %vm1000, %vm1016
        %vm1033 = vmand %vm1001, %vm1017
        %vm1034 = vmand %vm1002, %vm1018
        %vm1035 = vmand %vm1003, %vm1019
        %vm1036 = vmand %vm1004, %vm1020
        %vm1037 = vmand %vm1005, %vm1021
        %vm1038 = vmand %vm1006, %vm1022
        %vm1039 = vmand %vm1007, %vm1023
        %vm1040 = vmand %vm1008, %vm1024
        %vm1041 = vmand %vm1009, %vm1025
        %vm1042 = vmand %vm1010, %vm1026
        %vm1043 = vmand %vm1011, %vm1027
        %v1044 = vsel %vm1028, 1, 0
        %v1045 = vsel %vm1029, 1, 0
        %v1046 = vsel %vm1030, 1, 0
        %v1047 = vsel %vm1031, 1, 0
        %v1048 = vsel %vm1032, 1, 0
        %v1049 = vsel %vm1033, 1, 0
        %v1050 = vsel %vm1034, 1, 0
        %v1051 = vsel %vm1035, 1, 0
        %v1052 = vsel %vm1036, 1, 0
        %v1053 = vsel %vm1037, 1, 0
        %v1054 = vsel %vm1038, 1, 0
        %v1055 = vsel %vm1039, 1, 0
        %v1056 = vsel %vm1040, 1, 0
        %v1057 = vsel %vm1041, 1, 0
        %v1058 = vsel %vm1042, 1, 0
        %v1059 = vsel %vm1043, 1, 0
        %v1060 = vcvt.s32.f32 %v1044
        %v1061 = vcvt.s32.f32 %v1045
        %v1062 = vcvt.s32.f32 %v1046
        %v1063 = vcvt.s32.f32 %v1047
        %v1064 = vcvt.s32.f32 %v1048
        %v1065 = vcvt.s32.f32 %v1049
        %v1066 = vcvt.s32.f32 %v1050
        %v1067 = vcvt.s32.f32 %v1051
        %v1068 = vcvt.s32.f32 %v1052
        %v1069 = vcvt.s32.f32 %v1053
        %v1070 = vcvt.s32.f32 %v1054
        %v1071 = vcvt.s32.f32 %v1055
        %v1072 = vcvt.s32.f32 %v1056
        %v1073 = vcvt.s32.f32 %v1057
        %v1074 = vcvt.s32.f32 %v1058
        %v1075 = vcvt.s32.f32 %v1059
        %v1078 = vlaneseq
        %v1079 = vshrl.u32 %v1078, 7
        %v1080 = vsub.s32 0, %v1079
        %v1081 = vrot.slane %v289, %v1080
        %v1082 = vlaneseq
        %v1083 = vshrl.u32 %v1082, 7
        %v1084 = vsub.s32 1, %v1083
        %v1085 = vrot.slane %v289, %v1084
        %v1086 = vlaneseq
        %v1087 = vshrl.u32 %v1086, 7
        %v1088 = vsub.s32 2, %v1087
        %v1089 = vrot.slane %v289, %v1088
        %v1090 = vlaneseq
        %v1091 = vshrl.u32 %v1090, 7
        %v1092 = vsub.s32 3, %v1091
        %v1093 = vrot.slane %v289, %v1092
        %v1094 = vlaneseq
        %v1095 = vshrl.u32 %v1094, 7
        %v1096 = vsub.s32 4, %v1095
        %v1097 = vrot.slane %v289, %v1096
        %v1098 = vlaneseq
        %v1099 = vshrl.u32 %v1098, 7
        %v1100 = vsub.s32 5, %v1099
        %v1101 = vrot.slane %v289, %v1100
        %v1102 = vlaneseq
        %v1103 = vshrl.u32 %v1102, 7
        %v1104 = vsub.s32 6, %v1103
        %v1105 = vrot.slane %v289, %v1104
        %v1106 = vlaneseq
        %v1107 = vshrl.u32 %v1106, 7
        %v1108 = vsub.s32 7, %v1107
        %v1109 = vrot.slane %v289, %v1108
        %v1110 = vlaneseq
        %v1111 = vshrl.u32 %v1110, 7
        %v1112 = vsub.s32 0, %v1111
        %v1113 = vrot.slane %v290, %v1112
        %v1114 = vlaneseq
        %v1115 = vshrl.u32 %v1114, 7
        %v1116 = vsub.s32 1, %v1115
        %v1117 = vrot.slane %v290, %v1116
        %v1118 = vlaneseq
        %v1119 = vshrl.u32 %v1118, 7
        %v1120 = vsub.s32 2, %v1119
        %v1121 = vrot.slane %v290, %v1120
        %v1122 = vlaneseq
        %v1123 = vshrl.u32 %v1122, 7
        %v1124 = vsub.s32 3, %v1123
        %v1125 = vrot.slane %v290, %v1124
        %v1126 = vlaneseq
        %v1127 = vshrl.u32 %v1126, 7
        %v1128 = vsub.s32 4, %v1127
        %v1129 = vrot.slane %v290, %v1128
        %v1130 = vlaneseq
        %v1131 = vshrl.u32 %v1130, 7
        %v1132 = vsub.s32 5, %v1131
        %v1133 = vrot.slane %v290, %v1132
        %v1134 = vlaneseq
        %v1135 = vshrl.u32 %v1134, 7
        %v1136 = vsub.s32 6, %v1135
        %v1137 = vrot.slane %v290, %v1136
        %v1138 = vlaneseq
        %v1139 = vshrl.u32 %v1138, 7
        %v1140 = vsub.s32 7, %v1139
        %v1141 = vrot.slane %v290, %v1140
        %1158 = vrot.lane.b32.xlu0 %v1081, 3
        %v1159 = vpop.permute.xlu0 %1158
        %1160 = vrot.lane.b32.xlu0 %v1085, 3
        %v1161 = vpop.permute.xlu0 %1160
        %1162 = vrot.lane.b32.xlu0 %v1089, 3
        %v1163 = vpop.permute.xlu0 %1162
        %1164 = vrot.lane.b32.xlu0 %v1093, 3
        %v1165 = vpop.permute.xlu0 %1164
        %1166 = vrot.lane.b32.xlu0 %v1097, 3
        %v1167 = vpop.permute.xlu0 %1166
        %1168 = vrot.lane.b32.xlu0 %v1101, 3
        %v1169 = vpop.permute.xlu0 %1168
        %1170 = vrot.lane.b32.xlu0 %v1105, 3
        %v1171 = vpop.permute.xlu0 %1170
        %1172 = vrot.lane.b32.xlu0 %v1109, 3
        %v1173 = vpop.permute.xlu0 %1172
        %1174 = vrot.lane.b32.xlu0 %v1113, 3
        %v1175 = vpop.permute.xlu0 %1174
        %1176 = vrot.lane.b32.xlu0 %v1117, 3
        %v1177 = vpop.permute.xlu0 %1176
        %1178 = vrot.lane.b32.xlu0 %v1121, 3
        %v1179 = vpop.permute.xlu0 %1178
        %1180 = vrot.lane.b32.xlu0 %v1125, 3
        %v1181 = vpop.permute.xlu0 %1180
        %1182 = vrot.lane.b32.xlu0 %v1129, 3
        %v1183 = vpop.permute.xlu0 %1182
        %1184 = vrot.lane.b32.xlu0 %v1133, 3
        %v1185 = vpop.permute.xlu0 %1184
        %1186 = vrot.lane.b32.xlu0 %v1137, 3
        %v1187 = vpop.permute.xlu0 %1186
        %1188 = vrot.lane.b32.xlu0 %v1141, 3
        %v1189 = vpop.permute.xlu0 %1188
        %vm1190 = vcmp.lt.s32.totalorder %v292, 3
        %v1191 = vsel %vm1190, %v1187, %v1189
        %v1192 = vsel %vm1190, %v1185, %v1187
        %v1193 = vsel %vm1190, %v1183, %v1185
        %v1194 = vsel %vm1190, %v1181, %v1183
        %v1195 = vsel %vm1190, %v1179, %v1181
        %v1196 = vsel %vm1190, %v1177, %v1179
        %v1197 = vsel %vm1190, %v1175, %v1177
        %v1198 = vsel %vm1190, %v1173, %v1175
        %v1199 = vsel %vm1190, %v1171, %v1173
        %v1200 = vsel %vm1190, %v1169, %v1171
        %v1201 = vsel %vm1190, %v1167, %v1169
        %v1202 = vsel %vm1190, %v1165, %v1167
        %v1203 = vsel %vm1190, %v1163, %v1165
        %v1204 = vsel %vm1190, %v1161, %v1163
        %v1205 = vsel %vm1190, %v1159, %v1161
        %v1206 = vsel %vm1190, %v1189, %v1159
        %v1207 = vmul.f32 %v1206, %v580
        %v1208 = vmul.f32 %v1205, %v581
        %v1209 = vmul.f32 %v1204, %v582
        %v1210 = vmul.f32 %v1203, %v583
        %v1211 = vmul.f32 %v1202, %v584
        %v1212 = vmul.f32 %v1201, %v585
        %v1213 = vmul.f32 %v1200, %v586
        %v1214 = vmul.f32 %v1199, %v587
        %v1215 = vmul.f32 %v1198, %v588
        %v1216 = vmul.f32 %v1197, %v589
        %v1217 = vmul.f32 %v1196, %v590
        %v1218 = vmul.f32 %v1195, %v591
        %v1219 = vmul.f32 %v1194, %v592
        %v1220 = vmul.f32 %v1193, %v593
        %v1221 = vmul.f32 %v1192, %v594
        %v1222 = vmul.f32 %v1191, %v595
        %1223 = vrot.lane.b32.xlu0 %v1081, 2
        %v1224 = vpop.permute.xlu0 %1223
        %1225 = vrot.lane.b32.xlu0 %v1085, 2
        %v1226 = vpop.permute.xlu0 %1225
        %1227 = vrot.lane.b32.xlu0 %v1089, 2
        %v1228 = vpop.permute.xlu0 %1227
        %1229 = vrot.lane.b32.xlu0 %v1093, 2
        %v1230 = vpop.permute.xlu0 %1229
        %1231 = vrot.lane.b32.xlu0 %v1097, 2
        %v1232 = vpop.permute.xlu0 %1231
        %1233 = vrot.lane.b32.xlu0 %v1101, 2
        %v1234 = vpop.permute.xlu0 %1233
        %1235 = vrot.lane.b32.xlu0 %v1105, 2
        %v1236 = vpop.permute.xlu0 %1235
        %1237 = vrot.lane.b32.xlu0 %v1109, 2
        %v1238 = vpop.permute.xlu0 %1237
        %1239 = vrot.lane.b32.xlu0 %v1113, 2
        %v1240 = vpop.permute.xlu0 %1239
        %1241 = vrot.lane.b32.xlu0 %v1117, 2
        %v1242 = vpop.permute.xlu0 %1241
        %1243 = vrot.lane.b32.xlu0 %v1121, 2
        %v1244 = vpop.permute.xlu0 %1243
        %1245 = vrot.lane.b32.xlu0 %v1125, 2
        %v1246 = vpop.permute.xlu0 %1245
        %1247 = vrot.lane.b32.xlu0 %v1129, 2
        %v1248 = vpop.permute.xlu0 %1247
        %1249 = vrot.lane.b32.xlu0 %v1133, 2
        %v1250 = vpop.permute.xlu0 %1249
        %1251 = vrot.lane.b32.xlu0 %v1137, 2
        %v1252 = vpop.permute.xlu0 %1251
        %1253 = vrot.lane.b32.xlu0 %v1141, 2
        %v1254 = vpop.permute.xlu0 %1253
        %vm1255 = vcmp.lt.s32.totalorder %v292, 2
        %v1256 = vsel %vm1255, %v1252, %v1254
        %v1257 = vsel %vm1255, %v1250, %v1252
        %v1258 = vsel %vm1255, %v1248, %v1250
        %v1259 = vsel %vm1255, %v1246, %v1248
        %v1260 = vsel %vm1255, %v1244, %v1246
        %v1261 = vsel %vm1255, %v1242, %v1244
        %v1262 = vsel %vm1255, %v1240, %v1242
        %v1263 = vsel %vm1255, %v1238, %v1240
        %v1264 = vsel %vm1255, %v1236, %v1238
        %v1265 = vsel %vm1255, %v1234, %v1236
        %v1266 = vsel %vm1255, %v1232, %v1234
        %v1267 = vsel %vm1255, %v1230, %v1232
        %v1268 = vsel %vm1255, %v1228, %v1230
        %v1269 = vsel %vm1255, %v1226, %v1228
        %v1270 = vsel %vm1255, %v1224, %v1226
        %v1271 = vsel %vm1255, %v1254, %v1224
        %v1272 = vmul.f32 %v1271, %v676
        %v1273 = vmul.f32 %v1270, %v677
        %v1274 = vmul.f32 %v1269, %v678
        %v1275 = vmul.f32 %v1268, %v679
        %v1276 = vmul.f32 %v1267, %v680
        %v1277 = vmul.f32 %v1266, %v681
        %v1278 = vmul.f32 %v1265, %v682
        %v1279 = vmul.f32 %v1264, %v683
        %v1280 = vmul.f32 %v1263, %v684
        %v1281 = vmul.f32 %v1262, %v685
        %v1282 = vmul.f32 %v1261, %v686
        %v1283 = vmul.f32 %v1260, %v687
        %v1284 = vmul.f32 %v1259, %v688
        %v1285 = vmul.f32 %v1258, %v689
        %v1286 = vmul.f32 %v1257, %v690
        %v1287 = vmul.f32 %v1256, %v691
        %1288 = vrot.lane.b32.xlu0 %v1081, 1
        %v1289 = vpop.permute.xlu0 %1288
        %1290 = vrot.lane.b32.xlu0 %v1085, 1
        %v1291 = vpop.permute.xlu0 %1290
        %1292 = vrot.lane.b32.xlu0 %v1089, 1
        %v1293 = vpop.permute.xlu0 %1292
        %1294 = vrot.lane.b32.xlu0 %v1093, 1
        %v1295 = vpop.permute.xlu0 %1294
        %1296 = vrot.lane.b32.xlu0 %v1097, 1
        %v1297 = vpop.permute.xlu0 %1296
        %1298 = vrot.lane.b32.xlu0 %v1101, 1
        %v1299 = vpop.permute.xlu0 %1298
        %1300 = vrot.lane.b32.xlu0 %v1105, 1
        %v1301 = vpop.permute.xlu0 %1300
        %1302 = vrot.lane.b32.xlu0 %v1109, 1
        %v1303 = vpop.permute.xlu0 %1302
        %1304 = vrot.lane.b32.xlu0 %v1113, 1
        %v1305 = vpop.permute.xlu0 %1304
        %1306 = vrot.lane.b32.xlu0 %v1117, 1
        %v1307 = vpop.permute.xlu0 %1306
        %1308 = vrot.lane.b32.xlu0 %v1121, 1
        %v1309 = vpop.permute.xlu0 %1308
        %1310 = vrot.lane.b32.xlu0 %v1125, 1
        %v1311 = vpop.permute.xlu0 %1310
        %1312 = vrot.lane.b32.xlu0 %v1129, 1
        %v1313 = vpop.permute.xlu0 %1312
        %1314 = vrot.lane.b32.xlu0 %v1133, 1
        %v1315 = vpop.permute.xlu0 %1314
        %1316 = vrot.lane.b32.xlu0 %v1137, 1
        %v1317 = vpop.permute.xlu0 %1316
        %1318 = vrot.lane.b32.xlu0 %v1141, 1
        %v1319 = vpop.permute.xlu0 %1318
        %vm1320 = vcmp.lt.s32.totalorder %v292, 1
        %v1321 = vsel %vm1320, %v1317, %v1319
        %v1322 = vsel %vm1320, %v1315, %v1317
        %v1323 = vsel %vm1320, %v1313, %v1315
        %v1324 = vsel %vm1320, %v1311, %v1313
        %v1325 = vsel %vm1320, %v1309, %v1311
        %v1326 = vsel %vm1320, %v1307, %v1309
        %v1327 = vsel %vm1320, %v1305, %v1307
        %v1328 = vsel %vm1320, %v1303, %v1305
        %v1329 = vsel %vm1320, %v1301, %v1303
        %v1330 = vsel %vm1320, %v1299, %v1301
        %v1331 = vsel %vm1320, %v1297, %v1299
        %v1332 = vsel %vm1320, %v1295, %v1297
        %v1333 = vsel %vm1320, %v1293, %v1295
        %v1334 = vsel %vm1320, %v1291, %v1293
        %v1335 = vsel %vm1320, %v1289, %v1291
        %v1336 = vsel %vm1320, %v1319, %v1289
        %v1337 = vmul.f32 %v1336, %v772
        %v1338 = vmul.f32 %v1335, %v773
        %v1339 = vmul.f32 %v1334, %v774
        %v1340 = vmul.f32 %v1333, %v775
        %v1341 = vmul.f32 %v1332, %v776
        %v1342 = vmul.f32 %v1331, %v777
        %v1343 = vmul.f32 %v1330, %v778
        %v1344 = vmul.f32 %v1329, %v779
        %v1345 = vmul.f32 %v1328, %v780
        %v1346 = vmul.f32 %v1327, %v781
        %v1347 = vmul.f32 %v1326, %v782
        %v1348 = vmul.f32 %v1325, %v783
        %v1349 = vmul.f32 %v1324, %v784
        %v1350 = vmul.f32 %v1323, %v785
        %v1351 = vmul.f32 %v1322, %v786
        %v1352 = vmul.f32 %v1321, %v787
        %1353 = vrot.lane.b32.xlu0 %v1081, 127
        %v1354 = vpop.permute.xlu0 %1353
        %1355 = vrot.lane.b32.xlu0 %v1085, 127
        %v1356 = vpop.permute.xlu0 %1355
        %1357 = vrot.lane.b32.xlu0 %v1089, 127
        %v1358 = vpop.permute.xlu0 %1357
        %1359 = vrot.lane.b32.xlu0 %v1093, 127
        %v1360 = vpop.permute.xlu0 %1359
        %1361 = vrot.lane.b32.xlu0 %v1097, 127
        %v1362 = vpop.permute.xlu0 %1361
        %1363 = vrot.lane.b32.xlu0 %v1101, 127
        %v1364 = vpop.permute.xlu0 %1363
        %1365 = vrot.lane.b32.xlu0 %v1105, 127
        %v1366 = vpop.permute.xlu0 %1365
        %1367 = vrot.lane.b32.xlu0 %v1109, 127
        %v1368 = vpop.permute.xlu0 %1367
        %1369 = vrot.lane.b32.xlu0 %v1113, 127
        %v1370 = vpop.permute.xlu0 %1369
        %1371 = vrot.lane.b32.xlu0 %v1117, 127
        %v1372 = vpop.permute.xlu0 %1371
        %1373 = vrot.lane.b32.xlu0 %v1121, 127
        %v1374 = vpop.permute.xlu0 %1373
        %1375 = vrot.lane.b32.xlu0 %v1125, 127
        %v1376 = vpop.permute.xlu0 %1375
        %1377 = vrot.lane.b32.xlu0 %v1129, 127
        %v1378 = vpop.permute.xlu0 %1377
        %1379 = vrot.lane.b32.xlu0 %v1133, 127
        %v1380 = vpop.permute.xlu0 %1379
        %1381 = vrot.lane.b32.xlu0 %v1137, 127
        %v1382 = vpop.permute.xlu0 %1381
        %1383 = vrot.lane.b32.xlu0 %v1141, 127
        %v1384 = vpop.permute.xlu0 %1383
        %vm1385 = vcmp.lt.s32.totalorder %v292, 127
        %v1386 = vsel %vm1385, %v1382, %v1384
        %v1387 = vsel %vm1385, %v1380, %v1382
        %v1388 = vsel %vm1385, %v1378, %v1380
        %v1389 = vsel %vm1385, %v1376, %v1378
        %v1390 = vsel %vm1385, %v1374, %v1376
        %v1391 = vsel %vm1385, %v1372, %v1374
        %v1392 = vsel %vm1385, %v1370, %v1372
        %v1393 = vsel %vm1385, %v1368, %v1370
        %v1394 = vsel %vm1385, %v1366, %v1368
        %v1395 = vsel %vm1385, %v1364, %v1366
        %v1396 = vsel %vm1385, %v1362, %v1364
        %v1397 = vsel %vm1385, %v1360, %v1362
        %v1398 = vsel %vm1385, %v1358, %v1360
        %v1399 = vsel %vm1385, %v1356, %v1358
        %v1400 = vsel %vm1385, %v1354, %v1356
        %v1401 = vsel %vm1385, %v1384, %v1354
        %v1402 = vmul.f32 %v1400, %v868
        %v1403 = vmul.f32 %v1399, %v869
        %v1404 = vmul.f32 %v1398, %v870
        %v1405 = vmul.f32 %v1397, %v871
        %v1406 = vmul.f32 %v1396, %v872
        %v1407 = vmul.f32 %v1395, %v873
        %v1408 = vmul.f32 %v1394, %v874
        %v1409 = vmul.f32 %v1393, %v875
        %v1410 = vmul.f32 %v1392, %v876
        %v1411 = vmul.f32 %v1391, %v877
        %v1412 = vmul.f32 %v1390, %v878
        %v1413 = vmul.f32 %v1389, %v879
        %v1414 = vmul.f32 %v1388, %v880
        %v1415 = vmul.f32 %v1387, %v881
        %v1416 = vmul.f32 %v1386, %v882
        %v1417 = vmul.f32 %v1401, %v883
        %1418 = vrot.lane.b32.xlu0 %v1081, 126
        %v1419 = vpop.permute.xlu0 %1418
        %1420 = vrot.lane.b32.xlu0 %v1085, 126
        %v1421 = vpop.permute.xlu0 %1420
        %1422 = vrot.lane.b32.xlu0 %v1089, 126
        %v1423 = vpop.permute.xlu0 %1422
        %1424 = vrot.lane.b32.xlu0 %v1093, 126
        %v1425 = vpop.permute.xlu0 %1424
        %1426 = vrot.lane.b32.xlu0 %v1097, 126
        %v1427 = vpop.permute.xlu0 %1426
        %1428 = vrot.lane.b32.xlu0 %v1101, 126
        %v1429 = vpop.permute.xlu0 %1428
        %1430 = vrot.lane.b32.xlu0 %v1105, 126
        %v1431 = vpop.permute.xlu0 %1430
        %1432 = vrot.lane.b32.xlu0 %v1109, 126
        %v1433 = vpop.permute.xlu0 %1432
        %1434 = vrot.lane.b32.xlu0 %v1113, 126
        %v1435 = vpop.permute.xlu0 %1434
        %1436 = vrot.lane.b32.xlu0 %v1117, 126
        %v1437 = vpop.permute.xlu0 %1436
        %1438 = vrot.lane.b32.xlu0 %v1121, 126
        %v1439 = vpop.permute.xlu0 %1438
        %1440 = vrot.lane.b32.xlu0 %v1125, 126
        %v1441 = vpop.permute.xlu0 %1440
        %1442 = vrot.lane.b32.xlu0 %v1129, 126
        %v1443 = vpop.permute.xlu0 %1442
        %1444 = vrot.lane.b32.xlu0 %v1133, 126
        %v1445 = vpop.permute.xlu0 %1444
        %1446 = vrot.lane.b32.xlu0 %v1137, 126
        %v1447 = vpop.permute.xlu0 %1446
        %1448 = vrot.lane.b32.xlu0 %v1141, 126
        %v1449 = vpop.permute.xlu0 %1448
        %vm1450 = vcmp.lt.s32.totalorder %v292, 126
        %v1451 = vsel %vm1450, %v1447, %v1449
        %v1452 = vsel %vm1450, %v1445, %v1447
        %v1453 = vsel %vm1450, %v1443, %v1445
        %v1454 = vsel %vm1450, %v1441, %v1443
        %v1455 = vsel %vm1450, %v1439, %v1441
        %v1456 = vsel %vm1450, %v1437, %v1439
        %v1457 = vsel %vm1450, %v1435, %v1437
        %v1458 = vsel %vm1450, %v1433, %v1435
        %v1459 = vsel %vm1450, %v1431, %v1433
        %v1460 = vsel %vm1450, %v1429, %v1431
        %v1461 = vsel %vm1450, %v1427, %v1429
        %v1462 = vsel %vm1450, %v1425, %v1427
        %v1463 = vsel %vm1450, %v1423, %v1425
        %v1464 = vsel %vm1450, %v1421, %v1423
        %v1465 = vsel %vm1450, %v1419, %v1421
        %v1466 = vsel %vm1450, %v1449, %v1419
        %v1467 = vmul.f32 %v1465, %v964
        %v1468 = vmul.f32 %v1464, %v965
        %v1469 = vmul.f32 %v1463, %v966
        %v1470 = vmul.f32 %v1462, %v967
        %v1471 = vmul.f32 %v1461, %v968
        %v1472 = vmul.f32 %v1460, %v969
        %v1473 = vmul.f32 %v1459, %v970
        %v1474 = vmul.f32 %v1458, %v971
        %v1475 = vmul.f32 %v1457, %v972
        %v1476 = vmul.f32 %v1456, %v973
        %v1477 = vmul.f32 %v1455, %v974
        %v1478 = vmul.f32 %v1454, %v975
        %v1479 = vmul.f32 %v1453, %v976
        %v1480 = vmul.f32 %v1452, %v977
        %v1481 = vmul.f32 %v1451, %v978
        %v1482 = vmul.f32 %v1466, %v979
        %1483 = vrot.lane.b32.xlu0 %v1081, 125
        %v1484 = vpop.permute.xlu0 %1483
        %1485 = vrot.lane.b32.xlu0 %v1085, 125
        %v1486 = vpop.permute.xlu0 %1485
        %1487 = vrot.lane.b32.xlu0 %v1089, 125
        %v1488 = vpop.permute.xlu0 %1487
        %1489 = vrot.lane.b32.xlu0 %v1093, 125
        %v1490 = vpop.permute.xlu0 %1489
        %1491 = vrot.lane.b32.xlu0 %v1097, 125
        %v1492 = vpop.permute.xlu0 %1491
        %1493 = vrot.lane.b32.xlu0 %v1101, 125
        %v1494 = vpop.permute.xlu0 %1493
        %1495 = vrot.lane.b32.xlu0 %v1105, 125
        %v1496 = vpop.permute.xlu0 %1495
        %1497 = vrot.lane.b32.xlu0 %v1109, 125
        %v1498 = vpop.permute.xlu0 %1497
        %1499 = vrot.lane.b32.xlu0 %v1113, 125
        %v1500 = vpop.permute.xlu0 %1499
        %1501 = vrot.lane.b32.xlu0 %v1117, 125
        %v1502 = vpop.permute.xlu0 %1501
        %1503 = vrot.lane.b32.xlu0 %v1121, 125
        %v1504 = vpop.permute.xlu0 %1503
        %1505 = vrot.lane.b32.xlu0 %v1125, 125
        %v1506 = vpop.permute.xlu0 %1505
        %1507 = vrot.lane.b32.xlu0 %v1129, 125
        %v1508 = vpop.permute.xlu0 %1507
        %1509 = vrot.lane.b32.xlu0 %v1133, 125
        %v1510 = vpop.permute.xlu0 %1509
        %1511 = vrot.lane.b32.xlu0 %v1137, 125
        %v1512 = vpop.permute.xlu0 %1511
        %1513 = vrot.lane.b32.xlu0 %v1141, 125
        %v1514 = vpop.permute.xlu0 %1513
        %vm1515 = vcmp.lt.s32.totalorder %v292, 125
        %v1516 = vsel %vm1515, %v1512, %v1514
        %v1517 = vsel %vm1515, %v1510, %v1512
        %v1518 = vsel %vm1515, %v1508, %v1510
        %v1519 = vsel %vm1515, %v1506, %v1508
        %v1520 = vsel %vm1515, %v1504, %v1506
        %v1521 = vsel %vm1515, %v1502, %v1504
        %v1522 = vsel %vm1515, %v1500, %v1502
        %v1523 = vsel %vm1515, %v1498, %v1500
        %v1524 = vsel %vm1515, %v1496, %v1498
        %v1525 = vsel %vm1515, %v1494, %v1496
        %v1526 = vsel %vm1515, %v1492, %v1494
        %v1527 = vsel %vm1515, %v1490, %v1492
        %v1528 = vsel %vm1515, %v1488, %v1490
        %v1529 = vsel %vm1515, %v1486, %v1488
        %v1530 = vsel %vm1515, %v1484, %v1486
        %v1531 = vsel %vm1515, %v1514, %v1484
        %v1532 = vmul.f32 %v1530, %v1060
        %v1533 = vmul.f32 %v1529, %v1061
        %v1534 = vmul.f32 %v1528, %v1062
        %v1535 = vmul.f32 %v1527, %v1063
        %v1536 = vmul.f32 %v1526, %v1064
        %v1537 = vmul.f32 %v1525, %v1065
        %v1538 = vmul.f32 %v1524, %v1066
        %v1539 = vmul.f32 %v1523, %v1067
        %v1540 = vmul.f32 %v1522, %v1068
        %v1541 = vmul.f32 %v1521, %v1069
        %v1542 = vmul.f32 %v1520, %v1070
        %v1543 = vmul.f32 %v1519, %v1071
        %v1544 = vmul.f32 %v1518, %v1072
        %v1545 = vmul.f32 %v1517, %v1073
        %v1546 = vmul.f32 %v1516, %v1074
        %v1547 = vmul.f32 %v1531, %v1075
        %v1564 = vrot.slane %v1272, 7
        %v1565 = vrot.slane %v1273, 7
        %v1566 = vrot.slane %v1274, 7
        %v1567 = vrot.slane %v1275, 7
        %v1568 = vrot.slane %v1276, 7
        %v1569 = vrot.slane %v1277, 7
        %v1570 = vrot.slane %v1278, 7
        %v1571 = vrot.slane %v1279, 7
        %v1572 = vrot.slane %v1280, 7
        %v1573 = vrot.slane %v1281, 7
        %v1574 = vrot.slane %v1282, 7
        %v1575 = vrot.slane %v1283, 7
        %v1576 = vrot.slane %v1284, 7
        %v1577 = vrot.slane %v1285, 7
        %v1578 = vrot.slane %v1286, 7
        %v1579 = vrot.slane %v1287, 7
        %v1612 = vrot.slane %v1337, 6
        %v1613 = vrot.slane %v1338, 6
        %v1614 = vrot.slane %v1339, 6
        %v1615 = vrot.slane %v1340, 6
        %v1616 = vrot.slane %v1341, 6
        %v1617 = vrot.slane %v1342, 6
        %v1618 = vrot.slane %v1343, 6
        %v1619 = vrot.slane %v1344, 6
        %v1620 = vrot.slane %v1345, 6
        %v1621 = vrot.slane %v1346, 6
        %v1622 = vrot.slane %v1347, 6
        %v1623 = vrot.slane %v1348, 6
        %v1624 = vrot.slane %v1349, 6
        %v1625 = vrot.slane %v1350, 6
        %v1626 = vrot.slane %v1351, 6
        %v1627 = vrot.slane %v1352, 6
        %v1660 = vrot.slane %v1402, 4
        %v1661 = vrot.slane %v1403, 4
        %v1662 = vrot.slane %v1404, 4
        %v1663 = vrot.slane %v1405, 4
        %v1664 = vrot.slane %v1406, 4
        %v1665 = vrot.slane %v1407, 4
        %v1666 = vrot.slane %v1408, 4
        %v1667 = vrot.slane %v1409, 4
        %v1668 = vrot.slane %v1410, 4
        %v1669 = vrot.slane %v1411, 4
        %v1670 = vrot.slane %v1412, 4
        %v1671 = vrot.slane %v1413, 4
        %v1672 = vrot.slane %v1414, 4
        %v1673 = vrot.slane %v1415, 4
        %v1674 = vrot.slane %v1416, 4
        %v1675 = vrot.slane %v1417, 4
        %v1708 = vrot.slane %v1467, 3
        %v1709 = vrot.slane %v1468, 3
        %v1710 = vrot.slane %v1469, 3
        %v1711 = vrot.slane %v1470, 3
        %v1712 = vrot.slane %v1471, 3
        %v1713 = vrot.slane %v1472, 3
        %v1714 = vrot.slane %v1473, 3
        %v1715 = vrot.slane %v1474, 3
        %v1716 = vrot.slane %v1475, 3
        %v1717 = vrot.slane %v1476, 3
        %v1718 = vrot.slane %v1477, 3
        %v1719 = vrot.slane %v1478, 3
        %v1720 = vrot.slane %v1479, 3
        %v1721 = vrot.slane %v1480, 3
        %v1722 = vrot.slane %v1481, 3
        %v1723 = vrot.slane %v1482, 3
        %v1756 = vrot.slane %v1532, 2
        %v1757 = vrot.slane %v1533, 2
        %v1758 = vrot.slane %v1534, 2
        %v1759 = vrot.slane %v1535, 2
        %v1760 = vrot.slane %v1536, 2
        %v1761 = vrot.slane %v1537, 2
        %v1762 = vrot.slane %v1538, 2
        %v1763 = vrot.slane %v1539, 2
        %v1764 = vrot.slane %v1540, 2
        %v1765 = vrot.slane %v1541, 2
        %v1766 = vrot.slane %v1542, 2
        %v1767 = vrot.slane %v1543, 2
        %v1768 = vrot.slane %v1544, 2
        %v1769 = vrot.slane %v1545, 2
        %v1770 = vrot.slane %v1546, 2
        %v1771 = vrot.slane %v1547, 2
        %vm1788 = vcmask 1040384
        %v1789 = vsel %vm1788, %v1207, %v1564
        %v1790 = vsel %vm1788, %v1208, %v1565
        %v1791 = vsel %vm1788, %v1209, %v1566
        %v1792 = vsel %vm1788, %v1210, %v1567
        %v1793 = vsel %vm1788, %v1211, %v1568
        %v1794 = vsel %vm1788, %v1212, %v1569
        %v1795 = vsel %vm1788, %v1213, %v1570
        %v1796 = vsel %vm1788, %v1214, %v1571
        %v1797 = vsel %vm1788, %v1215, %v1572
        %v1798 = vsel %vm1788, %v1216, %v1573
        %v1799 = vsel %vm1788, %v1217, %v1574
        %v1800 = vsel %vm1788, %v1218, %v1575
        %v1801 = vsel %vm1788, %v1219, %v1576
        %v1802 = vsel %vm1788, %v1220, %v1577
        %v1803 = vsel %vm1788, %v1221, %v1578
        %v1804 = vsel %vm1788, %v1222, %v1579
        %vm1805 = vcmask 1041408
        %v1806 = vsel %vm1805, %v1789, %v1612
        %v1807 = vsel %vm1805, %v1790, %v1613
        %v1808 = vsel %vm1805, %v1791, %v1614
        %v1809 = vsel %vm1805, %v1792, %v1615
        %v1810 = vsel %vm1805, %v1793, %v1616
        %v1811 = vsel %vm1805, %v1794, %v1617
        %v1812 = vsel %vm1805, %v1795, %v1618
        %v1813 = vsel %vm1805, %v1796, %v1619
        %v1814 = vsel %vm1805, %v1797, %v1620
        %v1815 = vsel %vm1805, %v1798, %v1621
        %v1816 = vsel %vm1805, %v1799, %v1622
        %v1817 = vsel %vm1805, %v1800, %v1623
        %v1818 = vsel %vm1805, %v1801, %v1624
        %v1819 = vsel %vm1805, %v1802, %v1625
        %v1820 = vsel %vm1805, %v1803, %v1626
        %v1821 = vsel %vm1805, %v1804, %v1627
        %vm1822 = vcmask 1042432
        %v1823 = vsel %vm1822, %v1806, %v1081
        %v1824 = vsel %vm1822, %v1807, %v1085
        %v1825 = vsel %vm1822, %v1808, %v1089
        %v1826 = vsel %vm1822, %v1809, %v1093
        %v1827 = vsel %vm1822, %v1810, %v1097
        %v1828 = vsel %vm1822, %v1811, %v1101
        %v1829 = vsel %vm1822, %v1812, %v1105
        %v1830 = vsel %vm1822, %v1813, %v1109
        %v1831 = vsel %vm1822, %v1814, %v1113
        %v1832 = vsel %vm1822, %v1815, %v1117
        %v1833 = vsel %vm1822, %v1816, %v1121
        %v1834 = vsel %vm1822, %v1817, %v1125
        %v1835 = vsel %vm1822, %v1818, %v1129
        %v1836 = vsel %vm1822, %v1819, %v1133
        %v1837 = vsel %vm1822, %v1820, %v1137
        %v1838 = vsel %vm1822, %v1821, %v1141
        %vm1839 = vcmask 1043456
        %v1840 = vsel %vm1839, %v1823, %v1660
        %v1841 = vsel %vm1839, %v1824, %v1661
        %v1842 = vsel %vm1839, %v1825, %v1662
        %v1843 = vsel %vm1839, %v1826, %v1663
        %v1844 = vsel %vm1839, %v1827, %v1664
        %v1845 = vsel %vm1839, %v1828, %v1665
        %v1846 = vsel %vm1839, %v1829, %v1666
        %v1847 = vsel %vm1839, %v1830, %v1667
        %v1848 = vsel %vm1839, %v1831, %v1668
        %v1849 = vsel %vm1839, %v1832, %v1669
        %v1850 = vsel %vm1839, %v1833, %v1670
        %v1851 = vsel %vm1839, %v1834, %v1671
        %v1852 = vsel %vm1839, %v1835, %v1672
        %v1853 = vsel %vm1839, %v1836, %v1673
        %v1854 = vsel %vm1839, %v1837, %v1674
        %v1855 = vsel %vm1839, %v1838, %v1675
        %vm1856 = vcmask 1044480
        %v1857 = vsel %vm1856, %v1840, %v1708
        %v1858 = vsel %vm1856, %v1841, %v1709
        %v1859 = vsel %vm1856, %v1842, %v1710
        %v1860 = vsel %vm1856, %v1843, %v1711
        %v1861 = vsel %vm1856, %v1844, %v1712
        %v1862 = vsel %vm1856, %v1845, %v1713
        %v1863 = vsel %vm1856, %v1846, %v1714
        %v1864 = vsel %vm1856, %v1847, %v1715
        %v1865 = vsel %vm1856, %v1848, %v1716
        %v1866 = vsel %vm1856, %v1849, %v1717
        %v1867 = vsel %vm1856, %v1850, %v1718
        %v1868 = vsel %vm1856, %v1851, %v1719
        %v1869 = vsel %vm1856, %v1852, %v1720
        %v1870 = vsel %vm1856, %v1853, %v1721
        %v1871 = vsel %vm1856, %v1854, %v1722
        %v1872 = vsel %vm1856, %v1855, %v1723
        %vm1873 = vcmask 1045504
        %v1874 = vsel %vm1873, %v1857, %v1756
        %v1875 = vsel %vm1873, %v1858, %v1757
        %v1876 = vsel %vm1873, %v1859, %v1758
        %v1877 = vsel %vm1873, %v1860, %v1759
        %v1878 = vsel %vm1873, %v1861, %v1760
        %v1879 = vsel %vm1873, %v1862, %v1761
        %v1880 = vsel %vm1873, %v1863, %v1762
        %v1881 = vsel %vm1873, %v1864, %v1763
        %v1882 = vsel %vm1873, %v1865, %v1764
        %v1883 = vsel %vm1873, %v1866, %v1765
        %v1884 = vsel %vm1873, %v1867, %v1766
        %v1885 = vsel %vm1873, %v1868, %v1767
        %v1886 = vsel %vm1873, %v1869, %v1768
        %v1887 = vsel %vm1873, %v1870, %v1769
        %v1888 = vsel %vm1873, %v1871, %v1770
        %v1889 = vsel %vm1873, %v1872, %v1771
        %vm1890 = vcmask 1046528
        %v1891 = vsel %vm1890, %v1874, 1.0
        %v1892 = vsel %vm1890, %v1875, 1.0
        %v1893 = vsel %vm1890, %v1876, 1.0
        %v1894 = vsel %vm1890, %v1877, 1.0
        %v1895 = vsel %vm1890, %v1878, 1.0
        %v1896 = vsel %vm1890, %v1879, 1.0
        %v1897 = vsel %vm1890, %v1880, 1.0
        %v1898 = vsel %vm1890, %v1881, 1.0
        %v1899 = vsel %vm1890, %v1882, 1.0
        %v1900 = vsel %vm1890, %v1883, 1.0
        %v1901 = vsel %vm1890, %v1884, 1.0
        %v1902 = vsel %vm1890, %v1885, 1.0
        %v1903 = vsel %vm1890, %v1886, 1.0
        %v1904 = vsel %vm1890, %v1887, 1.0
        %v1905 = vsel %vm1890, %v1888, 1.0
        %v1906 = vsel %vm1890, %v1889, 1.0
        %v1907 = vld [vmem:[%s1] sm:$0xff]
        %v1908 = vld [vmem:[%s1 + $0x8] sm:$0xff]
        %v1909 = vld [vmem:[%s1 + $0x10] sm:$0xff]
        %v1910 = vld [vmem:[%s1 + $0x18] sm:$0xff]
        %vm1911 = vcmask 64512
        %v1913 = vsel %vm1911, %v1907, 0
        %v1916 = vsel %vm1911, %v1908, 0
        %v1919 = vsel %vm1911, %v1909, 0
        %v1922 = vsel %vm1911, %v1910, 0
        %1924 = vmatprep.subr.mxu0 0.0
        %1925 = vmatpush1.msra.mxu0 0.0
        %1926 = vmatprep.subr.mxu0 0.0
        %1927 = vmatpush1.msra.mxu0 0.0
        %1928 = vmatprep.subr.mxu0 0.0
        %1929 = vmatpush1.msra.mxu0 0.0
        %1930 = vmatprep.subr.mxu0 0.0
        %1931 = vmatpush1.msra.mxu0 0.0
        %1932 = vmatprep.subr.mxu0 0.0
        %1933 = vmatpush1.msra.mxu0 0.0
        %1934 = vmatprep.subr.mxu0 0.0
        %1935 = vmatpush1.msra.mxu0 0.0
        %1936 = vmatprep.subr.mxu0 0.0
        %1937 = vmatpush1.msra.mxu0 0.0
        %1938 = vmatprep.subr.mxu0 0.0
        %1939 = vmatpush1.msra.mxu0 0.0
        %1940 = vmatprep.subr.mxu0 0.0
        %1941 = vmatpush1.msra.mxu0 0.0
        %1942 = vmatprep.subr.mxu0 0.0
        %1943 = vmatpush1.msra.mxu0 0.0
        %1944 = vmatprep.subr.mxu0 0.0
        %1945 = vmatpush1.msra.mxu0 0.0
        %1946 = vmatprep.subr.mxu0 0.0
        %1947 = vmatpush1.msra.mxu0 0.0
        %1948 = vmatprep.subr.mxu0 0.0
        %1949 = vmatpush1.msra.mxu0 0.0
        %1950 = vmatprep.subr.mxu0 0.0
        %1951 = vmatpush1.msra.mxu0 0.0
        %1952 = vmatprep.subr.mxu0 0.0
        %1953 = vmatpush1.msra.mxu0 0.0
        %1954 = vmatprep.subr.mxu0 %v1892
        %1955 = vmatpush1.msra.mxu0 %v1891
        %1956 = vmatprep.subr.mxu0 0.0
        %1957 = vmatpush2.msra.mxu0 0.0
        %1958 = vmatprep.subr.mxu0 0.0
        %1959 = vmatpush2.msra.mxu0 0.0
        %1960 = vmatprep.subr.mxu0 0.0
        %1961 = vmatpush2.msra.mxu0 0.0
        %1962 = vmatprep.subr.mxu0 0.0
        %1963 = vmatpush2.msra.mxu0 0.0
        %1964 = vmatprep.subr.mxu0 0.0
        %1965 = vmatpush2.msra.mxu0 0.0
        %1966 = vmatprep.subr.mxu0 0.0
        %1967 = vmatpush2.msra.mxu0 0.0
        %1968 = vmatprep.subr.mxu0 0.0
        %1969 = vmatpush2.msra.mxu0 0.0
        %1970 = vmatprep.subr.mxu0 0.0
        %1971 = vmatpush2.msra.mxu0 0.0
        %1972 = vmatprep.subr.mxu0 0.0
        %1973 = vmatpush2.msra.mxu0 0.0
        %1974 = vmatprep.subr.mxu0 0.0
        %1975 = vmatpush2.msra.mxu0 0.0
        %1976 = vmatprep.subr.mxu0 0.0
        %1977 = vmatpush2.msra.mxu0 0.0
        %1978 = vmatprep.subr.mxu0 0.0
        %1979 = vmatpush2.msra.mxu0 0.0
        %1980 = vmatprep.subr.mxu0 0.0
        %1981 = vmatpush2.msra.mxu0 0.0
        %1982 = vmatprep.subr.mxu0 0.0
        %1983 = vmatpush2.msra.mxu0 0.0
        %1984 = vmatprep.subr.mxu0 0.0
        %1985 = vmatpush2.msra.mxu0 0.0
        %1986 = vmatprep.subr.mxu0 0.0
        %1987 = vmatpush2.msra.mxu0 0.0
        %1988 = vmatprep.mubr.f32.mxu0 0.0
        %1989 = vmatmul.mubr.f32.gmra.mxu0 %v1913
        %v1990 = vpop.f32.mrf.mxu0
        %v1991 = vadd.f32 0.0, %v1990
        %v1992 = vpop.f32.mrf.mxu0
        %v1993 = vadd.f32 0.0, %v1992
        %1994 = vmatprep.mubr.f32.mxu0 0.0
        %1995 = vmatmul.mubr.f32.gmra.mxu0 %v1916
        %v1996 = vpop.f32.mrf.mxu0
        %v1997 = vadd.f32 0.0, %v1996
        %v1998 = vpop.f32.mrf.mxu0
        %v1999 = vadd.f32 0.0, %v1998
        %2000 = vmatprep.mubr.f32.mxu0 0.0
        %2001 = vmatmul.mubr.f32.gmra.mxu0 %v1919
        %v2002 = vpop.f32.mrf.mxu0
        %v2003 = vadd.f32 0.0, %v2002
        %v2004 = vpop.f32.mrf.mxu0
        %v2005 = vadd.f32 0.0, %v2004
        %2006 = vmatprep.mubr.f32.mxu0 0.0
        %2007 = vmatmul.mubr.f32.gmra.mxu0 %v1922
        %v2008 = vpop.f32.mrf.mxu0
        %v2009 = vadd.f32 0.0, %v2008
        %v2010 = vpop.f32.mrf.mxu0
        %v2011 = vadd.f32 0.0, %v2010
        %2012 = vdwg.mxu0
        %2013 = vmatprep.subr.mxu0 0.0
        %2014 = vmatpush1.msra.mxu0 0.0
        %2015 = vmatprep.subr.mxu0 0.0
        %2016 = vmatpush1.msra.mxu0 0.0
        %2017 = vmatprep.subr.mxu0 0.0
        %2018 = vmatpush1.msra.mxu0 0.0
        %2019 = vmatprep.subr.mxu0 0.0
        %2020 = vmatpush1.msra.mxu0 0.0
        %2021 = vmatprep.subr.mxu0 0.0
        %2022 = vmatpush1.msra.mxu0 0.0
        %2023 = vmatprep.subr.mxu0 0.0
        %2024 = vmatpush1.msra.mxu0 0.0
        %2025 = vmatprep.subr.mxu0 0.0
        %2026 = vmatpush1.msra.mxu0 0.0
        %2027 = vmatprep.subr.mxu0 0.0
        %2028 = vmatpush1.msra.mxu0 0.0
        %2029 = vmatprep.subr.mxu0 0.0
        %2030 = vmatpush1.msra.mxu0 0.0
        %2031 = vmatprep.subr.mxu0 0.0
        %2032 = vmatpush1.msra.mxu0 0.0
        %2033 = vmatprep.subr.mxu0 0.0
        %2034 = vmatpush1.msra.mxu0 0.0
        %2035 = vmatprep.subr.mxu0 0.0
        %2036 = vmatpush1.msra.mxu0 0.0
        %2037 = vmatprep.subr.mxu0 0.0
        %2038 = vmatpush1.msra.mxu0 0.0
        %2039 = vmatprep.subr.mxu0 0.0
        %2040 = vmatpush1.msra.mxu0 0.0
        %2041 = vmatprep.subr.mxu0 0.0
        %2042 = vmatpush1.msra.mxu0 0.0
        %2043 = vmatprep.subr.mxu0 %v1894
        %2044 = vmatpush1.msra.mxu0 %v1893
        %2045 = vmatprep.subr.mxu0 0.0
        %2046 = vmatpush2.msra.mxu0 0.0
        %2047 = vmatprep.subr.mxu0 0.0
        %2048 = vmatpush2.msra.mxu0 0.0
        %2049 = vmatprep.subr.mxu0 0.0
        %2050 = vmatpush2.msra.mxu0 0.0
        %2051 = vmatprep.subr.mxu0 0.0
        %2052 = vmatpush2.msra.mxu0 0.0
        %2053 = vmatprep.subr.mxu0 0.0
        %2054 = vmatpush2.msra.mxu0 0.0
        %2055 = vmatprep.subr.mxu0 0.0
        %2056 = vmatpush2.msra.mxu0 0.0
        %2057 = vmatprep.subr.mxu0 0.0
        %2058 = vmatpush2.msra.mxu0 0.0
        %2059 = vmatprep.subr.mxu0 0.0
        %2060 = vmatpush2.msra.mxu0 0.0
        %2061 = vmatprep.subr.mxu0 0.0
        %2062 = vmatpush2.msra.mxu0 0.0
        %2063 = vmatprep.subr.mxu0 0.0
        %2064 = vmatpush2.msra.mxu0 0.0
        %2065 = vmatprep.subr.mxu0 0.0
        %2066 = vmatpush2.msra.mxu0 0.0
        %2067 = vmatprep.subr.mxu0 0.0
        %2068 = vmatpush2.msra.mxu0 0.0
        %2069 = vmatprep.subr.mxu0 0.0
        %2070 = vmatpush2.msra.mxu0 0.0
        %2071 = vmatprep.subr.mxu0 0.0
        %2072 = vmatpush2.msra.mxu0 0.0
        %2073 = vmatprep.subr.mxu0 0.0
        %2074 = vmatpush2.msra.mxu0 0.0
        %2075 = vmatprep.subr.mxu0 0.0
        %2076 = vmatpush2.msra.mxu0 0.0
        %2077 = vmatprep.mubr.f32.mxu0 0.0
        %2078 = vmatmul.mubr.f32.gmra.mxu0 %v1913
        %v2079 = vpop.f32.mrf.mxu0
        %v2080 = vadd.f32 0.0, %v2079
        %v2081 = vpop.f32.mrf.mxu0
        %v2082 = vadd.f32 0.0, %v2081
        %2083 = vmatprep.mubr.f32.mxu0 0.0
        %2084 = vmatmul.mubr.f32.gmra.mxu0 %v1916
        %v2085 = vpop.f32.mrf.mxu0
        %v2086 = vadd.f32 0.0, %v2085
        %v2087 = vpop.f32.mrf.mxu0
        %v2088 = vadd.f32 0.0, %v2087
        %2089 = vmatprep.mubr.f32.mxu0 0.0
        %2090 = vmatmul.mubr.f32.gmra.mxu0 %v1919
        %v2091 = vpop.f32.mrf.mxu0
        %v2092 = vadd.f32 0.0, %v2091
        %v2093 = vpop.f32.mrf.mxu0
        %v2094 = vadd.f32 0.0, %v2093
        %2095 = vmatprep.mubr.f32.mxu0 0.0
        %2096 = vmatmul.mubr.f32.gmra.mxu0 %v1922
        %v2097 = vpop.f32.mrf.mxu0
        %v2098 = vadd.f32 0.0, %v2097
        %v2099 = vpop.f32.mrf.mxu0
        %v2100 = vadd.f32 0.0, %v2099
        %2101 = vdwg.mxu0
        %2102 = vmatprep.subr.mxu0 0.0
        %2103 = vmatpush1.msra.mxu0 0.0
        %2104 = vmatprep.subr.mxu0 0.0
        %2105 = vmatpush1.msra.mxu0 0.0
        %2106 = vmatprep.subr.mxu0 0.0
        %2107 = vmatpush1.msra.mxu0 0.0
        %2108 = vmatprep.subr.mxu0 0.0
        %2109 = vmatpush1.msra.mxu0 0.0
        %2110 = vmatprep.subr.mxu0 0.0
        %2111 = vmatpush1.msra.mxu0 0.0
        %2112 = vmatprep.subr.mxu0 0.0
        %2113 = vmatpush1.msra.mxu0 0.0
        %2114 = vmatprep.subr.mxu0 0.0
        %2115 = vmatpush1.msra.mxu0 0.0
        %2116 = vmatprep.subr.mxu0 0.0
        %2117 = vmatpush1.msra.mxu0 0.0
        %2118 = vmatprep.subr.mxu0 0.0
        %2119 = vmatpush1.msra.mxu0 0.0
        %2120 = vmatprep.subr.mxu0 0.0
        %2121 = vmatpush1.msra.mxu0 0.0
        %2122 = vmatprep.subr.mxu0 0.0
        %2123 = vmatpush1.msra.mxu0 0.0
        %2124 = vmatprep.subr.mxu0 0.0
        %2125 = vmatpush1.msra.mxu0 0.0
        %2126 = vmatprep.subr.mxu0 0.0
        %2127 = vmatpush1.msra.mxu0 0.0
        %2128 = vmatprep.subr.mxu0 0.0
        %2129 = vmatpush1.msra.mxu0 0.0
        %2130 = vmatprep.subr.mxu0 0.0
        %2131 = vmatpush1.msra.mxu0 0.0
        %2132 = vmatprep.subr.mxu0 %v1896
        %2133 = vmatpush1.msra.mxu0 %v1895
        %2134 = vmatprep.subr.mxu0 0.0
        %2135 = vmatpush2.msra.mxu0 0.0
        %2136 = vmatprep.subr.mxu0 0.0
        %2137 = vmatpush2.msra.mxu0 0.0
        %2138 = vmatprep.subr.mxu0 0.0
        %2139 = vmatpush2.msra.mxu0 0.0
        %2140 = vmatprep.subr.mxu0 0.0
        %2141 = vmatpush2.msra.mxu0 0.0
        %2142 = vmatprep.subr.mxu0 0.0
        %2143 = vmatpush2.msra.mxu0 0.0
        %2144 = vmatprep.subr.mxu0 0.0
        %2145 = vmatpush2.msra.mxu0 0.0
        %2146 = vmatprep.subr.mxu0 0.0
        %2147 = vmatpush2.msra.mxu0 0.0
        %2148 = vmatprep.subr.mxu0 0.0
        %2149 = vmatpush2.msra.mxu0 0.0
        %2150 = vmatprep.subr.mxu0 0.0
        %2151 = vmatpush2.msra.mxu0 0.0
        %2152 = vmatprep.subr.mxu0 0.0
        %2153 = vmatpush2.msra.mxu0 0.0
        %2154 = vmatprep.subr.mxu0 0.0
        %2155 = vmatpush2.msra.mxu0 0.0
        %2156 = vmatprep.subr.mxu0 0.0
        %2157 = vmatpush2.msra.mxu0 0.0
        %2158 = vmatprep.subr.mxu0 0.0
        %2159 = vmatpush2.msra.mxu0 0.0
        %2160 = vmatprep.subr.mxu0 0.0
        %2161 = vmatpush2.msra.mxu0 0.0
        %2162 = vmatprep.subr.mxu0 0.0
        %2163 = vmatpush2.msra.mxu0 0.0
        %2164 = vmatprep.subr.mxu0 0.0
        %2165 = vmatpush2.msra.mxu0 0.0
        %2166 = vmatprep.mubr.f32.mxu0 0.0
        %2167 = vmatmul.mubr.f32.gmra.mxu0 %v1913
        %v2168 = vpop.f32.mrf.mxu0
        %v2169 = vadd.f32 0.0, %v2168
        %v2170 = vpop.f32.mrf.mxu0
        %v2171 = vadd.f32 0.0, %v2170
        %2172 = vmatprep.mubr.f32.mxu0 0.0
        %2173 = vmatmul.mubr.f32.gmra.mxu0 %v1916
        %v2174 = vpop.f32.mrf.mxu0
        %v2175 = vadd.f32 0.0, %v2174
        %v2176 = vpop.f32.mrf.mxu0
        %v2177 = vadd.f32 0.0, %v2176
        %2178 = vmatprep.mubr.f32.mxu0 0.0
        %2179 = vmatmul.mubr.f32.gmra.mxu0 %v1919
        %v2180 = vpop.f32.mrf.mxu0
        %v2181 = vadd.f32 0.0, %v2180
        %v2182 = vpop.f32.mrf.mxu0
        %v2183 = vadd.f32 0.0, %v2182
        %2184 = vmatprep.mubr.f32.mxu0 0.0
        %2185 = vmatmul.mubr.f32.gmra.mxu0 %v1922
        %v2186 = vpop.f32.mrf.mxu0
        %v2187 = vadd.f32 0.0, %v2186
        %v2188 = vpop.f32.mrf.mxu0
        %v2189 = vadd.f32 0.0, %v2188
        %2190 = vdwg.mxu0
        %2191 = vmatprep.subr.mxu0 0.0
        %2192 = vmatpush1.msra.mxu0 0.0
        %2193 = vmatprep.subr.mxu0 0.0
        %2194 = vmatpush1.msra.mxu0 0.0
        %2195 = vmatprep.subr.mxu0 0.0
        %2196 = vmatpush1.msra.mxu0 0.0
        %2197 = vmatprep.subr.mxu0 0.0
        %2198 = vmatpush1.msra.mxu0 0.0
        %2199 = vmatprep.subr.mxu0 0.0
        %2200 = vmatpush1.msra.mxu0 0.0
        %2201 = vmatprep.subr.mxu0 0.0
        %2202 = vmatpush1.msra.mxu0 0.0
        %2203 = vmatprep.subr.mxu0 0.0
        %2204 = vmatpush1.msra.mxu0 0.0
        %2205 = vmatprep.subr.mxu0 0.0
        %2206 = vmatpush1.msra.mxu0 0.0
        %2207 = vmatprep.subr.mxu0 0.0
        %2208 = vmatpush1.msra.mxu0 0.0
        %2209 = vmatprep.subr.mxu0 0.0
        %2210 = vmatpush1.msra.mxu0 0.0
        %2211 = vmatprep.subr.mxu0 0.0
        %2212 = vmatpush1.msra.mxu0 0.0
        %2213 = vmatprep.subr.mxu0 0.0
        %2214 = vmatpush1.msra.mxu0 0.0
        %2215 = vmatprep.subr.mxu0 0.0
        %2216 = vmatpush1.msra.mxu0 0.0
        %2217 = vmatprep.subr.mxu0 0.0
        %2218 = vmatpush1.msra.mxu0 0.0
        %2219 = vmatprep.subr.mxu0 0.0
        %2220 = vmatpush1.msra.mxu0 0.0
        %2221 = vmatprep.subr.mxu0 %v1898
        %2222 = vmatpush1.msra.mxu0 %v1897
        %2223 = vmatprep.subr.mxu0 0.0
        %2224 = vmatpush2.msra.mxu0 0.0
        %2225 = vmatprep.subr.mxu0 0.0
        %2226 = vmatpush2.msra.mxu0 0.0
        %2227 = vmatprep.subr.mxu0 0.0
        %2228 = vmatpush2.msra.mxu0 0.0
        %2229 = vmatprep.subr.mxu0 0.0
        %2230 = vmatpush2.msra.mxu0 0.0
        %2231 = vmatprep.subr.mxu0 0.0
        %2232 = vmatpush2.msra.mxu0 0.0
        %2233 = vmatprep.subr.mxu0 0.0
        %2234 = vmatpush2.msra.mxu0 0.0
        %2235 = vmatprep.subr.mxu0 0.0
        %2236 = vmatpush2.msra.mxu0 0.0
        %2237 = vmatprep.subr.mxu0 0.0
        %2238 = vmatpush2.msra.mxu0 0.0
        %2239 = vmatprep.subr.mxu0 0.0
        %2240 = vmatpush2.msra.mxu0 0.0
        %2241 = vmatprep.subr.mxu0 0.0
        %2242 = vmatpush2.msra.mxu0 0.0
        %2243 = vmatprep.subr.mxu0 0.0
        %2244 = vmatpush2.msra.mxu0 0.0
        %2245 = vmatprep.subr.mxu0 0.0
        %2246 = vmatpush2.msra.mxu0 0.0
        %2247 = vmatprep.subr.mxu0 0.0
        %2248 = vmatpush2.msra.mxu0 0.0
        %2249 = vmatprep.subr.mxu0 0.0
        %2250 = vmatpush2.msra.mxu0 0.0
        %2251 = vmatprep.subr.mxu0 0.0
        %2252 = vmatpush2.msra.mxu0 0.0
        %2253 = vmatprep.subr.mxu0 0.0
        %2254 = vmatpush2.msra.mxu0 0.0
        %2255 = vmatprep.mubr.f32.mxu0 0.0
        %2256 = vmatmul.mubr.f32.gmra.mxu0 %v1913
        %v2257 = vpop.f32.mrf.mxu0
        %v2258 = vadd.f32 0.0, %v2257
        %v2259 = vpop.f32.mrf.mxu0
        %v2260 = vadd.f32 0.0, %v2259
        %2261 = vmatprep.mubr.f32.mxu0 0.0
        %2262 = vmatmul.mubr.f32.gmra.mxu0 %v1916
        %v2263 = vpop.f32.mrf.mxu0
        %v2264 = vadd.f32 0.0, %v2263
        %v2265 = vpop.f32.mrf.mxu0
        %v2266 = vadd.f32 0.0, %v2265
        %2267 = vmatprep.mubr.f32.mxu0 0.0
        %2268 = vmatmul.mubr.f32.gmra.mxu0 %v1919
        %v2269 = vpop.f32.mrf.mxu0
        %v2270 = vadd.f32 0.0, %v2269
        %v2271 = vpop.f32.mrf.mxu0
        %v2272 = vadd.f32 0.0, %v2271
        %2273 = vmatprep.mubr.f32.mxu0 0.0
        %2274 = vmatmul.mubr.f32.gmra.mxu0 %v1922
        %v2275 = vpop.f32.mrf.mxu0
        %v2276 = vadd.f32 0.0, %v2275
        %v2277 = vpop.f32.mrf.mxu0
        %v2278 = vadd.f32 0.0, %v2277
        %2279 = vdwg.mxu0
        %2280 = vmatprep.subr.mxu0 0.0
        %2281 = vmatpush1.msra.mxu0 0.0
        %2282 = vmatprep.subr.mxu0 0.0
        %2283 = vmatpush1.msra.mxu0 0.0
        %2284 = vmatprep.subr.mxu0 0.0
        %2285 = vmatpush1.msra.mxu0 0.0
        %2286 = vmatprep.subr.mxu0 0.0
        %2287 = vmatpush1.msra.mxu0 0.0
        %2288 = vmatprep.subr.mxu0 0.0
        %2289 = vmatpush1.msra.mxu0 0.0
        %2290 = vmatprep.subr.mxu0 0.0
        %2291 = vmatpush1.msra.mxu0 0.0
        %2292 = vmatprep.subr.mxu0 0.0
        %2293 = vmatpush1.msra.mxu0 0.0
        %2294 = vmatprep.subr.mxu0 0.0
        %2295 = vmatpush1.msra.mxu0 0.0
        %2296 = vmatprep.subr.mxu0 0.0
        %2297 = vmatpush1.msra.mxu0 0.0
        %2298 = vmatprep.subr.mxu0 0.0
        %2299 = vmatpush1.msra.mxu0 0.0
        %2300 = vmatprep.subr.mxu0 0.0
        %2301 = vmatpush1.msra.mxu0 0.0
        %2302 = vmatprep.subr.mxu0 0.0
        %2303 = vmatpush1.msra.mxu0 0.0
        %2304 = vmatprep.subr.mxu0 0.0
        %2305 = vmatpush1.msra.mxu0 0.0
        %2306 = vmatprep.subr.mxu0 0.0
        %2307 = vmatpush1.msra.mxu0 0.0
        %2308 = vmatprep.subr.mxu0 0.0
        %2309 = vmatpush1.msra.mxu0 0.0
        %2310 = vmatprep.subr.mxu0 %v1900
        %2311 = vmatpush1.msra.mxu0 %v1899
        %2312 = vmatprep.subr.mxu0 0.0
        %2313 = vmatpush2.msra.mxu0 0.0
        %2314 = vmatprep.subr.mxu0 0.0
        %2315 = vmatpush2.msra.mxu0 0.0
        %2316 = vmatprep.subr.mxu0 0.0
        %2317 = vmatpush2.msra.mxu0 0.0
        %2318 = vmatprep.subr.mxu0 0.0
        %2319 = vmatpush2.msra.mxu0 0.0
        %2320 = vmatprep.subr.mxu0 0.0
        %2321 = vmatpush2.msra.mxu0 0.0
        %2322 = vmatprep.subr.mxu0 0.0
        %2323 = vmatpush2.msra.mxu0 0.0
        %2324 = vmatprep.subr.mxu0 0.0
        %2325 = vmatpush2.msra.mxu0 0.0
        %2326 = vmatprep.subr.mxu0 0.0
        %2327 = vmatpush2.msra.mxu0 0.0
        %2328 = vmatprep.subr.mxu0 0.0
        %2329 = vmatpush2.msra.mxu0 0.0
        %2330 = vmatprep.subr.mxu0 0.0
        %2331 = vmatpush2.msra.mxu0 0.0
        %2332 = vmatprep.subr.mxu0 0.0
        %2333 = vmatpush2.msra.mxu0 0.0
        %2334 = vmatprep.subr.mxu0 0.0
        %2335 = vmatpush2.msra.mxu0 0.0
        %2336 = vmatprep.subr.mxu0 0.0
        %2337 = vmatpush2.msra.mxu0 0.0
        %2338 = vmatprep.subr.mxu0 0.0
        %2339 = vmatpush2.msra.mxu0 0.0
        %2340 = vmatprep.subr.mxu0 0.0
        %2341 = vmatpush2.msra.mxu0 0.0
        %2342 = vmatprep.subr.mxu0 0.0
        %2343 = vmatpush2.msra.mxu0 0.0
        %2344 = vmatprep.mubr.f32.mxu0 0.0
        %2345 = vmatmul.mubr.f32.gmra.mxu0 %v1913
        %v2346 = vpop.f32.mrf.mxu0
        %v2347 = vadd.f32 0.0, %v2346
        %v2348 = vpop.f32.mrf.mxu0
        %v2349 = vadd.f32 0.0, %v2348
        %2350 = vmatprep.mubr.f32.mxu0 0.0
        %2351 = vmatmul.mubr.f32.gmra.mxu0 %v1916
        %v2352 = vpop.f32.mrf.mxu0
        %v2353 = vadd.f32 0.0, %v2352
        %v2354 = vpop.f32.mrf.mxu0
        %v2355 = vadd.f32 0.0, %v2354
        %2356 = vmatprep.mubr.f32.mxu0 0.0
        %2357 = vmatmul.mubr.f32.gmra.mxu0 %v1919
        %v2358 = vpop.f32.mrf.mxu0
        %v2359 = vadd.f32 0.0, %v2358
        %v2360 = vpop.f32.mrf.mxu0
        %v2361 = vadd.f32 0.0, %v2360
        %2362 = vmatprep.mubr.f32.mxu0 0.0
        %2363 = vmatmul.mubr.f32.gmra.mxu0 %v1922
        %v2364 = vpop.f32.mrf.mxu0
        %v2365 = vadd.f32 0.0, %v2364
        %v2366 = vpop.f32.mrf.mxu0
        %v2367 = vadd.f32 0.0, %v2366
        %2368 = vdwg.mxu0
        %2369 = vmatprep.subr.mxu0 0.0
        %2370 = vmatpush1.msra.mxu0 0.0
        %2371 = vmatprep.subr.mxu0 0.0
        %2372 = vmatpush1.msra.mxu0 0.0
        %2373 = vmatprep.subr.mxu0 0.0
        %2374 = vmatpush1.msra.mxu0 0.0
        %2375 = vmatprep.subr.mxu0 0.0
        %2376 = vmatpush1.msra.mxu0 0.0
        %2377 = vmatprep.subr.mxu0 0.0
        %2378 = vmatpush1.msra.mxu0 0.0
        %2379 = vmatprep.subr.mxu0 0.0
        %2380 = vmatpush1.msra.mxu0 0.0
        %2381 = vmatprep.subr.mxu0 0.0
        %2382 = vmatpush1.msra.mxu0 0.0
        %2383 = vmatprep.subr.mxu0 0.0
        %2384 = vmatpush1.msra.mxu0 0.0
        %2385 = vmatprep.subr.mxu0 0.0
        %2386 = vmatpush1.msra.mxu0 0.0
        %2387 = vmatprep.subr.mxu0 0.0
        %2388 = vmatpush1.msra.mxu0 0.0
        %2389 = vmatprep.subr.mxu0 0.0
        %2390 = vmatpush1.msra.mxu0 0.0
        %2391 = vmatprep.subr.mxu0 0.0
        %2392 = vmatpush1.msra.mxu0 0.0
        %2393 = vmatprep.subr.mxu0 0.0
        %2394 = vmatpush1.msra.mxu0 0.0
        %2395 = vmatprep.subr.mxu0 0.0
        %2396 = vmatpush1.msra.mxu0 0.0
        %2397 = vmatprep.subr.mxu0 0.0
        %2398 = vmatpush1.msra.mxu0 0.0
        %2399 = vmatprep.subr.mxu0 %v1902
        %2400 = vmatpush1.msra.mxu0 %v1901
        %2401 = vmatprep.subr.mxu0 0.0
        %2402 = vmatpush2.msra.mxu0 0.0
        %2403 = vmatprep.subr.mxu0 0.0
        %2404 = vmatpush2.msra.mxu0 0.0
        %2405 = vmatprep.subr.mxu0 0.0
        %2406 = vmatpush2.msra.mxu0 0.0
        %2407 = vmatprep.subr.mxu0 0.0
        %2408 = vmatpush2.msra.mxu0 0.0
        %2409 = vmatprep.subr.mxu0 0.0
        %2410 = vmatpush2.msra.mxu0 0.0
        %2411 = vmatprep.subr.mxu0 0.0
        %2412 = vmatpush2.msra.mxu0 0.0
        %2413 = vmatprep.subr.mxu0 0.0
        %2414 = vmatpush2.msra.mxu0 0.0
        %2415 = vmatprep.subr.mxu0 0.0
        %2416 = vmatpush2.msra.mxu0 0.0
        %2417 = vmatprep.subr.mxu0 0.0
        %2418 = vmatpush2.msra.mxu0 0.0
        %2419 = vmatprep.subr.mxu0 0.0
        %2420 = vmatpush2.msra.mxu0 0.0
        %2421 = vmatprep.subr.mxu0 0.0
        %2422 = vmatpush2.msra.mxu0 0.0
        %2423 = vmatprep.subr.mxu0 0.0
        %2424 = vmatpush2.msra.mxu0 0.0
        %2425 = vmatprep.subr.mxu0 0.0
        %2426 = vmatpush2.msra.mxu0 0.0
        %2427 = vmatprep.subr.mxu0 0.0
        %2428 = vmatpush2.msra.mxu0 0.0
        %2429 = vmatprep.subr.mxu0 0.0
        %2430 = vmatpush2.msra.mxu0 0.0
        %2431 = vmatprep.subr.mxu0 0.0
        %2432 = vmatpush2.msra.mxu0 0.0
        %2433 = vmatprep.mubr.f32.mxu0 0.0
        %2434 = vmatmul.mubr.f32.gmra.mxu0 %v1913
        %v2435 = vpop.f32.mrf.mxu0
        %v2436 = vadd.f32 0.0, %v2435
        %v2437 = vpop.f32.mrf.mxu0
        %v2438 = vadd.f32 0.0, %v2437
        %2439 = vmatprep.mubr.f32.mxu0 0.0
        %2440 = vmatmul.mubr.f32.gmra.mxu0 %v1916
        %v2441 = vpop.f32.mrf.mxu0
        %v2442 = vadd.f32 0.0, %v2441
        %v2443 = vpop.f32.mrf.mxu0
        %v2444 = vadd.f32 0.0, %v2443
        %2445 = vmatprep.mubr.f32.mxu0 0.0
        %2446 = vmatmul.mubr.f32.gmra.mxu0 %v1919
        %v2447 = vpop.f32.mrf.mxu0
        %v2448 = vadd.f32 0.0, %v2447
        %v2449 = vpop.f32.mrf.mxu0
        %v2450 = vadd.f32 0.0, %v2449
        %2451 = vmatprep.mubr.f32.mxu0 0.0
        %2452 = vmatmul.mubr.f32.gmra.mxu0 %v1922
        %v2453 = vpop.f32.mrf.mxu0
        %v2454 = vadd.f32 0.0, %v2453
        %v2455 = vpop.f32.mrf.mxu0
        %v2456 = vadd.f32 0.0, %v2455
        %2457 = vdwg.mxu0
        %2458 = vmatprep.subr.mxu0 0.0
        %2459 = vmatpush1.msra.mxu0 0.0
        %2460 = vmatprep.subr.mxu0 0.0
        %2461 = vmatpush1.msra.mxu0 0.0
        %2462 = vmatprep.subr.mxu0 0.0
        %2463 = vmatpush1.msra.mxu0 0.0
        %2464 = vmatprep.subr.mxu0 0.0
        %2465 = vmatpush1.msra.mxu0 0.0
        %2466 = vmatprep.subr.mxu0 0.0
        %2467 = vmatpush1.msra.mxu0 0.0
        %2468 = vmatprep.subr.mxu0 0.0
        %2469 = vmatpush1.msra.mxu0 0.0
        %2470 = vmatprep.subr.mxu0 0.0
        %2471 = vmatpush1.msra.mxu0 0.0
        %2472 = vmatprep.subr.mxu0 0.0
        %2473 = vmatpush1.msra.mxu0 0.0
        %2474 = vmatprep.subr.mxu0 0.0
        %2475 = vmatpush1.msra.mxu0 0.0
        %2476 = vmatprep.subr.mxu0 0.0
        %2477 = vmatpush1.msra.mxu0 0.0
        %2478 = vmatprep.subr.mxu0 0.0
        %2479 = vmatpush1.msra.mxu0 0.0
        %2480 = vmatprep.subr.mxu0 0.0
        %2481 = vmatpush1.msra.mxu0 0.0
        %2482 = vmatprep.subr.mxu0 0.0
        %2483 = vmatpush1.msra.mxu0 0.0
        %2484 = vmatprep.subr.mxu0 0.0
        %2485 = vmatpush1.msra.mxu0 0.0
        %2486 = vmatprep.subr.mxu0 0.0
        %2487 = vmatpush1.msra.mxu0 0.0
        %2488 = vmatprep.subr.mxu0 %v1904
        %2489 = vmatpush1.msra.mxu0 %v1903
        %2490 = vmatprep.subr.mxu0 0.0
        %2491 = vmatpush2.msra.mxu0 0.0
        %2492 = vmatprep.subr.mxu0 0.0
        %2493 = vmatpush2.msra.mxu0 0.0
        %2494 = vmatprep.subr.mxu0 0.0
        %2495 = vmatpush2.msra.mxu0 0.0
        %2496 = vmatprep.subr.mxu0 0.0
        %2497 = vmatpush2.msra.mxu0 0.0
        %2498 = vmatprep.subr.mxu0 0.0
        %2499 = vmatpush2.msra.mxu0 0.0
        %2500 = vmatprep.subr.mxu0 0.0
        %2501 = vmatpush2.msra.mxu0 0.0
        %2502 = vmatprep.subr.mxu0 0.0
        %2503 = vmatpush2.msra.mxu0 0.0
        %2504 = vmatprep.subr.mxu0 0.0
        %2505 = vmatpush2.msra.mxu0 0.0
        %2506 = vmatprep.subr.mxu0 0.0
        %2507 = vmatpush2.msra.mxu0 0.0
        %2508 = vmatprep.subr.mxu0 0.0
        %2509 = vmatpush2.msra.mxu0 0.0
        %2510 = vmatprep.subr.mxu0 0.0
        %2511 = vmatpush2.msra.mxu0 0.0
        %2512 = vmatprep.subr.mxu0 0.0
        %2513 = vmatpush2.msra.mxu0 0.0
        %2514 = vmatprep.subr.mxu0 0.0
        %2515 = vmatpush2.msra.mxu0 0.0
        %2516 = vmatprep.subr.mxu0 0.0
        %2517 = vmatpush2.msra.mxu0 0.0
        %2518 = vmatprep.subr.mxu0 0.0
        %2519 = vmatpush2.msra.mxu0 0.0
        %2520 = vmatprep.subr.mxu0 0.0
        %2521 = vmatpush2.msra.mxu0 0.0
        %2522 = vmatprep.mubr.f32.mxu0 0.0
        %2523 = vmatmul.mubr.f32.gmra.mxu0 %v1913
        %v2524 = vpop.f32.mrf.mxu0
        %v2525 = vadd.f32 0.0, %v2524
        %v2526 = vpop.f32.mrf.mxu0
        %v2527 = vadd.f32 0.0, %v2526
        %2528 = vmatprep.mubr.f32.mxu0 0.0
        %2529 = vmatmul.mubr.f32.gmra.mxu0 %v1916
        %v2530 = vpop.f32.mrf.mxu0
        %v2531 = vadd.f32 0.0, %v2530
        %v2532 = vpop.f32.mrf.mxu0
        %v2533 = vadd.f32 0.0, %v2532
        %2534 = vmatprep.mubr.f32.mxu0 0.0
        %2535 = vmatmul.mubr.f32.gmra.mxu0 %v1919
        %v2536 = vpop.f32.mrf.mxu0
        %v2537 = vadd.f32 0.0, %v2536
        %v2538 = vpop.f32.mrf.mxu0
        %v2539 = vadd.f32 0.0, %v2538
        %2540 = vmatprep.mubr.f32.mxu0 0.0
        %2541 = vmatmul.mubr.f32.gmra.mxu0 %v1922
        %v2542 = vpop.f32.mrf.mxu0
        %v2543 = vadd.f32 0.0, %v2542
        %v2544 = vpop.f32.mrf.mxu0
        %v2545 = vadd.f32 0.0, %v2544
        %2546 = vdwg.mxu0
        %2547 = vmatprep.subr.mxu0 0.0
        %2548 = vmatpush1.msra.mxu0 0.0
        %2549 = vmatprep.subr.mxu0 0.0
        %2550 = vmatpush1.msra.mxu0 0.0
        %2551 = vmatprep.subr.mxu0 0.0
        %2552 = vmatpush1.msra.mxu0 0.0
        %2553 = vmatprep.subr.mxu0 0.0
        %2554 = vmatpush1.msra.mxu0 0.0
        %2555 = vmatprep.subr.mxu0 0.0
        %2556 = vmatpush1.msra.mxu0 0.0
        %2557 = vmatprep.subr.mxu0 0.0
        %2558 = vmatpush1.msra.mxu0 0.0
        %2559 = vmatprep.subr.mxu0 0.0
        %2560 = vmatpush1.msra.mxu0 0.0
        %2561 = vmatprep.subr.mxu0 0.0
        %2562 = vmatpush1.msra.mxu0 0.0
        %2563 = vmatprep.subr.mxu0 0.0
        %2564 = vmatpush1.msra.mxu0 0.0
        %2565 = vmatprep.subr.mxu0 0.0
        %2566 = vmatpush1.msra.mxu0 0.0
        %2567 = vmatprep.subr.mxu0 0.0
        %2568 = vmatpush1.msra.mxu0 0.0
        %2569 = vmatprep.subr.mxu0 0.0
        %2570 = vmatpush1.msra.mxu0 0.0
        %2571 = vmatprep.subr.mxu0 0.0
        %2572 = vmatpush1.msra.mxu0 0.0
        %2573 = vmatprep.subr.mxu0 0.0
        %2574 = vmatpush1.msra.mxu0 0.0
        %2575 = vmatprep.subr.mxu0 0.0
        %2576 = vmatpush1.msra.mxu0 0.0
        %2577 = vmatprep.subr.mxu0 %v1906
        %2578 = vmatpush1.msra.mxu0 %v1905
        %2579 = vmatprep.subr.mxu0 0.0
        %2580 = vmatpush2.msra.mxu0 0.0
        %2581 = vmatprep.subr.mxu0 0.0
        %2582 = vmatpush2.msra.mxu0 0.0
        %2583 = vmatprep.subr.mxu0 0.0
        %2584 = vmatpush2.msra.mxu0 0.0
        %2585 = vmatprep.subr.mxu0 0.0
        %2586 = vmatpush2.msra.mxu0 0.0
        %2587 = vmatprep.subr.mxu0 0.0
        %2588 = vmatpush2.msra.mxu0 0.0
        %2589 = vmatprep.subr.mxu0 0.0
        %2590 = vmatpush2.msra.mxu0 0.0
        %2591 = vmatprep.subr.mxu0 0.0
        %2592 = vmatpush2.msra.mxu0 0.0
        %2593 = vmatprep.subr.mxu0 0.0
        %2594 = vmatpush2.msra.mxu0 0.0
        %2595 = vmatprep.subr.mxu0 0.0
        %2596 = vmatpush2.msra.mxu0 0.0
        %2597 = vmatprep.subr.mxu0 0.0
        %2598 = vmatpush2.msra.mxu0 0.0
        %2599 = vmatprep.subr.mxu0 0.0
        %2600 = vmatpush2.msra.mxu0 0.0
        %2601 = vmatprep.subr.mxu0 0.0
        %2602 = vmatpush2.msra.mxu0 0.0
        %2603 = vmatprep.subr.mxu0 0.0
        %2604 = vmatpush2.msra.mxu0 0.0
        %2605 = vmatprep.subr.mxu0 0.0
        %2606 = vmatpush2.msra.mxu0 0.0
        %2607 = vmatprep.subr.mxu0 0.0
        %2608 = vmatpush2.msra.mxu0 0.0
        %2609 = vmatprep.subr.mxu0 0.0
        %2610 = vmatpush2.msra.mxu0 0.0
        %2611 = vmatprep.mubr.f32.mxu0 0.0
        %2612 = vmatmul.mubr.f32.gmra.mxu0 %v1913
        %v2613 = vpop.f32.mrf.mxu0
        %v2614 = vadd.f32 0.0, %v2613
        %v2615 = vpop.f32.mrf.mxu0
        %v2616 = vadd.f32 0.0, %v2615
        %2617 = vmatprep.mubr.f32.mxu0 0.0
        %2618 = vmatmul.mubr.f32.gmra.mxu0 %v1916
        %v2619 = vpop.f32.mrf.mxu0
        %v2620 = vadd.f32 0.0, %v2619
        %v2621 = vpop.f32.mrf.mxu0
        %v2622 = vadd.f32 0.0, %v2621
        %2623 = vmatprep.mubr.f32.mxu0 0.0
        %2624 = vmatmul.mubr.f32.gmra.mxu0 %v1919
        %v2625 = vpop.f32.mrf.mxu0
        %v2626 = vadd.f32 0.0, %v2625
        %v2627 = vpop.f32.mrf.mxu0
        %v2628 = vadd.f32 0.0, %v2627
        %2629 = vmatprep.mubr.f32.mxu0 0.0
        %2630 = vmatmul.mubr.f32.gmra.mxu0 %v1922
        %v2631 = vpop.f32.mrf.mxu0
        %v2632 = vadd.f32 0.0, %v2631
        %v2633 = vpop.f32.mrf.mxu0
        %v2634 = vadd.f32 0.0, %v2633
        %2635 = vdwg.mxu0
        %v2636 = vmax.f32 %v1991, 0.0
        %v2637 = vmax.f32 %v1993, 0.0
        %v2638 = vmax.f32 %v2080, 0.0
        %v2639 = vmax.f32 %v2082, 0.0
        %v2640 = vmax.f32 %v2169, 0.0
        %v2641 = vmax.f32 %v2171, 0.0
        %v2642 = vmax.f32 %v2258, 0.0
        %v2643 = vmax.f32 %v2260, 0.0
        %v2644 = vmax.f32 %v2347, 0.0
        %v2645 = vmax.f32 %v2349, 0.0
        %v2646 = vmax.f32 %v2436, 0.0
        %v2647 = vmax.f32 %v2438, 0.0
        %v2648 = vmax.f32 %v2525, 0.0
        %v2649 = vmax.f32 %v2527, 0.0
        %v2650 = vmax.f32 %v2614, 0.0
        %v2651 = vmax.f32 %v2616, 0.0
        %v2652 = vmax.f32 %v1997, 0.0
        %v2653 = vmax.f32 %v1999, 0.0
        %v2654 = vmax.f32 %v2086, 0.0
        %v2655 = vmax.f32 %v2088, 0.0
        %v2656 = vmax.f32 %v2175, 0.0
        %v2657 = vmax.f32 %v2177, 0.0
        %v2658 = vmax.f32 %v2264, 0.0
        %v2659 = vmax.f32 %v2266, 0.0
        %v2660 = vmax.f32 %v2353, 0.0
        %v2661 = vmax.f32 %v2355, 0.0
        %v2662 = vmax.f32 %v2442, 0.0
        %v2663 = vmax.f32 %v2444, 0.0
        %v2664 = vmax.f32 %v2531, 0.0
        %v2665 = vmax.f32 %v2533, 0.0
        %v2666 = vmax.f32 %v2620, 0.0
        %v2667 = vmax.f32 %v2622, 0.0
        %v2668 = vmax.f32 %v2003, 0.0
        %v2669 = vmax.f32 %v2005, 0.0
        %v2670 = vmax.f32 %v2092, 0.0
        %v2671 = vmax.f32 %v2094, 0.0
        %v2672 = vmax.f32 %v2181, 0.0
        %v2673 = vmax.f32 %v2183, 0.0
        %v2674 = vmax.f32 %v2270, 0.0
        %v2675 = vmax.f32 %v2272, 0.0
        %v2676 = vmax.f32 %v2359, 0.0
        %v2677 = vmax.f32 %v2361, 0.0
        %v2678 = vmax.f32 %v2448, 0.0
        %v2679 = vmax.f32 %v2450, 0.0
        %v2680 = vmax.f32 %v2537, 0.0
        %v2681 = vmax.f32 %v2539, 0.0
        %v2682 = vmax.f32 %v2626, 0.0
        %v2683 = vmax.f32 %v2628, 0.0
        %v2684 = vmax.f32 %v2009, 0.0
        %v2685 = vmax.f32 %v2011, 0.0
        %v2686 = vmax.f32 %v2098, 0.0
        %v2687 = vmax.f32 %v2100, 0.0
        %v2688 = vmax.f32 %v2187, 0.0
        %v2689 = vmax.f32 %v2189, 0.0
        %v2690 = vmax.f32 %v2276, 0.0
        %v2691 = vmax.f32 %v2278, 0.0
        %v2692 = vmax.f32 %v2365, 0.0
        %v2693 = vmax.f32 %v2367, 0.0
        %v2694 = vmax.f32 %v2454, 0.0
        %v2695 = vmax.f32 %v2456, 0.0
        %v2696 = vmax.f32 %v2543, 0.0
        %v2697 = vmax.f32 %v2545, 0.0
        %v2698 = vmax.f32 %v2632, 0.0
        %v2699 = vmax.f32 %v2634, 0.0
        %2700 = vrot.lane.b32.xlu0 %v2636, 2
        %v2701 = vpop.permute.xlu0 %2700
        %2702 = vrot.lane.b32.xlu0 %v2652, 2
        %v2703 = vpop.permute.xlu0 %2702
        %2704 = vrot.lane.b32.xlu0 %v2668, 2
        %v2705 = vpop.permute.xlu0 %2704
        %2706 = vrot.lane.b32.xlu0 %v2684, 2
        %v2707 = vpop.permute.xlu0 %2706
        %2708 = vrot.lane.b32.xlu0 %v2637, 2
        %v2709 = vpop.permute.xlu0 %2708
        %2710 = vrot.lane.b32.xlu0 %v2653, 2
        %v2711 = vpop.permute.xlu0 %2710
        %2712 = vrot.lane.b32.xlu0 %v2669, 2
        %v2713 = vpop.permute.xlu0 %2712
        %2714 = vrot.lane.b32.xlu0 %v2685, 2
        %v2715 = vpop.permute.xlu0 %2714
        %2716 = vrot.lane.b32.xlu0 %v2638, 2
        %v2717 = vpop.permute.xlu0 %2716
        %2718 = vrot.lane.b32.xlu0 %v2654, 2
        %v2719 = vpop.permute.xlu0 %2718
        %2720 = vrot.lane.b32.xlu0 %v2670, 2
        %v2721 = vpop.permute.xlu0 %2720
        %2722 = vrot.lane.b32.xlu0 %v2686, 2
        %v2723 = vpop.permute.xlu0 %2722
        %2724 = vrot.lane.b32.xlu0 %v2639, 2
        %v2725 = vpop.permute.xlu0 %2724
        %2726 = vrot.lane.b32.xlu0 %v2655, 2
        %v2727 = vpop.permute.xlu0 %2726
        %2728 = vrot.lane.b32.xlu0 %v2671, 2
        %v2729 = vpop.permute.xlu0 %2728
        %2730 = vrot.lane.b32.xlu0 %v2687, 2
        %v2731 = vpop.permute.xlu0 %2730
        %2732 = vrot.lane.b32.xlu0 %v2640, 2
        %v2733 = vpop.permute.xlu0 %2732
        %2734 = vrot.lane.b32.xlu0 %v2656, 2
        %v2735 = vpop.permute.xlu0 %2734
        %2736 = vrot.lane.b32.xlu0 %v2672, 2
        %v2737 = vpop.permute.xlu0 %2736
        %2738 = vrot.lane.b32.xlu0 %v2688, 2
        %v2739 = vpop.permute.xlu0 %2738
        %2740 = vrot.lane.b32.xlu0 %v2641, 2
        %v2741 = vpop.permute.xlu0 %2740
        %2742 = vrot.lane.b32.xlu0 %v2657, 2
        %v2743 = vpop.permute.xlu0 %2742
        %2744 = vrot.lane.b32.xlu0 %v2673, 2
        %v2745 = vpop.permute.xlu0 %2744
        %2746 = vrot.lane.b32.xlu0 %v2689, 2
        %v2747 = vpop.permute.xlu0 %2746
        %2748 = vrot.lane.b32.xlu0 %v2642, 2
        %v2749 = vpop.permute.xlu0 %2748
        %2750 = vrot.lane.b32.xlu0 %v2658, 2
        %v2751 = vpop.permute.xlu0 %2750
        %2752 = vrot.lane.b32.xlu0 %v2674, 2
        %v2753 = vpop.permute.xlu0 %2752
        %2754 = vrot.lane.b32.xlu0 %v2690, 2
        %v2755 = vpop.permute.xlu0 %2754
        %2756 = vrot.lane.b32.xlu0 %v2643, 2
        %v2757 = vpop.permute.xlu0 %2756
        %2758 = vrot.lane.b32.xlu0 %v2659, 2
        %v2759 = vpop.permute.xlu0 %2758
        %2760 = vrot.lane.b32.xlu0 %v2675, 2
        %v2761 = vpop.permute.xlu0 %2760
        %2762 = vrot.lane.b32.xlu0 %v2691, 2
        %v2763 = vpop.permute.xlu0 %2762
        %2764 = vrot.lane.b32.xlu0 %v2644, 2
        %v2765 = vpop.permute.xlu0 %2764
        %2766 = vrot.lane.b32.xlu0 %v2660, 2
        %v2767 = vpop.permute.xlu0 %2766
        %2768 = vrot.lane.b32.xlu0 %v2676, 2
        %v2769 = vpop.permute.xlu0 %2768
        %2770 = vrot.lane.b32.xlu0 %v2692, 2
        %v2771 = vpop.permute.xlu0 %2770
        %2772 = vrot.lane.b32.xlu0 %v2645, 2
        %v2773 = vpop.permute.xlu0 %2772
        %2774 = vrot.lane.b32.xlu0 %v2661, 2
        %v2775 = vpop.permute.xlu0 %2774
        %2776 = vrot.lane.b32.xlu0 %v2677, 2
        %v2777 = vpop.permute.xlu0 %2776
        %2778 = vrot.lane.b32.xlu0 %v2693, 2
        %v2779 = vpop.permute.xlu0 %2778
        %2780 = vrot.lane.b32.xlu0 %v2646, 2
        %v2781 = vpop.permute.xlu0 %2780
        %2782 = vrot.lane.b32.xlu0 %v2662, 2
        %v2783 = vpop.permute.xlu0 %2782
        %2784 = vrot.lane.b32.xlu0 %v2678, 2
        %v2785 = vpop.permute.xlu0 %2784
        %2786 = vrot.lane.b32.xlu0 %v2694, 2
        %v2787 = vpop.permute.xlu0 %2786
        %2788 = vrot.lane.b32.xlu0 %v2647, 2
        %v2789 = vpop.permute.xlu0 %2788
        %2790 = vrot.lane.b32.xlu0 %v2663, 2
        %v2791 = vpop.permute.xlu0 %2790
        %2792 = vrot.lane.b32.xlu0 %v2679, 2
        %v2793 = vpop.permute.xlu0 %2792
        %2794 = vrot.lane.b32.xlu0 %v2695, 2
        %v2795 = vpop.permute.xlu0 %2794
        %2796 = vrot.lane.b32.xlu0 %v2648, 2
        %v2797 = vpop.permute.xlu0 %2796
        %2798 = vrot.lane.b32.xlu0 %v2664, 2
        %v2799 = vpop.permute.xlu0 %2798
        %2800 = vrot.lane.b32.xlu0 %v2680, 2
        %v2801 = vpop.permute.xlu0 %2800
        %2802 = vrot.lane.b32.xlu0 %v2696, 2
        %v2803 = vpop.permute.xlu0 %2802
        %2804 = vrot.lane.b32.xlu0 %v2649, 2
        %v2805 = vpop.permute.xlu0 %2804
        %2806 = vrot.lane.b32.xlu0 %v2665, 2
        %v2807 = vpop.permute.xlu0 %2806
        %2808 = vrot.lane.b32.xlu0 %v2681, 2
        %v2809 = vpop.permute.xlu0 %2808
        %2810 = vrot.lane.b32.xlu0 %v2697, 2
        %v2811 = vpop.permute.xlu0 %2810
        %2812 = vrot.lane.b32.xlu0 %v2650, 2
        %v2813 = vpop.permute.xlu0 %2812
        %2814 = vrot.lane.b32.xlu0 %v2666, 2
        %v2815 = vpop.permute.xlu0 %2814
        %2816 = vrot.lane.b32.xlu0 %v2682, 2
        %v2817 = vpop.permute.xlu0 %2816
        %2818 = vrot.lane.b32.xlu0 %v2698, 2
        %v2819 = vpop.permute.xlu0 %2818
        %2820 = vrot.lane.b32.xlu0 %v2651, 2
        %v2821 = vpop.permute.xlu0 %2820
        %2822 = vrot.lane.b32.xlu0 %v2667, 2
        %v2823 = vpop.permute.xlu0 %2822
        %2824 = vrot.lane.b32.xlu0 %v2683, 2
        %v2825 = vpop.permute.xlu0 %2824
        %2826 = vrot.lane.b32.xlu0 %v2699, 2
        %v2827 = vpop.permute.xlu0 %2826
        %v2828 = vsel %vm1255, %v2813, %v2821
        %v2829 = vsel %vm1255, %v2815, %v2823
        %v2830 = vsel %vm1255, %v2817, %v2825
        %v2831 = vsel %vm1255, %v2819, %v2827
        %v2832 = vsel %vm1255, %v2805, %v2813
        %v2833 = vsel %vm1255, %v2807, %v2815
        %v2834 = vsel %vm1255, %v2809, %v2817
        %v2835 = vsel %vm1255, %v2811, %v2819
        %v2836 = vsel %vm1255, %v2797, %v2805
        %v2837 = vsel %vm1255, %v2799, %v2807
        %v2838 = vsel %vm1255, %v2801, %v2809
        %v2839 = vsel %vm1255, %v2803, %v2811
        %v2840 = vsel %vm1255, %v2789, %v2797
        %v2841 = vsel %vm1255, %v2791, %v2799
        %v2842 = vsel %vm1255, %v2793, %v2801
        %v2843 = vsel %vm1255, %v2795, %v2803
        %v2844 = vsel %vm1255, %v2781, %v2789
        %v2845 = vsel %vm1255, %v2783, %v2791
        %v2846 = vsel %vm1255, %v2785, %v2793
        %v2847 = vsel %vm1255, %v2787, %v2795
        %v2848 = vsel %vm1255, %v2773, %v2781
        %v2849 = vsel %vm1255, %v2775, %v2783
        %v2850 = vsel %vm1255, %v2777, %v2785
        %v2851 = vsel %vm1255, %v2779, %v2787
        %v2852 = vsel %vm1255, %v2765, %v2773
        %v2853 = vsel %vm1255, %v2767, %v2775
        %v2854 = vsel %vm1255, %v2769, %v2777
        %v2855 = vsel %vm1255, %v2771, %v2779
        %v2856 = vsel %vm1255, %v2757, %v2765
        %v2857 = vsel %vm1255, %v2759, %v2767
        %v2858 = vsel %vm1255, %v2761, %v2769
        %v2859 = vsel %vm1255, %v2763, %v2771
        %v2860 = vsel %vm1255, %v2749, %v2757
        %v2861 = vsel %vm1255, %v2751, %v2759
        %v2862 = vsel %vm1255, %v2753, %v2761
        %v2863 = vsel %vm1255, %v2755, %v2763
        %v2864 = vsel %vm1255, %v2741, %v2749
        %v2865 = vsel %vm1255, %v2743, %v2751
        %v2866 = vsel %vm1255, %v2745, %v2753
        %v2867 = vsel %vm1255, %v2747, %v2755
        %v2868 = vsel %vm1255, %v2733, %v2741
        %v2869 = vsel %vm1255, %v2735, %v2743
        %v2870 = vsel %vm1255, %v2737, %v2745
        %v2871 = vsel %vm1255, %v2739, %v2747
        %v2872 = vsel %vm1255, %v2725, %v2733
        %v2873 = vsel %vm1255, %v2727, %v2735
        %v2874 = vsel %vm1255, %v2729, %v2737
        %v2875 = vsel %vm1255, %v2731, %v2739
        %v2876 = vsel %vm1255, %v2717, %v2725
        %v2877 = vsel %vm1255, %v2719, %v2727
        %v2878 = vsel %vm1255, %v2721, %v2729
        %v2879 = vsel %vm1255, %v2723, %v2731
        %v2880 = vsel %vm1255, %v2709, %v2717
        %v2881 = vsel %vm1255, %v2711, %v2719
        %v2882 = vsel %vm1255, %v2713, %v2721
        %v2883 = vsel %vm1255, %v2715, %v2723
        %v2884 = vsel %vm1255, %v2701, %v2709
        %v2885 = vsel %vm1255, %v2703, %v2711
        %v2886 = vsel %vm1255, %v2705, %v2713
        %v2887 = vsel %vm1255, %v2707, %v2715
        %v2888 = vsel %vm1255, %v2821, %v2701
        %v2889 = vsel %vm1255, %v2823, %v2703
        %v2890 = vsel %vm1255, %v2825, %v2705
        %v2891 = vsel %vm1255, %v2827, %v2707
        %v2892 = vmul.f32 %v2888, %v676
        %v2893 = vmul.f32 %v2884, %v677
        %v2894 = vmul.f32 %v2880, %v678
        %v2895 = vmul.f32 %v2876, %v679
        %v2896 = vmul.f32 %v2872, %v680
        %v2897 = vmul.f32 %v2868, %v681
        %v2898 = vmul.f32 %v2864, %v682
        %v2899 = vmul.f32 %v2860, %v683
        %v2900 = vmul.f32 %v2856, %v684
        %v2901 = vmul.f32 %v2852, %v685
        %v2902 = vmul.f32 %v2848, %v686
        %v2903 = vmul.f32 %v2844, %v687
        %v2904 = vmul.f32 %v2840, %v688
        %v2905 = vmul.f32 %v2836, %v689
        %v2906 = vmul.f32 %v2832, %v690
        %v2907 = vmul.f32 %v2828, %v691
        %v2908 = vmul.f32 %v2889, %v676
        %v2909 = vmul.f32 %v2885, %v677
        %v2910 = vmul.f32 %v2881, %v678
        %v2911 = vmul.f32 %v2877, %v679
        %v2912 = vmul.f32 %v2873, %v680
        %v2913 = vmul.f32 %v2869, %v681
        %v2914 = vmul.f32 %v2865, %v682
        %v2915 = vmul.f32 %v2861, %v683
        %v2916 = vmul.f32 %v2857, %v684
        %v2917 = vmul.f32 %v2853, %v685
        %v2918 = vmul.f32 %v2849, %v686
        %v2919 = vmul.f32 %v2845, %v687
        %v2920 = vmul.f32 %v2841, %v688
        %v2921 = vmul.f32 %v2837, %v689
        %v2922 = vmul.f32 %v2833, %v690
        %v2923 = vmul.f32 %v2829, %v691
        %v2924 = vmul.f32 %v2890, %v676
        %v2925 = vmul.f32 %v2886, %v677
        %v2926 = vmul.f32 %v2882, %v678
        %v2927 = vmul.f32 %v2878, %v679
        %v2928 = vmul.f32 %v2874, %v680
        %v2929 = vmul.f32 %v2870, %v681
        %v2930 = vmul.f32 %v2866, %v682
        %v2931 = vmul.f32 %v2862, %v683
        %v2932 = vmul.f32 %v2858, %v684
        %v2933 = vmul.f32 %v2854, %v685
        %v2934 = vmul.f32 %v2850, %v686
        %v2935 = vmul.f32 %v2846, %v687
        %v2936 = vmul.f32 %v2842, %v688
        %v2937 = vmul.f32 %v2838, %v689
        %v2938 = vmul.f32 %v2834, %v690
        %v2939 = vmul.f32 %v2830, %v691
        %v2940 = vmul.f32 %v2891, %v676
        %v2941 = vmul.f32 %v2887, %v677
        %v2942 = vmul.f32 %v2883, %v678
        %v2943 = vmul.f32 %v2879, %v679
        %v2944 = vmul.f32 %v2875, %v680
        %v2945 = vmul.f32 %v2871, %v681
        %v2946 = vmul.f32 %v2867, %v682
        %v2947 = vmul.f32 %v2863, %v683
        %v2948 = vmul.f32 %v2859, %v684
        %v2949 = vmul.f32 %v2855, %v685
        %v2950 = vmul.f32 %v2851, %v686
        %v2951 = vmul.f32 %v2847, %v687
        %v2952 = vmul.f32 %v2843, %v688
        %v2953 = vmul.f32 %v2839, %v689
        %v2954 = vmul.f32 %v2835, %v690
        %v2955 = vmul.f32 %v2831, %v691
        %2956 = vrot.lane.b32.xlu0 %v2636, 1
        %v2957 = vpop.permute.xlu0 %2956
        %2958 = vrot.lane.b32.xlu0 %v2652, 1
        %v2959 = vpop.permute.xlu0 %2958
        %2960 = vrot.lane.b32.xlu0 %v2668, 1
        %v2961 = vpop.permute.xlu0 %2960
        %2962 = vrot.lane.b32.xlu0 %v2684, 1
        %v2963 = vpop.permute.xlu0 %2962
        %2964 = vrot.lane.b32.xlu0 %v2637, 1
        %v2965 = vpop.permute.xlu0 %2964
        %2966 = vrot.lane.b32.xlu0 %v2653, 1
        %v2967 = vpop.permute.xlu0 %2966
        %2968 = vrot.lane.b32.xlu0 %v2669, 1
        %v2969 = vpop.permute.xlu0 %2968
        %2970 = vrot.lane.b32.xlu0 %v2685, 1
        %v2971 = vpop.permute.xlu0 %2970
        %2972 = vrot.lane.b32.xlu0 %v2638, 1
        %v2973 = vpop.permute.xlu0 %2972
        %2974 = vrot.lane.b32.xlu0 %v2654, 1
        %v2975 = vpop.permute.xlu0 %2974
        %2976 = vrot.lane.b32.xlu0 %v2670, 1
        %v2977 = vpop.permute.xlu0 %2976
        %2978 = vrot.lane.b32.xlu0 %v2686, 1
        %v2979 = vpop.permute.xlu0 %2978
        %2980 = vrot.lane.b32.xlu0 %v2639, 1
        %v2981 = vpop.permute.xlu0 %2980
        %2982 = vrot.lane.b32.xlu0 %v2655, 1
        %v2983 = vpop.permute.xlu0 %2982
        %2984 = vrot.lane.b32.xlu0 %v2671, 1
        %v2985 = vpop.permute.xlu0 %2984
        %2986 = vrot.lane.b32.xlu0 %v2687, 1
        %v2987 = vpop.permute.xlu0 %2986
        %2988 = vrot.lane.b32.xlu0 %v2640, 1
        %v2989 = vpop.permute.xlu0 %2988
        %2990 = vrot.lane.b32.xlu0 %v2656, 1
        %v2991 = vpop.permute.xlu0 %2990
        %2992 = vrot.lane.b32.xlu0 %v2672, 1
        %v2993 = vpop.permute.xlu0 %2992
        %2994 = vrot.lane.b32.xlu0 %v2688, 1
        %v2995 = vpop.permute.xlu0 %2994
        %2996 = vrot.lane.b32.xlu0 %v2641, 1
        %v2997 = vpop.permute.xlu0 %2996
        %2998 = vrot.lane.b32.xlu0 %v2657, 1
        %v2999 = vpop.permute.xlu0 %2998
        %3000 = vrot.lane.b32.xlu0 %v2673, 1
        %v3001 = vpop.permute.xlu0 %3000
        %3002 = vrot.lane.b32.xlu0 %v2689, 1
        %v3003 = vpop.permute.xlu0 %3002
        %3004 = vrot.lane.b32.xlu0 %v2642, 1
        %v3005 = vpop.permute.xlu0 %3004
        %3006 = vrot.lane.b32.xlu0 %v2658, 1
        %v3007 = vpop.permute.xlu0 %3006
        %3008 = vrot.lane.b32.xlu0 %v2674, 1
        %v3009 = vpop.permute.xlu0 %3008
        %3010 = vrot.lane.b32.xlu0 %v2690, 1
        %v3011 = vpop.permute.xlu0 %3010
        %3012 = vrot.lane.b32.xlu0 %v2643, 1
        %v3013 = vpop.permute.xlu0 %3012
        %3014 = vrot.lane.b32.xlu0 %v2659, 1
        %v3015 = vpop.permute.xlu0 %3014
        %3016 = vrot.lane.b32.xlu0 %v2675, 1
        %v3017 = vpop.permute.xlu0 %3016
        %3018 = vrot.lane.b32.xlu0 %v2691, 1
        %v3019 = vpop.permute.xlu0 %3018
        %3020 = vrot.lane.b32.xlu0 %v2644, 1
        %v3021 = vpop.permute.xlu0 %3020
        %3022 = vrot.lane.b32.xlu0 %v2660, 1
        %v3023 = vpop.permute.xlu0 %3022
        %3024 = vrot.lane.b32.xlu0 %v2676, 1
        %v3025 = vpop.permute.xlu0 %3024
        %3026 = vrot.lane.b32.xlu0 %v2692, 1
        %v3027 = vpop.permute.xlu0 %3026
        %3028 = vrot.lane.b32.xlu0 %v2645, 1
        %v3029 = vpop.permute.xlu0 %3028
        %3030 = vrot.lane.b32.xlu0 %v2661, 1
        %v3031 = vpop.permute.xlu0 %3030
        %3032 = vrot.lane.b32.xlu0 %v2677, 1
        %v3033 = vpop.permute.xlu0 %3032
        %3034 = vrot.lane.b32.xlu0 %v2693, 1
        %v3035 = vpop.permute.xlu0 %3034
        %3036 = vrot.lane.b32.xlu0 %v2646, 1
        %v3037 = vpop.permute.xlu0 %3036
        %3038 = vrot.lane.b32.xlu0 %v2662, 1
        %v3039 = vpop.permute.xlu0 %3038
        %3040 = vrot.lane.b32.xlu0 %v2678, 1
        %v3041 = vpop.permute.xlu0 %3040
        %3042 = vrot.lane.b32.xlu0 %v2694, 1
        %v3043 = vpop.permute.xlu0 %3042
        %3044 = vrot.lane.b32.xlu0 %v2647, 1
        %v3045 = vpop.permute.xlu0 %3044
        %3046 = vrot.lane.b32.xlu0 %v2663, 1
        %v3047 = vpop.permute.xlu0 %3046
        %3048 = vrot.lane.b32.xlu0 %v2679, 1
        %v3049 = vpop.permute.xlu0 %3048
        %3050 = vrot.lane.b32.xlu0 %v2695, 1
        %v3051 = vpop.permute.xlu0 %3050
        %3052 = vrot.lane.b32.xlu0 %v2648, 1
        %v3053 = vpop.permute.xlu0 %3052
        %3054 = vrot.lane.b32.xlu0 %v2664, 1
        %v3055 = vpop.permute.xlu0 %3054
        %3056 = vrot.lane.b32.xlu0 %v2680, 1
        %v3057 = vpop.permute.xlu0 %3056
        %3058 = vrot.lane.b32.xlu0 %v2696, 1
        %v3059 = vpop.permute.xlu0 %3058
        %3060 = vrot.lane.b32.xlu0 %v2649, 1
        %v3061 = vpop.permute.xlu0 %3060
        %3062 = vrot.lane.b32.xlu0 %v2665, 1
        %v3063 = vpop.permute.xlu0 %3062
        %3064 = vrot.lane.b32.xlu0 %v2681, 1
        %v3065 = vpop.permute.xlu0 %3064
        %3066 = vrot.lane.b32.xlu0 %v2697, 1
        %v3067 = vpop.permute.xlu0 %3066
        %3068 = vrot.lane.b32.xlu0 %v2650, 1
        %v3069 = vpop.permute.xlu0 %3068
        %3070 = vrot.lane.b32.xlu0 %v2666, 1
        %v3071 = vpop.permute.xlu0 %3070
        %3072 = vrot.lane.b32.xlu0 %v2682, 1
        %v3073 = vpop.permute.xlu0 %3072
        %3074 = vrot.lane.b32.xlu0 %v2698, 1
        %v3075 = vpop.permute.xlu0 %3074
        %3076 = vrot.lane.b32.xlu0 %v2651, 1
        %v3077 = vpop.permute.xlu0 %3076
        %3078 = vrot.lane.b32.xlu0 %v2667, 1
        %v3079 = vpop.permute.xlu0 %3078
        %3080 = vrot.lane.b32.xlu0 %v2683, 1
        %v3081 = vpop.permute.xlu0 %3080
        %3082 = vrot.lane.b32.xlu0 %v2699, 1
        %v3083 = vpop.permute.xlu0 %3082
        %v3084 = vsel %vm1320, %v3069, %v3077
        %v3085 = vsel %vm1320, %v3071, %v3079
        %v3086 = vsel %vm1320, %v3073, %v3081
        %v3087 = vsel %vm1320, %v3075, %v3083
        %v3088 = vsel %vm1320, %v3061, %v3069
        %v3089 = vsel %vm1320, %v3063, %v3071
        %v3090 = vsel %vm1320, %v3065, %v3073
        %v3091 = vsel %vm1320, %v3067, %v3075
        %v3092 = vsel %vm1320, %v3053, %v3061
        %v3093 = vsel %vm1320, %v3055, %v3063
        %v3094 = vsel %vm1320, %v3057, %v3065
        %v3095 = vsel %vm1320, %v3059, %v3067
        %v3096 = vsel %vm1320, %v3045, %v3053
        %v3097 = vsel %vm1320, %v3047, %v3055
        %v3098 = vsel %vm1320, %v3049, %v3057
        %v3099 = vsel %vm1320, %v3051, %v3059
        %v3100 = vsel %vm1320, %v3037, %v3045
        %v3101 = vsel %vm1320, %v3039, %v3047
        %v3102 = vsel %vm1320, %v3041, %v3049
        %v3103 = vsel %vm1320, %v3043, %v3051
        %v3104 = vsel %vm1320, %v3029, %v3037
        %v3105 = vsel %vm1320, %v3031, %v3039
        %v3106 = vsel %vm1320, %v3033, %v3041
        %v3107 = vsel %vm1320, %v3035, %v3043
        %v3108 = vsel %vm1320, %v3021, %v3029
        %v3109 = vsel %vm1320, %v3023, %v3031
        %v3110 = vsel %vm1320, %v3025, %v3033
        %v3111 = vsel %vm1320, %v3027, %v3035
        %v3112 = vsel %vm1320, %v3013, %v3021
        %v3113 = vsel %vm1320, %v3015, %v3023
        %v3114 = vsel %vm1320, %v3017, %v3025
        %v3115 = vsel %vm1320, %v3019, %v3027
        %v3116 = vsel %vm1320, %v3005, %v3013
        %v3117 = vsel %vm1320, %v3007, %v3015
        %v3118 = vsel %vm1320, %v3009, %v3017
        %v3119 = vsel %vm1320, %v3011, %v3019
        %v3120 = vsel %vm1320, %v2997, %v3005
        %v3121 = vsel %vm1320, %v2999, %v3007
        %v3122 = vsel %vm1320, %v3001, %v3009
        %v3123 = vsel %vm1320, %v3003, %v3011
        %v3124 = vsel %vm1320, %v2989, %v2997
        %v3125 = vsel %vm1320, %v2991, %v2999
        %v3126 = vsel %vm1320, %v2993, %v3001
        %v3127 = vsel %vm1320, %v2995, %v3003
        %v3128 = vsel %vm1320, %v2981, %v2989
        %v3129 = vsel %vm1320, %v2983, %v2991
        %v3130 = vsel %vm1320, %v2985, %v2993
        %v3131 = vsel %vm1320, %v2987, %v2995
        %v3132 = vsel %vm1320, %v2973, %v2981
        %v3133 = vsel %vm1320, %v2975, %v2983
        %v3134 = vsel %vm1320, %v2977, %v2985
        %v3135 = vsel %vm1320, %v2979, %v2987
        %v3136 = vsel %vm1320, %v2965, %v2973
        %v3137 = vsel %vm1320, %v2967, %v2975
        %v3138 = vsel %vm1320, %v2969, %v2977
        %v3139 = vsel %vm1320, %v2971, %v2979
        %v3140 = vsel %vm1320, %v2957, %v2965
        %v3141 = vsel %vm1320, %v2959, %v2967
        %v3142 = vsel %vm1320, %v2961, %v2969
        %v3143 = vsel %vm1320, %v2963, %v2971
        %v3144 = vsel %vm1320, %v3077, %v2957
        %v3145 = vsel %vm1320, %v3079, %v2959
        %v3146 = vsel %vm1320, %v3081, %v2961
        %v3147 = vsel %vm1320, %v3083, %v2963
        %v3148 = vmul.f32 %v3144, %v772
        %v3149 = vmul.f32 %v3140, %v773
        %v3150 = vmul.f32 %v3136, %v774
        %v3151 = vmul.f32 %v3132, %v775
        %v3152 = vmul.f32 %v3128, %v776
        %v3153 = vmul.f32 %v3124, %v777
        %v3154 = vmul.f32 %v3120, %v778
        %v3155 = vmul.f32 %v3116, %v779
        %v3156 = vmul.f32 %v3112, %v780
        %v3157 = vmul.f32 %v3108, %v781
        %v3158 = vmul.f32 %v3104, %v782
        %v3159 = vmul.f32 %v3100, %v783
        %v3160 = vmul.f32 %v3096, %v784
        %v3161 = vmul.f32 %v3092, %v785
        %v3162 = vmul.f32 %v3088, %v786
        %v3163 = vmul.f32 %v3084, %v787
        %v3164 = vmul.f32 %v3145, %v772
        %v3165 = vmul.f32 %v3141, %v773
        %v3166 = vmul.f32 %v3137, %v774
        %v3167 = vmul.f32 %v3133, %v775
        %v3168 = vmul.f32 %v3129, %v776
        %v3169 = vmul.f32 %v3125, %v777
        %v3170 = vmul.f32 %v3121, %v778
        %v3171 = vmul.f32 %v3117, %v779
        %v3172 = vmul.f32 %v3113, %v780
        %v3173 = vmul.f32 %v3109, %v781
        %v3174 = vmul.f32 %v3105, %v782
        %v3175 = vmul.f32 %v3101, %v783
        %v3176 = vmul.f32 %v3097, %v784
        %v3177 = vmul.f32 %v3093, %v785
        %v3178 = vmul.f32 %v3089, %v786
        %v3179 = vmul.f32 %v3085, %v787
        %v3180 = vmul.f32 %v3146, %v772
        %v3181 = vmul.f32 %v3142, %v773
        %v3182 = vmul.f32 %v3138, %v774
        %v3183 = vmul.f32 %v3134, %v775
        %v3184 = vmul.f32 %v3130, %v776
        %v3185 = vmul.f32 %v3126, %v777
        %v3186 = vmul.f32 %v3122, %v778
        %v3187 = vmul.f32 %v3118, %v779
        %v3188 = vmul.f32 %v3114, %v780
        %v3189 = vmul.f32 %v3110, %v781
        %v3190 = vmul.f32 %v3106, %v782
        %v3191 = vmul.f32 %v3102, %v783
        %v3192 = vmul.f32 %v3098, %v784
        %v3193 = vmul.f32 %v3094, %v785
        %v3194 = vmul.f32 %v3090, %v786
        %v3195 = vmul.f32 %v3086, %v787
        %v3196 = vmul.f32 %v3147, %v772
        %v3197 = vmul.f32 %v3143, %v773
        %v3198 = vmul.f32 %v3139, %v774
        %v3199 = vmul.f32 %v3135, %v775
        %v3200 = vmul.f32 %v3131, %v776
        %v3201 = vmul.f32 %v3127, %v777
        %v3202 = vmul.f32 %v3123, %v778
        %v3203 = vmul.f32 %v3119, %v779
        %v3204 = vmul.f32 %v3115, %v780
        %v3205 = vmul.f32 %v3111, %v781
        %v3206 = vmul.f32 %v3107, %v782
        %v3207 = vmul.f32 %v3103, %v783
        %v3208 = vmul.f32 %v3099, %v784
        %v3209 = vmul.f32 %v3095, %v785
        %v3210 = vmul.f32 %v3091, %v786
        %v3211 = vmul.f32 %v3087, %v787
        %3212 = vrot.lane.b32.xlu0 %v2636, 127
        %v3213 = vpop.permute.xlu0 %3212
        %3214 = vrot.lane.b32.xlu0 %v2652, 127
        %v3215 = vpop.permute.xlu0 %3214
        %3216 = vrot.lane.b32.xlu0 %v2668, 127
        %v3217 = vpop.permute.xlu0 %3216
        %3218 = vrot.lane.b32.xlu0 %v2684, 127
        %v3219 = vpop.permute.xlu0 %3218
        %3220 = vrot.lane.b32.xlu0 %v2637, 127
        %v3221 = vpop.permute.xlu0 %3220
        %3222 = vrot.lane.b32.xlu0 %v2653, 127
        %v3223 = vpop.permute.xlu0 %3222
        %3224 = vrot.lane.b32.xlu0 %v2669, 127
        %v3225 = vpop.permute.xlu0 %3224
        %3226 = vrot.lane.b32.xlu0 %v2685, 127
        %v3227 = vpop.permute.xlu0 %3226
        %3228 = vrot.lane.b32.xlu0 %v2638, 127
        %v3229 = vpop.permute.xlu0 %3228
        %3230 = vrot.lane.b32.xlu0 %v2654, 127
        %v3231 = vpop.permute.xlu0 %3230
        %3232 = vrot.lane.b32.xlu0 %v2670, 127
        %v3233 = vpop.permute.xlu0 %3232
        %3234 = vrot.lane.b32.xlu0 %v2686, 127
        %v3235 = vpop.permute.xlu0 %3234
        %3236 = vrot.lane.b32.xlu0 %v2639, 127
        %v3237 = vpop.permute.xlu0 %3236
        %3238 = vrot.lane.b32.xlu0 %v2655, 127
        %v3239 = vpop.permute.xlu0 %3238
        %3240 = vrot.lane.b32.xlu0 %v2671, 127
        %v3241 = vpop.permute.xlu0 %3240
        %3242 = vrot.lane.b32.xlu0 %v2687, 127
        %v3243 = vpop.permute.xlu0 %3242
        %3244 = vrot.lane.b32.xlu0 %v2640, 127
        %v3245 = vpop.permute.xlu0 %3244
        %3246 = vrot.lane.b32.xlu0 %v2656, 127
        %v3247 = vpop.permute.xlu0 %3246
        %3248 = vrot.lane.b32.xlu0 %v2672, 127
        %v3249 = vpop.permute.xlu0 %3248
        %3250 = vrot.lane.b32.xlu0 %v2688, 127
        %v3251 = vpop.permute.xlu0 %3250
        %3252 = vrot.lane.b32.xlu0 %v2641, 127
        %v3253 = vpop.permute.xlu0 %3252
        %3254 = vrot.lane.b32.xlu0 %v2657, 127
        %v3255 = vpop.permute.xlu0 %3254
        %3256 = vrot.lane.b32.xlu0 %v2673, 127
        %v3257 = vpop.permute.xlu0 %3256
        %3258 = vrot.lane.b32.xlu0 %v2689, 127
        %v3259 = vpop.permute.xlu0 %3258
        %3260 = vrot.lane.b32.xlu0 %v2642, 127
        %v3261 = vpop.permute.xlu0 %3260
        %3262 = vrot.lane.b32.xlu0 %v2658, 127
        %v3263 = vpop.permute.xlu0 %3262
        %3264 = vrot.lane.b32.xlu0 %v2674, 127
        %v3265 = vpop.permute.xlu0 %3264
        %3266 = vrot.lane.b32.xlu0 %v2690, 127
        %v3267 = vpop.permute.xlu0 %3266
        %3268 = vrot.lane.b32.xlu0 %v2643, 127
        %v3269 = vpop.permute.xlu0 %3268
        %3270 = vrot.lane.b32.xlu0 %v2659, 127
        %v3271 = vpop.permute.xlu0 %3270
        %3272 = vrot.lane.b32.xlu0 %v2675, 127
        %v3273 = vpop.permute.xlu0 %3272
        %3274 = vrot.lane.b32.xlu0 %v2691, 127
        %v3275 = vpop.permute.xlu0 %3274
        %3276 = vrot.lane.b32.xlu0 %v2644, 127
        %v3277 = vpop.permute.xlu0 %3276
        %3278 = vrot.lane.b32.xlu0 %v2660, 127
        %v3279 = vpop.permute.xlu0 %3278
        %3280 = vrot.lane.b32.xlu0 %v2676, 127
        %v3281 = vpop.permute.xlu0 %3280
        %3282 = vrot.lane.b32.xlu0 %v2692, 127
        %v3283 = vpop.permute.xlu0 %3282
        %3284 = vrot.lane.b32.xlu0 %v2645, 127
        %v3285 = vpop.permute.xlu0 %3284
        %3286 = vrot.lane.b32.xlu0 %v2661, 127
        %v3287 = vpop.permute.xlu0 %3286
        %3288 = vrot.lane.b32.xlu0 %v2677, 127
        %v3289 = vpop.permute.xlu0 %3288
        %3290 = vrot.lane.b32.xlu0 %v2693, 127
        %v3291 = vpop.permute.xlu0 %3290
        %3292 = vrot.lane.b32.xlu0 %v2646, 127
        %v3293 = vpop.permute.xlu0 %3292
        %3294 = vrot.lane.b32.xlu0 %v2662, 127
        %v3295 = vpop.permute.xlu0 %3294
        %3296 = vrot.lane.b32.xlu0 %v2678, 127
        %v3297 = vpop.permute.xlu0 %3296
        %3298 = vrot.lane.b32.xlu0 %v2694, 127
        %v3299 = vpop.permute.xlu0 %3298
        %3300 = vrot.lane.b32.xlu0 %v2647, 127
        %v3301 = vpop.permute.xlu0 %3300
        %3302 = vrot.lane.b32.xlu0 %v2663, 127
        %v3303 = vpop.permute.xlu0 %3302
        %3304 = vrot.lane.b32.xlu0 %v2679, 127
        %v3305 = vpop.permute.xlu0 %3304
        %3306 = vrot.lane.b32.xlu0 %v2695, 127
        %v3307 = vpop.permute.xlu0 %3306
        %3308 = vrot.lane.b32.xlu0 %v2648, 127
        %v3309 = vpop.permute.xlu0 %3308
        %3310 = vrot.lane.b32.xlu0 %v2664, 127
        %v3311 = vpop.permute.xlu0 %3310
        %3312 = vrot.lane.b32.xlu0 %v2680, 127
        %v3313 = vpop.permute.xlu0 %3312
        %3314 = vrot.lane.b32.xlu0 %v2696, 127
        %v3315 = vpop.permute.xlu0 %3314
        %3316 = vrot.lane.b32.xlu0 %v2649, 127
        %v3317 = vpop.permute.xlu0 %3316
        %3318 = vrot.lane.b32.xlu0 %v2665, 127
        %v3319 = vpop.permute.xlu0 %3318
        %3320 = vrot.lane.b32.xlu0 %v2681, 127
        %v3321 = vpop.permute.xlu0 %3320
        %3322 = vrot.lane.b32.xlu0 %v2697, 127
        %v3323 = vpop.permute.xlu0 %3322
        %3324 = vrot.lane.b32.xlu0 %v2650, 127
        %v3325 = vpop.permute.xlu0 %3324
        %3326 = vrot.lane.b32.xlu0 %v2666, 127
        %v3327 = vpop.permute.xlu0 %3326
        %3328 = vrot.lane.b32.xlu0 %v2682, 127
        %v3329 = vpop.permute.xlu0 %3328
        %3330 = vrot.lane.b32.xlu0 %v2698, 127
        %v3331 = vpop.permute.xlu0 %3330
        %3332 = vrot.lane.b32.xlu0 %v2651, 127
        %v3333 = vpop.permute.xlu0 %3332
        %3334 = vrot.lane.b32.xlu0 %v2667, 127
        %v3335 = vpop.permute.xlu0 %3334
        %3336 = vrot.lane.b32.xlu0 %v2683, 127
        %v3337 = vpop.permute.xlu0 %3336
        %3338 = vrot.lane.b32.xlu0 %v2699, 127
        %v3339 = vpop.permute.xlu0 %3338
        %v3340 = vsel %vm1385, %v3325, %v3333
        %v3341 = vsel %vm1385, %v3327, %v3335
        %v3342 = vsel %vm1385, %v3329, %v3337
        %v3343 = vsel %vm1385, %v3331, %v3339
        %v3344 = vsel %vm1385, %v3317, %v3325
        %v3345 = vsel %vm1385, %v3319, %v3327
        %v3346 = vsel %vm1385, %v3321, %v3329
        %v3347 = vsel %vm1385, %v3323, %v3331
        %v3348 = vsel %vm1385, %v3309, %v3317
        %v3349 = vsel %vm1385, %v3311, %v3319
        %v3350 = vsel %vm1385, %v3313, %v3321
        %v3351 = vsel %vm1385, %v3315, %v3323
        %v3352 = vsel %vm1385, %v3301, %v3309
        %v3353 = vsel %vm1385, %v3303, %v3311
        %v3354 = vsel %vm1385, %v3305, %v3313
        %v3355 = vsel %vm1385, %v3307, %v3315
        %v3356 = vsel %vm1385, %v3293, %v3301
        %v3357 = vsel %vm1385, %v3295, %v3303
        %v3358 = vsel %vm1385, %v3297, %v3305
        %v3359 = vsel %vm1385, %v3299, %v3307
        %v3360 = vsel %vm1385, %v3285, %v3293
        %v3361 = vsel %vm1385, %v3287, %v3295
        %v3362 = vsel %vm1385, %v3289, %v3297
        %v3363 = vsel %vm1385, %v3291, %v3299
        %v3364 = vsel %vm1385, %v3277, %v3285
        %v3365 = vsel %vm1385, %v3279, %v3287
        %v3366 = vsel %vm1385, %v3281, %v3289
        %v3367 = vsel %vm1385, %v3283, %v3291
        %v3368 = vsel %vm1385, %v3269, %v3277
        %v3369 = vsel %vm1385, %v3271, %v3279
        %v3370 = vsel %vm1385, %v3273, %v3281
        %v3371 = vsel %vm1385, %v3275, %v3283
        %v3372 = vsel %vm1385, %v3261, %v3269
        %v3373 = vsel %vm1385, %v3263, %v3271
        %v3374 = vsel %vm1385, %v3265, %v3273
        %v3375 = vsel %vm1385, %v3267, %v3275
        %v3376 = vsel %vm1385, %v3253, %v3261
        %v3377 = vsel %vm1385, %v3255, %v3263
        %v3378 = vsel %vm1385, %v3257, %v3265
        %v3379 = vsel %vm1385, %v3259, %v3267
        %v3380 = vsel %vm1385, %v3245, %v3253
        %v3381 = vsel %vm1385, %v3247, %v3255
        %v3382 = vsel %vm1385, %v3249, %v3257
        %v3383 = vsel %vm1385, %v3251, %v3259
        %v3384 = vsel %vm1385, %v3237, %v3245
        %v3385 = vsel %vm1385, %v3239, %v3247
        %v3386 = vsel %vm1385, %v3241, %v3249
        %v3387 = vsel %vm1385, %v3243, %v3251
        %v3388 = vsel %vm1385, %v3229, %v3237
        %v3389 = vsel %vm1385, %v3231, %v3239
        %v3390 = vsel %vm1385, %v3233, %v3241
        %v3391 = vsel %vm1385, %v3235, %v3243
        %v3392 = vsel %vm1385, %v3221, %v3229
        %v3393 = vsel %vm1385, %v3223, %v3231
        %v3394 = vsel %vm1385, %v3225, %v3233
        %v3395 = vsel %vm1385, %v3227, %v3235
        %v3396 = vsel %vm1385, %v3213, %v3221
        %v3397 = vsel %vm1385, %v3215, %v3223
        %v3398 = vsel %vm1385, %v3217, %v3225
        %v3399 = vsel %vm1385, %v3219, %v3227
        %v3400 = vsel %vm1385, %v3333, %v3213
        %v3401 = vsel %vm1385, %v3335, %v3215
        %v3402 = vsel %vm1385, %v3337, %v3217
        %v3403 = vsel %vm1385, %v3339, %v3219
        %v3404 = vmul.f32 %v3396, %v868
        %v3405 = vmul.f32 %v3392, %v869
        %v3406 = vmul.f32 %v3388, %v870
        %v3407 = vmul.f32 %v3384, %v871
        %v3408 = vmul.f32 %v3380, %v872
        %v3409 = vmul.f32 %v3376, %v873
        %v3410 = vmul.f32 %v3372, %v874
        %v3411 = vmul.f32 %v3368, %v875
        %v3412 = vmul.f32 %v3364, %v876
        %v3413 = vmul.f32 %v3360, %v877
        %v3414 = vmul.f32 %v3356, %v878
        %v3415 = vmul.f32 %v3352, %v879
        %v3416 = vmul.f32 %v3348, %v880
        %v3417 = vmul.f32 %v3344, %v881
        %v3418 = vmul.f32 %v3340, %v882
        %v3419 = vmul.f32 %v3400, %v883
        %v3420 = vmul.f32 %v3397, %v868
        %v3421 = vmul.f32 %v3393, %v869
        %v3422 = vmul.f32 %v3389, %v870
        %v3423 = vmul.f32 %v3385, %v871
        %v3424 = vmul.f32 %v3381, %v872
        %v3425 = vmul.f32 %v3377, %v873
        %v3426 = vmul.f32 %v3373, %v874
        %v3427 = vmul.f32 %v3369, %v875
        %v3428 = vmul.f32 %v3365, %v876
        %v3429 = vmul.f32 %v3361, %v877
        %v3430 = vmul.f32 %v3357, %v878
        %v3431 = vmul.f32 %v3353, %v879
        %v3432 = vmul.f32 %v3349, %v880
        %v3433 = vmul.f32 %v3345, %v881
        %v3434 = vmul.f32 %v3341, %v882
        %v3435 = vmul.f32 %v3401, %v883
        %v3436 = vmul.f32 %v3398, %v868
        %v3437 = vmul.f32 %v3394, %v869
        %v3438 = vmul.f32 %v3390, %v870
        %v3439 = vmul.f32 %v3386, %v871
        %v3440 = vmul.f32 %v3382, %v872
        %v3441 = vmul.f32 %v3378, %v873
        %v3442 = vmul.f32 %v3374, %v874
        %v3443 = vmul.f32 %v3370, %v875
        %v3444 = vmul.f32 %v3366, %v876
        %v3445 = vmul.f32 %v3362, %v877
        %v3446 = vmul.f32 %v3358, %v878
        %v3447 = vmul.f32 %v3354, %v879
        %v3448 = vmul.f32 %v3350, %v880
        %v3449 = vmul.f32 %v3346, %v881
        %v3450 = vmul.f32 %v3342, %v882
        %v3451 = vmul.f32 %v3402, %v883
        %v3452 = vmul.f32 %v3399, %v868
        %v3453 = vmul.f32 %v3395, %v869
        %v3454 = vmul.f32 %v3391, %v870
        %v3455 = vmul.f32 %v3387, %v871
        %v3456 = vmul.f32 %v3383, %v872
        %v3457 = vmul.f32 %v3379, %v873
        %v3458 = vmul.f32 %v3375, %v874
        %v3459 = vmul.f32 %v3371, %v875
        %v3460 = vmul.f32 %v3367, %v876
        %v3461 = vmul.f32 %v3363, %v877
        %v3462 = vmul.f32 %v3359, %v878
        %v3463 = vmul.f32 %v3355, %v879
        %v3464 = vmul.f32 %v3351, %v880
        %v3465 = vmul.f32 %v3347, %v881
        %v3466 = vmul.f32 %v3343, %v882
        %v3467 = vmul.f32 %v3403, %v883
        %3468 = vrot.lane.b32.xlu0 %v2636, 126
        %v3469 = vpop.permute.xlu0 %3468
        %3470 = vrot.lane.b32.xlu0 %v2652, 126
        %v3471 = vpop.permute.xlu0 %3470
        %3472 = vrot.lane.b32.xlu0 %v2668, 126
        %v3473 = vpop.permute.xlu0 %3472
        %3474 = vrot.lane.b32.xlu0 %v2684, 126
        %v3475 = vpop.permute.xlu0 %3474
        %3476 = vrot.lane.b32.xlu0 %v2637, 126
        %v3477 = vpop.permute.xlu0 %3476
        %3478 = vrot.lane.b32.xlu0 %v2653, 126
        %v3479 = vpop.permute.xlu0 %3478
        %3480 = vrot.lane.b32.xlu0 %v2669, 126
        %v3481 = vpop.permute.xlu0 %3480
        %3482 = vrot.lane.b32.xlu0 %v2685, 126
        %v3483 = vpop.permute.xlu0 %3482
        %3484 = vrot.lane.b32.xlu0 %v2638, 126
        %v3485 = vpop.permute.xlu0 %3484
        %3486 = vrot.lane.b32.xlu0 %v2654, 126
        %v3487 = vpop.permute.xlu0 %3486
        %3488 = vrot.lane.b32.xlu0 %v2670, 126
        %v3489 = vpop.permute.xlu0 %3488
        %3490 = vrot.lane.b32.xlu0 %v2686, 126
        %v3491 = vpop.permute.xlu0 %3490
        %3492 = vrot.lane.b32.xlu0 %v2639, 126
        %v3493 = vpop.permute.xlu0 %3492
        %3494 = vrot.lane.b32.xlu0 %v2655, 126
        %v3495 = vpop.permute.xlu0 %3494
        %3496 = vrot.lane.b32.xlu0 %v2671, 126
        %v3497 = vpop.permute.xlu0 %3496
        %3498 = vrot.lane.b32.xlu0 %v2687, 126
        %v3499 = vpop.permute.xlu0 %3498
        %3500 = vrot.lane.b32.xlu0 %v2640, 126
        %v3501 = vpop.permute.xlu0 %3500
        %3502 = vrot.lane.b32.xlu0 %v2656, 126
        %v3503 = vpop.permute.xlu0 %3502
        %3504 = vrot.lane.b32.xlu0 %v2672, 126
        %v3505 = vpop.permute.xlu0 %3504
        %3506 = vrot.lane.b32.xlu0 %v2688, 126
        %v3507 = vpop.permute.xlu0 %3506
        %3508 = vrot.lane.b32.xlu0 %v2641, 126
        %v3509 = vpop.permute.xlu0 %3508
        %3510 = vrot.lane.b32.xlu0 %v2657, 126
        %v3511 = vpop.permute.xlu0 %3510
        %3512 = vrot.lane.b32.xlu0 %v2673, 126
        %v3513 = vpop.permute.xlu0 %3512
        %3514 = vrot.lane.b32.xlu0 %v2689, 126
        %v3515 = vpop.permute.xlu0 %3514
        %3516 = vrot.lane.b32.xlu0 %v2642, 126
        %v3517 = vpop.permute.xlu0 %3516
        %3518 = vrot.lane.b32.xlu0 %v2658, 126
        %v3519 = vpop.permute.xlu0 %3518
        %3520 = vrot.lane.b32.xlu0 %v2674, 126
        %v3521 = vpop.permute.xlu0 %3520
        %3522 = vrot.lane.b32.xlu0 %v2690, 126
        %v3523 = vpop.permute.xlu0 %3522
        %3524 = vrot.lane.b32.xlu0 %v2643, 126
        %v3525 = vpop.permute.xlu0 %3524
        %3526 = vrot.lane.b32.xlu0 %v2659, 126
        %v3527 = vpop.permute.xlu0 %3526
        %3528 = vrot.lane.b32.xlu0 %v2675, 126
        %v3529 = vpop.permute.xlu0 %3528
        %3530 = vrot.lane.b32.xlu0 %v2691, 126
        %v3531 = vpop.permute.xlu0 %3530
        %3532 = vrot.lane.b32.xlu0 %v2644, 126
        %v3533 = vpop.permute.xlu0 %3532
        %3534 = vrot.lane.b32.xlu0 %v2660, 126
        %v3535 = vpop.permute.xlu0 %3534
        %3536 = vrot.lane.b32.xlu0 %v2676, 126
        %v3537 = vpop.permute.xlu0 %3536
        %3538 = vrot.lane.b32.xlu0 %v2692, 126
        %v3539 = vpop.permute.xlu0 %3538
        %3540 = vrot.lane.b32.xlu0 %v2645, 126
        %v3541 = vpop.permute.xlu0 %3540
        %3542 = vrot.lane.b32.xlu0 %v2661, 126
        %v3543 = vpop.permute.xlu0 %3542
        %3544 = vrot.lane.b32.xlu0 %v2677, 126
        %v3545 = vpop.permute.xlu0 %3544
        %3546 = vrot.lane.b32.xlu0 %v2693, 126
        %v3547 = vpop.permute.xlu0 %3546
        %3548 = vrot.lane.b32.xlu0 %v2646, 126
        %v3549 = vpop.permute.xlu0 %3548
        %3550 = vrot.lane.b32.xlu0 %v2662, 126
        %v3551 = vpop.permute.xlu0 %3550
        %3552 = vrot.lane.b32.xlu0 %v2678, 126
        %v3553 = vpop.permute.xlu0 %3552
        %3554 = vrot.lane.b32.xlu0 %v2694, 126
        %v3555 = vpop.permute.xlu0 %3554
        %3556 = vrot.lane.b32.xlu0 %v2647, 126
        %v3557 = vpop.permute.xlu0 %3556
        %3558 = vrot.lane.b32.xlu0 %v2663, 126
        %v3559 = vpop.permute.xlu0 %3558
        %3560 = vrot.lane.b32.xlu0 %v2679, 126
        %v3561 = vpop.permute.xlu0 %3560
        %3562 = vrot.lane.b32.xlu0 %v2695, 126
        %v3563 = vpop.permute.xlu0 %3562
        %3564 = vrot.lane.b32.xlu0 %v2648, 126
        %v3565 = vpop.permute.xlu0 %3564
        %3566 = vrot.lane.b32.xlu0 %v2664, 126
        %v3567 = vpop.permute.xlu0 %3566
        %3568 = vrot.lane.b32.xlu0 %v2680, 126
        %v3569 = vpop.permute.xlu0 %3568
        %3570 = vrot.lane.b32.xlu0 %v2696, 126
        %v3571 = vpop.permute.xlu0 %3570
        %3572 = vrot.lane.b32.xlu0 %v2649, 126
        %v3573 = vpop.permute.xlu0 %3572
        %3574 = vrot.lane.b32.xlu0 %v2665, 126
        %v3575 = vpop.permute.xlu0 %3574
        %3576 = vrot.lane.b32.xlu0 %v2681, 126
        %v3577 = vpop.permute.xlu0 %3576
        %3578 = vrot.lane.b32.xlu0 %v2697, 126
        %v3579 = vpop.permute.xlu0 %3578
        %3580 = vrot.lane.b32.xlu0 %v2650, 126
        %v3581 = vpop.permute.xlu0 %3580
        %3582 = vrot.lane.b32.xlu0 %v2666, 126
        %v3583 = vpop.permute.xlu0 %3582
        %3584 = vrot.lane.b32.xlu0 %v2682, 126
        %v3585 = vpop.permute.xlu0 %3584
        %3586 = vrot.lane.b32.xlu0 %v2698, 126
        %v3587 = vpop.permute.xlu0 %3586
        %3588 = vrot.lane.b32.xlu0 %v2651, 126
        %v3589 = vpop.permute.xlu0 %3588
        %3590 = vrot.lane.b32.xlu0 %v2667, 126
        %v3591 = vpop.permute.xlu0 %3590
        %3592 = vrot.lane.b32.xlu0 %v2683, 126
        %v3593 = vpop.permute.xlu0 %3592
        %3594 = vrot.lane.b32.xlu0 %v2699, 126
        %v3595 = vpop.permute.xlu0 %3594
        %v3596 = vsel %vm1450, %v3581, %v3589
        %v3597 = vsel %vm1450, %v3583, %v3591
        %v3598 = vsel %vm1450, %v3585, %v3593
        %v3599 = vsel %vm1450, %v3587, %v3595
        %v3600 = vsel %vm1450, %v3573, %v3581
        %v3601 = vsel %vm1450, %v3575, %v3583
        %v3602 = vsel %vm1450, %v3577, %v3585
        %v3603 = vsel %vm1450, %v3579, %v3587
        %v3604 = vsel %vm1450, %v3565, %v3573
        %v3605 = vsel %vm1450, %v3567, %v3575
        %v3606 = vsel %vm1450, %v3569, %v3577
        %v3607 = vsel %vm1450, %v3571, %v3579
        %v3608 = vsel %vm1450, %v3557, %v3565
        %v3609 = vsel %vm1450, %v3559, %v3567
        %v3610 = vsel %vm1450, %v3561, %v3569
        %v3611 = vsel %vm1450, %v3563, %v3571
        %v3612 = vsel %vm1450, %v3549, %v3557
        %v3613 = vsel %vm1450, %v3551, %v3559
        %v3614 = vsel %vm1450, %v3553, %v3561
        %v3615 = vsel %vm1450, %v3555, %v3563
        %v3616 = vsel %vm1450, %v3541, %v3549
        %v3617 = vsel %vm1450, %v3543, %v3551
        %v3618 = vsel %vm1450, %v3545, %v3553
        %v3619 = vsel %vm1450, %v3547, %v3555
        %v3620 = vsel %vm1450, %v3533, %v3541
        %v3621 = vsel %vm1450, %v3535, %v3543
        %v3622 = vsel %vm1450, %v3537, %v3545
        %v3623 = vsel %vm1450, %v3539, %v3547
        %v3624 = vsel %vm1450, %v3525, %v3533
        %v3625 = vsel %vm1450, %v3527, %v3535
        %v3626 = vsel %vm1450, %v3529, %v3537
        %v3627 = vsel %vm1450, %v3531, %v3539
        %v3628 = vsel %vm1450, %v3517, %v3525
        %v3629 = vsel %vm1450, %v3519, %v3527
        %v3630 = vsel %vm1450, %v3521, %v3529
        %v3631 = vsel %vm1450, %v3523, %v3531
        %v3632 = vsel %vm1450, %v3509, %v3517
        %v3633 = vsel %vm1450, %v3511, %v3519
        %v3634 = vsel %vm1450, %v3513, %v3521
        %v3635 = vsel %vm1450, %v3515, %v3523
        %v3636 = vsel %vm1450, %v3501, %v3509
        %v3637 = vsel %vm1450, %v3503, %v3511
        %v3638 = vsel %vm1450, %v3505, %v3513
        %v3639 = vsel %vm1450, %v3507, %v3515
        %v3640 = vsel %vm1450, %v3493, %v3501
        %v3641 = vsel %vm1450, %v3495, %v3503
        %v3642 = vsel %vm1450, %v3497, %v3505
        %v3643 = vsel %vm1450, %v3499, %v3507
        %v3644 = vsel %vm1450, %v3485, %v3493
        %v3645 = vsel %vm1450, %v3487, %v3495
        %v3646 = vsel %vm1450, %v3489, %v3497
        %v3647 = vsel %vm1450, %v3491, %v3499
        %v3648 = vsel %vm1450, %v3477, %v3485
        %v3649 = vsel %vm1450, %v3479, %v3487
        %v3650 = vsel %vm1450, %v3481, %v3489
        %v3651 = vsel %vm1450, %v3483, %v3491
        %v3652 = vsel %vm1450, %v3469, %v3477
        %v3653 = vsel %vm1450, %v3471, %v3479
        %v3654 = vsel %vm1450, %v3473, %v3481
        %v3655 = vsel %vm1450, %v3475, %v3483
        %v3656 = vsel %vm1450, %v3589, %v3469
        %v3657 = vsel %vm1450, %v3591, %v3471
        %v3658 = vsel %vm1450, %v3593, %v3473
        %v3659 = vsel %vm1450, %v3595, %v3475
        %v3660 = vmul.f32 %v3652, %v964
        %v3661 = vmul.f32 %v3648, %v965
        %v3662 = vmul.f32 %v3644, %v966
        %v3663 = vmul.f32 %v3640, %v967
        %v3664 = vmul.f32 %v3636, %v968
        %v3665 = vmul.f32 %v3632, %v969
        %v3666 = vmul.f32 %v3628, %v970
        %v3667 = vmul.f32 %v3624, %v971
        %v3668 = vmul.f32 %v3620, %v972
        %v3669 = vmul.f32 %v3616, %v973
        %v3670 = vmul.f32 %v3612, %v974
        %v3671 = vmul.f32 %v3608, %v975
        %v3672 = vmul.f32 %v3604, %v976
        %v3673 = vmul.f32 %v3600, %v977
        %v3674 = vmul.f32 %v3596, %v978
        %v3675 = vmul.f32 %v3656, %v979
        %v3676 = vmul.f32 %v3653, %v964
        %v3677 = vmul.f32 %v3649, %v965
        %v3678 = vmul.f32 %v3645, %v966
        %v3679 = vmul.f32 %v3641, %v967
        %v3680 = vmul.f32 %v3637, %v968
        %v3681 = vmul.f32 %v3633, %v969
        %v3682 = vmul.f32 %v3629, %v970
        %v3683 = vmul.f32 %v3625, %v971
        %v3684 = vmul.f32 %v3621, %v972
        %v3685 = vmul.f32 %v3617, %v973
        %v3686 = vmul.f32 %v3613, %v974
        %v3687 = vmul.f32 %v3609, %v975
        %v3688 = vmul.f32 %v3605, %v976
        %v3689 = vmul.f32 %v3601, %v977
        %v3690 = vmul.f32 %v3597, %v978
        %v3691 = vmul.f32 %v3657, %v979
        %v3692 = vmul.f32 %v3654, %v964
        %v3693 = vmul.f32 %v3650, %v965
        %v3694 = vmul.f32 %v3646, %v966
        %v3695 = vmul.f32 %v3642, %v967
        %v3696 = vmul.f32 %v3638, %v968
        %v3697 = vmul.f32 %v3634, %v969
        %v3698 = vmul.f32 %v3630, %v970
        %v3699 = vmul.f32 %v3626, %v971
        %v3700 = vmul.f32 %v3622, %v972
        %v3701 = vmul.f32 %v3618, %v973
        %v3702 = vmul.f32 %v3614, %v974
        %v3703 = vmul.f32 %v3610, %v975
        %v3704 = vmul.f32 %v3606, %v976
        %v3705 = vmul.f32 %v3602, %v977
        %v3706 = vmul.f32 %v3598, %v978
        %v3707 = vmul.f32 %v3658, %v979
        %v3708 = vmul.f32 %v3655, %v964
        %v3709 = vmul.f32 %v3651, %v965
        %v3710 = vmul.f32 %v3647, %v966
        %v3711 = vmul.f32 %v3643, %v967
        %v3712 = vmul.f32 %v3639, %v968
        %v3713 = vmul.f32 %v3635, %v969
        %v3714 = vmul.f32 %v3631, %v970
        %v3715 = vmul.f32 %v3627, %v971
        %v3716 = vmul.f32 %v3623, %v972
        %v3717 = vmul.f32 %v3619, %v973
        %v3718 = vmul.f32 %v3615, %v974
        %v3719 = vmul.f32 %v3611, %v975
        %v3720 = vmul.f32 %v3607, %v976
        %v3721 = vmul.f32 %v3603, %v977
        %v3722 = vmul.f32 %v3599, %v978
        %v3723 = vmul.f32 %v3659, %v979
        %v3724 = vld [vmem:[%s2] sm:$0xff]
        %v3725 = vld [vmem:[%s2 + $0x8] sm:$0xff]
        %v3726 = vld [vmem:[%s2 + $0x10] sm:$0xff]
        %v3727 = vld [vmem:[%s2 + $0x18] sm:$0xff]
        %v3728 = vld [vmem:[%s2 + $0x20] sm:$0xff]
        %v3729 = vld [vmem:[%s2 + $0x28] sm:$0xff]
        %v3730 = vld [vmem:[%s2 + $0x30] sm:$0xff]
        %v3731 = vld [vmem:[%s2 + $0x38] sm:$0xff]
        %v3732 = vld [vmem:[%s2 + $0x40] sm:$0xff]
        %v3733 = vld [vmem:[%s2 + $0x48] sm:$0xff]
        %v3734 = vld [vmem:[%s2 + $0x50] sm:$0xff]
        %v3735 = vld [vmem:[%s2 + $0x58] sm:$0xff]
        %v3736 = vld [vmem:[%s2 + $0x60] sm:$0xff]
        %v3737 = vld [vmem:[%s2 + $0x68] sm:$0xff]
        %v3738 = vld [vmem:[%s2 + $0x70] sm:$0xff]
        %v3739 = vld [vmem:[%s2 + $0x78] sm:$0xff]
        %vm3740 = vcmask 269312
        %v3742 = vsel %vm3740, %v3725, 0
        %v3745 = vsel %vm3740, %v3727, 0
        %v3748 = vsel %vm3740, %v3729, 0
        %v3751 = vsel %vm3740, %v3731, 0
        %v3754 = vsel %vm3740, %v3733, 0
        %v3757 = vsel %vm3740, %v3735, 0
        %v3760 = vsel %vm3740, %v3737, 0
        %v3763 = vsel %vm3740, %v3739, 0
        %v3766 = vsel %vm1788, 1.0, 0
        %3768 = vmatprep.subr.mxu0 %v3453
        %3769 = vmatpush1.msra.mxu0 %v3452
        %3770 = vmatprep.subr.mxu0 %v3437
        %3771 = vmatpush1.msra.mxu0 %v3436
        %3772 = vmatprep.subr.mxu0 %v3421
        %3773 = vmatpush1.msra.mxu0 %v3420
        %3774 = vmatprep.subr.mxu0 %v3405
        %3775 = vmatpush1.msra.mxu0 %v3404
        %3776 = vmatprep.subr.mxu0 %v2685
        %3777 = vmatpush1.msra.mxu0 %v2684
        %3778 = vmatprep.subr.mxu0 %v2669
        %3779 = vmatpush1.msra.mxu0 %v2668
        %3780 = vmatprep.subr.mxu0 %v2653
        %3781 = vmatpush1.msra.mxu0 %v2652
        %3782 = vmatprep.subr.mxu0 %v2637
        %3783 = vmatpush1.msra.mxu0 %v2636
        %3784 = vmatprep.subr.mxu0 %v3197
        %3785 = vmatpush1.msra.mxu0 %v3196
        %3786 = vmatprep.subr.mxu0 %v3181
        %3787 = vmatpush1.msra.mxu0 %v3180
        %3788 = vmatprep.subr.mxu0 %v3165
        %3789 = vmatpush1.msra.mxu0 %v3164
        %3790 = vmatprep.subr.mxu0 %v3149
        %3791 = vmatpush1.msra.mxu0 %v3148
        %3792 = vmatprep.subr.mxu0 %v2941
        %3793 = vmatpush1.msra.mxu0 %v2940
        %3794 = vmatprep.subr.mxu0 %v2925
        %3795 = vmatpush1.msra.mxu0 %v2924
        %3796 = vmatprep.subr.mxu0 %v2909
        %3797 = vmatpush1.msra.mxu0 %v2908
        %3798 = vmatprep.subr.mxu0 %v2893
        %3799 = vmatpush1.msra.mxu0 %v2892
        %3800 = vmatprep.subr.mxu0 0.0
        %3801 = vmatpush2.msra.mxu0 0.0
        %3802 = vmatprep.subr.mxu0 0.0
        %3803 = vmatpush2.msra.mxu0 0.0
        %3804 = vmatprep.subr.mxu0 0.0
        %3805 = vmatpush2.msra.mxu0 0.0
        %3806 = vmatprep.subr.mxu0 0.0
        %3807 = vmatpush2.msra.mxu0 0.0
        %3808 = vmatprep.subr.mxu0 0.0
        %3809 = vmatpush2.msra.mxu0 0.0
        %3810 = vmatprep.subr.mxu0 0.0
        %3811 = vmatpush2.msra.mxu0 0.0
        %3812 = vmatprep.subr.mxu0 0.0
        %3813 = vmatpush2.msra.mxu0 0.0
        %3814 = vmatprep.subr.mxu0 0.0
        %3815 = vmatpush2.msra.mxu0 0.0
        %3816 = vmatprep.subr.mxu0 0.0
        %3817 = vmatpush2.msra.mxu0 0.0
        %3818 = vmatprep.subr.mxu0 0.0
        %3819 = vmatpush2.msra.mxu0 0.0
        %3820 = vmatprep.subr.mxu0 0.0
        %3821 = vmatpush2.msra.mxu0 0.0
        %3822 = vmatprep.subr.mxu0 %v3766
        %3823 = vmatpush2.msra.mxu0 %v3766
        %3824 = vmatprep.subr.mxu0 %v3709
        %3825 = vmatpush2.msra.mxu0 %v3708
        %3826 = vmatprep.subr.mxu0 %v3693
        %3827 = vmatpush2.msra.mxu0 %v3692
        %3828 = vmatprep.subr.mxu0 %v3677
        %3829 = vmatpush2.msra.mxu0 %v3676
        %3830 = vmatprep.subr.mxu0 %v3661
        %3831 = vmatpush2.msra.mxu0 %v3660
        %3832 = vmatprep.mubr.f32.mxu0 %v3742
        %3833 = vmatmul.mubr.f32.gmra.mxu0 %v3724
        %v3834 = vpop.f32.mrf.mxu0
        %v3835 = vadd.f32 0.0, %v3834
        %v3836 = vpop.f32.mrf.mxu0
        %v3837 = vadd.f32 0.0, %v3836
        %3838 = vmatprep.mubr.f32.mxu0 %v3745
        %3839 = vmatmul.mubr.f32.gmra.mxu0 %v3726
        %v3840 = vpop.f32.mrf.mxu0
        %v3841 = vadd.f32 0.0, %v3840
        %v3842 = vpop.f32.mrf.mxu0
        %v3843 = vadd.f32 0.0, %v3842
        %3844 = vmatprep.mubr.f32.mxu0 %v3748
        %3845 = vmatmul.mubr.f32.gmra.mxu0 %v3728
        %v3846 = vpop.f32.mrf.mxu0
        %v3847 = vadd.f32 0.0, %v3846
        %v3848 = vpop.f32.mrf.mxu0
        %v3849 = vadd.f32 0.0, %v3848
        %3850 = vmatprep.mubr.f32.mxu0 %v3751
        %3851 = vmatmul.mubr.f32.gmra.mxu0 %v3730
        %v3852 = vpop.f32.mrf.mxu0
        %v3853 = vadd.f32 0.0, %v3852
        %v3854 = vpop.f32.mrf.mxu0
        %v3855 = vadd.f32 0.0, %v3854
        %3856 = vmatprep.mubr.f32.mxu0 %v3754
        %3857 = vmatmul.mubr.f32.gmra.mxu0 %v3732
        %v3858 = vpop.f32.mrf.mxu0
        %v3859 = vadd.f32 0.0, %v3858
        %v3860 = vpop.f32.mrf.mxu0
        %v3861 = vadd.f32 0.0, %v3860
        %3862 = vmatprep.mubr.f32.mxu0 %v3757
        %3863 = vmatmul.mubr.f32.gmra.mxu0 %v3734
        %v3864 = vpop.f32.mrf.mxu0
        %v3865 = vadd.f32 0.0, %v3864
        %v3866 = vpop.f32.mrf.mxu0
        %v3867 = vadd.f32 0.0, %v3866
        %3868 = vmatprep.mubr.f32.mxu0 %v3760
        %3869 = vmatmul.mubr.f32.gmra.mxu0 %v3736
        %v3870 = vpop.f32.mrf.mxu0
        %v3871 = vadd.f32 0.0, %v3870
        %v3872 = vpop.f32.mrf.mxu0
        %v3873 = vadd.f32 0.0, %v3872
        %3874 = vmatprep.mubr.f32.mxu0 %v3763
        %3875 = vmatmul.mubr.f32.gmra.mxu0 %v3738
        %v3876 = vpop.f32.mrf.mxu0
        %v3877 = vadd.f32 0.0, %v3876
        %v3878 = vpop.f32.mrf.mxu0
        %v3879 = vadd.f32 0.0, %v3878
        %3880 = vdwg.mxu0
        %3881 = vmatprep.subr.mxu0 %v3455
        %3882 = vmatpush1.msra.mxu0 %v3454
        %3883 = vmatprep.subr.mxu0 %v3439
        %3884 = vmatpush1.msra.mxu0 %v3438
        %3885 = vmatprep.subr.mxu0 %v3423
        %3886 = vmatpush1.msra.mxu0 %v3422
        %3887 = vmatprep.subr.mxu0 %v3407
        %3888 = vmatpush1.msra.mxu0 %v3406
        %3889 = vmatprep.subr.mxu0 %v2687
        %3890 = vmatpush1.msra.mxu0 %v2686
        %3891 = vmatprep.subr.mxu0 %v2671
        %3892 = vmatpush1.msra.mxu0 %v2670
        %3893 = vmatprep.subr.mxu0 %v2655
        %3894 = vmatpush1.msra.mxu0 %v2654
        %3895 = vmatprep.subr.mxu0 %v2639
        %3896 = vmatpush1.msra.mxu0 %v2638
        %3897 = vmatprep.subr.mxu0 %v3199
        %3898 = vmatpush1.msra.mxu0 %v3198
        %3899 = vmatprep.subr.mxu0 %v3183
        %3900 = vmatpush1.msra.mxu0 %v3182
        %3901 = vmatprep.subr.mxu0 %v3167
        %3902 = vmatpush1.msra.mxu0 %v3166
        %3903 = vmatprep.subr.mxu0 %v3151
        %3904 = vmatpush1.msra.mxu0 %v3150
        %3905 = vmatprep.subr.mxu0 %v2943
        %3906 = vmatpush1.msra.mxu0 %v2942
        %3907 = vmatprep.subr.mxu0 %v2927
        %3908 = vmatpush1.msra.mxu0 %v2926
        %3909 = vmatprep.subr.mxu0 %v2911
        %3910 = vmatpush1.msra.mxu0 %v2910
        %3911 = vmatprep.subr.mxu0 %v2895
        %3912 = vmatpush1.msra.mxu0 %v2894
        %3913 = vmatprep.subr.mxu0 0.0
        %3914 = vmatpush2.msra.mxu0 0.0
        %3915 = vmatprep.subr.mxu0 0.0
        %3916 = vmatpush2.msra.mxu0 0.0
        %3917 = vmatprep.subr.mxu0 0.0
        %3918 = vmatpush2.msra.mxu0 0.0
        %3919 = vmatprep.subr.mxu0 0.0
        %3920 = vmatpush2.msra.mxu0 0.0
        %3921 = vmatprep.subr.mxu0 0.0
        %3922 = vmatpush2.msra.mxu0 0.0
        %3923 = vmatprep.subr.mxu0 0.0
        %3924 = vmatpush2.msra.mxu0 0.0
        %3925 = vmatprep.subr.mxu0 0.0
        %3926 = vmatpush2.msra.mxu0 0.0
        %3927 = vmatprep.subr.mxu0 0.0
        %3928 = vmatpush2.msra.mxu0 0.0
        %3929 = vmatprep.subr.mxu0 0.0
        %3930 = vmatpush2.msra.mxu0 0.0
        %3931 = vmatprep.subr.mxu0 0.0
        %3932 = vmatpush2.msra.mxu0 0.0
        %3933 = vmatprep.subr.mxu0 0.0
        %3934 = vmatpush2.msra.mxu0 0.0
        %3935 = vmatprep.subr.mxu0 %v3766
        %3936 = vmatpush2.msra.mxu0 %v3766
        %3937 = vmatprep.subr.mxu0 %v3711
        %3938 = vmatpush2.msra.mxu0 %v3710
        %3939 = vmatprep.subr.mxu0 %v3695
        %3940 = vmatpush2.msra.mxu0 %v3694
        %3941 = vmatprep.subr.mxu0 %v3679
        %3942 = vmatpush2.msra.mxu0 %v3678
        %3943 = vmatprep.subr.mxu0 %v3663
        %3944 = vmatpush2.msra.mxu0 %v3662
        %3945 = vmatprep.mubr.f32.mxu0 %v3742
        %3946 = vmatmul.mubr.f32.gmra.mxu0 %v3724
        %v3947 = vpop.f32.mrf.mxu0
        %v3948 = vadd.f32 0.0, %v3947
        %v3949 = vpop.f32.mrf.mxu0
        %v3950 = vadd.f32 0.0, %v3949
        %3951 = vmatprep.mubr.f32.mxu0 %v3745
        %3952 = vmatmul.mubr.f32.gmra.mxu0 %v3726
        %v3953 = vpop.f32.mrf.mxu0
        %v3954 = vadd.f32 0.0, %v3953
        %v3955 = vpop.f32.mrf.mxu0
        %v3956 = vadd.f32 0.0, %v3955
        %3957 = vmatprep.mubr.f32.mxu0 %v3748
        %3958 = vmatmul.mubr.f32.gmra.mxu0 %v3728
        %v3959 = vpop.f32.mrf.mxu0
        %v3960 = vadd.f32 0.0, %v3959
        %v3961 = vpop.f32.mrf.mxu0
        %v3962 = vadd.f32 0.0, %v3961
        %3963 = vmatprep.mubr.f32.mxu0 %v3751
        %3964 = vmatmul.mubr.f32.gmra.mxu0 %v3730
        %v3965 = vpop.f32.mrf.mxu0
        %v3966 = vadd.f32 0.0, %v3965
        %v3967 = vpop.f32.mrf.mxu0
        %v3968 = vadd.f32 0.0, %v3967
        %3969 = vmatprep.mubr.f32.mxu0 %v3754
        %3970 = vmatmul.mubr.f32.gmra.mxu0 %v3732
        %v3971 = vpop.f32.mrf.mxu0
        %v3972 = vadd.f32 0.0, %v3971
        %v3973 = vpop.f32.mrf.mxu0
        %v3974 = vadd.f32 0.0, %v3973
        %3975 = vmatprep.mubr.f32.mxu0 %v3757
        %3976 = vmatmul.mubr.f32.gmra.mxu0 %v3734
        %v3977 = vpop.f32.mrf.mxu0
        %v3978 = vadd.f32 0.0, %v3977
        %v3979 = vpop.f32.mrf.mxu0
        %v3980 = vadd.f32 0.0, %v3979
        %3981 = vmatprep.mubr.f32.mxu0 %v3760
        %3982 = vmatmul.mubr.f32.gmra.mxu0 %v3736
        %v3983 = vpop.f32.mrf.mxu0
        %v3984 = vadd.f32 0.0, %v3983
        %v3985 = vpop.f32.mrf.mxu0
        %v3986 = vadd.f32 0.0, %v3985
        %3987 = vmatprep.mubr.f32.mxu0 %v3763
        %3988 = vmatmul.mubr.f32.gmra.mxu0 %v3738
        %v3989 = vpop.f32.mrf.mxu0
        %v3990 = vadd.f32 0.0, %v3989
        %v3991 = vpop.f32.mrf.mxu0
        %v3992 = vadd.f32 0.0, %v3991
        %3993 = vdwg.mxu0
        %3994 = vmatprep.subr.mxu0 %v3457
        %3995 = vmatpush1.msra.mxu0 %v3456
        %3996 = vmatprep.subr.mxu0 %v3441
        %3997 = vmatpush1.msra.mxu0 %v3440
        %3998 = vmatprep.subr.mxu0 %v3425
        %3999 = vmatpush1.msra.mxu0 %v3424
        %4000 = vmatprep.subr.mxu0 %v3409
        %4001 = vmatpush1.msra.mxu0 %v3408
        %4002 = vmatprep.subr.mxu0 %v2689
        %4003 = vmatpush1.msra.mxu0 %v2688
        %4004 = vmatprep.subr.mxu0 %v2673
        %4005 = vmatpush1.msra.mxu0 %v2672
        %4006 = vmatprep.subr.mxu0 %v2657
        %4007 = vmatpush1.msra.mxu0 %v2656
        %4008 = vmatprep.subr.mxu0 %v2641
        %4009 = vmatpush1.msra.mxu0 %v2640
        %4010 = vmatprep.subr.mxu0 %v3201
        %4011 = vmatpush1.msra.mxu0 %v3200
        %4012 = vmatprep.subr.mxu0 %v3185
        %4013 = vmatpush1.msra.mxu0 %v3184
        %4014 = vmatprep.subr.mxu0 %v3169
        %4015 = vmatpush1.msra.mxu0 %v3168
        %4016 = vmatprep.subr.mxu0 %v3153
        %4017 = vmatpush1.msra.mxu0 %v3152
        %4018 = vmatprep.subr.mxu0 %v2945
        %4019 = vmatpush1.msra.mxu0 %v2944
        %4020 = vmatprep.subr.mxu0 %v2929
        %4021 = vmatpush1.msra.mxu0 %v2928
        %4022 = vmatprep.subr.mxu0 %v2913
        %4023 = vmatpush1.msra.mxu0 %v2912
        %4024 = vmatprep.subr.mxu0 %v2897
        %4025 = vmatpush1.msra.mxu0 %v2896
        %4026 = vmatprep.subr.mxu0 0.0
        %4027 = vmatpush2.msra.mxu0 0.0
        %4028 = vmatprep.subr.mxu0 0.0
        %4029 = vmatpush2.msra.mxu0 0.0
        %4030 = vmatprep.subr.mxu0 0.0
        %4031 = vmatpush2.msra.mxu0 0.0
        %4032 = vmatprep.subr.mxu0 0.0
        %4033 = vmatpush2.msra.mxu0 0.0
        %4034 = vmatprep.subr.mxu0 0.0
        %4035 = vmatpush2.msra.mxu0 0.0
        %4036 = vmatprep.subr.mxu0 0.0
        %4037 = vmatpush2.msra.mxu0 0.0
        %4038 = vmatprep.subr.mxu0 0.0
        %4039 = vmatpush2.msra.mxu0 0.0
        %4040 = vmatprep.subr.mxu0 0.0
        %4041 = vmatpush2.msra.mxu0 0.0
        %4042 = vmatprep.subr.mxu0 0.0
        %4043 = vmatpush2.msra.mxu0 0.0
        %4044 = vmatprep.subr.mxu0 0.0
        %4045 = vmatpush2.msra.mxu0 0.0
        %4046 = vmatprep.subr.mxu0 0.0
        %4047 = vmatpush2.msra.mxu0 0.0
        %4048 = vmatprep.subr.mxu0 %v3766
        %4049 = vmatpush2.msra.mxu0 %v3766
        %4050 = vmatprep.subr.mxu0 %v3713
        %4051 = vmatpush2.msra.mxu0 %v3712
        %4052 = vmatprep.subr.mxu0 %v3697
        %4053 = vmatpush2.msra.mxu0 %v3696
        %4054 = vmatprep.subr.mxu0 %v3681
        %4055 = vmatpush2.msra.mxu0 %v3680
        %4056 = vmatprep.subr.mxu0 %v3665
        %4057 = vmatpush2.msra.mxu0 %v3664
        %4058 = vmatprep.mubr.f32.mxu0 %v3742
        %4059 = vmatmul.mubr.f32.gmra.mxu0 %v3724
        %v4060 = vpop.f32.mrf.mxu0
        %v4061 = vadd.f32 0.0, %v4060
        %v4062 = vpop.f32.mrf.mxu0
        %v4063 = vadd.f32 0.0, %v4062
        %4064 = vmatprep.mubr.f32.mxu0 %v3745
        %4065 = vmatmul.mubr.f32.gmra.mxu0 %v3726
        %v4066 = vpop.f32.mrf.mxu0
        %v4067 = vadd.f32 0.0, %v4066
        %v4068 = vpop.f32.mrf.mxu0
        %v4069 = vadd.f32 0.0, %v4068
        %4070 = vmatprep.mubr.f32.mxu0 %v3748
        %4071 = vmatmul.mubr.f32.gmra.mxu0 %v3728
        %v4072 = vpop.f32.mrf.mxu0
        %v4073 = vadd.f32 0.0, %v4072
        %v4074 = vpop.f32.mrf.mxu0
        %v4075 = vadd.f32 0.0, %v4074
        %4076 = vmatprep.mubr.f32.mxu0 %v3751
        %4077 = vmatmul.mubr.f32.gmra.mxu0 %v3730
        %v4078 = vpop.f32.mrf.mxu0
        %v4079 = vadd.f32 0.0, %v4078
        %v4080 = vpop.f32.mrf.mxu0
        %v4081 = vadd.f32 0.0, %v4080
        %4082 = vmatprep.mubr.f32.mxu0 %v3754
        %4083 = vmatmul.mubr.f32.gmra.mxu0 %v3732
        %v4084 = vpop.f32.mrf.mxu0
        %v4085 = vadd.f32 0.0, %v4084
        %v4086 = vpop.f32.mrf.mxu0
        %v4087 = vadd.f32 0.0, %v4086
        %4088 = vmatprep.mubr.f32.mxu0 %v3757
        %4089 = vmatmul.mubr.f32.gmra.mxu0 %v3734
        %v4090 = vpop.f32.mrf.mxu0
        %v4091 = vadd.f32 0.0, %v4090
        %v4092 = vpop.f32.mrf.mxu0
        %v4093 = vadd.f32 0.0, %v4092
        %4094 = vmatprep.mubr.f32.mxu0 %v3760
        %4095 = vmatmul.mubr.f32.gmra.mxu0 %v3736
        %v4096 = vpop.f32.mrf.mxu0
        %v4097 = vadd.f32 0.0, %v4096
        %v4098 = vpop.f32.mrf.mxu0
        %v4099 = vadd.f32 0.0, %v4098
        %4100 = vmatprep.mubr.f32.mxu0 %v3763
        %4101 = vmatmul.mubr.f32.gmra.mxu0 %v3738
        %v4102 = vpop.f32.mrf.mxu0
        %v4103 = vadd.f32 0.0, %v4102
        %v4104 = vpop.f32.mrf.mxu0
        %v4105 = vadd.f32 0.0, %v4104
        %4106 = vdwg.mxu0
        %4107 = vmatprep.subr.mxu0 %v3459
        %4108 = vmatpush1.msra.mxu0 %v3458
        %4109 = vmatprep.subr.mxu0 %v3443
        %4110 = vmatpush1.msra.mxu0 %v3442
        %4111 = vmatprep.subr.mxu0 %v3427
        %4112 = vmatpush1.msra.mxu0 %v3426
        %4113 = vmatprep.subr.mxu0 %v3411
        %4114 = vmatpush1.msra.mxu0 %v3410
        %4115 = vmatprep.subr.mxu0 %v2691
        %4116 = vmatpush1.msra.mxu0 %v2690
        %4117 = vmatprep.subr.mxu0 %v2675
        %4118 = vmatpush1.msra.mxu0 %v2674
        %4119 = vmatprep.subr.mxu0 %v2659
        %4120 = vmatpush1.msra.mxu0 %v2658
        %4121 = vmatprep.subr.mxu0 %v2643
        %4122 = vmatpush1.msra.mxu0 %v2642
        %4123 = vmatprep.subr.mxu0 %v3203
        %4124 = vmatpush1.msra.mxu0 %v3202
        %4125 = vmatprep.subr.mxu0 %v3187
        %4126 = vmatpush1.msra.mxu0 %v3186
        %4127 = vmatprep.subr.mxu0 %v3171
        %4128 = vmatpush1.msra.mxu0 %v3170
        %4129 = vmatprep.subr.mxu0 %v3155
        %4130 = vmatpush1.msra.mxu0 %v3154
        %4131 = vmatprep.subr.mxu0 %v2947
        %4132 = vmatpush1.msra.mxu0 %v2946
        %4133 = vmatprep.subr.mxu0 %v2931
        %4134 = vmatpush1.msra.mxu0 %v2930
        %4135 = vmatprep.subr.mxu0 %v2915
        %4136 = vmatpush1.msra.mxu0 %v2914
        %4137 = vmatprep.subr.mxu0 %v2899
        %4138 = vmatpush1.msra.mxu0 %v2898
        %4139 = vmatprep.subr.mxu0 0.0
        %4140 = vmatpush2.msra.mxu0 0.0
        %4141 = vmatprep.subr.mxu0 0.0
        %4142 = vmatpush2.msra.mxu0 0.0
        %4143 = vmatprep.subr.mxu0 0.0
        %4144 = vmatpush2.msra.mxu0 0.0
        %4145 = vmatprep.subr.mxu0 0.0
        %4146 = vmatpush2.msra.mxu0 0.0
        %4147 = vmatprep.subr.mxu0 0.0
        %4148 = vmatpush2.msra.mxu0 0.0
        %4149 = vmatprep.subr.mxu0 0.0
        %4150 = vmatpush2.msra.mxu0 0.0
        %4151 = vmatprep.subr.mxu0 0.0
        %4152 = vmatpush2.msra.mxu0 0.0
        %4153 = vmatprep.subr.mxu0 0.0
        %4154 = vmatpush2.msra.mxu0 0.0
        %4155 = vmatprep.subr.mxu0 0.0
        %4156 = vmatpush2.msra.mxu0 0.0
        %4157 = vmatprep.subr.mxu0 0.0
        %4158 = vmatpush2.msra.mxu0 0.0
        %4159 = vmatprep.subr.mxu0 0.0
        %4160 = vmatpush2.msra.mxu0 0.0
        %4161 = vmatprep.subr.mxu0 %v3766
        %4162 = vmatpush2.msra.mxu0 %v3766
        %4163 = vmatprep.subr.mxu0 %v3715
        %4164 = vmatpush2.msra.mxu0 %v3714
        %4165 = vmatprep.subr.mxu0 %v3699
        %4166 = vmatpush2.msra.mxu0 %v3698
        %4167 = vmatprep.subr.mxu0 %v3683
        %4168 = vmatpush2.msra.mxu0 %v3682
        %4169 = vmatprep.subr.mxu0 %v3667
        %4170 = vmatpush2.msra.mxu0 %v3666
        %4171 = vmatprep.mubr.f32.mxu0 %v3742
        %4172 = vmatmul.mubr.f32.gmra.mxu0 %v3724
        %v4173 = vpop.f32.mrf.mxu0
        %v4174 = vadd.f32 0.0, %v4173
        %v4175 = vpop.f32.mrf.mxu0
        %v4176 = vadd.f32 0.0, %v4175
        %4177 = vmatprep.mubr.f32.mxu0 %v3745
        %4178 = vmatmul.mubr.f32.gmra.mxu0 %v3726
        %v4179 = vpop.f32.mrf.mxu0
        %v4180 = vadd.f32 0.0, %v4179
        %v4181 = vpop.f32.mrf.mxu0
        %v4182 = vadd.f32 0.0, %v4181
        %4183 = vmatprep.mubr.f32.mxu0 %v3748
        %4184 = vmatmul.mubr.f32.gmra.mxu0 %v3728
        %v4185 = vpop.f32.mrf.mxu0
        %v4186 = vadd.f32 0.0, %v4185
        %v4187 = vpop.f32.mrf.mxu0
        %v4188 = vadd.f32 0.0, %v4187
        %4189 = vmatprep.mubr.f32.mxu0 %v3751
        %4190 = vmatmul.mubr.f32.gmra.mxu0 %v3730
        %v4191 = vpop.f32.mrf.mxu0
        %v4192 = vadd.f32 0.0, %v4191
        %v4193 = vpop.f32.mrf.mxu0
        %v4194 = vadd.f32 0.0, %v4193
        %4195 = vmatprep.mubr.f32.mxu0 %v3754
        %4196 = vmatmul.mubr.f32.gmra.mxu0 %v3732
        %v4197 = vpop.f32.mrf.mxu0
        %v4198 = vadd.f32 0.0, %v4197
        %v4199 = vpop.f32.mrf.mxu0
        %v4200 = vadd.f32 0.0, %v4199
        %4201 = vmatprep.mubr.f32.mxu0 %v3757
        %4202 = vmatmul.mubr.f32.gmra.mxu0 %v3734
        %v4203 = vpop.f32.mrf.mxu0
        %v4204 = vadd.f32 0.0, %v4203
        %v4205 = vpop.f32.mrf.mxu0
        %v4206 = vadd.f32 0.0, %v4205
        %4207 = vmatprep.mubr.f32.mxu0 %v3760
        %4208 = vmatmul.mubr.f32.gmra.mxu0 %v3736
        %v4209 = vpop.f32.mrf.mxu0
        %v4210 = vadd.f32 0.0, %v4209
        %v4211 = vpop.f32.mrf.mxu0
        %v4212 = vadd.f32 0.0, %v4211
        %4213 = vmatprep.mubr.f32.mxu0 %v3763
        %4214 = vmatmul.mubr.f32.gmra.mxu0 %v3738
        %v4215 = vpop.f32.mrf.mxu0
        %v4216 = vadd.f32 0.0, %v4215
        %v4217 = vpop.f32.mrf.mxu0
        %v4218 = vadd.f32 0.0, %v4217
        %4219 = vdwg.mxu0
        %4220 = vmatprep.subr.mxu0 %v3461
        %4221 = vmatpush1.msra.mxu0 %v3460
        %4222 = vmatprep.subr.mxu0 %v3445
        %4223 = vmatpush1.msra.mxu0 %v3444
        %4224 = vmatprep.subr.mxu0 %v3429
        %4225 = vmatpush1.msra.mxu0 %v3428
        %4226 = vmatprep.subr.mxu0 %v3413
        %4227 = vmatpush1.msra.mxu0 %v3412
        %4228 = vmatprep.subr.mxu0 %v2693
        %4229 = vmatpush1.msra.mxu0 %v2692
        %4230 = vmatprep.subr.mxu0 %v2677
        %4231 = vmatpush1.msra.mxu0 %v2676
        %4232 = vmatprep.subr.mxu0 %v2661
        %4233 = vmatpush1.msra.mxu0 %v2660
        %4234 = vmatprep.subr.mxu0 %v2645
        %4235 = vmatpush1.msra.mxu0 %v2644
        %4236 = vmatprep.subr.mxu0 %v3205
        %4237 = vmatpush1.msra.mxu0 %v3204
        %4238 = vmatprep.subr.mxu0 %v3189
        %4239 = vmatpush1.msra.mxu0 %v3188
        %4240 = vmatprep.subr.mxu0 %v3173
        %4241 = vmatpush1.msra.mxu0 %v3172
        %4242 = vmatprep.subr.mxu0 %v3157
        %4243 = vmatpush1.msra.mxu0 %v3156
        %4244 = vmatprep.subr.mxu0 %v2949
        %4245 = vmatpush1.msra.mxu0 %v2948
        %4246 = vmatprep.subr.mxu0 %v2933
        %4247 = vmatpush1.msra.mxu0 %v2932
        %4248 = vmatprep.subr.mxu0 %v2917
        %4249 = vmatpush1.msra.mxu0 %v2916
        %4250 = vmatprep.subr.mxu0 %v2901
        %4251 = vmatpush1.msra.mxu0 %v2900
        %4252 = vmatprep.subr.mxu0 0.0
        %4253 = vmatpush2.msra.mxu0 0.0
        %4254 = vmatprep.subr.mxu0 0.0
        %4255 = vmatpush2.msra.mxu0 0.0
        %4256 = vmatprep.subr.mxu0 0.0
        %4257 = vmatpush2.msra.mxu0 0.0
        %4258 = vmatprep.subr.mxu0 0.0
        %4259 = vmatpush2.msra.mxu0 0.0
        %4260 = vmatprep.subr.mxu0 0.0
        %4261 = vmatpush2.msra.mxu0 0.0
        %4262 = vmatprep.subr.mxu0 0.0
        %4263 = vmatpush2.msra.mxu0 0.0
        %4264 = vmatprep.subr.mxu0 0.0
        %4265 = vmatpush2.msra.mxu0 0.0
        %4266 = vmatprep.subr.mxu0 0.0
        %4267 = vmatpush2.msra.mxu0 0.0
        %4268 = vmatprep.subr.mxu0 0.0
        %4269 = vmatpush2.msra.mxu0 0.0
        %4270 = vmatprep.subr.mxu0 0.0
        %4271 = vmatpush2.msra.mxu0 0.0
        %4272 = vmatprep.subr.mxu0 0.0
        %4273 = vmatpush2.msra.mxu0 0.0
        %4274 = vmatprep.subr.mxu0 %v3766
        %4275 = vmatpush2.msra.mxu0 %v3766
        %4276 = vmatprep.subr.mxu0 %v3717
        %4277 = vmatpush2.msra.mxu0 %v3716
        %4278 = vmatprep.subr.mxu0 %v3701
        %4279 = vmatpush2.msra.mxu0 %v3700
        %4280 = vmatprep.subr.mxu0 %v3685
        %4281 = vmatpush2.msra.mxu0 %v3684
        %4282 = vmatprep.subr.mxu0 %v3669
        %4283 = vmatpush2.msra.mxu0 %v3668
        %4284 = vmatprep.mubr.f32.mxu0 %v3742
        %4285 = vmatmul.mubr.f32.gmra.mxu0 %v3724
        %v4286 = vpop.f32.mrf.mxu0
        %v4287 = vadd.f32 0.0, %v4286
        %v4288 = vpop.f32.mrf.mxu0
        %v4289 = vadd.f32 0.0, %v4288
        %4290 = vmatprep.mubr.f32.mxu0 %v3745
        %4291 = vmatmul.mubr.f32.gmra.mxu0 %v3726
        %v4292 = vpop.f32.mrf.mxu0
        %v4293 = vadd.f32 0.0, %v4292
        %v4294 = vpop.f32.mrf.mxu0
        %v4295 = vadd.f32 0.0, %v4294
        %4296 = vmatprep.mubr.f32.mxu0 %v3748
        %4297 = vmatmul.mubr.f32.gmra.mxu0 %v3728
        %v4298 = vpop.f32.mrf.mxu0
        %v4299 = vadd.f32 0.0, %v4298
        %v4300 = vpop.f32.mrf.mxu0
        %v4301 = vadd.f32 0.0, %v4300
        %4302 = vmatprep.mubr.f32.mxu0 %v3751
        %4303 = vmatmul.mubr.f32.gmra.mxu0 %v3730
        %v4304 = vpop.f32.mrf.mxu0
        %v4305 = vadd.f32 0.0, %v4304
        %v4306 = vpop.f32.mrf.mxu0
        %v4307 = vadd.f32 0.0, %v4306
        %4308 = vmatprep.mubr.f32.mxu0 %v3754
        %4309 = vmatmul.mubr.f32.gmra.mxu0 %v3732
        %v4310 = vpop.f32.mrf.mxu0
        %v4311 = vadd.f32 0.0, %v4310
        %v4312 = vpop.f32.mrf.mxu0
        %v4313 = vadd.f32 0.0, %v4312
        %4314 = vmatprep.mubr.f32.mxu0 %v3757
        %4315 = vmatmul.mubr.f32.gmra.mxu0 %v3734
        %v4316 = vpop.f32.mrf.mxu0
        %v4317 = vadd.f32 0.0, %v4316
        %v4318 = vpop.f32.mrf.mxu0
        %v4319 = vadd.f32 0.0, %v4318
        %4320 = vmatprep.mubr.f32.mxu0 %v3760
        %4321 = vmatmul.mubr.f32.gmra.mxu0 %v3736
        %v4322 = vpop.f32.mrf.mxu0
        %v4323 = vadd.f32 0.0, %v4322
        %v4324 = vpop.f32.mrf.mxu0
        %v4325 = vadd.f32 0.0, %v4324
        %4326 = vmatprep.mubr.f32.mxu0 %v3763
        %4327 = vmatmul.mubr.f32.gmra.mxu0 %v3738
        %v4328 = vpop.f32.mrf.mxu0
        %v4329 = vadd.f32 0.0, %v4328
        %v4330 = vpop.f32.mrf.mxu0
        %v4331 = vadd.f32 0.0, %v4330
        %4332 = vdwg.mxu0
        %4333 = vmatprep.subr.mxu0 %v3463
        %4334 = vmatpush1.msra.mxu0 %v3462
        %4335 = vmatprep.subr.mxu0 %v3447
        %4336 = vmatpush1.msra.mxu0 %v3446
        %4337 = vmatprep.subr.mxu0 %v3431
        %4338 = vmatpush1.msra.mxu0 %v3430
        %4339 = vmatprep.subr.mxu0 %v3415
        %4340 = vmatpush1.msra.mxu0 %v3414
        %4341 = vmatprep.subr.mxu0 %v2695
        %4342 = vmatpush1.msra.mxu0 %v2694
        %4343 = vmatprep.subr.mxu0 %v2679
        %4344 = vmatpush1.msra.mxu0 %v2678
        %4345 = vmatprep.subr.mxu0 %v2663
        %4346 = vmatpush1.msra.mxu0 %v2662
        %4347 = vmatprep.subr.mxu0 %v2647
        %4348 = vmatpush1.msra.mxu0 %v2646
        %4349 = vmatprep.subr.mxu0 %v3207
        %4350 = vmatpush1.msra.mxu0 %v3206
        %4351 = vmatprep.subr.mxu0 %v3191
        %4352 = vmatpush1.msra.mxu0 %v3190
        %4353 = vmatprep.subr.mxu0 %v3175
        %4354 = vmatpush1.msra.mxu0 %v3174
        %4355 = vmatprep.subr.mxu0 %v3159
        %4356 = vmatpush1.msra.mxu0 %v3158
        %4357 = vmatprep.subr.mxu0 %v2951
        %4358 = vmatpush1.msra.mxu0 %v2950
        %4359 = vmatprep.subr.mxu0 %v2935
        %4360 = vmatpush1.msra.mxu0 %v2934
        %4361 = vmatprep.subr.mxu0 %v2919
        %4362 = vmatpush1.msra.mxu0 %v2918
        %4363 = vmatprep.subr.mxu0 %v2903
        %4364 = vmatpush1.msra.mxu0 %v2902
        %4365 = vmatprep.subr.mxu0 0.0
        %4366 = vmatpush2.msra.mxu0 0.0
        %4367 = vmatprep.subr.mxu0 0.0
        %4368 = vmatpush2.msra.mxu0 0.0
        %4369 = vmatprep.subr.mxu0 0.0
        %4370 = vmatpush2.msra.mxu0 0.0
        %4371 = vmatprep.subr.mxu0 0.0
        %4372 = vmatpush2.msra.mxu0 0.0
        %4373 = vmatprep.subr.mxu0 0.0
        %4374 = vmatpush2.msra.mxu0 0.0
        %4375 = vmatprep.subr.mxu0 0.0
        %4376 = vmatpush2.msra.mxu0 0.0
        %4377 = vmatprep.subr.mxu0 0.0
        %4378 = vmatpush2.msra.mxu0 0.0
        %4379 = vmatprep.subr.mxu0 0.0
        %4380 = vmatpush2.msra.mxu0 0.0
        %4381 = vmatprep.subr.mxu0 0.0
        %4382 = vmatpush2.msra.mxu0 0.0
        %4383 = vmatprep.subr.mxu0 0.0
        %4384 = vmatpush2.msra.mxu0 0.0
        %4385 = vmatprep.subr.mxu0 0.0
        %4386 = vmatpush2.msra.mxu0 0.0
        %4387 = vmatprep.subr.mxu0 %v3766
        %4388 = vmatpush2.msra.mxu0 %v3766
        %4389 = vmatprep.subr.mxu0 %v3719
        %4390 = vmatpush2.msra.mxu0 %v3718
        %4391 = vmatprep.subr.mxu0 %v3703
        %4392 = vmatpush2.msra.mxu0 %v3702
        %4393 = vmatprep.subr.mxu0 %v3687
        %4394 = vmatpush2.msra.mxu0 %v3686
        %4395 = vmatprep.subr.mxu0 %v3671
        %4396 = vmatpush2.msra.mxu0 %v3670
        %4397 = vmatprep.mubr.f32.mxu0 %v3742
        %4398 = vmatmul.mubr.f32.gmra.mxu0 %v3724
        %v4399 = vpop.f32.mrf.mxu0
        %v4400 = vadd.f32 0.0, %v4399
        %v4401 = vpop.f32.mrf.mxu0
        %v4402 = vadd.f32 0.0, %v4401
        %4403 = vmatprep.mubr.f32.mxu0 %v3745
        %4404 = vmatmul.mubr.f32.gmra.mxu0 %v3726
        %v4405 = vpop.f32.mrf.mxu0
        %v4406 = vadd.f32 0.0, %v4405
        %v4407 = vpop.f32.mrf.mxu0
        %v4408 = vadd.f32 0.0, %v4407
        %4409 = vmatprep.mubr.f32.mxu0 %v3748
        %4410 = vmatmul.mubr.f32.gmra.mxu0 %v3728
        %v4411 = vpop.f32.mrf.mxu0
        %v4412 = vadd.f32 0.0, %v4411
        %v4413 = vpop.f32.mrf.mxu0
        %v4414 = vadd.f32 0.0, %v4413
        %4415 = vmatprep.mubr.f32.mxu0 %v3751
        %4416 = vmatmul.mubr.f32.gmra.mxu0 %v3730
        %v4417 = vpop.f32.mrf.mxu0
        %v4418 = vadd.f32 0.0, %v4417
        %v4419 = vpop.f32.mrf.mxu0
        %v4420 = vadd.f32 0.0, %v4419
        %4421 = vmatprep.mubr.f32.mxu0 %v3754
        %4422 = vmatmul.mubr.f32.gmra.mxu0 %v3732
        %v4423 = vpop.f32.mrf.mxu0
        %v4424 = vadd.f32 0.0, %v4423
        %v4425 = vpop.f32.mrf.mxu0
        %v4426 = vadd.f32 0.0, %v4425
        %4427 = vmatprep.mubr.f32.mxu0 %v3757
        %4428 = vmatmul.mubr.f32.gmra.mxu0 %v3734
        %v4429 = vpop.f32.mrf.mxu0
        %v4430 = vadd.f32 0.0, %v4429
        %v4431 = vpop.f32.mrf.mxu0
        %v4432 = vadd.f32 0.0, %v4431
        %4433 = vmatprep.mubr.f32.mxu0 %v3760
        %4434 = vmatmul.mubr.f32.gmra.mxu0 %v3736
        %v4435 = vpop.f32.mrf.mxu0
        %v4436 = vadd.f32 0.0, %v4435
        %v4437 = vpop.f32.mrf.mxu0
        %v4438 = vadd.f32 0.0, %v4437
        %4439 = vmatprep.mubr.f32.mxu0 %v3763
        %4440 = vmatmul.mubr.f32.gmra.mxu0 %v3738
        %v4441 = vpop.f32.mrf.mxu0
        %v4442 = vadd.f32 0.0, %v4441
        %v4443 = vpop.f32.mrf.mxu0
        %v4444 = vadd.f32 0.0, %v4443
        %4445 = vdwg.mxu0
        %4446 = vmatprep.subr.mxu0 %v3465
        %4447 = vmatpush1.msra.mxu0 %v3464
        %4448 = vmatprep.subr.mxu0 %v3449
        %4449 = vmatpush1.msra.mxu0 %v3448
        %4450 = vmatprep.subr.mxu0 %v3433
        %4451 = vmatpush1.msra.mxu0 %v3432
        %4452 = vmatprep.subr.mxu0 %v3417
        %4453 = vmatpush1.msra.mxu0 %v3416
        %4454 = vmatprep.subr.mxu0 %v2697
        %4455 = vmatpush1.msra.mxu0 %v2696
        %4456 = vmatprep.subr.mxu0 %v2681
        %4457 = vmatpush1.msra.mxu0 %v2680
        %4458 = vmatprep.subr.mxu0 %v2665
        %4459 = vmatpush1.msra.mxu0 %v2664
        %4460 = vmatprep.subr.mxu0 %v2649
        %4461 = vmatpush1.msra.mxu0 %v2648
        %4462 = vmatprep.subr.mxu0 %v3209
        %4463 = vmatpush1.msra.mxu0 %v3208
        %4464 = vmatprep.subr.mxu0 %v3193
        %4465 = vmatpush1.msra.mxu0 %v3192
        %4466 = vmatprep.subr.mxu0 %v3177
        %4467 = vmatpush1.msra.mxu0 %v3176
        %4468 = vmatprep.subr.mxu0 %v3161
        %4469 = vmatpush1.msra.mxu0 %v3160
        %4470 = vmatprep.subr.mxu0 %v2953
        %4471 = vmatpush1.msra.mxu0 %v2952
        %4472 = vmatprep.subr.mxu0 %v2937
        %4473 = vmatpush1.msra.mxu0 %v2936
        %4474 = vmatprep.subr.mxu0 %v2921
        %4475 = vmatpush1.msra.mxu0 %v2920
        %4476 = vmatprep.subr.mxu0 %v2905
        %4477 = vmatpush1.msra.mxu0 %v2904
        %4478 = vmatprep.subr.mxu0 0.0
        %4479 = vmatpush2.msra.mxu0 0.0
        %4480 = vmatprep.subr.mxu0 0.0
        %4481 = vmatpush2.msra.mxu0 0.0
        %4482 = vmatprep.subr.mxu0 0.0
        %4483 = vmatpush2.msra.mxu0 0.0
        %4484 = vmatprep.subr.mxu0 0.0
        %4485 = vmatpush2.msra.mxu0 0.0
        %4486 = vmatprep.subr.mxu0 0.0
        %4487 = vmatpush2.msra.mxu0 0.0
        %4488 = vmatprep.subr.mxu0 0.0
        %4489 = vmatpush2.msra.mxu0 0.0
        %4490 = vmatprep.subr.mxu0 0.0
        %4491 = vmatpush2.msra.mxu0 0.0
        %4492 = vmatprep.subr.mxu0 0.0
        %4493 = vmatpush2.msra.mxu0 0.0
        %4494 = vmatprep.subr.mxu0 0.0
        %4495 = vmatpush2.msra.mxu0 0.0
        %4496 = vmatprep.subr.mxu0 0.0
        %4497 = vmatpush2.msra.mxu0 0.0
        %4498 = vmatprep.subr.mxu0 0.0
        %4499 = vmatpush2.msra.mxu0 0.0
        %4500 = vmatprep.subr.mxu0 %v3766
        %4501 = vmatpush2.msra.mxu0 %v3766
        %4502 = vmatprep.subr.mxu0 %v3721
        %4503 = vmatpush2.msra.mxu0 %v3720
        %4504 = vmatprep.subr.mxu0 %v3705
        %4505 = vmatpush2.msra.mxu0 %v3704
        %4506 = vmatprep.subr.mxu0 %v3689
        %4507 = vmatpush2.msra.mxu0 %v3688
        %4508 = vmatprep.subr.mxu0 %v3673
        %4509 = vmatpush2.msra.mxu0 %v3672
        %4510 = vmatprep.mubr.f32.mxu0 %v3742
        %4511 = vmatmul.mubr.f32.gmra.mxu0 %v3724
        %v4512 = vpop.f32.mrf.mxu0
        %v4513 = vadd.f32 0.0, %v4512
        %v4514 = vpop.f32.mrf.mxu0
        %v4515 = vadd.f32 0.0, %v4514
        %4516 = vmatprep.mubr.f32.mxu0 %v3745
        %4517 = vmatmul.mubr.f32.gmra.mxu0 %v3726
        %v4518 = vpop.f32.mrf.mxu0
        %v4519 = vadd.f32 0.0, %v4518
        %v4520 = vpop.f32.mrf.mxu0
        %v4521 = vadd.f32 0.0, %v4520
        %4522 = vmatprep.mubr.f32.mxu0 %v3748
        %4523 = vmatmul.mubr.f32.gmra.mxu0 %v3728
        %v4524 = vpop.f32.mrf.mxu0
        %v4525 = vadd.f32 0.0, %v4524
        %v4526 = vpop.f32.mrf.mxu0
        %v4527 = vadd.f32 0.0, %v4526
        %4528 = vmatprep.mubr.f32.mxu0 %v3751
        %4529 = vmatmul.mubr.f32.gmra.mxu0 %v3730
        %v4530 = vpop.f32.mrf.mxu0
        %v4531 = vadd.f32 0.0, %v4530
        %v4532 = vpop.f32.mrf.mxu0
        %v4533 = vadd.f32 0.0, %v4532
        %4534 = vmatprep.mubr.f32.mxu0 %v3754
        %4535 = vmatmul.mubr.f32.gmra.mxu0 %v3732
        %v4536 = vpop.f32.mrf.mxu0
        %v4537 = vadd.f32 0.0, %v4536
        %v4538 = vpop.f32.mrf.mxu0
        %v4539 = vadd.f32 0.0, %v4538
        %4540 = vmatprep.mubr.f32.mxu0 %v3757
        %4541 = vmatmul.mubr.f32.gmra.mxu0 %v3734
        %v4542 = vpop.f32.mrf.mxu0
        %v4543 = vadd.f32 0.0, %v4542
        %v4544 = vpop.f32.mrf.mxu0
        %v4545 = vadd.f32 0.0, %v4544
        %4546 = vmatprep.mubr.f32.mxu0 %v3760
        %4547 = vmatmul.mubr.f32.gmra.mxu0 %v3736
        %v4548 = vpop.f32.mrf.mxu0
        %v4549 = vadd.f32 0.0, %v4548
        %v4550 = vpop.f32.mrf.mxu0
        %v4551 = vadd.f32 0.0, %v4550
        %4552 = vmatprep.mubr.f32.mxu0 %v3763
        %4553 = vmatmul.mubr.f32.gmra.mxu0 %v3738
        %v4554 = vpop.f32.mrf.mxu0
        %v4555 = vadd.f32 0.0, %v4554
        %v4556 = vpop.f32.mrf.mxu0
        %v4557 = vadd.f32 0.0, %v4556
        %4558 = vdwg.mxu0
        %4559 = vmatprep.subr.mxu0 %v3467
        %4560 = vmatpush1.msra.mxu0 %v3466
        %4561 = vmatprep.subr.mxu0 %v3451
        %4562 = vmatpush1.msra.mxu0 %v3450
        %4563 = vmatprep.subr.mxu0 %v3435
        %4564 = vmatpush1.msra.mxu0 %v3434
        %4565 = vmatprep.subr.mxu0 %v3419
        %4566 = vmatpush1.msra.mxu0 %v3418
        %4567 = vmatprep.subr.mxu0 %v2699
        %4568 = vmatpush1.msra.mxu0 %v2698
        %4569 = vmatprep.subr.mxu0 %v2683
        %4570 = vmatpush1.msra.mxu0 %v2682
        %4571 = vmatprep.subr.mxu0 %v2667
        %4572 = vmatpush1.msra.mxu0 %v2666
        %4573 = vmatprep.subr.mxu0 %v2651
        %4574 = vmatpush1.msra.mxu0 %v2650
        %4575 = vmatprep.subr.mxu0 %v3211
        %4576 = vmatpush1.msra.mxu0 %v3210
        %4577 = vmatprep.subr.mxu0 %v3195
        %4578 = vmatpush1.msra.mxu0 %v3194
        %4579 = vmatprep.subr.mxu0 %v3179
        %4580 = vmatpush1.msra.mxu0 %v3178
        %4581 = vmatprep.subr.mxu0 %v3163
        %4582 = vmatpush1.msra.mxu0 %v3162
        %4583 = vmatprep.subr.mxu0 %v2955
        %4584 = vmatpush1.msra.mxu0 %v2954
        %4585 = vmatprep.subr.mxu0 %v2939
        %4586 = vmatpush1.msra.mxu0 %v2938
        %4587 = vmatprep.subr.mxu0 %v2923
        %4588 = vmatpush1.msra.mxu0 %v2922
        %4589 = vmatprep.subr.mxu0 %v2907
        %4590 = vmatpush1.msra.mxu0 %v2906
        %4591 = vmatprep.subr.mxu0 0.0
        %4592 = vmatpush2.msra.mxu0 0.0
        %4593 = vmatprep.subr.mxu0 0.0
        %4594 = vmatpush2.msra.mxu0 0.0
        %4595 = vmatprep.subr.mxu0 0.0
        %4596 = vmatpush2.msra.mxu0 0.0
        %4597 = vmatprep.subr.mxu0 0.0
        %4598 = vmatpush2.msra.mxu0 0.0
        %4599 = vmatprep.subr.mxu0 0.0
        %4600 = vmatpush2.msra.mxu0 0.0
        %4601 = vmatprep.subr.mxu0 0.0
        %4602 = vmatpush2.msra.mxu0 0.0
        %4603 = vmatprep.subr.mxu0 0.0
        %4604 = vmatpush2.msra.mxu0 0.0
        %4605 = vmatprep.subr.mxu0 0.0
        %4606 = vmatpush2.msra.mxu0 0.0
        %4607 = vmatprep.subr.mxu0 0.0
        %4608 = vmatpush2.msra.mxu0 0.0
        %4609 = vmatprep.subr.mxu0 0.0
        %4610 = vmatpush2.msra.mxu0 0.0
        %4611 = vmatprep.subr.mxu0 0.0
        %4612 = vmatpush2.msra.mxu0 0.0
        %4613 = vmatprep.subr.mxu0 %v3766
        %4614 = vmatpush2.msra.mxu0 %v3766
        %4615 = vmatprep.subr.mxu0 %v3723
        %4616 = vmatpush2.msra.mxu0 %v3722
        %4617 = vmatprep.subr.mxu0 %v3707
        %4618 = vmatpush2.msra.mxu0 %v3706
        %4619 = vmatprep.subr.mxu0 %v3691
        %4620 = vmatpush2.msra.mxu0 %v3690
        %4621 = vmatprep.subr.mxu0 %v3675
        %4622 = vmatpush2.msra.mxu0 %v3674
        %4623 = vmatprep.mubr.f32.mxu0 %v3742
        %4624 = vmatmul.mubr.f32.gmra.mxu0 %v3724
        %v4625 = vpop.f32.mrf.mxu0
        %v4626 = vadd.f32 0.0, %v4625
        %v4627 = vpop.f32.mrf.mxu0
        %v4628 = vadd.f32 0.0, %v4627
        %4629 = vmatprep.mubr.f32.mxu0 %v3745
        %4630 = vmatmul.mubr.f32.gmra.mxu0 %v3726
        %v4631 = vpop.f32.mrf.mxu0
        %v4632 = vadd.f32 0.0, %v4631
        %v4633 = vpop.f32.mrf.mxu0
        %v4634 = vadd.f32 0.0, %v4633
        %4635 = vmatprep.mubr.f32.mxu0 %v3748
        %4636 = vmatmul.mubr.f32.gmra.mxu0 %v3728
        %v4637 = vpop.f32.mrf.mxu0
        %v4638 = vadd.f32 0.0, %v4637
        %v4639 = vpop.f32.mrf.mxu0
        %v4640 = vadd.f32 0.0, %v4639
        %4641 = vmatprep.mubr.f32.mxu0 %v3751
        %4642 = vmatmul.mubr.f32.gmra.mxu0 %v3730
        %v4643 = vpop.f32.mrf.mxu0
        %v4644 = vadd.f32 0.0, %v4643
        %v4645 = vpop.f32.mrf.mxu0
        %v4646 = vadd.f32 0.0, %v4645
        %4647 = vmatprep.mubr.f32.mxu0 %v3754
        %4648 = vmatmul.mubr.f32.gmra.mxu0 %v3732
        %v4649 = vpop.f32.mrf.mxu0
        %v4650 = vadd.f32 0.0, %v4649
        %v4651 = vpop.f32.mrf.mxu0
        %v4652 = vadd.f32 0.0, %v4651
        %4653 = vmatprep.mubr.f32.mxu0 %v3757
        %4654 = vmatmul.mubr.f32.gmra.mxu0 %v3734
        %v4655 = vpop.f32.mrf.mxu0
        %v4656 = vadd.f32 0.0, %v4655
        %v4657 = vpop.f32.mrf.mxu0
        %v4658 = vadd.f32 0.0, %v4657
        %4659 = vmatprep.mubr.f32.mxu0 %v3760
        %4660 = vmatmul.mubr.f32.gmra.mxu0 %v3736
        %v4661 = vpop.f32.mrf.mxu0
        %v4662 = vadd.f32 0.0, %v4661
        %v4663 = vpop.f32.mrf.mxu0
        %v4664 = vadd.f32 0.0, %v4663
        %4665 = vmatprep.mubr.f32.mxu0 %v3763
        %4666 = vmatmul.mubr.f32.gmra.mxu0 %v3738
        %v4667 = vpop.f32.mrf.mxu0
        %v4668 = vadd.f32 0.0, %v4667
        %v4669 = vpop.f32.mrf.mxu0
        %v4670 = vadd.f32 0.0, %v4669
        %4671 = vdwg.mxu0
        %v4672 = vmax.f32 %v3835, 0.0
        %v4673 = vmax.f32 %v3837, 0.0
        %v4674 = vmax.f32 %v3948, 0.0
        %v4675 = vmax.f32 %v3950, 0.0
        %v4676 = vmax.f32 %v4061, 0.0
        %v4677 = vmax.f32 %v4063, 0.0
        %v4678 = vmax.f32 %v4174, 0.0
        %v4679 = vmax.f32 %v4176, 0.0
        %v4680 = vmax.f32 %v4287, 0.0
        %v4681 = vmax.f32 %v4289, 0.0
        %v4682 = vmax.f32 %v4400, 0.0
        %v4683 = vmax.f32 %v4402, 0.0
        %v4684 = vmax.f32 %v4513, 0.0
        %v4685 = vmax.f32 %v4515, 0.0
        %v4686 = vmax.f32 %v4626, 0.0
        %v4687 = vmax.f32 %v4628, 0.0
        %v4688 = vmax.f32 %v3841, 0.0
        %v4689 = vmax.f32 %v3843, 0.0
        %v4690 = vmax.f32 %v3954, 0.0
        %v4691 = vmax.f32 %v3956, 0.0
        %v4692 = vmax.f32 %v4067, 0.0
        %v4693 = vmax.f32 %v4069, 0.0
        %v4694 = vmax.f32 %v4180, 0.0
        %v4695 = vmax.f32 %v4182, 0.0
        %v4696 = vmax.f32 %v4293, 0.0
        %v4697 = vmax.f32 %v4295, 0.0
        %v4698 = vmax.f32 %v4406, 0.0
        %v4699 = vmax.f32 %v4408, 0.0
        %v4700 = vmax.f32 %v4519, 0.0
        %v4701 = vmax.f32 %v4521, 0.0
        %v4702 = vmax.f32 %v4632, 0.0
        %v4703 = vmax.f32 %v4634, 0.0
        %v4704 = vmax.f32 %v3847, 0.0
        %v4705 = vmax.f32 %v3849, 0.0
        %v4706 = vmax.f32 %v3960, 0.0
        %v4707 = vmax.f32 %v3962, 0.0
        %v4708 = vmax.f32 %v4073, 0.0
        %v4709 = vmax.f32 %v4075, 0.0
        %v4710 = vmax.f32 %v4186, 0.0
        %v4711 = vmax.f32 %v4188, 0.0
        %v4712 = vmax.f32 %v4299, 0.0
        %v4713 = vmax.f32 %v4301, 0.0
        %v4714 = vmax.f32 %v4412, 0.0
        %v4715 = vmax.f32 %v4414, 0.0
        %v4716 = vmax.f32 %v4525, 0.0
        %v4717 = vmax.f32 %v4527, 0.0
        %v4718 = vmax.f32 %v4638, 0.0
        %v4719 = vmax.f32 %v4640, 0.0
        %v4720 = vmax.f32 %v3853, 0.0
        %v4721 = vmax.f32 %v3855, 0.0
        %v4722 = vmax.f32 %v3966, 0.0
        %v4723 = vmax.f32 %v3968, 0.0
        %v4724 = vmax.f32 %v4079, 0.0
        %v4725 = vmax.f32 %v4081, 0.0
        %v4726 = vmax.f32 %v4192, 0.0
        %v4727 = vmax.f32 %v4194, 0.0
        %v4728 = vmax.f32 %v4305, 0.0
        %v4729 = vmax.f32 %v4307, 0.0
        %v4730 = vmax.f32 %v4418, 0.0
        %v4731 = vmax.f32 %v4420, 0.0
        %v4732 = vmax.f32 %v4531, 0.0
        %v4733 = vmax.f32 %v4533, 0.0
        %v4734 = vmax.f32 %v4644, 0.0
        %v4735 = vmax.f32 %v4646, 0.0
        %v4736 = vmax.f32 %v3859, 0.0
        %v4737 = vmax.f32 %v3861, 0.0
        %v4738 = vmax.f32 %v3972, 0.0
        %v4739 = vmax.f32 %v3974, 0.0
        %v4740 = vmax.f32 %v4085, 0.0
        %v4741 = vmax.f32 %v4087, 0.0
        %v4742 = vmax.f32 %v4198, 0.0
        %v4743 = vmax.f32 %v4200, 0.0
        %v4744 = vmax.f32 %v4311, 0.0
        %v4745 = vmax.f32 %v4313, 0.0
        %v4746 = vmax.f32 %v4424, 0.0
        %v4747 = vmax.f32 %v4426, 0.0
        %v4748 = vmax.f32 %v4537, 0.0
        %v4749 = vmax.f32 %v4539, 0.0
        %v4750 = vmax.f32 %v4650, 0.0
        %v4751 = vmax.f32 %v4652, 0.0
        %v4752 = vmax.f32 %v3865, 0.0
        %v4753 = vmax.f32 %v3867, 0.0
        %v4754 = vmax.f32 %v3978, 0.0
        %v4755 = vmax.f32 %v3980, 0.0
        %v4756 = vmax.f32 %v4091, 0.0
        %v4757 = vmax.f32 %v4093, 0.0
        %v4758 = vmax.f32 %v4204, 0.0
        %v4759 = vmax.f32 %v4206, 0.0
        %v4760 = vmax.f32 %v4317, 0.0
        %v4761 = vmax.f32 %v4319, 0.0
        %v4762 = vmax.f32 %v4430, 0.0
        %v4763 = vmax.f32 %v4432, 0.0
        %v4764 = vmax.f32 %v4543, 0.0
        %v4765 = vmax.f32 %v4545, 0.0
        %v4766 = vmax.f32 %v4656, 0.0
        %v4767 = vmax.f32 %v4658, 0.0
        %v4768 = vmax.f32 %v3871, 0.0
        %v4769 = vmax.f32 %v3873, 0.0
        %v4770 = vmax.f32 %v3984, 0.0
        %v4771 = vmax.f32 %v3986, 0.0
        %v4772 = vmax.f32 %v4097, 0.0
        %v4773 = vmax.f32 %v4099, 0.0
        %v4774 = vmax.f32 %v4210, 0.0
        %v4775 = vmax.f32 %v4212, 0.0
        %v4776 = vmax.f32 %v4323, 0.0
        %v4777 = vmax.f32 %v4325, 0.0
        %v4778 = vmax.f32 %v4436, 0.0
        %v4779 = vmax.f32 %v4438, 0.0
        %v4780 = vmax.f32 %v4549, 0.0
        %v4781 = vmax.f32 %v4551, 0.0
        %v4782 = vmax.f32 %v4662, 0.0
        %v4783 = vmax.f32 %v4664, 0.0
        %v4784 = vmax.f32 %v3877, 0.0
        %v4785 = vmax.f32 %v3879, 0.0
        %v4786 = vmax.f32 %v3990, 0.0
        %v4787 = vmax.f32 %v3992, 0.0
        %v4788 = vmax.f32 %v4103, 0.0
        %v4789 = vmax.f32 %v4105, 0.0
        %v4790 = vmax.f32 %v4216, 0.0
        %v4791 = vmax.f32 %v4218, 0.0
        %v4792 = vmax.f32 %v4329, 0.0
        %v4793 = vmax.f32 %v4331, 0.0
        %v4794 = vmax.f32 %v4442, 0.0
        %v4795 = vmax.f32 %v4444, 0.0
        %v4796 = vmax.f32 %v4555, 0.0
        %v4797 = vmax.f32 %v4557, 0.0
        %v4798 = vmax.f32 %v4668, 0.0
        %v4799 = vmax.f32 %v4670, 0.0
        %4800 = vrot.lane.b32.xlu0 %v4672, 1
        %v4801 = vpop.permute.xlu0 %4800
        %4802 = vrot.lane.b32.xlu0 %v4688, 1
        %v4803 = vpop.permute.xlu0 %4802
        %4804 = vrot.lane.b32.xlu0 %v4704, 1
        %v4805 = vpop.permute.xlu0 %4804
        %4806 = vrot.lane.b32.xlu0 %v4720, 1
        %v4807 = vpop.permute.xlu0 %4806
        %4808 = vrot.lane.b32.xlu0 %v4736, 1
        %v4809 = vpop.permute.xlu0 %4808
        %4810 = vrot.lane.b32.xlu0 %v4752, 1
        %v4811 = vpop.permute.xlu0 %4810
        %4812 = vrot.lane.b32.xlu0 %v4768, 1
        %v4813 = vpop.permute.xlu0 %4812
        %4814 = vrot.lane.b32.xlu0 %v4784, 1
        %v4815 = vpop.permute.xlu0 %4814
        %4816 = vrot.lane.b32.xlu0 %v4673, 1
        %v4817 = vpop.permute.xlu0 %4816
        %4818 = vrot.lane.b32.xlu0 %v4689, 1
        %v4819 = vpop.permute.xlu0 %4818
        %4820 = vrot.lane.b32.xlu0 %v4705, 1
        %v4821 = vpop.permute.xlu0 %4820
        %4822 = vrot.lane.b32.xlu0 %v4721, 1
        %v4823 = vpop.permute.xlu0 %4822
        %4824 = vrot.lane.b32.xlu0 %v4737, 1
        %v4825 = vpop.permute.xlu0 %4824
        %4826 = vrot.lane.b32.xlu0 %v4753, 1
        %v4827 = vpop.permute.xlu0 %4826
        %4828 = vrot.lane.b32.xlu0 %v4769, 1
        %v4829 = vpop.permute.xlu0 %4828
        %4830 = vrot.lane.b32.xlu0 %v4785, 1
        %v4831 = vpop.permute.xlu0 %4830
        %4832 = vrot.lane.b32.xlu0 %v4674, 1
        %v4833 = vpop.permute.xlu0 %4832
        %4834 = vrot.lane.b32.xlu0 %v4690, 1
        %v4835 = vpop.permute.xlu0 %4834
        %4836 = vrot.lane.b32.xlu0 %v4706, 1
        %v4837 = vpop.permute.xlu0 %4836
        %4838 = vrot.lane.b32.xlu0 %v4722, 1
        %v4839 = vpop.permute.xlu0 %4838
        %4840 = vrot.lane.b32.xlu0 %v4738, 1
        %v4841 = vpop.permute.xlu0 %4840
        %4842 = vrot.lane.b32.xlu0 %v4754, 1
        %v4843 = vpop.permute.xlu0 %4842
        %4844 = vrot.lane.b32.xlu0 %v4770, 1
        %v4845 = vpop.permute.xlu0 %4844
        %4846 = vrot.lane.b32.xlu0 %v4786, 1
        %v4847 = vpop.permute.xlu0 %4846
        %4848 = vrot.lane.b32.xlu0 %v4675, 1
        %v4849 = vpop.permute.xlu0 %4848
        %4850 = vrot.lane.b32.xlu0 %v4691, 1
        %v4851 = vpop.permute.xlu0 %4850
        %4852 = vrot.lane.b32.xlu0 %v4707, 1
        %v4853 = vpop.permute.xlu0 %4852
        %4854 = vrot.lane.b32.xlu0 %v4723, 1
        %v4855 = vpop.permute.xlu0 %4854
        %4856 = vrot.lane.b32.xlu0 %v4739, 1
        %v4857 = vpop.permute.xlu0 %4856
        %4858 = vrot.lane.b32.xlu0 %v4755, 1
        %v4859 = vpop.permute.xlu0 %4858
        %4860 = vrot.lane.b32.xlu0 %v4771, 1
        %v4861 = vpop.permute.xlu0 %4860
        %4862 = vrot.lane.b32.xlu0 %v4787, 1
        %v4863 = vpop.permute.xlu0 %4862
        %4864 = vrot.lane.b32.xlu0 %v4676, 1
        %v4865 = vpop.permute.xlu0 %4864
        %4866 = vrot.lane.b32.xlu0 %v4692, 1
        %v4867 = vpop.permute.xlu0 %4866
        %4868 = vrot.lane.b32.xlu0 %v4708, 1
        %v4869 = vpop.permute.xlu0 %4868
        %4870 = vrot.lane.b32.xlu0 %v4724, 1
        %v4871 = vpop.permute.xlu0 %4870
        %4872 = vrot.lane.b32.xlu0 %v4740, 1
        %v4873 = vpop.permute.xlu0 %4872
        %4874 = vrot.lane.b32.xlu0 %v4756, 1
        %v4875 = vpop.permute.xlu0 %4874
        %4876 = vrot.lane.b32.xlu0 %v4772, 1
        %v4877 = vpop.permute.xlu0 %4876
        %4878 = vrot.lane.b32.xlu0 %v4788, 1
        %v4879 = vpop.permute.xlu0 %4878
        %4880 = vrot.lane.b32.xlu0 %v4677, 1
        %v4881 = vpop.permute.xlu0 %4880
        %4882 = vrot.lane.b32.xlu0 %v4693, 1
        %v4883 = vpop.permute.xlu0 %4882
        %4884 = vrot.lane.b32.xlu0 %v4709, 1
        %v4885 = vpop.permute.xlu0 %4884
        %4886 = vrot.lane.b32.xlu0 %v4725, 1
        %v4887 = vpop.permute.xlu0 %4886
        %4888 = vrot.lane.b32.xlu0 %v4741, 1
        %v4889 = vpop.permute.xlu0 %4888
        %4890 = vrot.lane.b32.xlu0 %v4757, 1
        %v4891 = vpop.permute.xlu0 %4890
        %4892 = vrot.lane.b32.xlu0 %v4773, 1
        %v4893 = vpop.permute.xlu0 %4892
        %4894 = vrot.lane.b32.xlu0 %v4789, 1
        %v4895 = vpop.permute.xlu0 %4894
        %4896 = vrot.lane.b32.xlu0 %v4678, 1
        %v4897 = vpop.permute.xlu0 %4896
        %4898 = vrot.lane.b32.xlu0 %v4694, 1
        %v4899 = vpop.permute.xlu0 %4898
        %4900 = vrot.lane.b32.xlu0 %v4710, 1
        %v4901 = vpop.permute.xlu0 %4900
        %4902 = vrot.lane.b32.xlu0 %v4726, 1
        %v4903 = vpop.permute.xlu0 %4902
        %4904 = vrot.lane.b32.xlu0 %v4742, 1
        %v4905 = vpop.permute.xlu0 %4904
        %4906 = vrot.lane.b32.xlu0 %v4758, 1
        %v4907 = vpop.permute.xlu0 %4906
        %4908 = vrot.lane.b32.xlu0 %v4774, 1
        %v4909 = vpop.permute.xlu0 %4908
        %4910 = vrot.lane.b32.xlu0 %v4790, 1
        %v4911 = vpop.permute.xlu0 %4910
        %4912 = vrot.lane.b32.xlu0 %v4679, 1
        %v4913 = vpop.permute.xlu0 %4912
        %4914 = vrot.lane.b32.xlu0 %v4695, 1
        %v4915 = vpop.permute.xlu0 %4914
        %4916 = vrot.lane.b32.xlu0 %v4711, 1
        %v4917 = vpop.permute.xlu0 %4916
        %4918 = vrot.lane.b32.xlu0 %v4727, 1
        %v4919 = vpop.permute.xlu0 %4918
        %4920 = vrot.lane.b32.xlu0 %v4743, 1
        %v4921 = vpop.permute.xlu0 %4920
        %4922 = vrot.lane.b32.xlu0 %v4759, 1
        %v4923 = vpop.permute.xlu0 %4922
        %4924 = vrot.lane.b32.xlu0 %v4775, 1
        %v4925 = vpop.permute.xlu0 %4924
        %4926 = vrot.lane.b32.xlu0 %v4791, 1
        %v4927 = vpop.permute.xlu0 %4926
        %4928 = vrot.lane.b32.xlu0 %v4680, 1
        %v4929 = vpop.permute.xlu0 %4928
        %4930 = vrot.lane.b32.xlu0 %v4696, 1
        %v4931 = vpop.permute.xlu0 %4930
        %4932 = vrot.lane.b32.xlu0 %v4712, 1
        %v4933 = vpop.permute.xlu0 %4932
        %4934 = vrot.lane.b32.xlu0 %v4728, 1
        %v4935 = vpop.permute.xlu0 %4934
        %4936 = vrot.lane.b32.xlu0 %v4744, 1
        %v4937 = vpop.permute.xlu0 %4936
        %4938 = vrot.lane.b32.xlu0 %v4760, 1
        %v4939 = vpop.permute.xlu0 %4938
        %4940 = vrot.lane.b32.xlu0 %v4776, 1
        %v4941 = vpop.permute.xlu0 %4940
        %4942 = vrot.lane.b32.xlu0 %v4792, 1
        %v4943 = vpop.permute.xlu0 %4942
        %4944 = vrot.lane.b32.xlu0 %v4681, 1
        %v4945 = vpop.permute.xlu0 %4944
        %4946 = vrot.lane.b32.xlu0 %v4697, 1
        %v4947 = vpop.permute.xlu0 %4946
        %4948 = vrot.lane.b32.xlu0 %v4713, 1
        %v4949 = vpop.permute.xlu0 %4948
        %4950 = vrot.lane.b32.xlu0 %v4729, 1
        %v4951 = vpop.permute.xlu0 %4950
        %4952 = vrot.lane.b32.xlu0 %v4745, 1
        %v4953 = vpop.permute.xlu0 %4952
        %4954 = vrot.lane.b32.xlu0 %v4761, 1
        %v4955 = vpop.permute.xlu0 %4954
        %4956 = vrot.lane.b32.xlu0 %v4777, 1
        %v4957 = vpop.permute.xlu0 %4956
        %4958 = vrot.lane.b32.xlu0 %v4793, 1
        %v4959 = vpop.permute.xlu0 %4958
        %4960 = vrot.lane.b32.xlu0 %v4682, 1
        %v4961 = vpop.permute.xlu0 %4960
        %4962 = vrot.lane.b32.xlu0 %v4698, 1
        %v4963 = vpop.permute.xlu0 %4962
        %4964 = vrot.lane.b32.xlu0 %v4714, 1
        %v4965 = vpop.permute.xlu0 %4964
        %4966 = vrot.lane.b32.xlu0 %v4730, 1
        %v4967 = vpop.permute.xlu0 %4966
        %4968 = vrot.lane.b32.xlu0 %v4746, 1
        %v4969 = vpop.permute.xlu0 %4968
        %4970 = vrot.lane.b32.xlu0 %v4762, 1
        %v4971 = vpop.permute.xlu0 %4970
        %4972 = vrot.lane.b32.xlu0 %v4778, 1
        %v4973 = vpop.permute.xlu0 %4972
        %4974 = vrot.lane.b32.xlu0 %v4794, 1
        %v4975 = vpop.permute.xlu0 %4974
        %4976 = vrot.lane.b32.xlu0 %v4683, 1
        %v4977 = vpop.permute.xlu0 %4976
        %4978 = vrot.lane.b32.xlu0 %v4699, 1
        %v4979 = vpop.permute.xlu0 %4978
        %4980 = vrot.lane.b32.xlu0 %v4715, 1
        %v4981 = vpop.permute.xlu0 %4980
        %4982 = vrot.lane.b32.xlu0 %v4731, 1
        %v4983 = vpop.permute.xlu0 %4982
        %4984 = vrot.lane.b32.xlu0 %v4747, 1
        %v4985 = vpop.permute.xlu0 %4984
        %4986 = vrot.lane.b32.xlu0 %v4763, 1
        %v4987 = vpop.permute.xlu0 %4986
        %4988 = vrot.lane.b32.xlu0 %v4779, 1
        %v4989 = vpop.permute.xlu0 %4988
        %4990 = vrot.lane.b32.xlu0 %v4795, 1
        %v4991 = vpop.permute.xlu0 %4990
        %4992 = vrot.lane.b32.xlu0 %v4684, 1
        %v4993 = vpop.permute.xlu0 %4992
        %4994 = vrot.lane.b32.xlu0 %v4700, 1
        %v4995 = vpop.permute.xlu0 %4994
        %4996 = vrot.lane.b32.xlu0 %v4716, 1
        %v4997 = vpop.permute.xlu0 %4996
        %4998 = vrot.lane.b32.xlu0 %v4732, 1
        %v4999 = vpop.permute.xlu0 %4998
        %5000 = vrot.lane.b32.xlu0 %v4748, 1
        %v5001 = vpop.permute.xlu0 %5000
        %5002 = vrot.lane.b32.xlu0 %v4764, 1
        %v5003 = vpop.permute.xlu0 %5002
        %5004 = vrot.lane.b32.xlu0 %v4780, 1
        %v5005 = vpop.permute.xlu0 %5004
        %5006 = vrot.lane.b32.xlu0 %v4796, 1
        %v5007 = vpop.permute.xlu0 %5006
        %5008 = vrot.lane.b32.xlu0 %v4685, 1
        %v5009 = vpop.permute.xlu0 %5008
        %5010 = vrot.lane.b32.xlu0 %v4701, 1
        %v5011 = vpop.permute.xlu0 %5010
        %5012 = vrot.lane.b32.xlu0 %v4717, 1
        %v5013 = vpop.permute.xlu0 %5012
        %5014 = vrot.lane.b32.xlu0 %v4733, 1
        %v5015 = vpop.permute.xlu0 %5014
        %5016 = vrot.lane.b32.xlu0 %v4749, 1
        %v5017 = vpop.permute.xlu0 %5016
        %5018 = vrot.lane.b32.xlu0 %v4765, 1
        %v5019 = vpop.permute.xlu0 %5018
        %5020 = vrot.lane.b32.xlu0 %v4781, 1
        %v5021 = vpop.permute.xlu0 %5020
        %5022 = vrot.lane.b32.xlu0 %v4797, 1
        %v5023 = vpop.permute.xlu0 %5022
        %5024 = vrot.lane.b32.xlu0 %v4686, 1
        %v5025 = vpop.permute.xlu0 %5024
        %5026 = vrot.lane.b32.xlu0 %v4702, 1
        %v5027 = vpop.permute.xlu0 %5026
        %5028 = vrot.lane.b32.xlu0 %v4718, 1
        %v5029 = vpop.permute.xlu0 %5028
        %5030 = vrot.lane.b32.xlu0 %v4734, 1
        %v5031 = vpop.permute.xlu0 %5030
        %5032 = vrot.lane.b32.xlu0 %v4750, 1
        %v5033 = vpop.permute.xlu0 %5032
        %5034 = vrot.lane.b32.xlu0 %v4766, 1
        %v5035 = vpop.permute.xlu0 %5034
        %5036 = vrot.lane.b32.xlu0 %v4782, 1
        %v5037 = vpop.permute.xlu0 %5036
        %5038 = vrot.lane.b32.xlu0 %v4798, 1
        %v5039 = vpop.permute.xlu0 %5038
        %5040 = vrot.lane.b32.xlu0 %v4687, 1
        %v5041 = vpop.permute.xlu0 %5040
        %5042 = vrot.lane.b32.xlu0 %v4703, 1
        %v5043 = vpop.permute.xlu0 %5042
        %5044 = vrot.lane.b32.xlu0 %v4719, 1
        %v5045 = vpop.permute.xlu0 %5044
        %5046 = vrot.lane.b32.xlu0 %v4735, 1
        %v5047 = vpop.permute.xlu0 %5046
        %5048 = vrot.lane.b32.xlu0 %v4751, 1
        %v5049 = vpop.permute.xlu0 %5048
        %5050 = vrot.lane.b32.xlu0 %v4767, 1
        %v5051 = vpop.permute.xlu0 %5050
        %5052 = vrot.lane.b32.xlu0 %v4783, 1
        %v5053 = vpop.permute.xlu0 %5052
        %5054 = vrot.lane.b32.xlu0 %v4799, 1
        %v5055 = vpop.permute.xlu0 %5054
        %v5056 = vsel %vm1320, %v5025, %v5041
        %v5057 = vsel %vm1320, %v5027, %v5043
        %v5058 = vsel %vm1320, %v5029, %v5045
        %v5059 = vsel %vm1320, %v5031, %v5047
        %v5060 = vsel %vm1320, %v5033, %v5049
        %v5061 = vsel %vm1320, %v5035, %v5051
        %v5062 = vsel %vm1320, %v5037, %v5053
        %v5063 = vsel %vm1320, %v5039, %v5055
        %v5064 = vsel %vm1320, %v5009, %v5025
        %v5065 = vsel %vm1320, %v5011, %v5027
        %v5066 = vsel %vm1320, %v5013, %v5029
        %v5067 = vsel %vm1320, %v5015, %v5031
        %v5068 = vsel %vm1320, %v5017, %v5033
        %v5069 = vsel %vm1320, %v5019, %v5035
        %v5070 = vsel %vm1320, %v5021, %v5037
        %v5071 = vsel %vm1320, %v5023, %v5039
        %v5072 = vsel %vm1320, %v4993, %v5009
        %v5073 = vsel %vm1320, %v4995, %v5011
        %v5074 = vsel %vm1320, %v4997, %v5013
        %v5075 = vsel %vm1320, %v4999, %v5015
        %v5076 = vsel %vm1320, %v5001, %v5017
        %v5077 = vsel %vm1320, %v5003, %v5019
        %v5078 = vsel %vm1320, %v5005, %v5021
        %v5079 = vsel %vm1320, %v5007, %v5023
        %v5080 = vsel %vm1320, %v4977, %v4993
        %v5081 = vsel %vm1320, %v4979, %v4995
        %v5082 = vsel %vm1320, %v4981, %v4997
        %v5083 = vsel %vm1320, %v4983, %v4999
        %v5084 = vsel %vm1320, %v4985, %v5001
        %v5085 = vsel %vm1320, %v4987, %v5003
        %v5086 = vsel %vm1320, %v4989, %v5005
        %v5087 = vsel %vm1320, %v4991, %v5007
        %v5088 = vsel %vm1320, %v4961, %v4977
        %v5089 = vsel %vm1320, %v4963, %v4979
        %v5090 = vsel %vm1320, %v4965, %v4981
        %v5091 = vsel %vm1320, %v4967, %v4983
        %v5092 = vsel %vm1320, %v4969, %v4985
        %v5093 = vsel %vm1320, %v4971, %v4987
        %v5094 = vsel %vm1320, %v4973, %v4989
        %v5095 = vsel %vm1320, %v4975, %v4991
        %v5096 = vsel %vm1320, %v4945, %v4961
        %v5097 = vsel %vm1320, %v4947, %v4963
        %v5098 = vsel %vm1320, %v4949, %v4965
        %v5099 = vsel %vm1320, %v4951, %v4967
        %v5100 = vsel %vm1320, %v4953, %v4969
        %v5101 = vsel %vm1320, %v4955, %v4971
        %v5102 = vsel %vm1320, %v4957, %v4973
        %v5103 = vsel %vm1320, %v4959, %v4975
        %v5104 = vsel %vm1320, %v4929, %v4945
        %v5105 = vsel %vm1320, %v4931, %v4947
        %v5106 = vsel %vm1320, %v4933, %v4949
        %v5107 = vsel %vm1320, %v4935, %v4951
        %v5108 = vsel %vm1320, %v4937, %v4953
        %v5109 = vsel %vm1320, %v4939, %v4955
        %v5110 = vsel %vm1320, %v4941, %v4957
        %v5111 = vsel %vm1320, %v4943, %v4959
        %v5112 = vsel %vm1320, %v4913, %v4929
        %v5113 = vsel %vm1320, %v4915, %v4931
        %v5114 = vsel %vm1320, %v4917, %v4933
        %v5115 = vsel %vm1320, %v4919, %v4935
        %v5116 = vsel %vm1320, %v4921, %v4937
        %v5117 = vsel %vm1320, %v4923, %v4939
        %v5118 = vsel %vm1320, %v4925, %v4941
        %v5119 = vsel %vm1320, %v4927, %v4943
        %v5120 = vsel %vm1320, %v4897, %v4913
        %v5121 = vsel %vm1320, %v4899, %v4915
        %v5122 = vsel %vm1320, %v4901, %v4917
        %v5123 = vsel %vm1320, %v4903, %v4919
        %v5124 = vsel %vm1320, %v4905, %v4921
        %v5125 = vsel %vm1320, %v4907, %v4923
        %v5126 = vsel %vm1320, %v4909, %v4925
        %v5127 = vsel %vm1320, %v4911, %v4927
        %v5128 = vsel %vm1320, %v4881, %v4897
        %v5129 = vsel %vm1320, %v4883, %v4899
        %v5130 = vsel %vm1320, %v4885, %v4901
        %v5131 = vsel %vm1320, %v4887, %v4903
        %v5132 = vsel %vm1320, %v4889, %v4905
        %v5133 = vsel %vm1320, %v4891, %v4907
        %v5134 = vsel %vm1320, %v4893, %v4909
        %v5135 = vsel %vm1320, %v4895, %v4911
        %v5136 = vsel %vm1320, %v4865, %v4881
        %v5137 = vsel %vm1320, %v4867, %v4883
        %v5138 = vsel %vm1320, %v4869, %v4885
        %v5139 = vsel %vm1320, %v4871, %v4887
        %v5140 = vsel %vm1320, %v4873, %v4889
        %v5141 = vsel %vm1320, %v4875, %v4891
        %v5142 = vsel %vm1320, %v4877, %v4893
        %v5143 = vsel %vm1320, %v4879, %v4895
        %v5144 = vsel %vm1320, %v4849, %v4865
        %v5145 = vsel %vm1320, %v4851, %v4867
        %v5146 = vsel %vm1320, %v4853, %v4869
        %v5147 = vsel %vm1320, %v4855, %v4871
        %v5148 = vsel %vm1320, %v4857, %v4873
        %v5149 = vsel %vm1320, %v4859, %v4875
        %v5150 = vsel %vm1320, %v4861, %v4877
        %v5151 = vsel %vm1320, %v4863, %v4879
        %v5152 = vsel %vm1320, %v4833, %v4849
        %v5153 = vsel %vm1320, %v4835, %v4851
        %v5154 = vsel %vm1320, %v4837, %v4853
        %v5155 = vsel %vm1320, %v4839, %v4855
        %v5156 = vsel %vm1320, %v4841, %v4857
        %v5157 = vsel %vm1320, %v4843, %v4859
        %v5158 = vsel %vm1320, %v4845, %v4861
        %v5159 = vsel %vm1320, %v4847, %v4863
        %v5160 = vsel %vm1320, %v4817, %v4833
        %v5161 = vsel %vm1320, %v4819, %v4835
        %v5162 = vsel %vm1320, %v4821, %v4837
        %v5163 = vsel %vm1320, %v4823, %v4839
        %v5164 = vsel %vm1320, %v4825, %v4841
        %v5165 = vsel %vm1320, %v4827, %v4843
        %v5166 = vsel %vm1320, %v4829, %v4845
        %v5167 = vsel %vm1320, %v4831, %v4847
        %v5168 = vsel %vm1320, %v4801, %v4817
        %v5169 = vsel %vm1320, %v4803, %v4819
        %v5170 = vsel %vm1320, %v4805, %v4821
        %v5171 = vsel %vm1320, %v4807, %v4823
        %v5172 = vsel %vm1320, %v4809, %v4825
        %v5173 = vsel %vm1320, %v4811, %v4827
        %v5174 = vsel %vm1320, %v4813, %v4829
        %v5175 = vsel %vm1320, %v4815, %v4831
        %v5176 = vsel %vm1320, %v5041, %v4801
        %v5177 = vsel %vm1320, %v5043, %v4803
        %v5178 = vsel %vm1320, %v5045, %v4805
        %v5179 = vsel %vm1320, %v5047, %v4807
        %v5180 = vsel %vm1320, %v5049, %v4809
        %v5181 = vsel %vm1320, %v5051, %v4811
        %v5182 = vsel %vm1320, %v5053, %v4813
        %v5183 = vsel %vm1320, %v5055, %v4815
        %v5184 = vmul.f32 %v5176, %v772
        %v5185 = vmul.f32 %v5168, %v773
        %v5186 = vmul.f32 %v5160, %v774
        %v5187 = vmul.f32 %v5152, %v775
        %v5188 = vmul.f32 %v5144, %v776
        %v5189 = vmul.f32 %v5136, %v777
        %v5190 = vmul.f32 %v5128, %v778
        %v5191 = vmul.f32 %v5120, %v779
        %v5192 = vmul.f32 %v5112, %v780
        %v5193 = vmul.f32 %v5104, %v781
        %v5194 = vmul.f32 %v5096, %v782
        %v5195 = vmul.f32 %v5088, %v783
        %v5196 = vmul.f32 %v5080, %v784
        %v5197 = vmul.f32 %v5072, %v785
        %v5198 = vmul.f32 %v5064, %v786
        %v5199 = vmul.f32 %v5056, %v787
        %v5200 = vmul.f32 %v5177, %v772
        %v5201 = vmul.f32 %v5169, %v773
        %v5202 = vmul.f32 %v5161, %v774
        %v5203 = vmul.f32 %v5153, %v775
        %v5204 = vmul.f32 %v5145, %v776
        %v5205 = vmul.f32 %v5137, %v777
        %v5206 = vmul.f32 %v5129, %v778
        %v5207 = vmul.f32 %v5121, %v779
        %v5208 = vmul.f32 %v5113, %v780
        %v5209 = vmul.f32 %v5105, %v781
        %v5210 = vmul.f32 %v5097, %v782
        %v5211 = vmul.f32 %v5089, %v783
        %v5212 = vmul.f32 %v5081, %v784
        %v5213 = vmul.f32 %v5073, %v785
        %v5214 = vmul.f32 %v5065, %v786
        %v5215 = vmul.f32 %v5057, %v787
        %v5216 = vmul.f32 %v5178, %v772
        %v5217 = vmul.f32 %v5170, %v773
        %v5218 = vmul.f32 %v5162, %v774
        %v5219 = vmul.f32 %v5154, %v775
        %v5220 = vmul.f32 %v5146, %v776
        %v5221 = vmul.f32 %v5138, %v777
        %v5222 = vmul.f32 %v5130, %v778
        %v5223 = vmul.f32 %v5122, %v779
        %v5224 = vmul.f32 %v5114, %v780
        %v5225 = vmul.f32 %v5106, %v781
        %v5226 = vmul.f32 %v5098, %v782
        %v5227 = vmul.f32 %v5090, %v783
        %v5228 = vmul.f32 %v5082, %v784
        %v5229 = vmul.f32 %v5074, %v785
        %v5230 = vmul.f32 %v5066, %v786
        %v5231 = vmul.f32 %v5058, %v787
        %v5232 = vmul.f32 %v5179, %v772
        %v5233 = vmul.f32 %v5171, %v773
        %v5234 = vmul.f32 %v5163, %v774
        %v5235 = vmul.f32 %v5155, %v775
        %v5236 = vmul.f32 %v5147, %v776
        %v5237 = vmul.f32 %v5139, %v777
        %v5238 = vmul.f32 %v5131, %v778
        %v5239 = vmul.f32 %v5123, %v779
        %v5240 = vmul.f32 %v5115, %v780
        %v5241 = vmul.f32 %v5107, %v781
        %v5242 = vmul.f32 %v5099, %v782
        %v5243 = vmul.f32 %v5091, %v783
        %v5244 = vmul.f32 %v5083, %v784
        %v5245 = vmul.f32 %v5075, %v785
        %v5246 = vmul.f32 %v5067, %v786
        %v5247 = vmul.f32 %v5059, %v787
        %v5248 = vmul.f32 %v5180, %v772
        %v5249 = vmul.f32 %v5172, %v773
        %v5250 = vmul.f32 %v5164, %v774
        %v5251 = vmul.f32 %v5156, %v775
        %v5252 = vmul.f32 %v5148, %v776
        %v5253 = vmul.f32 %v5140, %v777
        %v5254 = vmul.f32 %v5132, %v778
        %v5255 = vmul.f32 %v5124, %v779
        %v5256 = vmul.f32 %v5116, %v780
        %v5257 = vmul.f32 %v5108, %v781
        %v5258 = vmul.f32 %v5100, %v782
        %v5259 = vmul.f32 %v5092, %v783
        %v5260 = vmul.f32 %v5084, %v784
        %v5261 = vmul.f32 %v5076, %v785
        %v5262 = vmul.f32 %v5068, %v786
        %v5263 = vmul.f32 %v5060, %v787
        %v5264 = vmul.f32 %v5181, %v772
        %v5265 = vmul.f32 %v5173, %v773
        %v5266 = vmul.f32 %v5165, %v774
        %v5267 = vmul.f32 %v5157, %v775
        %v5268 = vmul.f32 %v5149, %v776
        %v5269 = vmul.f32 %v5141, %v777
        %v5270 = vmul.f32 %v5133, %v778
        %v5271 = vmul.f32 %v5125, %v779
        %v5272 = vmul.f32 %v5117, %v780
        %v5273 = vmul.f32 %v5109, %v781
        %v5274 = vmul.f32 %v5101, %v782
        %v5275 = vmul.f32 %v5093, %v783
        %v5276 = vmul.f32 %v5085, %v784
        %v5277 = vmul.f32 %v5077, %v785
        %v5278 = vmul.f32 %v5069, %v786
        %v5279 = vmul.f32 %v5061, %v787
        %v5280 = vmul.f32 %v5182, %v772
        %v5281 = vmul.f32 %v5174, %v773
        %v5282 = vmul.f32 %v5166, %v774
        %v5283 = vmul.f32 %v5158, %v775
        %v5284 = vmul.f32 %v5150, %v776
        %v5285 = vmul.f32 %v5142, %v777
        %v5286 = vmul.f32 %v5134, %v778
        %v5287 = vmul.f32 %v5126, %v779
        %v5288 = vmul.f32 %v5118, %v780
        %v5289 = vmul.f32 %v5110, %v781
        %v5290 = vmul.f32 %v5102, %v782
        %v5291 = vmul.f32 %v5094, %v783
        %v5292 = vmul.f32 %v5086, %v784
        %v5293 = vmul.f32 %v5078, %v785
        %v5294 = vmul.f32 %v5070, %v786
        %v5295 = vmul.f32 %v5062, %v787
        %v5296 = vmul.f32 %v5183, %v772
        %v5297 = vmul.f32 %v5175, %v773
        %v5298 = vmul.f32 %v5167, %v774
        %v5299 = vmul.f32 %v5159, %v775
        %v5300 = vmul.f32 %v5151, %v776
        %v5301 = vmul.f32 %v5143, %v777
        %v5302 = vmul.f32 %v5135, %v778
        %v5303 = vmul.f32 %v5127, %v779
        %v5304 = vmul.f32 %v5119, %v780
        %v5305 = vmul.f32 %v5111, %v781
        %v5306 = vmul.f32 %v5103, %v782
        %v5307 = vmul.f32 %v5095, %v783
        %v5308 = vmul.f32 %v5087, %v784
        %v5309 = vmul.f32 %v5079, %v785
        %v5310 = vmul.f32 %v5071, %v786
        %v5311 = vmul.f32 %v5063, %v787
        %5312 = vrot.lane.b32.xlu0 %v4672, 127
        %v5313 = vpop.permute.xlu0 %5312
        %5314 = vrot.lane.b32.xlu0 %v4688, 127
        %v5315 = vpop.permute.xlu0 %5314
        %5316 = vrot.lane.b32.xlu0 %v4704, 127
        %v5317 = vpop.permute.xlu0 %5316
        %5318 = vrot.lane.b32.xlu0 %v4720, 127
        %v5319 = vpop.permute.xlu0 %5318
        %5320 = vrot.lane.b32.xlu0 %v4736, 127
        %v5321 = vpop.permute.xlu0 %5320
        %5322 = vrot.lane.b32.xlu0 %v4752, 127
        %v5323 = vpop.permute.xlu0 %5322
        %5324 = vrot.lane.b32.xlu0 %v4768, 127
        %v5325 = vpop.permute.xlu0 %5324
        %5326 = vrot.lane.b32.xlu0 %v4784, 127
        %v5327 = vpop.permute.xlu0 %5326
        %5328 = vrot.lane.b32.xlu0 %v4673, 127
        %v5329 = vpop.permute.xlu0 %5328
        %5330 = vrot.lane.b32.xlu0 %v4689, 127
        %v5331 = vpop.permute.xlu0 %5330
        %5332 = vrot.lane.b32.xlu0 %v4705, 127
        %v5333 = vpop.permute.xlu0 %5332
        %5334 = vrot.lane.b32.xlu0 %v4721, 127
        %v5335 = vpop.permute.xlu0 %5334
        %5336 = vrot.lane.b32.xlu0 %v4737, 127
        %v5337 = vpop.permute.xlu0 %5336
        %5338 = vrot.lane.b32.xlu0 %v4753, 127
        %v5339 = vpop.permute.xlu0 %5338
        %5340 = vrot.lane.b32.xlu0 %v4769, 127
        %v5341 = vpop.permute.xlu0 %5340
        %5342 = vrot.lane.b32.xlu0 %v4785, 127
        %v5343 = vpop.permute.xlu0 %5342
        %5344 = vrot.lane.b32.xlu0 %v4674, 127
        %v5345 = vpop.permute.xlu0 %5344
        %5346 = vrot.lane.b32.xlu0 %v4690, 127
        %v5347 = vpop.permute.xlu0 %5346
        %5348 = vrot.lane.b32.xlu0 %v4706, 127
        %v5349 = vpop.permute.xlu0 %5348
        %5350 = vrot.lane.b32.xlu0 %v4722, 127
        %v5351 = vpop.permute.xlu0 %5350
        %5352 = vrot.lane.b32.xlu0 %v4738, 127
        %v5353 = vpop.permute.xlu0 %5352
        %5354 = vrot.lane.b32.xlu0 %v4754, 127
        %v5355 = vpop.permute.xlu0 %5354
        %5356 = vrot.lane.b32.xlu0 %v4770, 127
        %v5357 = vpop.permute.xlu0 %5356
        %5358 = vrot.lane.b32.xlu0 %v4786, 127
        %v5359 = vpop.permute.xlu0 %5358
        %5360 = vrot.lane.b32.xlu0 %v4675, 127
        %v5361 = vpop.permute.xlu0 %5360
        %5362 = vrot.lane.b32.xlu0 %v4691, 127
        %v5363 = vpop.permute.xlu0 %5362
        %5364 = vrot.lane.b32.xlu0 %v4707, 127
        %v5365 = vpop.permute.xlu0 %5364
        %5366 = vrot.lane.b32.xlu0 %v4723, 127
        %v5367 = vpop.permute.xlu0 %5366
        %5368 = vrot.lane.b32.xlu0 %v4739, 127
        %v5369 = vpop.permute.xlu0 %5368
        %5370 = vrot.lane.b32.xlu0 %v4755, 127
        %v5371 = vpop.permute.xlu0 %5370
        %5372 = vrot.lane.b32.xlu0 %v4771, 127
        %v5373 = vpop.permute.xlu0 %5372
        %5374 = vrot.lane.b32.xlu0 %v4787, 127
        %v5375 = vpop.permute.xlu0 %5374
        %5376 = vrot.lane.b32.xlu0 %v4676, 127
        %v5377 = vpop.permute.xlu0 %5376
        %5378 = vrot.lane.b32.xlu0 %v4692, 127
        %v5379 = vpop.permute.xlu0 %5378
        %5380 = vrot.lane.b32.xlu0 %v4708, 127
        %v5381 = vpop.permute.xlu0 %5380
        %5382 = vrot.lane.b32.xlu0 %v4724, 127
        %v5383 = vpop.permute.xlu0 %5382
        %5384 = vrot.lane.b32.xlu0 %v4740, 127
        %v5385 = vpop.permute.xlu0 %5384
        %5386 = vrot.lane.b32.xlu0 %v4756, 127
        %v5387 = vpop.permute.xlu0 %5386
        %5388 = vrot.lane.b32.xlu0 %v4772, 127
        %v5389 = vpop.permute.xlu0 %5388
        %5390 = vrot.lane.b32.xlu0 %v4788, 127
        %v5391 = vpop.permute.xlu0 %5390
        %5392 = vrot.lane.b32.xlu0 %v4677, 127
        %v5393 = vpop.permute.xlu0 %5392
        %5394 = vrot.lane.b32.xlu0 %v4693, 127
        %v5395 = vpop.permute.xlu0 %5394
        %5396 = vrot.lane.b32.xlu0 %v4709, 127
        %v5397 = vpop.permute.xlu0 %5396
        %5398 = vrot.lane.b32.xlu0 %v4725, 127
        %v5399 = vpop.permute.xlu0 %5398
        %5400 = vrot.lane.b32.xlu0 %v4741, 127
        %v5401 = vpop.permute.xlu0 %5400
        %5402 = vrot.lane.b32.xlu0 %v4757, 127
        %v5403 = vpop.permute.xlu0 %5402
        %5404 = vrot.lane.b32.xlu0 %v4773, 127
        %v5405 = vpop.permute.xlu0 %5404
        %5406 = vrot.lane.b32.xlu0 %v4789, 127
        %v5407 = vpop.permute.xlu0 %5406
        %5408 = vrot.lane.b32.xlu0 %v4678, 127
        %v5409 = vpop.permute.xlu0 %5408
        %5410 = vrot.lane.b32.xlu0 %v4694, 127
        %v5411 = vpop.permute.xlu0 %5410
        %5412 = vrot.lane.b32.xlu0 %v4710, 127
        %v5413 = vpop.permute.xlu0 %5412
        %5414 = vrot.lane.b32.xlu0 %v4726, 127
        %v5415 = vpop.permute.xlu0 %5414
        %5416 = vrot.lane.b32.xlu0 %v4742, 127
        %v5417 = vpop.permute.xlu0 %5416
        %5418 = vrot.lane.b32.xlu0 %v4758, 127
        %v5419 = vpop.permute.xlu0 %5418
        %5420 = vrot.lane.b32.xlu0 %v4774, 127
        %v5421 = vpop.permute.xlu0 %5420
        %5422 = vrot.lane.b32.xlu0 %v4790, 127
        %v5423 = vpop.permute.xlu0 %5422
        %5424 = vrot.lane.b32.xlu0 %v4679, 127
        %v5425 = vpop.permute.xlu0 %5424
        %5426 = vrot.lane.b32.xlu0 %v4695, 127
        %v5427 = vpop.permute.xlu0 %5426
        %5428 = vrot.lane.b32.xlu0 %v4711, 127
        %v5429 = vpop.permute.xlu0 %5428
        %5430 = vrot.lane.b32.xlu0 %v4727, 127
        %v5431 = vpop.permute.xlu0 %5430
        %5432 = vrot.lane.b32.xlu0 %v4743, 127
        %v5433 = vpop.permute.xlu0 %5432
        %5434 = vrot.lane.b32.xlu0 %v4759, 127
        %v5435 = vpop.permute.xlu0 %5434
        %5436 = vrot.lane.b32.xlu0 %v4775, 127
        %v5437 = vpop.permute.xlu0 %5436
        %5438 = vrot.lane.b32.xlu0 %v4791, 127
        %v5439 = vpop.permute.xlu0 %5438
        %5440 = vrot.lane.b32.xlu0 %v4680, 127
        %v5441 = vpop.permute.xlu0 %5440
        %5442 = vrot.lane.b32.xlu0 %v4696, 127
        %v5443 = vpop.permute.xlu0 %5442
        %5444 = vrot.lane.b32.xlu0 %v4712, 127
        %v5445 = vpop.permute.xlu0 %5444
        %5446 = vrot.lane.b32.xlu0 %v4728, 127
        %v5447 = vpop.permute.xlu0 %5446
        %5448 = vrot.lane.b32.xlu0 %v4744, 127
        %v5449 = vpop.permute.xlu0 %5448
        %5450 = vrot.lane.b32.xlu0 %v4760, 127
        %v5451 = vpop.permute.xlu0 %5450
        %5452 = vrot.lane.b32.xlu0 %v4776, 127
        %v5453 = vpop.permute.xlu0 %5452
        %5454 = vrot.lane.b32.xlu0 %v4792, 127
        %v5455 = vpop.permute.xlu0 %5454
        %5456 = vrot.lane.b32.xlu0 %v4681, 127
        %v5457 = vpop.permute.xlu0 %5456
        %5458 = vrot.lane.b32.xlu0 %v4697, 127
        %v5459 = vpop.permute.xlu0 %5458
        %5460 = vrot.lane.b32.xlu0 %v4713, 127
        %v5461 = vpop.permute.xlu0 %5460
        %5462 = vrot.lane.b32.xlu0 %v4729, 127
        %v5463 = vpop.permute.xlu0 %5462
        %5464 = vrot.lane.b32.xlu0 %v4745, 127
        %v5465 = vpop.permute.xlu0 %5464
        %5466 = vrot.lane.b32.xlu0 %v4761, 127
        %v5467 = vpop.permute.xlu0 %5466
        %5468 = vrot.lane.b32.xlu0 %v4777, 127
        %v5469 = vpop.permute.xlu0 %5468
        %5470 = vrot.lane.b32.xlu0 %v4793, 127
        %v5471 = vpop.permute.xlu0 %5470
        %5472 = vrot.lane.b32.xlu0 %v4682, 127
        %v5473 = vpop.permute.xlu0 %5472
        %5474 = vrot.lane.b32.xlu0 %v4698, 127
        %v5475 = vpop.permute.xlu0 %5474
        %5476 = vrot.lane.b32.xlu0 %v4714, 127
        %v5477 = vpop.permute.xlu0 %5476
        %5478 = vrot.lane.b32.xlu0 %v4730, 127
        %v5479 = vpop.permute.xlu0 %5478
        %5480 = vrot.lane.b32.xlu0 %v4746, 127
        %v5481 = vpop.permute.xlu0 %5480
        %5482 = vrot.lane.b32.xlu0 %v4762, 127
        %v5483 = vpop.permute.xlu0 %5482
        %5484 = vrot.lane.b32.xlu0 %v4778, 127
        %v5485 = vpop.permute.xlu0 %5484
        %5486 = vrot.lane.b32.xlu0 %v4794, 127
        %v5487 = vpop.permute.xlu0 %5486
        %5488 = vrot.lane.b32.xlu0 %v4683, 127
        %v5489 = vpop.permute.xlu0 %5488
        %5490 = vrot.lane.b32.xlu0 %v4699, 127
        %v5491 = vpop.permute.xlu0 %5490
        %5492 = vrot.lane.b32.xlu0 %v4715, 127
        %v5493 = vpop.permute.xlu0 %5492
        %5494 = vrot.lane.b32.xlu0 %v4731, 127
        %v5495 = vpop.permute.xlu0 %5494
        %5496 = vrot.lane.b32.xlu0 %v4747, 127
        %v5497 = vpop.permute.xlu0 %5496
        %5498 = vrot.lane.b32.xlu0 %v4763, 127
        %v5499 = vpop.permute.xlu0 %5498
        %5500 = vrot.lane.b32.xlu0 %v4779, 127
        %v5501 = vpop.permute.xlu0 %5500
        %5502 = vrot.lane.b32.xlu0 %v4795, 127
        %v5503 = vpop.permute.xlu0 %5502
        %5504 = vrot.lane.b32.xlu0 %v4684, 127
        %v5505 = vpop.permute.xlu0 %5504
        %5506 = vrot.lane.b32.xlu0 %v4700, 127
        %v5507 = vpop.permute.xlu0 %5506
        %5508 = vrot.lane.b32.xlu0 %v4716, 127
        %v5509 = vpop.permute.xlu0 %5508
        %5510 = vrot.lane.b32.xlu0 %v4732, 127
        %v5511 = vpop.permute.xlu0 %5510
        %5512 = vrot.lane.b32.xlu0 %v4748, 127
        %v5513 = vpop.permute.xlu0 %5512
        %5514 = vrot.lane.b32.xlu0 %v4764, 127
        %v5515 = vpop.permute.xlu0 %5514
        %5516 = vrot.lane.b32.xlu0 %v4780, 127
        %v5517 = vpop.permute.xlu0 %5516
        %5518 = vrot.lane.b32.xlu0 %v4796, 127
        %v5519 = vpop.permute.xlu0 %5518
        %5520 = vrot.lane.b32.xlu0 %v4685, 127
        %v5521 = vpop.permute.xlu0 %5520
        %5522 = vrot.lane.b32.xlu0 %v4701, 127
        %v5523 = vpop.permute.xlu0 %5522
        %5524 = vrot.lane.b32.xlu0 %v4717, 127
        %v5525 = vpop.permute.xlu0 %5524
        %5526 = vrot.lane.b32.xlu0 %v4733, 127
        %v5527 = vpop.permute.xlu0 %5526
        %5528 = vrot.lane.b32.xlu0 %v4749, 127
        %v5529 = vpop.permute.xlu0 %5528
        %5530 = vrot.lane.b32.xlu0 %v4765, 127
        %v5531 = vpop.permute.xlu0 %5530
        %5532 = vrot.lane.b32.xlu0 %v4781, 127
        %v5533 = vpop.permute.xlu0 %5532
        %5534 = vrot.lane.b32.xlu0 %v4797, 127
        %v5535 = vpop.permute.xlu0 %5534
        %5536 = vrot.lane.b32.xlu0 %v4686, 127
        %v5537 = vpop.permute.xlu0 %5536
        %5538 = vrot.lane.b32.xlu0 %v4702, 127
        %v5539 = vpop.permute.xlu0 %5538
        %5540 = vrot.lane.b32.xlu0 %v4718, 127
        %v5541 = vpop.permute.xlu0 %5540
        %5542 = vrot.lane.b32.xlu0 %v4734, 127
        %v5543 = vpop.permute.xlu0 %5542
        %5544 = vrot.lane.b32.xlu0 %v4750, 127
        %v5545 = vpop.permute.xlu0 %5544
        %5546 = vrot.lane.b32.xlu0 %v4766, 127
        %v5547 = vpop.permute.xlu0 %5546
        %5548 = vrot.lane.b32.xlu0 %v4782, 127
        %v5549 = vpop.permute.xlu0 %5548
        %5550 = vrot.lane.b32.xlu0 %v4798, 127
        %v5551 = vpop.permute.xlu0 %5550
        %5552 = vrot.lane.b32.xlu0 %v4687, 127
        %v5553 = vpop.permute.xlu0 %5552
        %5554 = vrot.lane.b32.xlu0 %v4703, 127
        %v5555 = vpop.permute.xlu0 %5554
        %5556 = vrot.lane.b32.xlu0 %v4719, 127
        %v5557 = vpop.permute.xlu0 %5556
        %5558 = vrot.lane.b32.xlu0 %v4735, 127
        %v5559 = vpop.permute.xlu0 %5558
        %5560 = vrot.lane.b32.xlu0 %v4751, 127
        %v5561 = vpop.permute.xlu0 %5560
        %5562 = vrot.lane.b32.xlu0 %v4767, 127
        %v5563 = vpop.permute.xlu0 %5562
        %5564 = vrot.lane.b32.xlu0 %v4783, 127
        %v5565 = vpop.permute.xlu0 %5564
        %5566 = vrot.lane.b32.xlu0 %v4799, 127
        %v5567 = vpop.permute.xlu0 %5566
        %v5568 = vsel %vm1385, %v5537, %v5553
        %v5569 = vsel %vm1385, %v5539, %v5555
        %v5570 = vsel %vm1385, %v5541, %v5557
        %v5571 = vsel %vm1385, %v5543, %v5559
        %v5572 = vsel %vm1385, %v5545, %v5561
        %v5573 = vsel %vm1385, %v5547, %v5563
        %v5574 = vsel %vm1385, %v5549, %v5565
        %v5575 = vsel %vm1385, %v5551, %v5567
        %v5576 = vsel %vm1385, %v5521, %v5537
        %v5577 = vsel %vm1385, %v5523, %v5539
        %v5578 = vsel %vm1385, %v5525, %v5541
        %v5579 = vsel %vm1385, %v5527, %v5543
        %v5580 = vsel %vm1385, %v5529, %v5545
        %v5581 = vsel %vm1385, %v5531, %v5547
        %v5582 = vsel %vm1385, %v5533, %v5549
        %v5583 = vsel %vm1385, %v5535, %v5551
        %v5584 = vsel %vm1385, %v5505, %v5521
        %v5585 = vsel %vm1385, %v5507, %v5523
        %v5586 = vsel %vm1385, %v5509, %v5525
        %v5587 = vsel %vm1385, %v5511, %v5527
        %v5588 = vsel %vm1385, %v5513, %v5529
        %v5589 = vsel %vm1385, %v5515, %v5531
        %v5590 = vsel %vm1385, %v5517, %v5533
        %v5591 = vsel %vm1385, %v5519, %v5535
        %v5592 = vsel %vm1385, %v5489, %v5505
        %v5593 = vsel %vm1385, %v5491, %v5507
        %v5594 = vsel %vm1385, %v5493, %v5509
        %v5595 = vsel %vm1385, %v5495, %v5511
        %v5596 = vsel %vm1385, %v5497, %v5513
        %v5597 = vsel %vm1385, %v5499, %v5515
        %v5598 = vsel %vm1385, %v5501, %v5517
        %v5599 = vsel %vm1385, %v5503, %v5519
        %v5600 = vsel %vm1385, %v5473, %v5489
        %v5601 = vsel %vm1385, %v5475, %v5491
        %v5602 = vsel %vm1385, %v5477, %v5493
        %v5603 = vsel %vm1385, %v5479, %v5495
        %v5604 = vsel %vm1385, %v5481, %v5497
        %v5605 = vsel %vm1385, %v5483, %v5499
        %v5606 = vsel %vm1385, %v5485, %v5501
        %v5607 = vsel %vm1385, %v5487, %v5503
        %v5608 = vsel %vm1385, %v5457, %v5473
        %v5609 = vsel %vm1385, %v5459, %v5475
        %v5610 = vsel %vm1385, %v5461, %v5477
        %v5611 = vsel %vm1385, %v5463, %v5479
        %v5612 = vsel %vm1385, %v5465, %v5481
        %v5613 = vsel %vm1385, %v5467, %v5483
        %v5614 = vsel %vm1385, %v5469, %v5485
        %v5615 = vsel %vm1385, %v5471, %v5487
        %v5616 = vsel %vm1385, %v5441, %v5457
        %v5617 = vsel %vm1385, %v5443, %v5459
        %v5618 = vsel %vm1385, %v5445, %v5461
        %v5619 = vsel %vm1385, %v5447, %v5463
        %v5620 = vsel %vm1385, %v5449, %v5465
        %v5621 = vsel %vm1385, %v5451, %v5467
        %v5622 = vsel %vm1385, %v5453, %v5469
        %v5623 = vsel %vm1385, %v5455, %v5471
        %v5624 = vsel %vm1385, %v5425, %v5441
        %v5625 = vsel %vm1385, %v5427, %v5443
        %v5626 = vsel %vm1385, %v5429, %v5445
        %v5627 = vsel %vm1385, %v5431, %v5447
        %v5628 = vsel %vm1385, %v5433, %v5449
        %v5629 = vsel %vm1385, %v5435, %v5451
        %v5630 = vsel %vm1385, %v5437, %v5453
        %v5631 = vsel %vm1385, %v5439, %v5455
        %v5632 = vsel %vm1385, %v5409, %v5425
        %v5633 = vsel %vm1385, %v5411, %v5427
        %v5634 = vsel %vm1385, %v5413, %v5429
        %v5635 = vsel %vm1385, %v5415, %v5431
        %v5636 = vsel %vm1385, %v5417, %v5433
        %v5637 = vsel %vm1385, %v5419, %v5435
        %v5638 = vsel %vm1385, %v5421, %v5437
        %v5639 = vsel %vm1385, %v5423, %v5439
        %v5640 = vsel %vm1385, %v5393, %v5409
        %v5641 = vsel %vm1385, %v5395, %v5411
        %v5642 = vsel %vm1385, %v5397, %v5413
        %v5643 = vsel %vm1385, %v5399, %v5415
        %v5644 = vsel %vm1385, %v5401, %v5417
        %v5645 = vsel %vm1385, %v5403, %v5419
        %v5646 = vsel %vm1385, %v5405, %v5421
        %v5647 = vsel %vm1385, %v5407, %v5423
        %v5648 = vsel %vm1385, %v5377, %v5393
        %v5649 = vsel %vm1385, %v5379, %v5395
        %v5650 = vsel %vm1385, %v5381, %v5397
        %v5651 = vsel %vm1385, %v5383, %v5399
        %v5652 = vsel %vm1385, %v5385, %v5401
        %v5653 = vsel %vm1385, %v5387, %v5403
        %v5654 = vsel %vm1385, %v5389, %v5405
        %v5655 = vsel %vm1385, %v5391, %v5407
        %v5656 = vsel %vm1385, %v5361, %v5377
        %v5657 = vsel %vm1385, %v5363, %v5379
        %v5658 = vsel %vm1385, %v5365, %v5381
        %v5659 = vsel %vm1385, %v5367, %v5383
        %v5660 = vsel %vm1385, %v5369, %v5385
        %v5661 = vsel %vm1385, %v5371, %v5387
        %v5662 = vsel %vm1385, %v5373, %v5389
        %v5663 = vsel %vm1385, %v5375, %v5391
        %v5664 = vsel %vm1385, %v5345, %v5361
        %v5665 = vsel %vm1385, %v5347, %v5363
        %v5666 = vsel %vm1385, %v5349, %v5365
        %v5667 = vsel %vm1385, %v5351, %v5367
        %v5668 = vsel %vm1385, %v5353, %v5369
        %v5669 = vsel %vm1385, %v5355, %v5371
        %v5670 = vsel %vm1385, %v5357, %v5373
        %v5671 = vsel %vm1385, %v5359, %v5375
        %v5672 = vsel %vm1385, %v5329, %v5345
        %v5673 = vsel %vm1385, %v5331, %v5347
        %v5674 = vsel %vm1385, %v5333, %v5349
        %v5675 = vsel %vm1385, %v5335, %v5351
        %v5676 = vsel %vm1385, %v5337, %v5353
        %v5677 = vsel %vm1385, %v5339, %v5355
        %v5678 = vsel %vm1385, %v5341, %v5357
        %v5679 = vsel %vm1385, %v5343, %v5359
        %v5680 = vsel %vm1385, %v5313, %v5329
        %v5681 = vsel %vm1385, %v5315, %v5331
        %v5682 = vsel %vm1385, %v5317, %v5333
        %v5683 = vsel %vm1385, %v5319, %v5335
        %v5684 = vsel %vm1385, %v5321, %v5337
        %v5685 = vsel %vm1385, %v5323, %v5339
        %v5686 = vsel %vm1385, %v5325, %v5341
        %v5687 = vsel %vm1385, %v5327, %v5343
        %v5688 = vsel %vm1385, %v5553, %v5313
        %v5689 = vsel %vm1385, %v5555, %v5315
        %v5690 = vsel %vm1385, %v5557, %v5317
        %v5691 = vsel %vm1385, %v5559, %v5319
        %v5692 = vsel %vm1385, %v5561, %v5321
        %v5693 = vsel %vm1385, %v5563, %v5323
        %v5694 = vsel %vm1385, %v5565, %v5325
        %v5695 = vsel %vm1385, %v5567, %v5327
        %v5696 = vmul.f32 %v5680, %v868
        %v5697 = vmul.f32 %v5672, %v869
        %v5698 = vmul.f32 %v5664, %v870
        %v5699 = vmul.f32 %v5656, %v871
        %v5700 = vmul.f32 %v5648, %v872
        %v5701 = vmul.f32 %v5640, %v873
        %v5702 = vmul.f32 %v5632, %v874
        %v5703 = vmul.f32 %v5624, %v875
        %v5704 = vmul.f32 %v5616, %v876
        %v5705 = vmul.f32 %v5608, %v877
        %v5706 = vmul.f32 %v5600, %v878
        %v5707 = vmul.f32 %v5592, %v879
        %v5708 = vmul.f32 %v5584, %v880
        %v5709 = vmul.f32 %v5576, %v881
        %v5710 = vmul.f32 %v5568, %v882
        %v5711 = vmul.f32 %v5688, %v883
        %v5712 = vmul.f32 %v5681, %v868
        %v5713 = vmul.f32 %v5673, %v869
        %v5714 = vmul.f32 %v5665, %v870
        %v5715 = vmul.f32 %v5657, %v871
        %v5716 = vmul.f32 %v5649, %v872
        %v5717 = vmul.f32 %v5641, %v873
        %v5718 = vmul.f32 %v5633, %v874
        %v5719 = vmul.f32 %v5625, %v875
        %v5720 = vmul.f32 %v5617, %v876
        %v5721 = vmul.f32 %v5609, %v877
        %v5722 = vmul.f32 %v5601, %v878
        %v5723 = vmul.f32 %v5593, %v879
        %v5724 = vmul.f32 %v5585, %v880
        %v5725 = vmul.f32 %v5577, %v881
        %v5726 = vmul.f32 %v5569, %v882
        %v5727 = vmul.f32 %v5689, %v883
        %v5728 = vmul.f32 %v5682, %v868
        %v5729 = vmul.f32 %v5674, %v869
        %v5730 = vmul.f32 %v5666, %v870
        %v5731 = vmul.f32 %v5658, %v871
        %v5732 = vmul.f32 %v5650, %v872
        %v5733 = vmul.f32 %v5642, %v873
        %v5734 = vmul.f32 %v5634, %v874
        %v5735 = vmul.f32 %v5626, %v875
        %v5736 = vmul.f32 %v5618, %v876
        %v5737 = vmul.f32 %v5610, %v877
        %v5738 = vmul.f32 %v5602, %v878
        %v5739 = vmul.f32 %v5594, %v879
        %v5740 = vmul.f32 %v5586, %v880
        %v5741 = vmul.f32 %v5578, %v881
        %v5742 = vmul.f32 %v5570, %v882
        %v5743 = vmul.f32 %v5690, %v883
        %v5744 = vmul.f32 %v5683, %v868
        %v5745 = vmul.f32 %v5675, %v869
        %v5746 = vmul.f32 %v5667, %v870
        %v5747 = vmul.f32 %v5659, %v871
        %v5748 = vmul.f32 %v5651, %v872
        %v5749 = vmul.f32 %v5643, %v873
        %v5750 = vmul.f32 %v5635, %v874
        %v5751 = vmul.f32 %v5627, %v875
        %v5752 = vmul.f32 %v5619, %v876
        %v5753 = vmul.f32 %v5611, %v877
        %v5754 = vmul.f32 %v5603, %v878
        %v5755 = vmul.f32 %v5595, %v879
        %v5756 = vmul.f32 %v5587, %v880
        %v5757 = vmul.f32 %v5579, %v881
        %v5758 = vmul.f32 %v5571, %v882
        %v5759 = vmul.f32 %v5691, %v883
        %v5760 = vmul.f32 %v5684, %v868
        %v5761 = vmul.f32 %v5676, %v869
        %v5762 = vmul.f32 %v5668, %v870
        %v5763 = vmul.f32 %v5660, %v871
        %v5764 = vmul.f32 %v5652, %v872
        %v5765 = vmul.f32 %v5644, %v873
        %v5766 = vmul.f32 %v5636, %v874
        %v5767 = vmul.f32 %v5628, %v875
        %v5768 = vmul.f32 %v5620, %v876
        %v5769 = vmul.f32 %v5612, %v877
        %v5770 = vmul.f32 %v5604, %v878
        %v5771 = vmul.f32 %v5596, %v879
        %v5772 = vmul.f32 %v5588, %v880
        %v5773 = vmul.f32 %v5580, %v881
        %v5774 = vmul.f32 %v5572, %v882
        %v5775 = vmul.f32 %v5692, %v883
        %v5776 = vmul.f32 %v5685, %v868
        %v5777 = vmul.f32 %v5677, %v869
        %v5778 = vmul.f32 %v5669, %v870
        %v5779 = vmul.f32 %v5661, %v871
        %v5780 = vmul.f32 %v5653, %v872
        %v5781 = vmul.f32 %v5645, %v873
        %v5782 = vmul.f32 %v5637, %v874
        %v5783 = vmul.f32 %v5629, %v875
        %v5784 = vmul.f32 %v5621, %v876
        %v5785 = vmul.f32 %v5613, %v877
        %v5786 = vmul.f32 %v5605, %v878
        %v5787 = vmul.f32 %v5597, %v879
        %v5788 = vmul.f32 %v5589, %v880
        %v5789 = vmul.f32 %v5581, %v881
        %v5790 = vmul.f32 %v5573, %v882
        %v5791 = vmul.f32 %v5693, %v883
        %v5792 = vmul.f32 %v5686, %v868
        %v5793 = vmul.f32 %v5678, %v869
        %v5794 = vmul.f32 %v5670, %v870
        %v5795 = vmul.f32 %v5662, %v871
        %v5796 = vmul.f32 %v5654, %v872
        %v5797 = vmul.f32 %v5646, %v873
        %v5798 = vmul.f32 %v5638, %v874
        %v5799 = vmul.f32 %v5630, %v875
        %v5800 = vmul.f32 %v5622, %v876
        %v5801 = vmul.f32 %v5614, %v877
        %v5802 = vmul.f32 %v5606, %v878
        %v5803 = vmul.f32 %v5598, %v879
        %v5804 = vmul.f32 %v5590, %v880
        %v5805 = vmul.f32 %v5582, %v881
        %v5806 = vmul.f32 %v5574, %v882
        %v5807 = vmul.f32 %v5694, %v883
        %v5808 = vmul.f32 %v5687, %v868
        %v5809 = vmul.f32 %v5679, %v869
        %v5810 = vmul.f32 %v5671, %v870
        %v5811 = vmul.f32 %v5663, %v871
        %v5812 = vmul.f32 %v5655, %v872
        %v5813 = vmul.f32 %v5647, %v873
        %v5814 = vmul.f32 %v5639, %v874
        %v5815 = vmul.f32 %v5631, %v875
        %v5816 = vmul.f32 %v5623, %v876
        %v5817 = vmul.f32 %v5615, %v877
        %v5818 = vmul.f32 %v5607, %v878
        %v5819 = vmul.f32 %v5599, %v879
        %v5820 = vmul.f32 %v5591, %v880
        %v5821 = vmul.f32 %v5583, %v881
        %v5822 = vmul.f32 %v5575, %v882
        %v5823 = vmul.f32 %v5695, %v883
        %v5824 = vld [vmem:[%s3] sm:$0xff]
        %v5825 = vld [vmem:[%s3 + $0x8] sm:$0xff]
        %v5826 = vld [vmem:[%s3 + $0x10] sm:$0xff]
        %v5827 = vld [vmem:[%s3 + $0x18] sm:$0xff]
        %v5828 = vld [vmem:[%s3 + $0x20] sm:$0xff]
        %v5829 = vld [vmem:[%s3 + $0x28] sm:$0xff]
        %v5830 = vld [vmem:[%s3 + $0x30] sm:$0xff]
        %v5831 = vld [vmem:[%s3 + $0x38] sm:$0xff]
        %v5832 = vld [vmem:[%s3 + $0x40] sm:$0xff]
        %v5833 = vld [vmem:[%s3 + $0x48] sm:$0xff]
        %v5834 = vld [vmem:[%s3 + $0x50] sm:$0xff]
        %v5835 = vld [vmem:[%s3 + $0x58] sm:$0xff]
        %v5836 = vld [vmem:[%s3 + $0x60] sm:$0xff]
        %v5837 = vld [vmem:[%s3 + $0x68] sm:$0xff]
        %v5838 = vld [vmem:[%s3 + $0x70] sm:$0xff]
        %v5839 = vld [vmem:[%s3 + $0x78] sm:$0xff]
        %v5840 = vld [vmem:[%s3 + $0x80] sm:$0xff]
        %v5841 = vld [vmem:[%s3 + $0x88] sm:$0xff]
        %v5842 = vld [vmem:[%s3 + $0x90] sm:$0xff]
        %v5843 = vld [vmem:[%s3 + $0x98] sm:$0xff]
        %v5844 = vld [vmem:[%s3 + $0xa0] sm:$0xff]
        %v5845 = vld [vmem:[%s3 + $0xa8] sm:$0xff]
        %v5846 = vld [vmem:[%s3 + $0xb0] sm:$0xff]
        %v5847 = vld [vmem:[%s3 + $0xb8] sm:$0xff]
        %v5848 = vld [vmem:[%s3 + $0xc0] sm:$0xff]
        %v5849 = vld [vmem:[%s3 + $0xc8] sm:$0xff]
        %v5850 = vld [vmem:[%s3 + $0xd0] sm:$0xff]
        %v5851 = vld [vmem:[%s3 + $0xd8] sm:$0xff]
        %v5852 = vld [vmem:[%s3 + $0xe0] sm:$0xff]
        %v5853 = vld [vmem:[%s3 + $0xe8] sm:$0xff]
        %v5854 = vld [vmem:[%s3 + $0xf0] sm:$0xff]
        %v5855 = vld [vmem:[%s3 + $0xf8] sm:$0xff]
        %vm5856 = vcmask 531456
        %v5858 = vsel %vm5856, %v5825, 0
        %v5861 = vsel %vm5856, %v5827, 0
        %v5864 = vsel %vm5856, %v5829, 0
        %v5867 = vsel %vm5856, %v5831, 0
        %v5870 = vsel %vm5856, %v5833, 0
        %v5873 = vsel %vm5856, %v5835, 0
        %v5876 = vsel %vm5856, %v5837, 0
        %v5879 = vsel %vm5856, %v5839, 0
        %v5882 = vsel %vm5856, %v5841, 0
        %v5885 = vsel %vm5856, %v5843, 0
        %v5888 = vsel %vm5856, %v5845, 0
        %v5891 = vsel %vm5856, %v5847, 0
        %v5894 = vsel %vm5856, %v5849, 0
        %v5897 = vsel %vm5856, %v5851, 0
        %v5900 = vsel %vm5856, %v5853, 0
        %v5903 = vsel %vm5856, %v5855, 0
        %5905 = vmatprep.subr.mxu0 %v4785
        %5906 = vmatpush1.msra.mxu0 %v4784
        %5907 = vmatprep.subr.mxu0 %v4769
        %5908 = vmatpush1.msra.mxu0 %v4768
        %5909 = vmatprep.subr.mxu0 %v4753
        %5910 = vmatpush1.msra.mxu0 %v4752
        %5911 = vmatprep.subr.mxu0 %v4737
        %5912 = vmatpush1.msra.mxu0 %v4736
        %5913 = vmatprep.subr.mxu0 %v4721
        %5914 = vmatpush1.msra.mxu0 %v4720
        %5915 = vmatprep.subr.mxu0 %v4705
        %5916 = vmatpush1.msra.mxu0 %v4704
        %5917 = vmatprep.subr.mxu0 %v4689
        %5918 = vmatpush1.msra.mxu0 %v4688
        %5919 = vmatprep.subr.mxu0 %v4673
        %5920 = vmatpush1.msra.mxu0 %v4672
        %5921 = vmatprep.subr.mxu0 %v5297
        %5922 = vmatpush1.msra.mxu0 %v5296
        %5923 = vmatprep.subr.mxu0 %v5281
        %5924 = vmatpush1.msra.mxu0 %v5280
        %5925 = vmatprep.subr.mxu0 %v5265
        %5926 = vmatpush1.msra.mxu0 %v5264
        %5927 = vmatprep.subr.mxu0 %v5249
        %5928 = vmatpush1.msra.mxu0 %v5248
        %5929 = vmatprep.subr.mxu0 %v5233
        %5930 = vmatpush1.msra.mxu0 %v5232
        %5931 = vmatprep.subr.mxu0 %v5217
        %5932 = vmatpush1.msra.mxu0 %v5216
        %5933 = vmatprep.subr.mxu0 %v5201
        %5934 = vmatpush1.msra.mxu0 %v5200
        %5935 = vmatprep.subr.mxu0 %v5185
        %5936 = vmatpush1.msra.mxu0 %v5184
        %5937 = vmatprep.subr.mxu0 0.0
        %5938 = vmatpush2.msra.mxu0 0.0
        %5939 = vmatprep.subr.mxu0 0.0
        %5940 = vmatpush2.msra.mxu0 0.0
        %5941 = vmatprep.subr.mxu0 0.0
        %5942 = vmatpush2.msra.mxu0 0.0
        %5943 = vmatprep.subr.mxu0 0.0
        %5944 = vmatpush2.msra.mxu0 0.0
        %5945 = vmatprep.subr.mxu0 0.0
        %5946 = vmatpush2.msra.mxu0 0.0
        %5947 = vmatprep.subr.mxu0 0.0
        %5948 = vmatpush2.msra.mxu0 0.0
        %5949 = vmatprep.subr.mxu0 0.0
        %5950 = vmatpush2.msra.mxu0 0.0
        %5951 = vmatprep.subr.mxu0 %v3766
        %5952 = vmatpush2.msra.mxu0 %v3766
        %5953 = vmatprep.subr.mxu0 %v5809
        %5954 = vmatpush2.msra.mxu0 %v5808
        %5955 = vmatprep.subr.mxu0 %v5793
        %5956 = vmatpush2.msra.mxu0 %v5792
        %5957 = vmatprep.subr.mxu0 %v5777
        %5958 = vmatpush2.msra.mxu0 %v5776
        %5959 = vmatprep.subr.mxu0 %v5761
        %5960 = vmatpush2.msra.mxu0 %v5760
        %5961 = vmatprep.subr.mxu0 %v5745
        %5962 = vmatpush2.msra.mxu0 %v5744
        %5963 = vmatprep.subr.mxu0 %v5729
        %5964 = vmatpush2.msra.mxu0 %v5728
        %5965 = vmatprep.subr.mxu0 %v5713
        %5966 = vmatpush2.msra.mxu0 %v5712
        %5967 = vmatprep.subr.mxu0 %v5697
        %5968 = vmatpush2.msra.mxu0 %v5696
        %5969 = vmatprep.mubr.f32.mxu0 %v5858
        %5970 = vmatmul.mubr.f32.gmra.mxu0 %v5824
        %v5971 = vpop.f32.mrf.mxu0
        %v5972 = vadd.f32 0.0, %v5971
        %v5973 = vpop.f32.mrf.mxu0
        %v5974 = vadd.f32 0.0, %v5973
        %5975 = vmatprep.mubr.f32.mxu0 %v5861
        %5976 = vmatmul.mubr.f32.gmra.mxu0 %v5826
        %v5977 = vpop.f32.mrf.mxu0
        %v5978 = vadd.f32 0.0, %v5977
        %v5979 = vpop.f32.mrf.mxu0
        %v5980 = vadd.f32 0.0, %v5979
        %5981 = vmatprep.mubr.f32.mxu0 %v5864
        %5982 = vmatmul.mubr.f32.gmra.mxu0 %v5828
        %v5983 = vpop.f32.mrf.mxu0
        %v5984 = vadd.f32 0.0, %v5983
        %v5985 = vpop.f32.mrf.mxu0
        %v5986 = vadd.f32 0.0, %v5985
        %5987 = vmatprep.mubr.f32.mxu0 %v5867
        %5988 = vmatmul.mubr.f32.gmra.mxu0 %v5830
        %v5989 = vpop.f32.mrf.mxu0
        %v5990 = vadd.f32 0.0, %v5989
        %v5991 = vpop.f32.mrf.mxu0
        %v5992 = vadd.f32 0.0, %v5991
        %5993 = vmatprep.mubr.f32.mxu0 %v5870
        %5994 = vmatmul.mubr.f32.gmra.mxu0 %v5832
        %v5995 = vpop.f32.mrf.mxu0
        %v5996 = vadd.f32 0.0, %v5995
        %v5997 = vpop.f32.mrf.mxu0
        %v5998 = vadd.f32 0.0, %v5997
        %5999 = vmatprep.mubr.f32.mxu0 %v5873
        %6000 = vmatmul.mubr.f32.gmra.mxu0 %v5834
        %v6001 = vpop.f32.mrf.mxu0
        %v6002 = vadd.f32 0.0, %v6001
        %v6003 = vpop.f32.mrf.mxu0
        %v6004 = vadd.f32 0.0, %v6003
        %6005 = vmatprep.mubr.f32.mxu0 %v5876
        %6006 = vmatmul.mubr.f32.gmra.mxu0 %v5836
        %v6007 = vpop.f32.mrf.mxu0
        %v6008 = vadd.f32 0.0, %v6007
        %v6009 = vpop.f32.mrf.mxu0
        %v6010 = vadd.f32 0.0, %v6009
        %6011 = vmatprep.mubr.f32.mxu0 %v5879
        %6012 = vmatmul.mubr.f32.gmra.mxu0 %v5838
        %v6013 = vpop.f32.mrf.mxu0
        %v6014 = vadd.f32 0.0, %v6013
        %v6015 = vpop.f32.mrf.mxu0
        %v6016 = vadd.f32 0.0, %v6015
        %6017 = vmatprep.mubr.f32.mxu0 %v5882
        %6018 = vmatmul.mubr.f32.gmra.mxu0 %v5840
        %v6019 = vpop.f32.mrf.mxu0
        %v6020 = vadd.f32 0.0, %v6019
        %v6021 = vpop.f32.mrf.mxu0
        %v6022 = vadd.f32 0.0, %v6021
        %6023 = vmatprep.mubr.f32.mxu0 %v5885
        %6024 = vmatmul.mubr.f32.gmra.mxu0 %v5842
        %v6025 = vpop.f32.mrf.mxu0
        %v6026 = vadd.f32 0.0, %v6025
        %v6027 = vpop.f32.mrf.mxu0
        %v6028 = vadd.f32 0.0, %v6027
        %6029 = vmatprep.mubr.f32.mxu0 %v5888
        %6030 = vmatmul.mubr.f32.gmra.mxu0 %v5844
        %v6031 = vpop.f32.mrf.mxu0
        %v6032 = vadd.f32 0.0, %v6031
        %v6033 = vpop.f32.mrf.mxu0
        %v6034 = vadd.f32 0.0, %v6033
        %6035 = vmatprep.mubr.f32.mxu0 %v5891
        %6036 = vmatmul.mubr.f32.gmra.mxu0 %v5846
        %v6037 = vpop.f32.mrf.mxu0
        %v6038 = vadd.f32 0.0, %v6037
        %v6039 = vpop.f32.mrf.mxu0
        %v6040 = vadd.f32 0.0, %v6039
        %6041 = vmatprep.mubr.f32.mxu0 %v5894
        %6042 = vmatmul.mubr.f32.gmra.mxu0 %v5848
        %v6043 = vpop.f32.mrf.mxu0
        %v6044 = vadd.f32 0.0, %v6043
        %v6045 = vpop.f32.mrf.mxu0
        %v6046 = vadd.f32 0.0, %v6045
        %6047 = vmatprep.mubr.f32.mxu0 %v5897
        %6048 = vmatmul.mubr.f32.gmra.mxu0 %v5850
        %v6049 = vpop.f32.mrf.mxu0
        %v6050 = vadd.f32 0.0, %v6049
        %v6051 = vpop.f32.mrf.mxu0
        %v6052 = vadd.f32 0.0, %v6051
        %6053 = vmatprep.mubr.f32.mxu0 %v5900
        %6054 = vmatmul.mubr.f32.gmra.mxu0 %v5852
        %v6055 = vpop.f32.mrf.mxu0
        %v6056 = vadd.f32 0.0, %v6055
        %v6057 = vpop.f32.mrf.mxu0
        %v6058 = vadd.f32 0.0, %v6057
        %6059 = vmatprep.mubr.f32.mxu0 %v5903
        %6060 = vmatmul.mubr.f32.gmra.mxu0 %v5854
        %v6061 = vpop.f32.mrf.mxu0
        %v6062 = vadd.f32 0.0, %v6061
        %v6063 = vpop.f32.mrf.mxu0
        %v6064 = vadd.f32 0.0, %v6063
        %6065 = vdwg.mxu0
        %6066 = vmatprep.subr.mxu0 %v4787
        %6067 = vmatpush1.msra.mxu0 %v4786
        %6068 = vmatprep.subr.mxu0 %v4771
        %6069 = vmatpush1.msra.mxu0 %v4770
        %6070 = vmatprep.subr.mxu0 %v4755
        %6071 = vmatpush1.msra.mxu0 %v4754
        %6072 = vmatprep.subr.mxu0 %v4739
        %6073 = vmatpush1.msra.mxu0 %v4738
        %6074 = vmatprep.subr.mxu0 %v4723
        %6075 = vmatpush1.msra.mxu0 %v4722
        %6076 = vmatprep.subr.mxu0 %v4707
        %6077 = vmatpush1.msra.mxu0 %v4706
        %6078 = vmatprep.subr.mxu0 %v4691
        %6079 = vmatpush1.msra.mxu0 %v4690
        %6080 = vmatprep.subr.mxu0 %v4675
        %6081 = vmatpush1.msra.mxu0 %v4674
        %6082 = vmatprep.subr.mxu0 %v5299
        %6083 = vmatpush1.msra.mxu0 %v5298
        %6084 = vmatprep.subr.mxu0 %v5283
        %6085 = vmatpush1.msra.mxu0 %v5282
        %6086 = vmatprep.subr.mxu0 %v5267
        %6087 = vmatpush1.msra.mxu0 %v5266
        %6088 = vmatprep.subr.mxu0 %v5251
        %6089 = vmatpush1.msra.mxu0 %v5250
        %6090 = vmatprep.subr.mxu0 %v5235
        %6091 = vmatpush1.msra.mxu0 %v5234
        %6092 = vmatprep.subr.mxu0 %v5219
        %6093 = vmatpush1.msra.mxu0 %v5218
        %6094 = vmatprep.subr.mxu0 %v5203
        %6095 = vmatpush1.msra.mxu0 %v5202
        %6096 = vmatprep.subr.mxu0 %v5187
        %6097 = vmatpush1.msra.mxu0 %v5186
        %6098 = vmatprep.subr.mxu0 0.0
        %6099 = vmatpush2.msra.mxu0 0.0
        %6100 = vmatprep.subr.mxu0 0.0
        %6101 = vmatpush2.msra.mxu0 0.0
        %6102 = vmatprep.subr.mxu0 0.0
        %6103 = vmatpush2.msra.mxu0 0.0
        %6104 = vmatprep.subr.mxu0 0.0
        %6105 = vmatpush2.msra.mxu0 0.0
        %6106 = vmatprep.subr.mxu0 0.0
        %6107 = vmatpush2.msra.mxu0 0.0
        %6108 = vmatprep.subr.mxu0 0.0
        %6109 = vmatpush2.msra.mxu0 0.0
        %6110 = vmatprep.subr.mxu0 0.0
        %6111 = vmatpush2.msra.mxu0 0.0
        %6112 = vmatprep.subr.mxu0 %v3766
        %6113 = vmatpush2.msra.mxu0 %v3766
        %6114 = vmatprep.subr.mxu0 %v5811
        %6115 = vmatpush2.msra.mxu0 %v5810
        %6116 = vmatprep.subr.mxu0 %v5795
        %6117 = vmatpush2.msra.mxu0 %v5794
        %6118 = vmatprep.subr.mxu0 %v5779
        %6119 = vmatpush2.msra.mxu0 %v5778
        %6120 = vmatprep.subr.mxu0 %v5763
        %6121 = vmatpush2.msra.mxu0 %v5762
        %6122 = vmatprep.subr.mxu0 %v5747
        %6123 = vmatpush2.msra.mxu0 %v5746
        %6124 = vmatprep.subr.mxu0 %v5731
        %6125 = vmatpush2.msra.mxu0 %v5730
        %6126 = vmatprep.subr.mxu0 %v5715
        %6127 = vmatpush2.msra.mxu0 %v5714
        %6128 = vmatprep.subr.mxu0 %v5699
        %6129 = vmatpush2.msra.mxu0 %v5698
        %6130 = vmatprep.mubr.f32.mxu0 %v5858
        %6131 = vmatmul.mubr.f32.gmra.mxu0 %v5824
        %v6132 = vpop.f32.mrf.mxu0
        %v6133 = vadd.f32 0.0, %v6132
        %v6134 = vpop.f32.mrf.mxu0
        %v6135 = vadd.f32 0.0, %v6134
        %6136 = vmatprep.mubr.f32.mxu0 %v5861
        %6137 = vmatmul.mubr.f32.gmra.mxu0 %v5826
        %v6138 = vpop.f32.mrf.mxu0
        %v6139 = vadd.f32 0.0, %v6138
        %v6140 = vpop.f32.mrf.mxu0
        %v6141 = vadd.f32 0.0, %v6140
        %6142 = vmatprep.mubr.f32.mxu0 %v5864
        %6143 = vmatmul.mubr.f32.gmra.mxu0 %v5828
        %v6144 = vpop.f32.mrf.mxu0
        %v6145 = vadd.f32 0.0, %v6144
        %v6146 = vpop.f32.mrf.mxu0
        %v6147 = vadd.f32 0.0, %v6146
        %6148 = vmatprep.mubr.f32.mxu0 %v5867
        %6149 = vmatmul.mubr.f32.gmra.mxu0 %v5830
        %v6150 = vpop.f32.mrf.mxu0
        %v6151 = vadd.f32 0.0, %v6150
        %v6152 = vpop.f32.mrf.mxu0
        %v6153 = vadd.f32 0.0, %v6152
        %6154 = vmatprep.mubr.f32.mxu0 %v5870
        %6155 = vmatmul.mubr.f32.gmra.mxu0 %v5832
        %v6156 = vpop.f32.mrf.mxu0
        %v6157 = vadd.f32 0.0, %v6156
        %v6158 = vpop.f32.mrf.mxu0
        %v6159 = vadd.f32 0.0, %v6158
        %6160 = vmatprep.mubr.f32.mxu0 %v5873
        %6161 = vmatmul.mubr.f32.gmra.mxu0 %v5834
        %v6162 = vpop.f32.mrf.mxu0
        %v6163 = vadd.f32 0.0, %v6162
        %v6164 = vpop.f32.mrf.mxu0
        %v6165 = vadd.f32 0.0, %v6164
        %6166 = vmatprep.mubr.f32.mxu0 %v5876
        %6167 = vmatmul.mubr.f32.gmra.mxu0 %v5836
        %v6168 = vpop.f32.mrf.mxu0
        %v6169 = vadd.f32 0.0, %v6168
        %v6170 = vpop.f32.mrf.mxu0
        %v6171 = vadd.f32 0.0, %v6170
        %6172 = vmatprep.mubr.f32.mxu0 %v5879
        %6173 = vmatmul.mubr.f32.gmra.mxu0 %v5838
        %v6174 = vpop.f32.mrf.mxu0
        %v6175 = vadd.f32 0.0, %v6174
        %v6176 = vpop.f32.mrf.mxu0
        %v6177 = vadd.f32 0.0, %v6176
        %6178 = vmatprep.mubr.f32.mxu0 %v5882
        %6179 = vmatmul.mubr.f32.gmra.mxu0 %v5840
        %v6180 = vpop.f32.mrf.mxu0
        %v6181 = vadd.f32 0.0, %v6180
        %v6182 = vpop.f32.mrf.mxu0
        %v6183 = vadd.f32 0.0, %v6182
        %6184 = vmatprep.mubr.f32.mxu0 %v5885
        %6185 = vmatmul.mubr.f32.gmra.mxu0 %v5842
        %v6186 = vpop.f32.mrf.mxu0
        %v6187 = vadd.f32 0.0, %v6186
        %v6188 = vpop.f32.mrf.mxu0
        %v6189 = vadd.f32 0.0, %v6188
        %6190 = vmatprep.mubr.f32.mxu0 %v5888
        %6191 = vmatmul.mubr.f32.gmra.mxu0 %v5844
        %v6192 = vpop.f32.mrf.mxu0
        %v6193 = vadd.f32 0.0, %v6192
        %v6194 = vpop.f32.mrf.mxu0
        %v6195 = vadd.f32 0.0, %v6194
        %6196 = vmatprep.mubr.f32.mxu0 %v5891
        %6197 = vmatmul.mubr.f32.gmra.mxu0 %v5846
        %v6198 = vpop.f32.mrf.mxu0
        %v6199 = vadd.f32 0.0, %v6198
        %v6200 = vpop.f32.mrf.mxu0
        %v6201 = vadd.f32 0.0, %v6200
        %6202 = vmatprep.mubr.f32.mxu0 %v5894
        %6203 = vmatmul.mubr.f32.gmra.mxu0 %v5848
        %v6204 = vpop.f32.mrf.mxu0
        %v6205 = vadd.f32 0.0, %v6204
        %v6206 = vpop.f32.mrf.mxu0
        %v6207 = vadd.f32 0.0, %v6206
        %6208 = vmatprep.mubr.f32.mxu0 %v5897
        %6209 = vmatmul.mubr.f32.gmra.mxu0 %v5850
        %v6210 = vpop.f32.mrf.mxu0
        %v6211 = vadd.f32 0.0, %v6210
        %v6212 = vpop.f32.mrf.mxu0
        %v6213 = vadd.f32 0.0, %v6212
        %6214 = vmatprep.mubr.f32.mxu0 %v5900
        %6215 = vmatmul.mubr.f32.gmra.mxu0 %v5852
        %v6216 = vpop.f32.mrf.mxu0
        %v6217 = vadd.f32 0.0, %v6216
        %v6218 = vpop.f32.mrf.mxu0
        %v6219 = vadd.f32 0.0, %v6218
        %6220 = vmatprep.mubr.f32.mxu0 %v5903
        %6221 = vmatmul.mubr.f32.gmra.mxu0 %v5854
        %v6222 = vpop.f32.mrf.mxu0
        %v6223 = vadd.f32 0.0, %v6222
        %v6224 = vpop.f32.mrf.mxu0
        %v6225 = vadd.f32 0.0, %v6224
        %6226 = vdwg.mxu0
        %6227 = vmatprep.subr.mxu0 %v4789
        %6228 = vmatpush1.msra.mxu0 %v4788
        %6229 = vmatprep.subr.mxu0 %v4773
        %6230 = vmatpush1.msra.mxu0 %v4772
        %6231 = vmatprep.subr.mxu0 %v4757
        %6232 = vmatpush1.msra.mxu0 %v4756
        %6233 = vmatprep.subr.mxu0 %v4741
        %6234 = vmatpush1.msra.mxu0 %v4740
        %6235 = vmatprep.subr.mxu0 %v4725
        %6236 = vmatpush1.msra.mxu0 %v4724
        %6237 = vmatprep.subr.mxu0 %v4709
        %6238 = vmatpush1.msra.mxu0 %v4708
        %6239 = vmatprep.subr.mxu0 %v4693
        %6240 = vmatpush1.msra.mxu0 %v4692
        %6241 = vmatprep.subr.mxu0 %v4677
        %6242 = vmatpush1.msra.mxu0 %v4676
        %6243 = vmatprep.subr.mxu0 %v5301
        %6244 = vmatpush1.msra.mxu0 %v5300
        %6245 = vmatprep.subr.mxu0 %v5285
        %6246 = vmatpush1.msra.mxu0 %v5284
        %6247 = vmatprep.subr.mxu0 %v5269
        %6248 = vmatpush1.msra.mxu0 %v5268
        %6249 = vmatprep.subr.mxu0 %v5253
        %6250 = vmatpush1.msra.mxu0 %v5252
        %6251 = vmatprep.subr.mxu0 %v5237
        %6252 = vmatpush1.msra.mxu0 %v5236
        %6253 = vmatprep.subr.mxu0 %v5221
        %6254 = vmatpush1.msra.mxu0 %v5220
        %6255 = vmatprep.subr.mxu0 %v5205
        %6256 = vmatpush1.msra.mxu0 %v5204
        %6257 = vmatprep.subr.mxu0 %v5189
        %6258 = vmatpush1.msra.mxu0 %v5188
        %6259 = vmatprep.subr.mxu0 0.0
        %6260 = vmatpush2.msra.mxu0 0.0
        %6261 = vmatprep.subr.mxu0 0.0
        %6262 = vmatpush2.msra.mxu0 0.0
        %6263 = vmatprep.subr.mxu0 0.0
        %6264 = vmatpush2.msra.mxu0 0.0
        %6265 = vmatprep.subr.mxu0 0.0
        %6266 = vmatpush2.msra.mxu0 0.0
        %6267 = vmatprep.subr.mxu0 0.0
        %6268 = vmatpush2.msra.mxu0 0.0
        %6269 = vmatprep.subr.mxu0 0.0
        %6270 = vmatpush2.msra.mxu0 0.0
        %6271 = vmatprep.subr.mxu0 0.0
        %6272 = vmatpush2.msra.mxu0 0.0
        %6273 = vmatprep.subr.mxu0 %v3766
        %6274 = vmatpush2.msra.mxu0 %v3766
        %6275 = vmatprep.subr.mxu0 %v5813
        %6276 = vmatpush2.msra.mxu0 %v5812
        %6277 = vmatprep.subr.mxu0 %v5797
        %6278 = vmatpush2.msra.mxu0 %v5796
        %6279 = vmatprep.subr.mxu0 %v5781
        %6280 = vmatpush2.msra.mxu0 %v5780
        %6281 = vmatprep.subr.mxu0 %v5765
        %6282 = vmatpush2.msra.mxu0 %v5764
        %6283 = vmatprep.subr.mxu0 %v5749
        %6284 = vmatpush2.msra.mxu0 %v5748
        %6285 = vmatprep.subr.mxu0 %v5733
        %6286 = vmatpush2.msra.mxu0 %v5732
        %6287 = vmatprep.subr.mxu0 %v5717
        %6288 = vmatpush2.msra.mxu0 %v5716
        %6289 = vmatprep.subr.mxu0 %v5701
        %6290 = vmatpush2.msra.mxu0 %v5700
        %6291 = vmatprep.mubr.f32.mxu0 %v5858
        %6292 = vmatmul.mubr.f32.gmra.mxu0 %v5824
        %v6293 = vpop.f32.mrf.mxu0
        %v6294 = vadd.f32 0.0, %v6293
        %v6295 = vpop.f32.mrf.mxu0
        %v6296 = vadd.f32 0.0, %v6295
        %6297 = vmatprep.mubr.f32.mxu0 %v5861
        %6298 = vmatmul.mubr.f32.gmra.mxu0 %v5826
        %v6299 = vpop.f32.mrf.mxu0
        %v6300 = vadd.f32 0.0, %v6299
        %v6301 = vpop.f32.mrf.mxu0
        %v6302 = vadd.f32 0.0, %v6301
        %6303 = vmatprep.mubr.f32.mxu0 %v5864
        %6304 = vmatmul.mubr.f32.gmra.mxu0 %v5828
        %v6305 = vpop.f32.mrf.mxu0
        %v6306 = vadd.f32 0.0, %v6305
        %v6307 = vpop.f32.mrf.mxu0
        %v6308 = vadd.f32 0.0, %v6307
        %6309 = vmatprep.mubr.f32.mxu0 %v5867
        %6310 = vmatmul.mubr.f32.gmra.mxu0 %v5830
        %v6311 = vpop.f32.mrf.mxu0
        %v6312 = vadd.f32 0.0, %v6311
        %v6313 = vpop.f32.mrf.mxu0
        %v6314 = vadd.f32 0.0, %v6313
        %6315 = vmatprep.mubr.f32.mxu0 %v5870
        %6316 = vmatmul.mubr.f32.gmra.mxu0 %v5832
        %v6317 = vpop.f32.mrf.mxu0
        %v6318 = vadd.f32 0.0, %v6317
        %v6319 = vpop.f32.mrf.mxu0
        %v6320 = vadd.f32 0.0, %v6319
        %6321 = vmatprep.mubr.f32.mxu0 %v5873
        %6322 = vmatmul.mubr.f32.gmra.mxu0 %v5834
        %v6323 = vpop.f32.mrf.mxu0
        %v6324 = vadd.f32 0.0, %v6323
        %v6325 = vpop.f32.mrf.mxu0
        %v6326 = vadd.f32 0.0, %v6325
        %6327 = vmatprep.mubr.f32.mxu0 %v5876
        %6328 = vmatmul.mubr.f32.gmra.mxu0 %v5836
        %v6329 = vpop.f32.mrf.mxu0
        %v6330 = vadd.f32 0.0, %v6329
        %v6331 = vpop.f32.mrf.mxu0
        %v6332 = vadd.f32 0.0, %v6331
        %6333 = vmatprep.mubr.f32.mxu0 %v5879
        %6334 = vmatmul.mubr.f32.gmra.mxu0 %v5838
        %v6335 = vpop.f32.mrf.mxu0
        %v6336 = vadd.f32 0.0, %v6335
        %v6337 = vpop.f32.mrf.mxu0
        %v6338 = vadd.f32 0.0, %v6337
        %6339 = vmatprep.mubr.f32.mxu0 %v5882
        %6340 = vmatmul.mubr.f32.gmra.mxu0 %v5840
        %v6341 = vpop.f32.mrf.mxu0
        %v6342 = vadd.f32 0.0, %v6341
        %v6343 = vpop.f32.mrf.mxu0
        %v6344 = vadd.f32 0.0, %v6343
        %6345 = vmatprep.mubr.f32.mxu0 %v5885
        %6346 = vmatmul.mubr.f32.gmra.mxu0 %v5842
        %v6347 = vpop.f32.mrf.mxu0
        %v6348 = vadd.f32 0.0, %v6347
        %v6349 = vpop.f32.mrf.mxu0
        %v6350 = vadd.f32 0.0, %v6349
        %6351 = vmatprep.mubr.f32.mxu0 %v5888
        %6352 = vmatmul.mubr.f32.gmra.mxu0 %v5844
        %v6353 = vpop.f32.mrf.mxu0
        %v6354 = vadd.f32 0.0, %v6353
        %v6355 = vpop.f32.mrf.mxu0
        %v6356 = vadd.f32 0.0, %v6355
        %6357 = vmatprep.mubr.f32.mxu0 %v5891
        %6358 = vmatmul.mubr.f32.gmra.mxu0 %v5846
        %v6359 = vpop.f32.mrf.mxu0
        %v6360 = vadd.f32 0.0, %v6359
        %v6361 = vpop.f32.mrf.mxu0
        %v6362 = vadd.f32 0.0, %v6361
        %6363 = vmatprep.mubr.f32.mxu0 %v5894
        %6364 = vmatmul.mubr.f32.gmra.mxu0 %v5848
        %v6365 = vpop.f32.mrf.mxu0
        %v6366 = vadd.f32 0.0, %v6365
        %v6367 = vpop.f32.mrf.mxu0
        %v6368 = vadd.f32 0.0, %v6367
        %6369 = vmatprep.mubr.f32.mxu0 %v5897
        %6370 = vmatmul.mubr.f32.gmra.mxu0 %v5850
        %v6371 = vpop.f32.mrf.mxu0
        %v6372 = vadd.f32 0.0, %v6371
        %v6373 = vpop.f32.mrf.mxu0
        %v6374 = vadd.f32 0.0, %v6373
        %6375 = vmatprep.mubr.f32.mxu0 %v5900
        %6376 = vmatmul.mubr.f32.gmra.mxu0 %v5852
        %v6377 = vpop.f32.mrf.mxu0
        %v6378 = vadd.f32 0.0, %v6377
        %v6379 = vpop.f32.mrf.mxu0
        %v6380 = vadd.f32 0.0, %v6379
        %6381 = vmatprep.mubr.f32.mxu0 %v5903
        %6382 = vmatmul.mubr.f32.gmra.mxu0 %v5854
        %v6383 = vpop.f32.mrf.mxu0
        %v6384 = vadd.f32 0.0, %v6383
        %v6385 = vpop.f32.mrf.mxu0
        %v6386 = vadd.f32 0.0, %v6385
        %6387 = vdwg.mxu0
        %6388 = vmatprep.subr.mxu0 %v4791
        %6389 = vmatpush1.msra.mxu0 %v4790
        %6390 = vmatprep.subr.mxu0 %v4775
        %6391 = vmatpush1.msra.mxu0 %v4774
        %6392 = vmatprep.subr.mxu0 %v4759
        %6393 = vmatpush1.msra.mxu0 %v4758
        %6394 = vmatprep.subr.mxu0 %v4743
        %6395 = vmatpush1.msra.mxu0 %v4742
        %6396 = vmatprep.subr.mxu0 %v4727
        %6397 = vmatpush1.msra.mxu0 %v4726
        %6398 = vmatprep.subr.mxu0 %v4711
        %6399 = vmatpush1.msra.mxu0 %v4710
        %6400 = vmatprep.subr.mxu0 %v4695
        %6401 = vmatpush1.msra.mxu0 %v4694
        %6402 = vmatprep.subr.mxu0 %v4679
        %6403 = vmatpush1.msra.mxu0 %v4678
        %6404 = vmatprep.subr.mxu0 %v5303
        %6405 = vmatpush1.msra.mxu0 %v5302
        %6406 = vmatprep.subr.mxu0 %v5287
        %6407 = vmatpush1.msra.mxu0 %v5286
        %6408 = vmatprep.subr.mxu0 %v5271
        %6409 = vmatpush1.msra.mxu0 %v5270
        %6410 = vmatprep.subr.mxu0 %v5255
        %6411 = vmatpush1.msra.mxu0 %v5254
        %6412 = vmatprep.subr.mxu0 %v5239
        %6413 = vmatpush1.msra.mxu0 %v5238
        %6414 = vmatprep.subr.mxu0 %v5223
        %6415 = vmatpush1.msra.mxu0 %v5222
        %6416 = vmatprep.subr.mxu0 %v5207
        %6417 = vmatpush1.msra.mxu0 %v5206
        %6418 = vmatprep.subr.mxu0 %v5191
        %6419 = vmatpush1.msra.mxu0 %v5190
        %6420 = vmatprep.subr.mxu0 0.0
        %6421 = vmatpush2.msra.mxu0 0.0
        %6422 = vmatprep.subr.mxu0 0.0
        %6423 = vmatpush2.msra.mxu0 0.0
        %6424 = vmatprep.subr.mxu0 0.0
        %6425 = vmatpush2.msra.mxu0 0.0
        %6426 = vmatprep.subr.mxu0 0.0
        %6427 = vmatpush2.msra.mxu0 0.0
        %6428 = vmatprep.subr.mxu0 0.0
        %6429 = vmatpush2.msra.mxu0 0.0
        %6430 = vmatprep.subr.mxu0 0.0
        %6431 = vmatpush2.msra.mxu0 0.0
        %6432 = vmatprep.subr.mxu0 0.0
        %6433 = vmatpush2.msra.mxu0 0.0
        %6434 = vmatprep.subr.mxu0 %v3766
        %6435 = vmatpush2.msra.mxu0 %v3766
        %6436 = vmatprep.subr.mxu0 %v5815
        %6437 = vmatpush2.msra.mxu0 %v5814
        %6438 = vmatprep.subr.mxu0 %v5799
        %6439 = vmatpush2.msra.mxu0 %v5798
        %6440 = vmatprep.subr.mxu0 %v5783
        %6441 = vmatpush2.msra.mxu0 %v5782
        %6442 = vmatprep.subr.mxu0 %v5767
        %6443 = vmatpush2.msra.mxu0 %v5766
        %6444 = vmatprep.subr.mxu0 %v5751
        %6445 = vmatpush2.msra.mxu0 %v5750
        %6446 = vmatprep.subr.mxu0 %v5735
        %6447 = vmatpush2.msra.mxu0 %v5734
        %6448 = vmatprep.subr.mxu0 %v5719
        %6449 = vmatpush2.msra.mxu0 %v5718
        %6450 = vmatprep.subr.mxu0 %v5703
        %6451 = vmatpush2.msra.mxu0 %v5702
        %6452 = vmatprep.mubr.f32.mxu0 %v5858
        %6453 = vmatmul.mubr.f32.gmra.mxu0 %v5824
        %v6454 = vpop.f32.mrf.mxu0
        %v6455 = vadd.f32 0.0, %v6454
        %v6456 = vpop.f32.mrf.mxu0
        %v6457 = vadd.f32 0.0, %v6456
        %6458 = vmatprep.mubr.f32.mxu0 %v5861
        %6459 = vmatmul.mubr.f32.gmra.mxu0 %v5826
        %v6460 = vpop.f32.mrf.mxu0
        %v6461 = vadd.f32 0.0, %v6460
        %v6462 = vpop.f32.mrf.mxu0
        %v6463 = vadd.f32 0.0, %v6462
        %6464 = vmatprep.mubr.f32.mxu0 %v5864
        %6465 = vmatmul.mubr.f32.gmra.mxu0 %v5828
        %v6466 = vpop.f32.mrf.mxu0
        %v6467 = vadd.f32 0.0, %v6466
        %v6468 = vpop.f32.mrf.mxu0
        %v6469 = vadd.f32 0.0, %v6468
        %6470 = vmatprep.mubr.f32.mxu0 %v5867
        %6471 = vmatmul.mubr.f32.gmra.mxu0 %v5830
        %v6472 = vpop.f32.mrf.mxu0
        %v6473 = vadd.f32 0.0, %v6472
        %v6474 = vpop.f32.mrf.mxu0
        %v6475 = vadd.f32 0.0, %v6474
        %6476 = vmatprep.mubr.f32.mxu0 %v5870
        %6477 = vmatmul.mubr.f32.gmra.mxu0 %v5832
        %v6478 = vpop.f32.mrf.mxu0
        %v6479 = vadd.f32 0.0, %v6478
        %v6480 = vpop.f32.mrf.mxu0
        %v6481 = vadd.f32 0.0, %v6480
        %6482 = vmatprep.mubr.f32.mxu0 %v5873
        %6483 = vmatmul.mubr.f32.gmra.mxu0 %v5834
        %v6484 = vpop.f32.mrf.mxu0
        %v6485 = vadd.f32 0.0, %v6484
        %v6486 = vpop.f32.mrf.mxu0
        %v6487 = vadd.f32 0.0, %v6486
        %6488 = vmatprep.mubr.f32.mxu0 %v5876
        %6489 = vmatmul.mubr.f32.gmra.mxu0 %v5836
        %v6490 = vpop.f32.mrf.mxu0
        %v6491 = vadd.f32 0.0, %v6490
        %v6492 = vpop.f32.mrf.mxu0
        %v6493 = vadd.f32 0.0, %v6492
        %6494 = vmatprep.mubr.f32.mxu0 %v5879
        %6495 = vmatmul.mubr.f32.gmra.mxu0 %v5838
        %v6496 = vpop.f32.mrf.mxu0
        %v6497 = vadd.f32 0.0, %v6496
        %v6498 = vpop.f32.mrf.mxu0
        %v6499 = vadd.f32 0.0, %v6498
        %6500 = vmatprep.mubr.f32.mxu0 %v5882
        %6501 = vmatmul.mubr.f32.gmra.mxu0 %v5840
        %v6502 = vpop.f32.mrf.mxu0
        %v6503 = vadd.f32 0.0, %v6502
        %v6504 = vpop.f32.mrf.mxu0
        %v6505 = vadd.f32 0.0, %v6504
        %6506 = vmatprep.mubr.f32.mxu0 %v5885
        %6507 = vmatmul.mubr.f32.gmra.mxu0 %v5842
        %v6508 = vpop.f32.mrf.mxu0
        %v6509 = vadd.f32 0.0, %v6508
        %v6510 = vpop.f32.mrf.mxu0
        %v6511 = vadd.f32 0.0, %v6510
        %6512 = vmatprep.mubr.f32.mxu0 %v5888
        %6513 = vmatmul.mubr.f32.gmra.mxu0 %v5844
        %v6514 = vpop.f32.mrf.mxu0
        %v6515 = vadd.f32 0.0, %v6514
        %v6516 = vpop.f32.mrf.mxu0
        %v6517 = vadd.f32 0.0, %v6516
        %6518 = vmatprep.mubr.f32.mxu0 %v5891
        %6519 = vmatmul.mubr.f32.gmra.mxu0 %v5846
        %v6520 = vpop.f32.mrf.mxu0
        %v6521 = vadd.f32 0.0, %v6520
        %v6522 = vpop.f32.mrf.mxu0
        %v6523 = vadd.f32 0.0, %v6522
        %6524 = vmatprep.mubr.f32.mxu0 %v5894
        %6525 = vmatmul.mubr.f32.gmra.mxu0 %v5848
        %v6526 = vpop.f32.mrf.mxu0
        %v6527 = vadd.f32 0.0, %v6526
        %v6528 = vpop.f32.mrf.mxu0
        %v6529 = vadd.f32 0.0, %v6528
        %6530 = vmatprep.mubr.f32.mxu0 %v5897
        %6531 = vmatmul.mubr.f32.gmra.mxu0 %v5850
        %v6532 = vpop.f32.mrf.mxu0
        %v6533 = vadd.f32 0.0, %v6532
        %v6534 = vpop.f32.mrf.mxu0
        %v6535 = vadd.f32 0.0, %v6534
        %6536 = vmatprep.mubr.f32.mxu0 %v5900
        %6537 = vmatmul.mubr.f32.gmra.mxu0 %v5852
        %v6538 = vpop.f32.mrf.mxu0
        %v6539 = vadd.f32 0.0, %v6538
        %v6540 = vpop.f32.mrf.mxu0
        %v6541 = vadd.f32 0.0, %v6540
        %6542 = vmatprep.mubr.f32.mxu0 %v5903
        %6543 = vmatmul.mubr.f32.gmra.mxu0 %v5854
        %v6544 = vpop.f32.mrf.mxu0
        %v6545 = vadd.f32 0.0, %v6544
        %v6546 = vpop.f32.mrf.mxu0
        %v6547 = vadd.f32 0.0, %v6546
        %6548 = vdwg.mxu0
        %6549 = vmatprep.subr.mxu0 %v4793
        %6550 = vmatpush1.msra.mxu0 %v4792
        %6551 = vmatprep.subr.mxu0 %v4777
        %6552 = vmatpush1.msra.mxu0 %v4776
        %6553 = vmatprep.subr.mxu0 %v4761
        %6554 = vmatpush1.msra.mxu0 %v4760
        %6555 = vmatprep.subr.mxu0 %v4745
        %6556 = vmatpush1.msra.mxu0 %v4744
        %6557 = vmatprep.subr.mxu0 %v4729
        %6558 = vmatpush1.msra.mxu0 %v4728
        %6559 = vmatprep.subr.mxu0 %v4713
        %6560 = vmatpush1.msra.mxu0 %v4712
        %6561 = vmatprep.subr.mxu0 %v4697
        %6562 = vmatpush1.msra.mxu0 %v4696
        %6563 = vmatprep.subr.mxu0 %v4681
        %6564 = vmatpush1.msra.mxu0 %v4680
        %6565 = vmatprep.subr.mxu0 %v5305
        %6566 = vmatpush1.msra.mxu0 %v5304
        %6567 = vmatprep.subr.mxu0 %v5289
        %6568 = vmatpush1.msra.mxu0 %v5288
        %6569 = vmatprep.subr.mxu0 %v5273
        %6570 = vmatpush1.msra.mxu0 %v5272
        %6571 = vmatprep.subr.mxu0 %v5257
        %6572 = vmatpush1.msra.mxu0 %v5256
        %6573 = vmatprep.subr.mxu0 %v5241
        %6574 = vmatpush1.msra.mxu0 %v5240
        %6575 = vmatprep.subr.mxu0 %v5225
        %6576 = vmatpush1.msra.mxu0 %v5224
        %6577 = vmatprep.subr.mxu0 %v5209
        %6578 = vmatpush1.msra.mxu0 %v5208
        %6579 = vmatprep.subr.mxu0 %v5193
        %6580 = vmatpush1.msra.mxu0 %v5192
        %6581 = vmatprep.subr.mxu0 0.0
        %6582 = vmatpush2.msra.mxu0 0.0
        %6583 = vmatprep.subr.mxu0 0.0
        %6584 = vmatpush2.msra.mxu0 0.0
        %6585 = vmatprep.subr.mxu0 0.0
        %6586 = vmatpush2.msra.mxu0 0.0
        %6587 = vmatprep.subr.mxu0 0.0
        %6588 = vmatpush2.msra.mxu0 0.0
        %6589 = vmatprep.subr.mxu0 0.0
        %6590 = vmatpush2.msra.mxu0 0.0
        %6591 = vmatprep.subr.mxu0 0.0
        %6592 = vmatpush2.msra.mxu0 0.0
        %6593 = vmatprep.subr.mxu0 0.0
        %6594 = vmatpush2.msra.mxu0 0.0
        %6595 = vmatprep.subr.mxu0 %v3766
        %6596 = vmatpush2.msra.mxu0 %v3766
        %6597 = vmatprep.subr.mxu0 %v5817
        %6598 = vmatpush2.msra.mxu0 %v5816
        %6599 = vmatprep.subr.mxu0 %v5801
        %6600 = vmatpush2.msra.mxu0 %v5800
        %6601 = vmatprep.subr.mxu0 %v5785
        %6602 = vmatpush2.msra.mxu0 %v5784
        %6603 = vmatprep.subr.mxu0 %v5769
        %6604 = vmatpush2.msra.mxu0 %v5768
        %6605 = vmatprep.subr.mxu0 %v5753
        %6606 = vmatpush2.msra.mxu0 %v5752
        %6607 = vmatprep.subr.mxu0 %v5737
        %6608 = vmatpush2.msra.mxu0 %v5736
        %6609 = vmatprep.subr.mxu0 %v5721
        %6610 = vmatpush2.msra.mxu0 %v5720
        %6611 = vmatprep.subr.mxu0 %v5705
        %6612 = vmatpush2.msra.mxu0 %v5704
        %6613 = vmatprep.mubr.f32.mxu0 %v5858
        %6614 = vmatmul.mubr.f32.gmra.mxu0 %v5824
        %v6615 = vpop.f32.mrf.mxu0
        %v6616 = vadd.f32 0.0, %v6615
        %v6617 = vpop.f32.mrf.mxu0
        %v6618 = vadd.f32 0.0, %v6617
        %6619 = vmatprep.mubr.f32.mxu0 %v5861
        %6620 = vmatmul.mubr.f32.gmra.mxu0 %v5826
        %v6621 = vpop.f32.mrf.mxu0
        %v6622 = vadd.f32 0.0, %v6621
        %v6623 = vpop.f32.mrf.mxu0
        %v6624 = vadd.f32 0.0, %v6623
        %6625 = vmatprep.mubr.f32.mxu0 %v5864
        %6626 = vmatmul.mubr.f32.gmra.mxu0 %v5828
        %v6627 = vpop.f32.mrf.mxu0
        %v6628 = vadd.f32 0.0, %v6627
        %v6629 = vpop.f32.mrf.mxu0
        %v6630 = vadd.f32 0.0, %v6629
        %6631 = vmatprep.mubr.f32.mxu0 %v5867
        %6632 = vmatmul.mubr.f32.gmra.mxu0 %v5830
        %v6633 = vpop.f32.mrf.mxu0
        %v6634 = vadd.f32 0.0, %v6633
        %v6635 = vpop.f32.mrf.mxu0
        %v6636 = vadd.f32 0.0, %v6635
        %6637 = vmatprep.mubr.f32.mxu0 %v5870
        %6638 = vmatmul.mubr.f32.gmra.mxu0 %v5832
        %v6639 = vpop.f32.mrf.mxu0
        %v6640 = vadd.f32 0.0, %v6639
        %v6641 = vpop.f32.mrf.mxu0
        %v6642 = vadd.f32 0.0, %v6641
        %6643 = vmatprep.mubr.f32.mxu0 %v5873
        %6644 = vmatmul.mubr.f32.gmra.mxu0 %v5834
        %v6645 = vpop.f32.mrf.mxu0
        %v6646 = vadd.f32 0.0, %v6645
        %v6647 = vpop.f32.mrf.mxu0
        %v6648 = vadd.f32 0.0, %v6647
        %6649 = vmatprep.mubr.f32.mxu0 %v5876
        %6650 = vmatmul.mubr.f32.gmra.mxu0 %v5836
        %v6651 = vpop.f32.mrf.mxu0
        %v6652 = vadd.f32 0.0, %v6651
        %v6653 = vpop.f32.mrf.mxu0
        %v6654 = vadd.f32 0.0, %v6653
        %6655 = vmatprep.mubr.f32.mxu0 %v5879
        %6656 = vmatmul.mubr.f32.gmra.mxu0 %v5838
        %v6657 = vpop.f32.mrf.mxu0
        %v6658 = vadd.f32 0.0, %v6657
        %v6659 = vpop.f32.mrf.mxu0
        %v6660 = vadd.f32 0.0, %v6659
        %6661 = vmatprep.mubr.f32.mxu0 %v5882
        %6662 = vmatmul.mubr.f32.gmra.mxu0 %v5840
        %v6663 = vpop.f32.mrf.mxu0
        %v6664 = vadd.f32 0.0, %v6663
        %v6665 = vpop.f32.mrf.mxu0
        %v6666 = vadd.f32 0.0, %v6665
        %6667 = vmatprep.mubr.f32.mxu0 %v5885
        %6668 = vmatmul.mubr.f32.gmra.mxu0 %v5842
        %v6669 = vpop.f32.mrf.mxu0
        %v6670 = vadd.f32 0.0, %v6669
        %v6671 = vpop.f32.mrf.mxu0
        %v6672 = vadd.f32 0.0, %v6671
        %6673 = vmatprep.mubr.f32.mxu0 %v5888
        %6674 = vmatmul.mubr.f32.gmra.mxu0 %v5844
        %v6675 = vpop.f32.mrf.mxu0
        %v6676 = vadd.f32 0.0, %v6675
        %v6677 = vpop.f32.mrf.mxu0
        %v6678 = vadd.f32 0.0, %v6677
        %6679 = vmatprep.mubr.f32.mxu0 %v5891
        %6680 = vmatmul.mubr.f32.gmra.mxu0 %v5846
        %v6681 = vpop.f32.mrf.mxu0
        %v6682 = vadd.f32 0.0, %v6681
        %v6683 = vpop.f32.mrf.mxu0
        %v6684 = vadd.f32 0.0, %v6683
        %6685 = vmatprep.mubr.f32.mxu0 %v5894
        %6686 = vmatmul.mubr.f32.gmra.mxu0 %v5848
        %v6687 = vpop.f32.mrf.mxu0
        %v6688 = vadd.f32 0.0, %v6687
        %v6689 = vpop.f32.mrf.mxu0
        %v6690 = vadd.f32 0.0, %v6689
        %6691 = vmatprep.mubr.f32.mxu0 %v5897
        %6692 = vmatmul.mubr.f32.gmra.mxu0 %v5850
        %v6693 = vpop.f32.mrf.mxu0
        %v6694 = vadd.f32 0.0, %v6693
        %v6695 = vpop.f32.mrf.mxu0
        %v6696 = vadd.f32 0.0, %v6695
        %6697 = vmatprep.mubr.f32.mxu0 %v5900
        %6698 = vmatmul.mubr.f32.gmra.mxu0 %v5852
        %v6699 = vpop.f32.mrf.mxu0
        %v6700 = vadd.f32 0.0, %v6699
        %v6701 = vpop.f32.mrf.mxu0
        %v6702 = vadd.f32 0.0, %v6701
        %6703 = vmatprep.mubr.f32.mxu0 %v5903
        %6704 = vmatmul.mubr.f32.gmra.mxu0 %v5854
        %v6705 = vpop.f32.mrf.mxu0
        %v6706 = vadd.f32 0.0, %v6705
        %v6707 = vpop.f32.mrf.mxu0
        %v6708 = vadd.f32 0.0, %v6707
        %6709 = vdwg.mxu0
        %6710 = vmatprep.subr.mxu0 %v4795
        %6711 = vmatpush1.msra.mxu0 %v4794
        %6712 = vmatprep.subr.mxu0 %v4779
        %6713 = vmatpush1.msra.mxu0 %v4778
        %6714 = vmatprep.subr.mxu0 %v4763
        %6715 = vmatpush1.msra.mxu0 %v4762
        %6716 = vmatprep.subr.mxu0 %v4747
        %6717 = vmatpush1.msra.mxu0 %v4746
        %6718 = vmatprep.subr.mxu0 %v4731
        %6719 = vmatpush1.msra.mxu0 %v4730
        %6720 = vmatprep.subr.mxu0 %v4715
        %6721 = vmatpush1.msra.mxu0 %v4714
        %6722 = vmatprep.subr.mxu0 %v4699
        %6723 = vmatpush1.msra.mxu0 %v4698
        %6724 = vmatprep.subr.mxu0 %v4683
        %6725 = vmatpush1.msra.mxu0 %v4682
        %6726 = vmatprep.subr.mxu0 %v5307
        %6727 = vmatpush1.msra.mxu0 %v5306
        %6728 = vmatprep.subr.mxu0 %v5291
        %6729 = vmatpush1.msra.mxu0 %v5290
        %6730 = vmatprep.subr.mxu0 %v5275
        %6731 = vmatpush1.msra.mxu0 %v5274
        %6732 = vmatprep.subr.mxu0 %v5259
        %6733 = vmatpush1.msra.mxu0 %v5258
        %6734 = vmatprep.subr.mxu0 %v5243
        %6735 = vmatpush1.msra.mxu0 %v5242
        %6736 = vmatprep.subr.mxu0 %v5227
        %6737 = vmatpush1.msra.mxu0 %v5226
        %6738 = vmatprep.subr.mxu0 %v5211
        %6739 = vmatpush1.msra.mxu0 %v5210
        %6740 = vmatprep.subr.mxu0 %v5195
        %6741 = vmatpush1.msra.mxu0 %v5194
        %6742 = vmatprep.subr.mxu0 0.0
        %6743 = vmatpush2.msra.mxu0 0.0
        %6744 = vmatprep.subr.mxu0 0.0
        %6745 = vmatpush2.msra.mxu0 0.0
        %6746 = vmatprep.subr.mxu0 0.0
        %6747 = vmatpush2.msra.mxu0 0.0
        %6748 = vmatprep.subr.mxu0 0.0
        %6749 = vmatpush2.msra.mxu0 0.0
        %6750 = vmatprep.subr.mxu0 0.0
        %6751 = vmatpush2.msra.mxu0 0.0
        %6752 = vmatprep.subr.mxu0 0.0
        %6753 = vmatpush2.msra.mxu0 0.0
        %6754 = vmatprep.subr.mxu0 0.0
        %6755 = vmatpush2.msra.mxu0 0.0
        %6756 = vmatprep.subr.mxu0 %v3766
        %6757 = vmatpush2.msra.mxu0 %v3766
        %6758 = vmatprep.subr.mxu0 %v5819
        %6759 = vmatpush2.msra.mxu0 %v5818
        %6760 = vmatprep.subr.mxu0 %v5803
        %6761 = vmatpush2.msra.mxu0 %v5802
        %6762 = vmatprep.subr.mxu0 %v5787
        %6763 = vmatpush2.msra.mxu0 %v5786
        %6764 = vmatprep.subr.mxu0 %v5771
        %6765 = vmatpush2.msra.mxu0 %v5770
        %6766 = vmatprep.subr.mxu0 %v5755
        %6767 = vmatpush2.msra.mxu0 %v5754
        %6768 = vmatprep.subr.mxu0 %v5739
        %6769 = vmatpush2.msra.mxu0 %v5738
        %6770 = vmatprep.subr.mxu0 %v5723
        %6771 = vmatpush2.msra.mxu0 %v5722
        %6772 = vmatprep.subr.mxu0 %v5707
        %6773 = vmatpush2.msra.mxu0 %v5706
        %6774 = vmatprep.mubr.f32.mxu0 %v5858
        %6775 = vmatmul.mubr.f32.gmra.mxu0 %v5824
        %v6776 = vpop.f32.mrf.mxu0
        %v6777 = vadd.f32 0.0, %v6776
        %v6778 = vpop.f32.mrf.mxu0
        %v6779 = vadd.f32 0.0, %v6778
        %6780 = vmatprep.mubr.f32.mxu0 %v5861
        %6781 = vmatmul.mubr.f32.gmra.mxu0 %v5826
        %v6782 = vpop.f32.mrf.mxu0
        %v6783 = vadd.f32 0.0, %v6782
        %v6784 = vpop.f32.mrf.mxu0
        %v6785 = vadd.f32 0.0, %v6784
        %6786 = vmatprep.mubr.f32.mxu0 %v5864
        %6787 = vmatmul.mubr.f32.gmra.mxu0 %v5828
        %v6788 = vpop.f32.mrf.mxu0
        %v6789 = vadd.f32 0.0, %v6788
        %v6790 = vpop.f32.mrf.mxu0
        %v6791 = vadd.f32 0.0, %v6790
        %6792 = vmatprep.mubr.f32.mxu0 %v5867
        %6793 = vmatmul.mubr.f32.gmra.mxu0 %v5830
        %v6794 = vpop.f32.mrf.mxu0
        %v6795 = vadd.f32 0.0, %v6794
        %v6796 = vpop.f32.mrf.mxu0
        %v6797 = vadd.f32 0.0, %v6796
        %6798 = vmatprep.mubr.f32.mxu0 %v5870
        %6799 = vmatmul.mubr.f32.gmra.mxu0 %v5832
        %v6800 = vpop.f32.mrf.mxu0
        %v6801 = vadd.f32 0.0, %v6800
        %v6802 = vpop.f32.mrf.mxu0
        %v6803 = vadd.f32 0.0, %v6802
        %6804 = vmatprep.mubr.f32.mxu0 %v5873
        %6805 = vmatmul.mubr.f32.gmra.mxu0 %v5834
        %v6806 = vpop.f32.mrf.mxu0
        %v6807 = vadd.f32 0.0, %v6806
        %v6808 = vpop.f32.mrf.mxu0
        %v6809 = vadd.f32 0.0, %v6808
        %6810 = vmatprep.mubr.f32.mxu0 %v5876
        %6811 = vmatmul.mubr.f32.gmra.mxu0 %v5836
        %v6812 = vpop.f32.mrf.mxu0
        %v6813 = vadd.f32 0.0, %v6812
        %v6814 = vpop.f32.mrf.mxu0
        %v6815 = vadd.f32 0.0, %v6814
        %6816 = vmatprep.mubr.f32.mxu0 %v5879
        %6817 = vmatmul.mubr.f32.gmra.mxu0 %v5838
        %v6818 = vpop.f32.mrf.mxu0
        %v6819 = vadd.f32 0.0, %v6818
        %v6820 = vpop.f32.mrf.mxu0
        %v6821 = vadd.f32 0.0, %v6820
        %6822 = vmatprep.mubr.f32.mxu0 %v5882
        %6823 = vmatmul.mubr.f32.gmra.mxu0 %v5840
        %v6824 = vpop.f32.mrf.mxu0
        %v6825 = vadd.f32 0.0, %v6824
        %v6826 = vpop.f32.mrf.mxu0
        %v6827 = vadd.f32 0.0, %v6826
        %6828 = vmatprep.mubr.f32.mxu0 %v5885
        %6829 = vmatmul.mubr.f32.gmra.mxu0 %v5842
        %v6830 = vpop.f32.mrf.mxu0
        %v6831 = vadd.f32 0.0, %v6830
        %v6832 = vpop.f32.mrf.mxu0
        %v6833 = vadd.f32 0.0, %v6832
        %6834 = vmatprep.mubr.f32.mxu0 %v5888
        %6835 = vmatmul.mubr.f32.gmra.mxu0 %v5844
        %v6836 = vpop.f32.mrf.mxu0
        %v6837 = vadd.f32 0.0, %v6836
        %v6838 = vpop.f32.mrf.mxu0
        %v6839 = vadd.f32 0.0, %v6838
        %6840 = vmatprep.mubr.f32.mxu0 %v5891
        %6841 = vmatmul.mubr.f32.gmra.mxu0 %v5846
        %v6842 = vpop.f32.mrf.mxu0
        %v6843 = vadd.f32 0.0, %v6842
        %v6844 = vpop.f32.mrf.mxu0
        %v6845 = vadd.f32 0.0, %v6844
        %6846 = vmatprep.mubr.f32.mxu0 %v5894
        %6847 = vmatmul.mubr.f32.gmra.mxu0 %v5848
        %v6848 = vpop.f32.mrf.mxu0
        %v6849 = vadd.f32 0.0, %v6848
        %v6850 = vpop.f32.mrf.mxu0
        %v6851 = vadd.f32 0.0, %v6850
        %6852 = vmatprep.mubr.f32.mxu0 %v5897
        %6853 = vmatmul.mubr.f32.gmra.mxu0 %v5850
        %v6854 = vpop.f32.mrf.mxu0
        %v6855 = vadd.f32 0.0, %v6854
        %v6856 = vpop.f32.mrf.mxu0
        %v6857 = vadd.f32 0.0, %v6856
        %6858 = vmatprep.mubr.f32.mxu0 %v5900
        %6859 = vmatmul.mubr.f32.gmra.mxu0 %v5852
        %v6860 = vpop.f32.mrf.mxu0
        %v6861 = vadd.f32 0.0, %v6860
        %v6862 = vpop.f32.mrf.mxu0
        %v6863 = vadd.f32 0.0, %v6862
        %6864 = vmatprep.mubr.f32.mxu0 %v5903
        %6865 = vmatmul.mubr.f32.gmra.mxu0 %v5854
        %v6866 = vpop.f32.mrf.mxu0
        %v6867 = vadd.f32 0.0, %v6866
        %v6868 = vpop.f32.mrf.mxu0
        %v6869 = vadd.f32 0.0, %v6868
        %6870 = vdwg.mxu0
        %6871 = vmatprep.subr.mxu0 %v4797
        %6872 = vmatpush1.msra.mxu0 %v4796
        %6873 = vmatprep.subr.mxu0 %v4781
        %6874 = vmatpush1.msra.mxu0 %v4780
        %6875 = vmatprep.subr.mxu0 %v4765
        %6876 = vmatpush1.msra.mxu0 %v4764
        %6877 = vmatprep.subr.mxu0 %v4749
        %6878 = vmatpush1.msra.mxu0 %v4748
        %6879 = vmatprep.subr.mxu0 %v4733
        %6880 = vmatpush1.msra.mxu0 %v4732
        %6881 = vmatprep.subr.mxu0 %v4717
        %6882 = vmatpush1.msra.mxu0 %v4716
        %6883 = vmatprep.subr.mxu0 %v4701
        %6884 = vmatpush1.msra.mxu0 %v4700
        %6885 = vmatprep.subr.mxu0 %v4685
        %6886 = vmatpush1.msra.mxu0 %v4684
        %6887 = vmatprep.subr.mxu0 %v5309
        %6888 = vmatpush1.msra.mxu0 %v5308
        %6889 = vmatprep.subr.mxu0 %v5293
        %6890 = vmatpush1.msra.mxu0 %v5292
        %6891 = vmatprep.subr.mxu0 %v5277
        %6892 = vmatpush1.msra.mxu0 %v5276
        %6893 = vmatprep.subr.mxu0 %v5261
        %6894 = vmatpush1.msra.mxu0 %v5260
        %6895 = vmatprep.subr.mxu0 %v5245
        %6896 = vmatpush1.msra.mxu0 %v5244
        %6897 = vmatprep.subr.mxu0 %v5229
        %6898 = vmatpush1.msra.mxu0 %v5228
        %6899 = vmatprep.subr.mxu0 %v5213
        %6900 = vmatpush1.msra.mxu0 %v5212
        %6901 = vmatprep.subr.mxu0 %v5197
        %6902 = vmatpush1.msra.mxu0 %v5196
        %6903 = vmatprep.subr.mxu0 0.0
        %6904 = vmatpush2.msra.mxu0 0.0
        %6905 = vmatprep.subr.mxu0 0.0
        %6906 = vmatpush2.msra.mxu0 0.0
        %6907 = vmatprep.subr.mxu0 0.0
        %6908 = vmatpush2.msra.mxu0 0.0
        %6909 = vmatprep.subr.mxu0 0.0
        %6910 = vmatpush2.msra.mxu0 0.0
        %6911 = vmatprep.subr.mxu0 0.0
        %6912 = vmatpush2.msra.mxu0 0.0
        %6913 = vmatprep.subr.mxu0 0.0
        %6914 = vmatpush2.msra.mxu0 0.0
        %6915 = vmatprep.subr.mxu0 0.0
        %6916 = vmatpush2.msra.mxu0 0.0
        %6917 = vmatprep.subr.mxu0 %v3766
        %6918 = vmatpush2.msra.mxu0 %v3766
        %6919 = vmatprep.subr.mxu0 %v5821
        %6920 = vmatpush2.msra.mxu0 %v5820
        %6921 = vmatprep.subr.mxu0 %v5805
        %6922 = vmatpush2.msra.mxu0 %v5804
        %6923 = vmatprep.subr.mxu0 %v5789
        %6924 = vmatpush2.msra.mxu0 %v5788
        %6925 = vmatprep.subr.mxu0 %v5773
        %6926 = vmatpush2.msra.mxu0 %v5772
        %6927 = vmatprep.subr.mxu0 %v5757
        %6928 = vmatpush2.msra.mxu0 %v5756
        %6929 = vmatprep.subr.mxu0 %v5741
        %6930 = vmatpush2.msra.mxu0 %v5740
        %6931 = vmatprep.subr.mxu0 %v5725
        %6932 = vmatpush2.msra.mxu0 %v5724
        %6933 = vmatprep.subr.mxu0 %v5709
        %6934 = vmatpush2.msra.mxu0 %v5708
        %6935 = vmatprep.mubr.f32.mxu0 %v5858
        %6936 = vmatmul.mubr.f32.gmra.mxu0 %v5824
        %v6937 = vpop.f32.mrf.mxu0
        %v6938 = vadd.f32 0.0, %v6937
        %v6939 = vpop.f32.mrf.mxu0
        %v6940 = vadd.f32 0.0, %v6939
        %6941 = vmatprep.mubr.f32.mxu0 %v5861
        %6942 = vmatmul.mubr.f32.gmra.mxu0 %v5826
        %v6943 = vpop.f32.mrf.mxu0
        %v6944 = vadd.f32 0.0, %v6943
        %v6945 = vpop.f32.mrf.mxu0
        %v6946 = vadd.f32 0.0, %v6945
        %6947 = vmatprep.mubr.f32.mxu0 %v5864
        %6948 = vmatmul.mubr.f32.gmra.mxu0 %v5828
        %v6949 = vpop.f32.mrf.mxu0
        %v6950 = vadd.f32 0.0, %v6949
        %v6951 = vpop.f32.mrf.mxu0
        %v6952 = vadd.f32 0.0, %v6951
        %6953 = vmatprep.mubr.f32.mxu0 %v5867
        %6954 = vmatmul.mubr.f32.gmra.mxu0 %v5830
        %v6955 = vpop.f32.mrf.mxu0
        %v6956 = vadd.f32 0.0, %v6955
        %v6957 = vpop.f32.mrf.mxu0
        %v6958 = vadd.f32 0.0, %v6957
        %6959 = vmatprep.mubr.f32.mxu0 %v5870
        %6960 = vmatmul.mubr.f32.gmra.mxu0 %v5832
        %v6961 = vpop.f32.mrf.mxu0
        %v6962 = vadd.f32 0.0, %v6961
        %v6963 = vpop.f32.mrf.mxu0
        %v6964 = vadd.f32 0.0, %v6963
        %6965 = vmatprep.mubr.f32.mxu0 %v5873
        %6966 = vmatmul.mubr.f32.gmra.mxu0 %v5834
        %v6967 = vpop.f32.mrf.mxu0
        %v6968 = vadd.f32 0.0, %v6967
        %v6969 = vpop.f32.mrf.mxu0
        %v6970 = vadd.f32 0.0, %v6969
        %6971 = vmatprep.mubr.f32.mxu0 %v5876
        %6972 = vmatmul.mubr.f32.gmra.mxu0 %v5836
        %v6973 = vpop.f32.mrf.mxu0
        %v6974 = vadd.f32 0.0, %v6973
        %v6975 = vpop.f32.mrf.mxu0
        %v6976 = vadd.f32 0.0, %v6975
        %6977 = vmatprep.mubr.f32.mxu0 %v5879
        %6978 = vmatmul.mubr.f32.gmra.mxu0 %v5838
        %v6979 = vpop.f32.mrf.mxu0
        %v6980 = vadd.f32 0.0, %v6979
        %v6981 = vpop.f32.mrf.mxu0
        %v6982 = vadd.f32 0.0, %v6981
        %6983 = vmatprep.mubr.f32.mxu0 %v5882
        %6984 = vmatmul.mubr.f32.gmra.mxu0 %v5840
        %v6985 = vpop.f32.mrf.mxu0
        %v6986 = vadd.f32 0.0, %v6985
        %v6987 = vpop.f32.mrf.mxu0
        %v6988 = vadd.f32 0.0, %v6987
        %6989 = vmatprep.mubr.f32.mxu0 %v5885
        %6990 = vmatmul.mubr.f32.gmra.mxu0 %v5842
        %v6991 = vpop.f32.mrf.mxu0
        %v6992 = vadd.f32 0.0, %v6991
        %v6993 = vpop.f32.mrf.mxu0
        %v6994 = vadd.f32 0.0, %v6993
        %6995 = vmatprep.mubr.f32.mxu0 %v5888
        %6996 = vmatmul.mubr.f32.gmra.mxu0 %v5844
        %v6997 = vpop.f32.mrf.mxu0
        %v6998 = vadd.f32 0.0, %v6997
        %v6999 = vpop.f32.mrf.mxu0
        %v7000 = vadd.f32 0.0, %v6999
        %7001 = vmatprep.mubr.f32.mxu0 %v5891
        %7002 = vmatmul.mubr.f32.gmra.mxu0 %v5846
        %v7003 = vpop.f32.mrf.mxu0
        %v7004 = vadd.f32 0.0, %v7003
        %v7005 = vpop.f32.mrf.mxu0
        %v7006 = vadd.f32 0.0, %v7005
        %7007 = vmatprep.mubr.f32.mxu0 %v5894
        %7008 = vmatmul.mubr.f32.gmra.mxu0 %v5848
        %v7009 = vpop.f32.mrf.mxu0
        %v7010 = vadd.f32 0.0, %v7009
        %v7011 = vpop.f32.mrf.mxu0
        %v7012 = vadd.f32 0.0, %v7011
        %7013 = vmatprep.mubr.f32.mxu0 %v5897
        %7014 = vmatmul.mubr.f32.gmra.mxu0 %v5850
        %v7015 = vpop.f32.mrf.mxu0
        %v7016 = vadd.f32 0.0, %v7015
        %v7017 = vpop.f32.mrf.mxu0
        %v7018 = vadd.f32 0.0, %v7017
        %7019 = vmatprep.mubr.f32.mxu0 %v5900
        %7020 = vmatmul.mubr.f32.gmra.mxu0 %v5852
        %v7021 = vpop.f32.mrf.mxu0
        %v7022 = vadd.f32 0.0, %v7021
        %v7023 = vpop.f32.mrf.mxu0
        %v7024 = vadd.f32 0.0, %v7023
        %7025 = vmatprep.mubr.f32.mxu0 %v5903
        %7026 = vmatmul.mubr.f32.gmra.mxu0 %v5854
        %v7027 = vpop.f32.mrf.mxu0
        %v7028 = vadd.f32 0.0, %v7027
        %v7029 = vpop.f32.mrf.mxu0
        %v7030 = vadd.f32 0.0, %v7029
        %7031 = vdwg.mxu0
        %7032 = vmatprep.subr.mxu0 %v4799
        %7033 = vmatpush1.msra.mxu0 %v4798
        %7034 = vmatprep.subr.mxu0 %v4783
        %7035 = vmatpush1.msra.mxu0 %v4782
        %7036 = vmatprep.subr.mxu0 %v4767
        %7037 = vmatpush1.msra.mxu0 %v4766
        %7038 = vmatprep.subr.mxu0 %v4751
        %7039 = vmatpush1.msra.mxu0 %v4750
        %7040 = vmatprep.subr.mxu0 %v4735
        %7041 = vmatpush1.msra.mxu0 %v4734
        %7042 = vmatprep.subr.mxu0 %v4719
        %7043 = vmatpush1.msra.mxu0 %v4718
        %7044 = vmatprep.subr.mxu0 %v4703
        %7045 = vmatpush1.msra.mxu0 %v4702
        %7046 = vmatprep.subr.mxu0 %v4687
        %7047 = vmatpush1.msra.mxu0 %v4686
        %7048 = vmatprep.subr.mxu0 %v5311
        %7049 = vmatpush1.msra.mxu0 %v5310
        %7050 = vmatprep.subr.mxu0 %v5295
        %7051 = vmatpush1.msra.mxu0 %v5294
        %7052 = vmatprep.subr.mxu0 %v5279
        %7053 = vmatpush1.msra.mxu0 %v5278
        %7054 = vmatprep.subr.mxu0 %v5263
        %7055 = vmatpush1.msra.mxu0 %v5262
        %7056 = vmatprep.subr.mxu0 %v5247
        %7057 = vmatpush1.msra.mxu0 %v5246
        %7058 = vmatprep.subr.mxu0 %v5231
        %7059 = vmatpush1.msra.mxu0 %v5230
        %7060 = vmatprep.subr.mxu0 %v5215
        %7061 = vmatpush1.msra.mxu0 %v5214
        %7062 = vmatprep.subr.mxu0 %v5199
        %7063 = vmatpush1.msra.mxu0 %v5198
        %7064 = vmatprep.subr.mxu0 0.0
        %7065 = vmatpush2.msra.mxu0 0.0
        %7066 = vmatprep.subr.mxu0 0.0
        %7067 = vmatpush2.msra.mxu0 0.0
        %7068 = vmatprep.subr.mxu0 0.0
        %7069 = vmatpush2.msra.mxu0 0.0
        %7070 = vmatprep.subr.mxu0 0.0
        %7071 = vmatpush2.msra.mxu0 0.0
        %7072 = vmatprep.subr.mxu0 0.0
        %7073 = vmatpush2.msra.mxu0 0.0
        %7074 = vmatprep.subr.mxu0 0.0
        %7075 = vmatpush2.msra.mxu0 0.0
        %7076 = vmatprep.subr.mxu0 0.0
        %7077 = vmatpush2.msra.mxu0 0.0
        %7078 = vmatprep.subr.mxu0 %v3766
        %7079 = vmatpush2.msra.mxu0 %v3766
        %7080 = vmatprep.subr.mxu0 %v5823
        %7081 = vmatpush2.msra.mxu0 %v5822
        %7082 = vmatprep.subr.mxu0 %v5807
        %7083 = vmatpush2.msra.mxu0 %v5806
        %7084 = vmatprep.subr.mxu0 %v5791
        %7085 = vmatpush2.msra.mxu0 %v5790
        %7086 = vmatprep.subr.mxu0 %v5775
        %7087 = vmatpush2.msra.mxu0 %v5774
        %7088 = vmatprep.subr.mxu0 %v5759
        %7089 = vmatpush2.msra.mxu0 %v5758
        %7090 = vmatprep.subr.mxu0 %v5743
        %7091 = vmatpush2.msra.mxu0 %v5742
        %7092 = vmatprep.subr.mxu0 %v5727
        %7093 = vmatpush2.msra.mxu0 %v5726
        %7094 = vmatprep.subr.mxu0 %v5711
        %7095 = vmatpush2.msra.mxu0 %v5710
        %7096 = vmatprep.mubr.f32.mxu0 %v5858
        %7097 = vmatmul.mubr.f32.gmra.mxu0 %v5824
        %v7098 = vpop.f32.mrf.mxu0
        %v7099 = vadd.f32 0.0, %v7098
        %v7100 = vpop.f32.mrf.mxu0
        %v7101 = vadd.f32 0.0, %v7100
        %7102 = vmatprep.mubr.f32.mxu0 %v5861
        %7103 = vmatmul.mubr.f32.gmra.mxu0 %v5826
        %v7104 = vpop.f32.mrf.mxu0
        %v7105 = vadd.f32 0.0, %v7104
        %v7106 = vpop.f32.mrf.mxu0
        %v7107 = vadd.f32 0.0, %v7106
        %7108 = vmatprep.mubr.f32.mxu0 %v5864
        %7109 = vmatmul.mubr.f32.gmra.mxu0 %v5828
        %v7110 = vpop.f32.mrf.mxu0
        %v7111 = vadd.f32 0.0, %v7110
        %v7112 = vpop.f32.mrf.mxu0
        %v7113 = vadd.f32 0.0, %v7112
        %7114 = vmatprep.mubr.f32.mxu0 %v5867
        %7115 = vmatmul.mubr.f32.gmra.mxu0 %v5830
        %v7116 = vpop.f32.mrf.mxu0
        %v7117 = vadd.f32 0.0, %v7116
        %v7118 = vpop.f32.mrf.mxu0
        %v7119 = vadd.f32 0.0, %v7118
        %7120 = vmatprep.mubr.f32.mxu0 %v5870
        %7121 = vmatmul.mubr.f32.gmra.mxu0 %v5832
        %v7122 = vpop.f32.mrf.mxu0
        %v7123 = vadd.f32 0.0, %v7122
        %v7124 = vpop.f32.mrf.mxu0
        %v7125 = vadd.f32 0.0, %v7124
        %7126 = vmatprep.mubr.f32.mxu0 %v5873
        %7127 = vmatmul.mubr.f32.gmra.mxu0 %v5834
        %v7128 = vpop.f32.mrf.mxu0
        %v7129 = vadd.f32 0.0, %v7128
        %v7130 = vpop.f32.mrf.mxu0
        %v7131 = vadd.f32 0.0, %v7130
        %7132 = vmatprep.mubr.f32.mxu0 %v5876
        %7133 = vmatmul.mubr.f32.gmra.mxu0 %v5836
        %v7134 = vpop.f32.mrf.mxu0
        %v7135 = vadd.f32 0.0, %v7134
        %v7136 = vpop.f32.mrf.mxu0
        %v7137 = vadd.f32 0.0, %v7136
        %7138 = vmatprep.mubr.f32.mxu0 %v5879
        %7139 = vmatmul.mubr.f32.gmra.mxu0 %v5838
        %v7140 = vpop.f32.mrf.mxu0
        %v7141 = vadd.f32 0.0, %v7140
        %v7142 = vpop.f32.mrf.mxu0
        %v7143 = vadd.f32 0.0, %v7142
        %7144 = vmatprep.mubr.f32.mxu0 %v5882
        %7145 = vmatmul.mubr.f32.gmra.mxu0 %v5840
        %v7146 = vpop.f32.mrf.mxu0
        %v7147 = vadd.f32 0.0, %v7146
        %v7148 = vpop.f32.mrf.mxu0
        %v7149 = vadd.f32 0.0, %v7148
        %7150 = vmatprep.mubr.f32.mxu0 %v5885
        %7151 = vmatmul.mubr.f32.gmra.mxu0 %v5842
        %v7152 = vpop.f32.mrf.mxu0
        %v7153 = vadd.f32 0.0, %v7152
        %v7154 = vpop.f32.mrf.mxu0
        %v7155 = vadd.f32 0.0, %v7154
        %7156 = vmatprep.mubr.f32.mxu0 %v5888
        %7157 = vmatmul.mubr.f32.gmra.mxu0 %v5844
        %v7158 = vpop.f32.mrf.mxu0
        %v7159 = vadd.f32 0.0, %v7158
        %v7160 = vpop.f32.mrf.mxu0
        %v7161 = vadd.f32 0.0, %v7160
        %7162 = vmatprep.mubr.f32.mxu0 %v5891
        %7163 = vmatmul.mubr.f32.gmra.mxu0 %v5846
        %v7164 = vpop.f32.mrf.mxu0
        %v7165 = vadd.f32 0.0, %v7164
        %v7166 = vpop.f32.mrf.mxu0
        %v7167 = vadd.f32 0.0, %v7166
        %7168 = vmatprep.mubr.f32.mxu0 %v5894
        %7169 = vmatmul.mubr.f32.gmra.mxu0 %v5848
        %v7170 = vpop.f32.mrf.mxu0
        %v7171 = vadd.f32 0.0, %v7170
        %v7172 = vpop.f32.mrf.mxu0
        %v7173 = vadd.f32 0.0, %v7172
        %7174 = vmatprep.mubr.f32.mxu0 %v5897
        %7175 = vmatmul.mubr.f32.gmra.mxu0 %v5850
        %v7176 = vpop.f32.mrf.mxu0
        %v7177 = vadd.f32 0.0, %v7176
        %v7178 = vpop.f32.mrf.mxu0
        %v7179 = vadd.f32 0.0, %v7178
        %7180 = vmatprep.mubr.f32.mxu0 %v5900
        %7181 = vmatmul.mubr.f32.gmra.mxu0 %v5852
        %v7182 = vpop.f32.mrf.mxu0
        %v7183 = vadd.f32 0.0, %v7182
        %v7184 = vpop.f32.mrf.mxu0
        %v7185 = vadd.f32 0.0, %v7184
        %7186 = vmatprep.mubr.f32.mxu0 %v5903
        %7187 = vmatmul.mubr.f32.gmra.mxu0 %v5854
        %v7188 = vpop.f32.mrf.mxu0
        %v7189 = vadd.f32 0.0, %v7188
        %v7190 = vpop.f32.mrf.mxu0
        %v7191 = vadd.f32 0.0, %v7190
        %7192 = vdwg.mxu0
        %v7193 = vmax.f32 %v5972, 0.0
        %v7194 = vmax.f32 %v5974, 0.0
        %v7195 = vmax.f32 %v6133, 0.0
        %v7196 = vmax.f32 %v6135, 0.0
        %v7197 = vmax.f32 %v6294, 0.0
        %v7198 = vmax.f32 %v6296, 0.0
        %v7199 = vmax.f32 %v6455, 0.0
        %v7200 = vmax.f32 %v6457, 0.0
        %v7201 = vmax.f32 %v6616, 0.0
        %v7202 = vmax.f32 %v6618, 0.0
        %v7203 = vmax.f32 %v6777, 0.0
        %v7204 = vmax.f32 %v6779, 0.0
        %v7205 = vmax.f32 %v6938, 0.0
        %v7206 = vmax.f32 %v6940, 0.0
        %v7207 = vmax.f32 %v7099, 0.0
        %v7208 = vmax.f32 %v7101, 0.0
        %v7209 = vmax.f32 %v5978, 0.0
        %v7210 = vmax.f32 %v5980, 0.0
        %v7211 = vmax.f32 %v6139, 0.0
        %v7212 = vmax.f32 %v6141, 0.0
        %v7213 = vmax.f32 %v6300, 0.0
        %v7214 = vmax.f32 %v6302, 0.0
        %v7215 = vmax.f32 %v6461, 0.0
        %v7216 = vmax.f32 %v6463, 0.0
        %v7217 = vmax.f32 %v6622, 0.0
        %v7218 = vmax.f32 %v6624, 0.0
        %v7219 = vmax.f32 %v6783, 0.0
        %v7220 = vmax.f32 %v6785, 0.0
        %v7221 = vmax.f32 %v6944, 0.0
        %v7222 = vmax.f32 %v6946, 0.0
        %v7223 = vmax.f32 %v7105, 0.0
        %v7224 = vmax.f32 %v7107, 0.0
        %v7225 = vmax.f32 %v5984, 0.0
        %v7226 = vmax.f32 %v5986, 0.0
        %v7227 = vmax.f32 %v6145, 0.0
        %v7228 = vmax.f32 %v6147, 0.0
        %v7229 = vmax.f32 %v6306, 0.0
        %v7230 = vmax.f32 %v6308, 0.0
        %v7231 = vmax.f32 %v6467, 0.0
        %v7232 = vmax.f32 %v6469, 0.0
        %v7233 = vmax.f32 %v6628, 0.0
        %v7234 = vmax.f32 %v6630, 0.0
        %v7235 = vmax.f32 %v6789, 0.0
        %v7236 = vmax.f32 %v6791, 0.0
        %v7237 = vmax.f32 %v6950, 0.0
        %v7238 = vmax.f32 %v6952, 0.0
        %v7239 = vmax.f32 %v7111, 0.0
        %v7240 = vmax.f32 %v7113, 0.0
        %v7241 = vmax.f32 %v5990, 0.0
        %v7242 = vmax.f32 %v5992, 0.0
        %v7243 = vmax.f32 %v6151, 0.0
        %v7244 = vmax.f32 %v6153, 0.0
        %v7245 = vmax.f32 %v6312, 0.0
        %v7246 = vmax.f32 %v6314, 0.0
        %v7247 = vmax.f32 %v6473, 0.0
        %v7248 = vmax.f32 %v6475, 0.0
        %v7249 = vmax.f32 %v6634, 0.0
        %v7250 = vmax.f32 %v6636, 0.0
        %v7251 = vmax.f32 %v6795, 0.0
        %v7252 = vmax.f32 %v6797, 0.0
        %v7253 = vmax.f32 %v6956, 0.0
        %v7254 = vmax.f32 %v6958, 0.0
        %v7255 = vmax.f32 %v7117, 0.0
        %v7256 = vmax.f32 %v7119, 0.0
        %v7257 = vmax.f32 %v5996, 0.0
        %v7258 = vmax.f32 %v5998, 0.0
        %v7259 = vmax.f32 %v6157, 0.0
        %v7260 = vmax.f32 %v6159, 0.0
        %v7261 = vmax.f32 %v6318, 0.0
        %v7262 = vmax.f32 %v6320, 0.0
        %v7263 = vmax.f32 %v6479, 0.0
        %v7264 = vmax.f32 %v6481, 0.0
        %v7265 = vmax.f32 %v6640, 0.0
        %v7266 = vmax.f32 %v6642, 0.0
        %v7267 = vmax.f32 %v6801, 0.0
        %v7268 = vmax.f32 %v6803, 0.0
        %v7269 = vmax.f32 %v6962, 0.0
        %v7270 = vmax.f32 %v6964, 0.0
        %v7271 = vmax.f32 %v7123, 0.0
        %v7272 = vmax.f32 %v7125, 0.0
        %v7273 = vmax.f32 %v6002, 0.0
        %v7274 = vmax.f32 %v6004, 0.0
        %v7275 = vmax.f32 %v6163, 0.0
        %v7276 = vmax.f32 %v6165, 0.0
        %v7277 = vmax.f32 %v6324, 0.0
        %v7278 = vmax.f32 %v6326, 0.0
        %v7279 = vmax.f32 %v6485, 0.0
        %v7280 = vmax.f32 %v6487, 0.0
        %v7281 = vmax.f32 %v6646, 0.0
        %v7282 = vmax.f32 %v6648, 0.0
        %v7283 = vmax.f32 %v6807, 0.0
        %v7284 = vmax.f32 %v6809, 0.0
        %v7285 = vmax.f32 %v6968, 0.0
        %v7286 = vmax.f32 %v6970, 0.0
        %v7287 = vmax.f32 %v7129, 0.0
        %v7288 = vmax.f32 %v7131, 0.0
        %v7289 = vmax.f32 %v6008, 0.0
        %v7290 = vmax.f32 %v6010, 0.0
        %v7291 = vmax.f32 %v6169, 0.0
        %v7292 = vmax.f32 %v6171, 0.0
        %v7293 = vmax.f32 %v6330, 0.0
        %v7294 = vmax.f32 %v6332, 0.0
        %v7295 = vmax.f32 %v6491, 0.0
        %v7296 = vmax.f32 %v6493, 0.0
        %v7297 = vmax.f32 %v6652, 0.0
        %v7298 = vmax.f32 %v6654, 0.0
        %v7299 = vmax.f32 %v6813, 0.0
        %v7300 = vmax.f32 %v6815, 0.0
        %v7301 = vmax.f32 %v6974, 0.0
        %v7302 = vmax.f32 %v6976, 0.0
        %v7303 = vmax.f32 %v7135, 0.0
        %v7304 = vmax.f32 %v7137, 0.0
        %v7305 = vmax.f32 %v6014, 0.0
        %v7306 = vmax.f32 %v6016, 0.0
        %v7307 = vmax.f32 %v6175, 0.0
        %v7308 = vmax.f32 %v6177, 0.0
        %v7309 = vmax.f32 %v6336, 0.0
        %v7310 = vmax.f32 %v6338, 0.0
        %v7311 = vmax.f32 %v6497, 0.0
        %v7312 = vmax.f32 %v6499, 0.0
        %v7313 = vmax.f32 %v6658, 0.0
        %v7314 = vmax.f32 %v6660, 0.0
        %v7315 = vmax.f32 %v6819, 0.0
        %v7316 = vmax.f32 %v6821, 0.0
        %v7317 = vmax.f32 %v6980, 0.0
        %v7318 = vmax.f32 %v6982, 0.0
        %v7319 = vmax.f32 %v7141, 0.0
        %v7320 = vmax.f32 %v7143, 0.0
        %v7321 = vmax.f32 %v6020, 0.0
        %v7322 = vmax.f32 %v6022, 0.0
        %v7323 = vmax.f32 %v6181, 0.0
        %v7324 = vmax.f32 %v6183, 0.0
        %v7325 = vmax.f32 %v6342, 0.0
        %v7326 = vmax.f32 %v6344, 0.0
        %v7327 = vmax.f32 %v6503, 0.0
        %v7328 = vmax.f32 %v6505, 0.0
        %v7329 = vmax.f32 %v6664, 0.0
        %v7330 = vmax.f32 %v6666, 0.0
        %v7331 = vmax.f32 %v6825, 0.0
        %v7332 = vmax.f32 %v6827, 0.0
        %v7333 = vmax.f32 %v6986, 0.0
        %v7334 = vmax.f32 %v6988, 0.0
        %v7335 = vmax.f32 %v7147, 0.0
        %v7336 = vmax.f32 %v7149, 0.0
        %v7337 = vmax.f32 %v6026, 0.0
        %v7338 = vmax.f32 %v6028, 0.0
        %v7339 = vmax.f32 %v6187, 0.0
        %v7340 = vmax.f32 %v6189, 0.0
        %v7341 = vmax.f32 %v6348, 0.0
        %v7342 = vmax.f32 %v6350, 0.0
        %v7343 = vmax.f32 %v6509, 0.0
        %v7344 = vmax.f32 %v6511, 0.0
        %v7345 = vmax.f32 %v6670, 0.0
        %v7346 = vmax.f32 %v6672, 0.0
        %v7347 = vmax.f32 %v6831, 0.0
        %v7348 = vmax.f32 %v6833, 0.0
        %v7349 = vmax.f32 %v6992, 0.0
        %v7350 = vmax.f32 %v6994, 0.0
        %v7351 = vmax.f32 %v7153, 0.0
        %v7352 = vmax.f32 %v7155, 0.0
        %v7353 = vmax.f32 %v6032, 0.0
        %v7354 = vmax.f32 %v6034, 0.0
        %v7355 = vmax.f32 %v6193, 0.0
        %v7356 = vmax.f32 %v6195, 0.0
        %v7357 = vmax.f32 %v6354, 0.0
        %v7358 = vmax.f32 %v6356, 0.0
        %v7359 = vmax.f32 %v6515, 0.0
        %v7360 = vmax.f32 %v6517, 0.0
        %v7361 = vmax.f32 %v6676, 0.0
        %v7362 = vmax.f32 %v6678, 0.0
        %v7363 = vmax.f32 %v6837, 0.0
        %v7364 = vmax.f32 %v6839, 0.0
        %v7365 = vmax.f32 %v6998, 0.0
        %v7366 = vmax.f32 %v7000, 0.0
        %v7367 = vmax.f32 %v7159, 0.0
        %v7368 = vmax.f32 %v7161, 0.0
        %v7369 = vmax.f32 %v6038, 0.0
        %v7370 = vmax.f32 %v6040, 0.0
        %v7371 = vmax.f32 %v6199, 0.0
        %v7372 = vmax.f32 %v6201, 0.0
        %v7373 = vmax.f32 %v6360, 0.0
        %v7374 = vmax.f32 %v6362, 0.0
        %v7375 = vmax.f32 %v6521, 0.0
        %v7376 = vmax.f32 %v6523, 0.0
        %v7377 = vmax.f32 %v6682, 0.0
        %v7378 = vmax.f32 %v6684, 0.0
        %v7379 = vmax.f32 %v6843, 0.0
        %v7380 = vmax.f32 %v6845, 0.0
        %v7381 = vmax.f32 %v7004, 0.0
        %v7382 = vmax.f32 %v7006, 0.0
        %v7383 = vmax.f32 %v7165, 0.0
        %v7384 = vmax.f32 %v7167, 0.0
        %v7385 = vmax.f32 %v6044, 0.0
        %v7386 = vmax.f32 %v6046, 0.0
        %v7387 = vmax.f32 %v6205, 0.0
        %v7388 = vmax.f32 %v6207, 0.0
        %v7389 = vmax.f32 %v6366, 0.0
        %v7390 = vmax.f32 %v6368, 0.0
        %v7391 = vmax.f32 %v6527, 0.0
        %v7392 = vmax.f32 %v6529, 0.0
        %v7393 = vmax.f32 %v6688, 0.0
        %v7394 = vmax.f32 %v6690, 0.0
        %v7395 = vmax.f32 %v6849, 0.0
        %v7396 = vmax.f32 %v6851, 0.0
        %v7397 = vmax.f32 %v7010, 0.0
        %v7398 = vmax.f32 %v7012, 0.0
        %v7399 = vmax.f32 %v7171, 0.0
        %v7400 = vmax.f32 %v7173, 0.0
        %v7401 = vmax.f32 %v6050, 0.0
        %v7402 = vmax.f32 %v6052, 0.0
        %v7403 = vmax.f32 %v6211, 0.0
        %v7404 = vmax.f32 %v6213, 0.0
        %v7405 = vmax.f32 %v6372, 0.0
        %v7406 = vmax.f32 %v6374, 0.0
        %v7407 = vmax.f32 %v6533, 0.0
        %v7408 = vmax.f32 %v6535, 0.0
        %v7409 = vmax.f32 %v6694, 0.0
        %v7410 = vmax.f32 %v6696, 0.0
        %v7411 = vmax.f32 %v6855, 0.0
        %v7412 = vmax.f32 %v6857, 0.0
        %v7413 = vmax.f32 %v7016, 0.0
        %v7414 = vmax.f32 %v7018, 0.0
        %v7415 = vmax.f32 %v7177, 0.0
        %v7416 = vmax.f32 %v7179, 0.0
        %v7417 = vmax.f32 %v6056, 0.0
        %v7418 = vmax.f32 %v6058, 0.0
        %v7419 = vmax.f32 %v6217, 0.0
        %v7420 = vmax.f32 %v6219, 0.0
        %v7421 = vmax.f32 %v6378, 0.0
        %v7422 = vmax.f32 %v6380, 0.0
        %v7423 = vmax.f32 %v6539, 0.0
        %v7424 = vmax.f32 %v6541, 0.0
        %v7425 = vmax.f32 %v6700, 0.0
        %v7426 = vmax.f32 %v6702, 0.0
        %v7427 = vmax.f32 %v6861, 0.0
        %v7428 = vmax.f32 %v6863, 0.0
        %v7429 = vmax.f32 %v7022, 0.0
        %v7430 = vmax.f32 %v7024, 0.0
        %v7431 = vmax.f32 %v7183, 0.0
        %v7432 = vmax.f32 %v7185, 0.0
        %v7433 = vmax.f32 %v6062, 0.0
        %v7434 = vmax.f32 %v6064, 0.0
        %v7435 = vmax.f32 %v6223, 0.0
        %v7436 = vmax.f32 %v6225, 0.0
        %v7437 = vmax.f32 %v6384, 0.0
        %v7438 = vmax.f32 %v6386, 0.0
        %v7439 = vmax.f32 %v6545, 0.0
        %v7440 = vmax.f32 %v6547, 0.0
        %v7441 = vmax.f32 %v6706, 0.0
        %v7442 = vmax.f32 %v6708, 0.0
        %v7443 = vmax.f32 %v6867, 0.0
        %v7444 = vmax.f32 %v6869, 0.0
        %v7445 = vmax.f32 %v7028, 0.0
        %v7446 = vmax.f32 %v7030, 0.0
        %v7447 = vmax.f32 %v7189, 0.0
        %v7448 = vmax.f32 %v7191, 0.0
        %v7449 = vld [vmem:[#allocation2] sm:$0xff]
        %v7450 = vld [vmem:[#allocation2 + $0x8] sm:$0xff]
        %v7451 = vld [vmem:[#allocation2 + $0x10] sm:$0xff]
        %v7452 = vld [vmem:[#allocation2 + $0x18] sm:$0xff]
        %v7453 = vld [vmem:[#allocation2 + $0x20] sm:$0xff]
        %v7454 = vld [vmem:[#allocation2 + $0x28] sm:$0xff]
        %v7455 = vld [vmem:[#allocation2 + $0x30] sm:$0xff]
        %v7456 = vld [vmem:[#allocation2 + $0x38] sm:$0xff]
        %v7457 = vld [vmem:[#allocation2 + $0x40] sm:$0xff]
        %v7458 = vld [vmem:[#allocation2 + $0x48] sm:$0xff]
        %v7459 = vld [vmem:[#allocation2 + $0x50] sm:$0xff]
        %v7460 = vld [vmem:[#allocation2 + $0x58] sm:$0xff]
        %v7461 = vld [vmem:[#allocation2 + $0x60] sm:$0xff]
        %v7462 = vld [vmem:[#allocation2 + $0x68] sm:$0xff]
        %v7463 = vld [vmem:[#allocation2 + $0x70] sm:$0xff]
        %v7464 = vld [vmem:[#allocation2 + $0x78] sm:$0xff]
        %v7465 = vld [vmem:[#allocation2 + $0x80] sm:$0xff]
        %v7466 = vld [vmem:[#allocation2 + $0x88] sm:$0xff]
        %v7467 = vld [vmem:[#allocation2 + $0x90] sm:$0xff]
        %v7468 = vld [vmem:[#allocation2 + $0x98] sm:$0xff]
        %v7469 = vld [vmem:[#allocation2 + $0xa0] sm:$0xff]
        %v7470 = vld [vmem:[#allocation2 + $0xa8] sm:$0xff]
        %v7471 = vld [vmem:[#allocation2 + $0xb0] sm:$0xff]
        %v7472 = vld [vmem:[#allocation2 + $0xb8] sm:$0xff]
        %v7473 = vld [vmem:[#allocation2 + $0xc0] sm:$0xff]
        %v7474 = vld [vmem:[#allocation2 + $0xc8] sm:$0xff]
        %v7475 = vld [vmem:[#allocation2 + $0xd0] sm:$0xff]
        %v7476 = vld [vmem:[#allocation2 + $0xd8] sm:$0xff]
        %v7477 = vld [vmem:[#allocation2 + $0xe0] sm:$0xff]
        %v7478 = vld [vmem:[#allocation2 + $0xe8] sm:$0xff]
        %v7479 = vld [vmem:[#allocation2 + $0xf0] sm:$0xff]
        %v7480 = vld [vmem:[#allocation2 + $0xf8] sm:$0xff]
        %v7481 = vld [vmem:[#allocation2 + $0x100] sm:$0xff]
        %v7482 = vld [vmem:[#allocation2 + $0x108] sm:$0xff]
        %v7483 = vld [vmem:[#allocation2 + $0x110] sm:$0xff]
        %v7484 = vld [vmem:[#allocation2 + $0x118] sm:$0xff]
        %v7485 = vld [vmem:[#allocation2 + $0x120] sm:$0xff]
        %v7486 = vld [vmem:[#allocation2 + $0x128] sm:$0xff]
        %v7487 = vld [vmem:[#allocation2 + $0x130] sm:$0xff]
        %v7488 = vld [vmem:[#allocation2 + $0x138] sm:$0xff]
        %v7489 = vld [vmem:[#allocation2 + $0x140] sm:$0xff]
        %v7490 = vld [vmem:[#allocation2 + $0x148] sm:$0xff]
        %v7491 = vld [vmem:[#allocation2 + $0x150] sm:$0xff]
        %v7492 = vld [vmem:[#allocation2 + $0x158] sm:$0xff]
        %v7493 = vld [vmem:[#allocation2 + $0x160] sm:$0xff]
        %v7494 = vld [vmem:[#allocation2 + $0x168] sm:$0xff]
        %v7495 = vld [vmem:[#allocation2 + $0x170] sm:$0xff]
        %v7496 = vld [vmem:[#allocation2 + $0x178] sm:$0xff]
        %v7497 = vld [vmem:[#allocation2 + $0x180] sm:$0xff]
        %v7498 = vld [vmem:[#allocation2 + $0x188] sm:$0xff]
        %v7499 = vld [vmem:[#allocation2 + $0x190] sm:$0xff]
        %v7500 = vld [vmem:[#allocation2 + $0x198] sm:$0xff]
        %v7501 = vld [vmem:[#allocation2 + $0x1a0] sm:$0xff]
        %v7502 = vld [vmem:[#allocation2 + $0x1a8] sm:$0xff]
        %v7503 = vld [vmem:[#allocation2 + $0x1b0] sm:$0xff]
        %v7504 = vld [vmem:[#allocation2 + $0x1b8] sm:$0xff]
        %v7505 = vld [vmem:[#allocation2 + $0x1c0] sm:$0xff]
        %v7506 = vld [vmem:[#allocation2 + $0x1c8] sm:$0xff]
        %v7507 = vld [vmem:[#allocation2 + $0x1d0] sm:$0xff]
        %v7508 = vld [vmem:[#allocation2 + $0x1d8] sm:$0xff]
        %v7509 = vld [vmem:[#allocation2 + $0x1e0] sm:$0xff]
        %v7510 = vld [vmem:[#allocation2 + $0x1e8] sm:$0xff]
        %v7511 = vld [vmem:[#allocation2 + $0x1f0] sm:$0xff]
        %v7512 = vld [vmem:[#allocation2 + $0x1f8] sm:$0xff]
        %v7513 = vld [vmem:[#allocation2 + $0x200] sm:$0xff]
        %v7514 = vld [vmem:[#allocation2 + $0x208] sm:$0xff]
        %v7515 = vld [vmem:[#allocation2 + $0x210] sm:$0xff]
        %v7516 = vld [vmem:[#allocation2 + $0x218] sm:$0xff]
        %v7517 = vld [vmem:[#allocation2 + $0x220] sm:$0xff]
        %v7518 = vld [vmem:[#allocation2 + $0x228] sm:$0xff]
        %v7519 = vld [vmem:[#allocation2 + $0x230] sm:$0xff]
        %v7520 = vld [vmem:[#allocation2 + $0x238] sm:$0xff]
        %v7521 = vld [vmem:[#allocation2 + $0x240] sm:$0xff]
        %v7522 = vld [vmem:[#allocation2 + $0x248] sm:$0xff]
        %v7523 = vld [vmem:[#allocation2 + $0x250] sm:$0xff]
        %v7524 = vld [vmem:[#allocation2 + $0x258] sm:$0xff]
        %v7525 = vld [vmem:[#allocation2 + $0x260] sm:$0xff]
        %v7526 = vld [vmem:[#allocation2 + $0x268] sm:$0xff]
        %v7527 = vld [vmem:[#allocation2 + $0x270] sm:$0xff]
        %v7528 = vld [vmem:[#allocation2 + $0x278] sm:$0xff]
        %v7529 = vld [vmem:[#allocation2 + $0x280] sm:$0xff]
        %v7530 = vld [vmem:[#allocation2 + $0x288] sm:$0xff]
        %v7531 = vld [vmem:[#allocation2 + $0x290] sm:$0xff]
        %v7532 = vld [vmem:[#allocation2 + $0x298] sm:$0xff]
        %v7533 = vld [vmem:[#allocation2 + $0x2a0] sm:$0xff]
        %v7534 = vld [vmem:[#allocation2 + $0x2a8] sm:$0xff]
        %v7535 = vld [vmem:[#allocation2 + $0x2b0] sm:$0xff]
        %v7536 = vld [vmem:[#allocation2 + $0x2b8] sm:$0xff]
        %v7537 = vld [vmem:[#allocation2 + $0x2c0] sm:$0xff]
        %v7538 = vld [vmem:[#allocation2 + $0x2c8] sm:$0xff]
        %v7539 = vld [vmem:[#allocation2 + $0x2d0] sm:$0xff]
        %v7540 = vld [vmem:[#allocation2 + $0x2d8] sm:$0xff]
        %v7541 = vld [vmem:[#allocation2 + $0x2e0] sm:$0xff]
        %v7542 = vld [vmem:[#allocation2 + $0x2e8] sm:$0xff]
        %v7543 = vld [vmem:[#allocation2 + $0x2f0] sm:$0xff]
        %v7544 = vld [vmem:[#allocation2 + $0x2f8] sm:$0xff]
        %v7545 = vld [vmem:[#allocation2 + $0x300] sm:$0xff]
        %v7546 = vld [vmem:[#allocation2 + $0x308] sm:$0xff]
        %v7547 = vld [vmem:[#allocation2 + $0x310] sm:$0xff]
        %v7548 = vld [vmem:[#allocation2 + $0x318] sm:$0xff]
        %v7549 = vld [vmem:[#allocation2 + $0x320] sm:$0xff]
        %v7550 = vld [vmem:[#allocation2 + $0x328] sm:$0xff]
        %v7551 = vld [vmem:[#allocation2 + $0x330] sm:$0xff]
        %v7552 = vld [vmem:[#allocation2 + $0x338] sm:$0xff]
        %v7553 = vld [vmem:[#allocation2 + $0x340] sm:$0xff]
        %v7554 = vld [vmem:[#allocation2 + $0x348] sm:$0xff]
        %v7555 = vld [vmem:[#allocation2 + $0x350] sm:$0xff]
        %v7556 = vld [vmem:[#allocation2 + $0x358] sm:$0xff]
        %v7557 = vld [vmem:[#allocation2 + $0x360] sm:$0xff]
        %v7558 = vld [vmem:[#allocation2 + $0x368] sm:$0xff]
        %v7559 = vld [vmem:[#allocation2 + $0x370] sm:$0xff]
        %v7560 = vld [vmem:[#allocation2 + $0x378] sm:$0xff]
        %v7561 = vld [vmem:[#allocation2 + $0x380] sm:$0xff]
        %v7562 = vld [vmem:[#allocation2 + $0x388] sm:$0xff]
        %v7563 = vld [vmem:[#allocation2 + $0x390] sm:$0xff]
        %v7564 = vld [vmem:[#allocation2 + $0x398] sm:$0xff]
        %v7565 = vld [vmem:[#allocation2 + $0x3a0] sm:$0xff]
        %v7566 = vld [vmem:[#allocation2 + $0x3a8] sm:$0xff]
        %v7567 = vld [vmem:[#allocation2 + $0x3b0] sm:$0xff]
        %v7568 = vld [vmem:[#allocation2 + $0x3b8] sm:$0xff]
        %v7569 = vld [vmem:[#allocation2 + $0x3c0] sm:$0xff]
        %v7570 = vld [vmem:[#allocation2 + $0x3c8] sm:$0xff]
        %v7571 = vld [vmem:[#allocation2 + $0x3d0] sm:$0xff]
        %v7572 = vld [vmem:[#allocation2 + $0x3d8] sm:$0xff]
        %v7573 = vld [vmem:[#allocation2 + $0x3e0] sm:$0xff]
        %v7574 = vld [vmem:[#allocation2 + $0x3e8] sm:$0xff]
        %v7575 = vld [vmem:[#allocation2 + $0x3f0] sm:$0xff]
        %v7576 = vld [vmem:[#allocation2 + $0x3f8] sm:$0xff]
        %v7577 = vld [vmem:[#allocation2 + $0x400] sm:$0xff]
        %v7578 = vld [vmem:[#allocation2 + $0x408] sm:$0xff]
        %v7579 = vld [vmem:[#allocation2 + $0x410] sm:$0xff]
        %v7580 = vld [vmem:[#allocation2 + $0x418] sm:$0xff]
        %v7581 = vld [vmem:[#allocation2 + $0x420] sm:$0xff]
        %v7582 = vld [vmem:[#allocation2 + $0x428] sm:$0xff]
        %v7583 = vld [vmem:[#allocation2 + $0x430] sm:$0xff]
        %v7584 = vld [vmem:[#allocation2 + $0x438] sm:$0xff]
        %v7585 = vld [vmem:[#allocation2 + $0x440] sm:$0xff]
        %v7586 = vld [vmem:[#allocation2 + $0x448] sm:$0xff]
        %v7587 = vld [vmem:[#allocation2 + $0x450] sm:$0xff]
        %v7588 = vld [vmem:[#allocation2 + $0x458] sm:$0xff]
        %v7589 = vld [vmem:[#allocation2 + $0x460] sm:$0xff]
        %v7590 = vld [vmem:[#allocation2 + $0x468] sm:$0xff]
        %v7591 = vld [vmem:[#allocation2 + $0x470] sm:$0xff]
        %v7592 = vld [vmem:[#allocation2 + $0x478] sm:$0xff]
        %v7593 = vld [vmem:[#allocation2 + $0x480] sm:$0xff]
        %v7594 = vld [vmem:[#allocation2 + $0x488] sm:$0xff]
        %v7595 = vld [vmem:[#allocation2 + $0x490] sm:$0xff]
        %v7596 = vld [vmem:[#allocation2 + $0x498] sm:$0xff]
        %v7597 = vld [vmem:[#allocation2 + $0x4a0] sm:$0xff]
        %v7598 = vld [vmem:[#allocation2 + $0x4a8] sm:$0xff]
        %v7599 = vld [vmem:[#allocation2 + $0x4b0] sm:$0xff]
        %v7600 = vld [vmem:[#allocation2 + $0x4b8] sm:$0xff]
        %v7601 = vld [vmem:[#allocation2 + $0x4c0] sm:$0xff]
        %v7602 = vld [vmem:[#allocation2 + $0x4c8] sm:$0xff]
        %v7603 = vld [vmem:[#allocation2 + $0x4d0] sm:$0xff]
        %v7604 = vld [vmem:[#allocation2 + $0x4d8] sm:$0xff]
        %v7605 = vld [vmem:[#allocation2 + $0x4e0] sm:$0xff]
        %v7606 = vld [vmem:[#allocation2 + $0x4e8] sm:$0xff]
        %v7607 = vld [vmem:[#allocation2 + $0x4f0] sm:$0xff]
        %v7608 = vld [vmem:[#allocation2 + $0x4f8] sm:$0xff]
        %v7609 = vld [vmem:[#allocation2 + $0x500] sm:$0xff]
        %v7610 = vld [vmem:[#allocation2 + $0x508] sm:$0xff]
        %v7611 = vld [vmem:[#allocation2 + $0x510] sm:$0xff]
        %v7612 = vld [vmem:[#allocation2 + $0x518] sm:$0xff]
        %v7613 = vld [vmem:[#allocation2 + $0x520] sm:$0xff]
        %v7614 = vld [vmem:[#allocation2 + $0x528] sm:$0xff]
        %v7615 = vld [vmem:[#allocation2 + $0x530] sm:$0xff]
        %v7616 = vld [vmem:[#allocation2 + $0x538] sm:$0xff]
        %v7617 = vld [vmem:[#allocation2 + $0x540] sm:$0xff]
        %v7618 = vld [vmem:[#allocation2 + $0x548] sm:$0xff]
        %v7619 = vld [vmem:[#allocation2 + $0x550] sm:$0xff]
        %v7620 = vld [vmem:[#allocation2 + $0x558] sm:$0xff]
        %v7621 = vld [vmem:[#allocation2 + $0x560] sm:$0xff]
        %v7622 = vld [vmem:[#allocation2 + $0x568] sm:$0xff]
        %v7623 = vld [vmem:[#allocation2 + $0x570] sm:$0xff]
        %v7624 = vld [vmem:[#allocation2 + $0x578] sm:$0xff]
        %v7625 = vld [vmem:[#allocation2 + $0x580] sm:$0xff]
        %v7626 = vld [vmem:[#allocation2 + $0x588] sm:$0xff]
        %v7627 = vld [vmem:[#allocation2 + $0x590] sm:$0xff]
        %v7628 = vld [vmem:[#allocation2 + $0x598] sm:$0xff]
        %v7629 = vld [vmem:[#allocation2 + $0x5a0] sm:$0xff]
        %v7630 = vld [vmem:[#allocation2 + $0x5a8] sm:$0xff]
        %v7631 = vld [vmem:[#allocation2 + $0x5b0] sm:$0xff]
        %v7632 = vld [vmem:[#allocation2 + $0x5b8] sm:$0xff]
        %v7633 = vld [vmem:[#allocation2 + $0x5c0] sm:$0xff]
        %v7634 = vld [vmem:[#allocation2 + $0x5c8] sm:$0xff]
        %v7635 = vld [vmem:[#allocation2 + $0x5d0] sm:$0xff]
        %v7636 = vld [vmem:[#allocation2 + $0x5d8] sm:$0xff]
        %v7637 = vld [vmem:[#allocation2 + $0x5e0] sm:$0xff]
        %v7638 = vld [vmem:[#allocation2 + $0x5e8] sm:$0xff]
        %v7639 = vld [vmem:[#allocation2 + $0x5f0] sm:$0xff]
        %v7640 = vld [vmem:[#allocation2 + $0x5f8] sm:$0xff]
        %v7641 = vld [vmem:[#allocation2 + $0x600] sm:$0xff]
        %v7642 = vld [vmem:[#allocation2 + $0x608] sm:$0xff]
        %v7643 = vld [vmem:[#allocation2 + $0x610] sm:$0xff]
        %v7644 = vld [vmem:[#allocation2 + $0x618] sm:$0xff]
        %v7645 = vld [vmem:[#allocation2 + $0x620] sm:$0xff]
        %v7646 = vld [vmem:[#allocation2 + $0x628] sm:$0xff]
        %v7647 = vld [vmem:[#allocation2 + $0x630] sm:$0xff]
        %v7648 = vld [vmem:[#allocation2 + $0x638] sm:$0xff]
        %v7649 = vld [vmem:[#allocation2 + $0x640] sm:$0xff]
        %v7650 = vld [vmem:[#allocation2 + $0x648] sm:$0xff]
        %v7651 = vld [vmem:[#allocation2 + $0x650] sm:$0xff]
        %v7652 = vld [vmem:[#allocation2 + $0x658] sm:$0xff]
        %v7653 = vld [vmem:[#allocation2 + $0x660] sm:$0xff]
        %v7654 = vld [vmem:[#allocation2 + $0x668] sm:$0xff]
        %v7655 = vld [vmem:[#allocation2 + $0x670] sm:$0xff]
        %v7656 = vld [vmem:[#allocation2 + $0x678] sm:$0xff]
        %v7657 = vld [vmem:[#allocation2 + $0x680] sm:$0xff]
        %v7658 = vld [vmem:[#allocation2 + $0x688] sm:$0xff]
        %v7659 = vld [vmem:[#allocation2 + $0x690] sm:$0xff]
        %v7660 = vld [vmem:[#allocation2 + $0x698] sm:$0xff]
        %v7661 = vld [vmem:[#allocation2 + $0x6a0] sm:$0xff]
        %v7662 = vld [vmem:[#allocation2 + $0x6a8] sm:$0xff]
        %v7663 = vld [vmem:[#allocation2 + $0x6b0] sm:$0xff]
        %v7664 = vld [vmem:[#allocation2 + $0x6b8] sm:$0xff]
        %v7665 = vld [vmem:[#allocation2 + $0x6c0] sm:$0xff]
        %v7666 = vld [vmem:[#allocation2 + $0x6c8] sm:$0xff]
        %v7667 = vld [vmem:[#allocation2 + $0x6d0] sm:$0xff]
        %v7668 = vld [vmem:[#allocation2 + $0x6d8] sm:$0xff]
        %v7669 = vld [vmem:[#allocation2 + $0x6e0] sm:$0xff]
        %v7670 = vld [vmem:[#allocation2 + $0x6e8] sm:$0xff]
        %v7671 = vld [vmem:[#allocation2 + $0x6f0] sm:$0xff]
        %v7672 = vld [vmem:[#allocation2 + $0x6f8] sm:$0xff]
        %v7673 = vld [vmem:[#allocation2 + $0x700] sm:$0xff]
        %v7674 = vld [vmem:[#allocation2 + $0x708] sm:$0xff]
        %v7675 = vld [vmem:[#allocation2 + $0x710] sm:$0xff]
        %v7676 = vld [vmem:[#allocation2 + $0x718] sm:$0xff]
        %v7677 = vld [vmem:[#allocation2 + $0x720] sm:$0xff]
        %v7678 = vld [vmem:[#allocation2 + $0x728] sm:$0xff]
        %v7679 = vld [vmem:[#allocation2 + $0x730] sm:$0xff]
        %v7680 = vld [vmem:[#allocation2 + $0x738] sm:$0xff]
        %v7681 = vld [vmem:[#allocation2 + $0x740] sm:$0xff]
        %v7682 = vld [vmem:[#allocation2 + $0x748] sm:$0xff]
        %v7683 = vld [vmem:[#allocation2 + $0x750] sm:$0xff]
        %v7684 = vld [vmem:[#allocation2 + $0x758] sm:$0xff]
        %v7685 = vld [vmem:[#allocation2 + $0x760] sm:$0xff]
        %v7686 = vld [vmem:[#allocation2 + $0x768] sm:$0xff]
        %v7687 = vld [vmem:[#allocation2 + $0x770] sm:$0xff]
        %v7688 = vld [vmem:[#allocation2 + $0x778] sm:$0xff]
        %v7689 = vld [vmem:[#allocation2 + $0x780] sm:$0xff]
        %v7690 = vld [vmem:[#allocation2 + $0x788] sm:$0xff]
        %v7691 = vld [vmem:[#allocation2 + $0x790] sm:$0xff]
        %v7692 = vld [vmem:[#allocation2 + $0x798] sm:$0xff]
        %v7693 = vld [vmem:[#allocation2 + $0x7a0] sm:$0xff]
        %v7694 = vld [vmem:[#allocation2 + $0x7a8] sm:$0xff]
        %v7695 = vld [vmem:[#allocation2 + $0x7b0] sm:$0xff]
        %v7696 = vld [vmem:[#allocation2 + $0x7b8] sm:$0xff]
        %v7697 = vld [vmem:[#allocation2 + $0x7c0] sm:$0xff]
        %v7698 = vld [vmem:[#allocation2 + $0x7c8] sm:$0xff]
        %v7699 = vld [vmem:[#allocation2 + $0x7d0] sm:$0xff]
        %v7700 = vld [vmem:[#allocation2 + $0x7d8] sm:$0xff]
        %v7701 = vld [vmem:[#allocation2 + $0x7e0] sm:$0xff]
        %v7702 = vld [vmem:[#allocation2 + $0x7e8] sm:$0xff]
        %v7703 = vld [vmem:[#allocation2 + $0x7f0] sm:$0xff]
        %v7704 = vld [vmem:[#allocation2 + $0x7f8] sm:$0xff]
        %7705 = vmatprep.subr.mxu0 0.0
        %7706 = vmatpush1.msra.mxu0 %v7464
        %7707 = vmatprep.subr.mxu0 0.0
        %7708 = vmatpush1.msra.mxu0 %v7463
        %7709 = vmatprep.subr.mxu0 0.0
        %7710 = vmatpush1.msra.mxu0 %v7462
        %7711 = vmatprep.subr.mxu0 0.0
        %7712 = vmatpush1.msra.mxu0 %v7461
        %7713 = vmatprep.subr.mxu0 0.0
        %7714 = vmatpush1.msra.mxu0 %v7460
        %7715 = vmatprep.subr.mxu0 0.0
        %7716 = vmatpush1.msra.mxu0 %v7459
        %7717 = vmatprep.subr.mxu0 0.0
        %7718 = vmatpush1.msra.mxu0 %v7458
        %7719 = vmatprep.subr.mxu0 0.0
        %7720 = vmatpush1.msra.mxu0 %v7457
        %7721 = vmatprep.subr.mxu0 0.0
        %7722 = vmatpush1.msra.mxu0 %v7456
        %7723 = vmatprep.subr.mxu0 0.0
        %7724 = vmatpush1.msra.mxu0 %v7455
        %7725 = vmatprep.subr.mxu0 0.0
        %7726 = vmatpush1.msra.mxu0 %v7454
        %7727 = vmatprep.subr.mxu0 0.0
        %7728 = vmatpush1.msra.mxu0 %v7453
        %7729 = vmatprep.subr.mxu0 0.0
        %7730 = vmatpush1.msra.mxu0 %v7452
        %7731 = vmatprep.subr.mxu0 0.0
        %7732 = vmatpush1.msra.mxu0 %v7451
        %7733 = vmatprep.subr.mxu0 0.0
        %7734 = vmatpush1.msra.mxu0 %v7450
        %7735 = vmatprep.subr.mxu0 0.0
        %7736 = vmatpush1.msra.mxu0 %v7449
        %7737 = vmatprep.subr.mxu0 0.0
        %7738 = vmatpush2.msra.mxu0 %v7480
        %7739 = vmatprep.subr.mxu0 0.0
        %7740 = vmatpush2.msra.mxu0 %v7479
        %7741 = vmatprep.subr.mxu0 0.0
        %7742 = vmatpush2.msra.mxu0 %v7478
        %7743 = vmatprep.subr.mxu0 0.0
        %7744 = vmatpush2.msra.mxu0 %v7477
        %7745 = vmatprep.subr.mxu0 0.0
        %7746 = vmatpush2.msra.mxu0 %v7476
        %7747 = vmatprep.subr.mxu0 0.0
        %7748 = vmatpush2.msra.mxu0 %v7475
        %7749 = vmatprep.subr.mxu0 0.0
        %7750 = vmatpush2.msra.mxu0 %v7474
        %7751 = vmatprep.subr.mxu0 0.0
        %7752 = vmatpush2.msra.mxu0 %v7473
        %7753 = vmatprep.subr.mxu0 0.0
        %7754 = vmatpush2.msra.mxu0 %v7472
        %7755 = vmatprep.subr.mxu0 0.0
        %7756 = vmatpush2.msra.mxu0 %v7471
        %7757 = vmatprep.subr.mxu0 0.0
        %7758 = vmatpush2.msra.mxu0 %v7470
        %7759 = vmatprep.subr.mxu0 0.0
        %7760 = vmatpush2.msra.mxu0 %v7469
        %7761 = vmatprep.subr.mxu0 0.0
        %7762 = vmatpush2.msra.mxu0 %v7468
        %7763 = vmatprep.subr.mxu0 0.0
        %7764 = vmatpush2.msra.mxu0 %v7467
        %7765 = vmatprep.subr.mxu0 0.0
        %7766 = vmatpush2.msra.mxu0 %v7466
        %7767 = vmatprep.subr.mxu0 0.0
        %7768 = vmatpush2.msra.mxu0 %v7465
        %7769 = vmatprep.mubr.f32.mxu0 %v7194
        %7770 = vmatmul.mubr.f32.gmra.mxu0 %v7193
        %v7771 = vpop.f32.mrf.mxu0
        %v7772 = vadd.f32 0.0, %v7771
        %v7773 = vpop.f32.mrf.mxu0
        %7774 = vmatprep.mubr.f32.mxu0 %v7210
        %7775 = vmatmul.mubr.f32.gmra.mxu0 %v7209
        %v7776 = vpop.f32.mrf.mxu0
        %v7777 = vadd.f32 0.0, %v7776
        %v7778 = vpop.f32.mrf.mxu0
        %7779 = vmatprep.mubr.f32.mxu0 %v7226
        %7780 = vmatmul.mubr.f32.gmra.mxu0 %v7225
        %v7781 = vpop.f32.mrf.mxu0
        %v7782 = vadd.f32 0.0, %v7781
        %v7783 = vpop.f32.mrf.mxu0
        %7784 = vmatprep.mubr.f32.mxu0 %v7242
        %7785 = vmatmul.mubr.f32.gmra.mxu0 %v7241
        %v7786 = vpop.f32.mrf.mxu0
        %v7787 = vadd.f32 0.0, %v7786
        %v7788 = vpop.f32.mrf.mxu0
        %7789 = vmatprep.mubr.f32.mxu0 %v7258
        %7790 = vmatmul.mubr.f32.gmra.mxu0 %v7257
        %v7791 = vpop.f32.mrf.mxu0
        %v7792 = vadd.f32 0.0, %v7791
        %v7793 = vpop.f32.mrf.mxu0
        %7794 = vmatprep.mubr.f32.mxu0 %v7274
        %7795 = vmatmul.mubr.f32.gmra.mxu0 %v7273
        %v7796 = vpop.f32.mrf.mxu0
        %v7797 = vadd.f32 0.0, %v7796
        %v7798 = vpop.f32.mrf.mxu0
        %7799 = vmatprep.mubr.f32.mxu0 %v7290
        %7800 = vmatmul.mubr.f32.gmra.mxu0 %v7289
        %v7801 = vpop.f32.mrf.mxu0
        %v7802 = vadd.f32 0.0, %v7801
        %v7803 = vpop.f32.mrf.mxu0
        %7804 = vmatprep.mubr.f32.mxu0 %v7306
        %7805 = vmatmul.mubr.f32.gmra.mxu0 %v7305
        %v7806 = vpop.f32.mrf.mxu0
        %v7807 = vadd.f32 0.0, %v7806
        %v7808 = vpop.f32.mrf.mxu0
        %7809 = vmatprep.mubr.f32.mxu0 %v7322
        %7810 = vmatmul.mubr.f32.gmra.mxu0 %v7321
        %v7811 = vpop.f32.mrf.mxu0
        %v7812 = vadd.f32 0.0, %v7811
        %v7813 = vpop.f32.mrf.mxu0
        %7814 = vmatprep.mubr.f32.mxu0 %v7338
        %7815 = vmatmul.mubr.f32.gmra.mxu0 %v7337
        %v7816 = vpop.f32.mrf.mxu0
        %v7817 = vadd.f32 0.0, %v7816
        %v7818 = vpop.f32.mrf.mxu0
        %7819 = vmatprep.mubr.f32.mxu0 %v7354
        %7820 = vmatmul.mubr.f32.gmra.mxu0 %v7353
        %v7821 = vpop.f32.mrf.mxu0
        %v7822 = vadd.f32 0.0, %v7821
        %v7823 = vpop.f32.mrf.mxu0
        %7824 = vmatprep.mubr.f32.mxu0 %v7370
        %7825 = vmatmul.mubr.f32.gmra.mxu0 %v7369
        %v7826 = vpop.f32.mrf.mxu0
        %v7827 = vadd.f32 0.0, %v7826
        %v7828 = vpop.f32.mrf.mxu0
        %7829 = vmatprep.mubr.f32.mxu0 %v7386
        %7830 = vmatmul.mubr.f32.gmra.mxu0 %v7385
        %v7831 = vpop.f32.mrf.mxu0
        %v7832 = vadd.f32 0.0, %v7831
        %v7833 = vpop.f32.mrf.mxu0
        %7834 = vmatprep.mubr.f32.mxu0 %v7402
        %7835 = vmatmul.mubr.f32.gmra.mxu0 %v7401
        %v7836 = vpop.f32.mrf.mxu0
        %v7837 = vadd.f32 0.0, %v7836
        %v7838 = vpop.f32.mrf.mxu0
        %7839 = vmatprep.mubr.f32.mxu0 %v7418
        %7840 = vmatmul.mubr.f32.gmra.mxu0 %v7417
        %v7841 = vpop.f32.mrf.mxu0
        %v7842 = vadd.f32 0.0, %v7841
        %v7843 = vpop.f32.mrf.mxu0
        %7844 = vmatprep.mubr.f32.mxu0 %v7434
        %7845 = vmatmul.mubr.f32.gmra.mxu0 %v7433
        %v7846 = vpop.f32.mrf.mxu0
        %v7847 = vadd.f32 0.0, %v7846
        %v7848 = vpop.f32.mrf.mxu0
        %7849 = vdwg.mxu0
        %7850 = vmatprep.subr.mxu0 0.0
        %7851 = vmatpush1.msra.mxu0 %v7496
        %7852 = vmatprep.subr.mxu0 0.0
        %7853 = vmatpush1.msra.mxu0 %v7495
        %7854 = vmatprep.subr.mxu0 0.0
        %7855 = vmatpush1.msra.mxu0 %v7494
        %7856 = vmatprep.subr.mxu0 0.0
        %7857 = vmatpush1.msra.mxu0 %v7493
        %7858 = vmatprep.subr.mxu0 0.0
        %7859 = vmatpush1.msra.mxu0 %v7492
        %7860 = vmatprep.subr.mxu0 0.0
        %7861 = vmatpush1.msra.mxu0 %v7491
        %7862 = vmatprep.subr.mxu0 0.0
        %7863 = vmatpush1.msra.mxu0 %v7490
        %7864 = vmatprep.subr.mxu0 0.0
        %7865 = vmatpush1.msra.mxu0 %v7489
        %7866 = vmatprep.subr.mxu0 0.0
        %7867 = vmatpush1.msra.mxu0 %v7488
        %7868 = vmatprep.subr.mxu0 0.0
        %7869 = vmatpush1.msra.mxu0 %v7487
        %7870 = vmatprep.subr.mxu0 0.0
        %7871 = vmatpush1.msra.mxu0 %v7486
        %7872 = vmatprep.subr.mxu0 0.0
        %7873 = vmatpush1.msra.mxu0 %v7485
        %7874 = vmatprep.subr.mxu0 0.0
        %7875 = vmatpush1.msra.mxu0 %v7484
        %7876 = vmatprep.subr.mxu0 0.0
        %7877 = vmatpush1.msra.mxu0 %v7483
        %7878 = vmatprep.subr.mxu0 0.0
        %7879 = vmatpush1.msra.mxu0 %v7482
        %7880 = vmatprep.subr.mxu0 0.0
        %7881 = vmatpush1.msra.mxu0 %v7481
        %7882 = vmatprep.subr.mxu0 0.0
        %7883 = vmatpush2.msra.mxu0 %v7512
        %7884 = vmatprep.subr.mxu0 0.0
        %7885 = vmatpush2.msra.mxu0 %v7511
        %7886 = vmatprep.subr.mxu0 0.0
        %7887 = vmatpush2.msra.mxu0 %v7510
        %7888 = vmatprep.subr.mxu0 0.0
        %7889 = vmatpush2.msra.mxu0 %v7509
        %7890 = vmatprep.subr.mxu0 0.0
        %7891 = vmatpush2.msra.mxu0 %v7508
        %7892 = vmatprep.subr.mxu0 0.0
        %7893 = vmatpush2.msra.mxu0 %v7507
        %7894 = vmatprep.subr.mxu0 0.0
        %7895 = vmatpush2.msra.mxu0 %v7506
        %7896 = vmatprep.subr.mxu0 0.0
        %7897 = vmatpush2.msra.mxu0 %v7505
        %7898 = vmatprep.subr.mxu0 0.0
        %7899 = vmatpush2.msra.mxu0 %v7504
        %7900 = vmatprep.subr.mxu0 0.0
        %7901 = vmatpush2.msra.mxu0 %v7503
        %7902 = vmatprep.subr.mxu0 0.0
        %7903 = vmatpush2.msra.mxu0 %v7502
        %7904 = vmatprep.subr.mxu0 0.0
        %7905 = vmatpush2.msra.mxu0 %v7501
        %7906 = vmatprep.subr.mxu0 0.0
        %7907 = vmatpush2.msra.mxu0 %v7500
        %7908 = vmatprep.subr.mxu0 0.0
        %7909 = vmatpush2.msra.mxu0 %v7499
        %7910 = vmatprep.subr.mxu0 0.0
        %7911 = vmatpush2.msra.mxu0 %v7498
        %7912 = vmatprep.subr.mxu0 0.0
        %7913 = vmatpush2.msra.mxu0 %v7497
        %7914 = vmatprep.mubr.f32.mxu0 %v7196
        %7915 = vmatmul.mubr.f32.gmra.mxu0 %v7195
        %v7916 = vpop.f32.mrf.mxu0
        %v7917 = vadd.f32 %v7772, %v7916
        %v7918 = vpop.f32.mrf.mxu0
        %7919 = vmatprep.mubr.f32.mxu0 %v7212
        %7920 = vmatmul.mubr.f32.gmra.mxu0 %v7211
        %v7921 = vpop.f32.mrf.mxu0
        %v7922 = vadd.f32 %v7777, %v7921
        %v7923 = vpop.f32.mrf.mxu0
        %7924 = vmatprep.mubr.f32.mxu0 %v7228
        %7925 = vmatmul.mubr.f32.gmra.mxu0 %v7227
        %v7926 = vpop.f32.mrf.mxu0
        %v7927 = vadd.f32 %v7782, %v7926
        %v7928 = vpop.f32.mrf.mxu0
        %7929 = vmatprep.mubr.f32.mxu0 %v7244
        %7930 = vmatmul.mubr.f32.gmra.mxu0 %v7243
        %v7931 = vpop.f32.mrf.mxu0
        %v7932 = vadd.f32 %v7787, %v7931
        %v7933 = vpop.f32.mrf.mxu0
        %7934 = vmatprep.mubr.f32.mxu0 %v7260
        %7935 = vmatmul.mubr.f32.gmra.mxu0 %v7259
        %v7936 = vpop.f32.mrf.mxu0
        %v7937 = vadd.f32 %v7792, %v7936
        %v7938 = vpop.f32.mrf.mxu0
        %7939 = vmatprep.mubr.f32.mxu0 %v7276
        %7940 = vmatmul.mubr.f32.gmra.mxu0 %v7275
        %v7941 = vpop.f32.mrf.mxu0
        %v7942 = vadd.f32 %v7797, %v7941
        %v7943 = vpop.f32.mrf.mxu0
        %7944 = vmatprep.mubr.f32.mxu0 %v7292
        %7945 = vmatmul.mubr.f32.gmra.mxu0 %v7291
        %v7946 = vpop.f32.mrf.mxu0
        %v7947 = vadd.f32 %v7802, %v7946
        %v7948 = vpop.f32.mrf.mxu0
        %7949 = vmatprep.mubr.f32.mxu0 %v7308
        %7950 = vmatmul.mubr.f32.gmra.mxu0 %v7307
        %v7951 = vpop.f32.mrf.mxu0
        %v7952 = vadd.f32 %v7807, %v7951
        %v7953 = vpop.f32.mrf.mxu0
        %7954 = vmatprep.mubr.f32.mxu0 %v7324
        %7955 = vmatmul.mubr.f32.gmra.mxu0 %v7323
        %v7956 = vpop.f32.mrf.mxu0
        %v7957 = vadd.f32 %v7812, %v7956
        %v7958 = vpop.f32.mrf.mxu0
        %7959 = vmatprep.mubr.f32.mxu0 %v7340
        %7960 = vmatmul.mubr.f32.gmra.mxu0 %v7339
        %v7961 = vpop.f32.mrf.mxu0
        %v7962 = vadd.f32 %v7817, %v7961
        %v7963 = vpop.f32.mrf.mxu0
        %7964 = vmatprep.mubr.f32.mxu0 %v7356
        %7965 = vmatmul.mubr.f32.gmra.mxu0 %v7355
        %v7966 = vpop.f32.mrf.mxu0
        %v7967 = vadd.f32 %v7822, %v7966
        %v7968 = vpop.f32.mrf.mxu0
        %7969 = vmatprep.mubr.f32.mxu0 %v7372
        %7970 = vmatmul.mubr.f32.gmra.mxu0 %v7371
        %v7971 = vpop.f32.mrf.mxu0
        %v7972 = vadd.f32 %v7827, %v7971
        %v7973 = vpop.f32.mrf.mxu0
        %7974 = vmatprep.mubr.f32.mxu0 %v7388
        %7975 = vmatmul.mubr.f32.gmra.mxu0 %v7387
        %v7976 = vpop.f32.mrf.mxu0
        %v7977 = vadd.f32 %v7832, %v7976
        %v7978 = vpop.f32.mrf.mxu0
        %7979 = vmatprep.mubr.f32.mxu0 %v7404
        %7980 = vmatmul.mubr.f32.gmra.mxu0 %v7403
        %v7981 = vpop.f32.mrf.mxu0
        %v7982 = vadd.f32 %v7837, %v7981
        %v7983 = vpop.f32.mrf.mxu0
        %7984 = vmatprep.mubr.f32.mxu0 %v7420
        %7985 = vmatmul.mubr.f32.gmra.mxu0 %v7419
        %v7986 = vpop.f32.mrf.mxu0
        %v7987 = vadd.f32 %v7842, %v7986
        %v7988 = vpop.f32.mrf.mxu0
        %7989 = vmatprep.mubr.f32.mxu0 %v7436
        %7990 = vmatmul.mubr.f32.gmra.mxu0 %v7435
        %v7991 = vpop.f32.mrf.mxu0
        %v7992 = vadd.f32 %v7847, %v7991
        %v7993 = vpop.f32.mrf.mxu0
        %7994 = vdwg.mxu0
        %7995 = vmatprep.subr.mxu0 0.0
        %7996 = vmatpush1.msra.mxu0 %v7528
        %7997 = vmatprep.subr.mxu0 0.0
        %7998 = vmatpush1.msra.mxu0 %v7527
        %7999 = vmatprep.subr.mxu0 0.0
        %8000 = vmatpush1.msra.mxu0 %v7526
        %8001 = vmatprep.subr.mxu0 0.0
        %8002 = vmatpush1.msra.mxu0 %v7525
        %8003 = vmatprep.subr.mxu0 0.0
        %8004 = vmatpush1.msra.mxu0 %v7524
        %8005 = vmatprep.subr.mxu0 0.0
        %8006 = vmatpush1.msra.mxu0 %v7523
        %8007 = vmatprep.subr.mxu0 0.0
        %8008 = vmatpush1.msra.mxu0 %v7522
        %8009 = vmatprep.subr.mxu0 0.0
        %8010 = vmatpush1.msra.mxu0 %v7521
        %8011 = vmatprep.subr.mxu0 0.0
        %8012 = vmatpush1.msra.mxu0 %v7520
        %8013 = vmatprep.subr.mxu0 0.0
        %8014 = vmatpush1.msra.mxu0 %v7519
        %8015 = vmatprep.subr.mxu0 0.0
        %8016 = vmatpush1.msra.mxu0 %v7518
        %8017 = vmatprep.subr.mxu0 0.0
        %8018 = vmatpush1.msra.mxu0 %v7517
        %8019 = vmatprep.subr.mxu0 0.0
        %8020 = vmatpush1.msra.mxu0 %v7516
        %8021 = vmatprep.subr.mxu0 0.0
        %8022 = vmatpush1.msra.mxu0 %v7515
        %8023 = vmatprep.subr.mxu0 0.0
        %8024 = vmatpush1.msra.mxu0 %v7514
        %8025 = vmatprep.subr.mxu0 0.0
        %8026 = vmatpush1.msra.mxu0 %v7513
        %8027 = vmatprep.subr.mxu0 0.0
        %8028 = vmatpush2.msra.mxu0 %v7544
        %8029 = vmatprep.subr.mxu0 0.0
        %8030 = vmatpush2.msra.mxu0 %v7543
        %8031 = vmatprep.subr.mxu0 0.0
        %8032 = vmatpush2.msra.mxu0 %v7542
        %8033 = vmatprep.subr.mxu0 0.0
        %8034 = vmatpush2.msra.mxu0 %v7541
        %8035 = vmatprep.subr.mxu0 0.0
        %8036 = vmatpush2.msra.mxu0 %v7540
        %8037 = vmatprep.subr.mxu0 0.0
        %8038 = vmatpush2.msra.mxu0 %v7539
        %8039 = vmatprep.subr.mxu0 0.0
        %8040 = vmatpush2.msra.mxu0 %v7538
        %8041 = vmatprep.subr.mxu0 0.0
        %8042 = vmatpush2.msra.mxu0 %v7537
        %8043 = vmatprep.subr.mxu0 0.0
        %8044 = vmatpush2.msra.mxu0 %v7536
        %8045 = vmatprep.subr.mxu0 0.0
        %8046 = vmatpush2.msra.mxu0 %v7535
        %8047 = vmatprep.subr.mxu0 0.0
        %8048 = vmatpush2.msra.mxu0 %v7534
        %8049 = vmatprep.subr.mxu0 0.0
        %8050 = vmatpush2.msra.mxu0 %v7533
        %8051 = vmatprep.subr.mxu0 0.0
        %8052 = vmatpush2.msra.mxu0 %v7532
        %8053 = vmatprep.subr.mxu0 0.0
        %8054 = vmatpush2.msra.mxu0 %v7531
        %8055 = vmatprep.subr.mxu0 0.0
        %8056 = vmatpush2.msra.mxu0 %v7530
        %8057 = vmatprep.subr.mxu0 0.0
        %8058 = vmatpush2.msra.mxu0 %v7529
        %8059 = vmatprep.mubr.f32.mxu0 %v7198
        %8060 = vmatmul.mubr.f32.gmra.mxu0 %v7197
        %v8061 = vpop.f32.mrf.mxu0
        %v8062 = vadd.f32 %v7917, %v8061
        %v8063 = vpop.f32.mrf.mxu0
        %8064 = vmatprep.mubr.f32.mxu0 %v7214
        %8065 = vmatmul.mubr.f32.gmra.mxu0 %v7213
        %v8066 = vpop.f32.mrf.mxu0
        %v8067 = vadd.f32 %v7922, %v8066
        %v8068 = vpop.f32.mrf.mxu0
        %8069 = vmatprep.mubr.f32.mxu0 %v7230
        %8070 = vmatmul.mubr.f32.gmra.mxu0 %v7229
        %v8071 = vpop.f32.mrf.mxu0
        %v8072 = vadd.f32 %v7927, %v8071
        %v8073 = vpop.f32.mrf.mxu0
        %8074 = vmatprep.mubr.f32.mxu0 %v7246
        %8075 = vmatmul.mubr.f32.gmra.mxu0 %v7245
        %v8076 = vpop.f32.mrf.mxu0
        %v8077 = vadd.f32 %v7932, %v8076
        %v8078 = vpop.f32.mrf.mxu0
        %8079 = vmatprep.mubr.f32.mxu0 %v7262
        %8080 = vmatmul.mubr.f32.gmra.mxu0 %v7261
        %v8081 = vpop.f32.mrf.mxu0
        %v8082 = vadd.f32 %v7937, %v8081
        %v8083 = vpop.f32.mrf.mxu0
        %8084 = vmatprep.mubr.f32.mxu0 %v7278
        %8085 = vmatmul.mubr.f32.gmra.mxu0 %v7277
        %v8086 = vpop.f32.mrf.mxu0
        %v8087 = vadd.f32 %v7942, %v8086
        %v8088 = vpop.f32.mrf.mxu0
        %8089 = vmatprep.mubr.f32.mxu0 %v7294
        %8090 = vmatmul.mubr.f32.gmra.mxu0 %v7293
        %v8091 = vpop.f32.mrf.mxu0
        %v8092 = vadd.f32 %v7947, %v8091
        %v8093 = vpop.f32.mrf.mxu0
        %8094 = vmatprep.mubr.f32.mxu0 %v7310
        %8095 = vmatmul.mubr.f32.gmra.mxu0 %v7309
        %v8096 = vpop.f32.mrf.mxu0
        %v8097 = vadd.f32 %v7952, %v8096
        %v8098 = vpop.f32.mrf.mxu0
        %8099 = vmatprep.mubr.f32.mxu0 %v7326
        %8100 = vmatmul.mubr.f32.gmra.mxu0 %v7325
        %v8101 = vpop.f32.mrf.mxu0
        %v8102 = vadd.f32 %v7957, %v8101
        %v8103 = vpop.f32.mrf.mxu0
        %8104 = vmatprep.mubr.f32.mxu0 %v7342
        %8105 = vmatmul.mubr.f32.gmra.mxu0 %v7341
        %v8106 = vpop.f32.mrf.mxu0
        %v8107 = vadd.f32 %v7962, %v8106
        %v8108 = vpop.f32.mrf.mxu0
        %8109 = vmatprep.mubr.f32.mxu0 %v7358
        %8110 = vmatmul.mubr.f32.gmra.mxu0 %v7357
        %v8111 = vpop.f32.mrf.mxu0
        %v8112 = vadd.f32 %v7967, %v8111
        %v8113 = vpop.f32.mrf.mxu0
        %8114 = vmatprep.mubr.f32.mxu0 %v7374
        %8115 = vmatmul.mubr.f32.gmra.mxu0 %v7373
        %v8116 = vpop.f32.mrf.mxu0
        %v8117 = vadd.f32 %v7972, %v8116
        %v8118 = vpop.f32.mrf.mxu0
        %8119 = vmatprep.mubr.f32.mxu0 %v7390
        %8120 = vmatmul.mubr.f32.gmra.mxu0 %v7389
        %v8121 = vpop.f32.mrf.mxu0
        %v8122 = vadd.f32 %v7977, %v8121
        %v8123 = vpop.f32.mrf.mxu0
        %8124 = vmatprep.mubr.f32.mxu0 %v7406
        %8125 = vmatmul.mubr.f32.gmra.mxu0 %v7405
        %v8126 = vpop.f32.mrf.mxu0
        %v8127 = vadd.f32 %v7982, %v8126
        %v8128 = vpop.f32.mrf.mxu0
        %8129 = vmatprep.mubr.f32.mxu0 %v7422
        %8130 = vmatmul.mubr.f32.gmra.mxu0 %v7421
        %v8131 = vpop.f32.mrf.mxu0
        %v8132 = vadd.f32 %v7987, %v8131
        %v8133 = vpop.f32.mrf.mxu0
        %8134 = vmatprep.mubr.f32.mxu0 %v7438
        %8135 = vmatmul.mubr.f32.gmra.mxu0 %v7437
        %v8136 = vpop.f32.mrf.mxu0
        %v8137 = vadd.f32 %v7992, %v8136
        %v8138 = vpop.f32.mrf.mxu0
        %8139 = vdwg.mxu0
        %8140 = vmatprep.subr.mxu0 0.0
        %8141 = vmatpush1.msra.mxu0 %v7560
        %8142 = vmatprep.subr.mxu0 0.0
        %8143 = vmatpush1.msra.mxu0 %v7559
        %8144 = vmatprep.subr.mxu0 0.0
        %8145 = vmatpush1.msra.mxu0 %v7558
        %8146 = vmatprep.subr.mxu0 0.0
        %8147 = vmatpush1.msra.mxu0 %v7557
        %8148 = vmatprep.subr.mxu0 0.0
        %8149 = vmatpush1.msra.mxu0 %v7556
        %8150 = vmatprep.subr.mxu0 0.0
        %8151 = vmatpush1.msra.mxu0 %v7555
        %8152 = vmatprep.subr.mxu0 0.0
        %8153 = vmatpush1.msra.mxu0 %v7554
        %8154 = vmatprep.subr.mxu0 0.0
        %8155 = vmatpush1.msra.mxu0 %v7553
        %8156 = vmatprep.subr.mxu0 0.0
        %8157 = vmatpush1.msra.mxu0 %v7552
        %8158 = vmatprep.subr.mxu0 0.0
        %8159 = vmatpush1.msra.mxu0 %v7551
        %8160 = vmatprep.subr.mxu0 0.0
        %8161 = vmatpush1.msra.mxu0 %v7550
        %8162 = vmatprep.subr.mxu0 0.0
        %8163 = vmatpush1.msra.mxu0 %v7549
        %8164 = vmatprep.subr.mxu0 0.0
        %8165 = vmatpush1.msra.mxu0 %v7548
        %8166 = vmatprep.subr.mxu0 0.0
        %8167 = vmatpush1.msra.mxu0 %v7547
        %8168 = vmatprep.subr.mxu0 0.0
        %8169 = vmatpush1.msra.mxu0 %v7546
        %8170 = vmatprep.subr.mxu0 0.0
        %8171 = vmatpush1.msra.mxu0 %v7545
        %8172 = vmatprep.subr.mxu0 0.0
        %8173 = vmatpush2.msra.mxu0 %v7576
        %8174 = vmatprep.subr.mxu0 0.0
        %8175 = vmatpush2.msra.mxu0 %v7575
        %8176 = vmatprep.subr.mxu0 0.0
        %8177 = vmatpush2.msra.mxu0 %v7574
        %8178 = vmatprep.subr.mxu0 0.0
        %8179 = vmatpush2.msra.mxu0 %v7573
        %8180 = vmatprep.subr.mxu0 0.0
        %8181 = vmatpush2.msra.mxu0 %v7572
        %8182 = vmatprep.subr.mxu0 0.0
        %8183 = vmatpush2.msra.mxu0 %v7571
        %8184 = vmatprep.subr.mxu0 0.0
        %8185 = vmatpush2.msra.mxu0 %v7570
        %8186 = vmatprep.subr.mxu0 0.0
        %8187 = vmatpush2.msra.mxu0 %v7569
        %8188 = vmatprep.subr.mxu0 0.0
        %8189 = vmatpush2.msra.mxu0 %v7568
        %8190 = vmatprep.subr.mxu0 0.0
        %8191 = vmatpush2.msra.mxu0 %v7567
        %8192 = vmatprep.subr.mxu0 0.0
        %8193 = vmatpush2.msra.mxu0 %v7566
        %8194 = vmatprep.subr.mxu0 0.0
        %8195 = vmatpush2.msra.mxu0 %v7565
        %8196 = vmatprep.subr.mxu0 0.0
        %8197 = vmatpush2.msra.mxu0 %v7564
        %8198 = vmatprep.subr.mxu0 0.0
        %8199 = vmatpush2.msra.mxu0 %v7563
        %8200 = vmatprep.subr.mxu0 0.0
        %8201 = vmatpush2.msra.mxu0 %v7562
        %8202 = vmatprep.subr.mxu0 0.0
        %8203 = vmatpush2.msra.mxu0 %v7561
        %8204 = vmatprep.mubr.f32.mxu0 %v7200
        %8205 = vmatmul.mubr.f32.gmra.mxu0 %v7199
        %v8206 = vpop.f32.mrf.mxu0
        %v8207 = vadd.f32 %v8062, %v8206
        %v8208 = vpop.f32.mrf.mxu0
        %8209 = vmatprep.mubr.f32.mxu0 %v7216
        %8210 = vmatmul.mubr.f32.gmra.mxu0 %v7215
        %v8211 = vpop.f32.mrf.mxu0
        %v8212 = vadd.f32 %v8067, %v8211
        %v8213 = vpop.f32.mrf.mxu0
        %8214 = vmatprep.mubr.f32.mxu0 %v7232
        %8215 = vmatmul.mubr.f32.gmra.mxu0 %v7231
        %v8216 = vpop.f32.mrf.mxu0
        %v8217 = vadd.f32 %v8072, %v8216
        %v8218 = vpop.f32.mrf.mxu0
        %8219 = vmatprep.mubr.f32.mxu0 %v7248
        %8220 = vmatmul.mubr.f32.gmra.mxu0 %v7247
        %v8221 = vpop.f32.mrf.mxu0
        %v8222 = vadd.f32 %v8077, %v8221
        %v8223 = vpop.f32.mrf.mxu0
        %8224 = vmatprep.mubr.f32.mxu0 %v7264
        %8225 = vmatmul.mubr.f32.gmra.mxu0 %v7263
        %v8226 = vpop.f32.mrf.mxu0
        %v8227 = vadd.f32 %v8082, %v8226
        %v8228 = vpop.f32.mrf.mxu0
        %8229 = vmatprep.mubr.f32.mxu0 %v7280
        %8230 = vmatmul.mubr.f32.gmra.mxu0 %v7279
        %v8231 = vpop.f32.mrf.mxu0
        %v8232 = vadd.f32 %v8087, %v8231
        %v8233 = vpop.f32.mrf.mxu0
        %8234 = vmatprep.mubr.f32.mxu0 %v7296
        %8235 = vmatmul.mubr.f32.gmra.mxu0 %v7295
        %v8236 = vpop.f32.mrf.mxu0
        %v8237 = vadd.f32 %v8092, %v8236
        %v8238 = vpop.f32.mrf.mxu0
        %8239 = vmatprep.mubr.f32.mxu0 %v7312
        %8240 = vmatmul.mubr.f32.gmra.mxu0 %v7311
        %v8241 = vpop.f32.mrf.mxu0
        %v8242 = vadd.f32 %v8097, %v8241
        %v8243 = vpop.f32.mrf.mxu0
        %8244 = vmatprep.mubr.f32.mxu0 %v7328
        %8245 = vmatmul.mubr.f32.gmra.mxu0 %v7327
        %v8246 = vpop.f32.mrf.mxu0
        %v8247 = vadd.f32 %v8102, %v8246
        %v8248 = vpop.f32.mrf.mxu0
        %8249 = vmatprep.mubr.f32.mxu0 %v7344
        %8250 = vmatmul.mubr.f32.gmra.mxu0 %v7343
        %v8251 = vpop.f32.mrf.mxu0
        %v8252 = vadd.f32 %v8107, %v8251
        %v8253 = vpop.f32.mrf.mxu0
        %8254 = vmatprep.mubr.f32.mxu0 %v7360
        %8255 = vmatmul.mubr.f32.gmra.mxu0 %v7359
        %v8256 = vpop.f32.mrf.mxu0
        %v8257 = vadd.f32 %v8112, %v8256
        %v8258 = vpop.f32.mrf.mxu0
        %8259 = vmatprep.mubr.f32.mxu0 %v7376
        %8260 = vmatmul.mubr.f32.gmra.mxu0 %v7375
        %v8261 = vpop.f32.mrf.mxu0
        %v8262 = vadd.f32 %v8117, %v8261
        %v8263 = vpop.f32.mrf.mxu0
        %8264 = vmatprep.mubr.f32.mxu0 %v7392
        %8265 = vmatmul.mubr.f32.gmra.mxu0 %v7391
        %v8266 = vpop.f32.mrf.mxu0
        %v8267 = vadd.f32 %v8122, %v8266
        %v8268 = vpop.f32.mrf.mxu0
        %8269 = vmatprep.mubr.f32.mxu0 %v7408
        %8270 = vmatmul.mubr.f32.gmra.mxu0 %v7407
        %v8271 = vpop.f32.mrf.mxu0
        %v8272 = vadd.f32 %v8127, %v8271
        %v8273 = vpop.f32.mrf.mxu0
        %8274 = vmatprep.mubr.f32.mxu0 %v7424
        %8275 = vmatmul.mubr.f32.gmra.mxu0 %v7423
        %v8276 = vpop.f32.mrf.mxu0
        %v8277 = vadd.f32 %v8132, %v8276
        %v8278 = vpop.f32.mrf.mxu0
        %8279 = vmatprep.mubr.f32.mxu0 %v7440
        %8280 = vmatmul.mubr.f32.gmra.mxu0 %v7439
        %v8281 = vpop.f32.mrf.mxu0
        %v8282 = vadd.f32 %v8137, %v8281
        %v8283 = vpop.f32.mrf.mxu0
        %8284 = vdwg.mxu0
        %8285 = vmatprep.subr.mxu0 0.0
        %8286 = vmatpush1.msra.mxu0 %v7592
        %8287 = vmatprep.subr.mxu0 0.0
        %8288 = vmatpush1.msra.mxu0 %v7591
        %8289 = vmatprep.subr.mxu0 0.0
        %8290 = vmatpush1.msra.mxu0 %v7590
        %8291 = vmatprep.subr.mxu0 0.0
        %8292 = vmatpush1.msra.mxu0 %v7589
        %8293 = vmatprep.subr.mxu0 0.0
        %8294 = vmatpush1.msra.mxu0 %v7588
        %8295 = vmatprep.subr.mxu0 0.0
        %8296 = vmatpush1.msra.mxu0 %v7587
        %8297 = vmatprep.subr.mxu0 0.0
        %8298 = vmatpush1.msra.mxu0 %v7586
        %8299 = vmatprep.subr.mxu0 0.0
        %8300 = vmatpush1.msra.mxu0 %v7585
        %8301 = vmatprep.subr.mxu0 0.0
        %8302 = vmatpush1.msra.mxu0 %v7584
        %8303 = vmatprep.subr.mxu0 0.0
        %8304 = vmatpush1.msra.mxu0 %v7583
        %8305 = vmatprep.subr.mxu0 0.0
        %8306 = vmatpush1.msra.mxu0 %v7582
        %8307 = vmatprep.subr.mxu0 0.0
        %8308 = vmatpush1.msra.mxu0 %v7581
        %8309 = vmatprep.subr.mxu0 0.0
        %8310 = vmatpush1.msra.mxu0 %v7580
        %8311 = vmatprep.subr.mxu0 0.0
        %8312 = vmatpush1.msra.mxu0 %v7579
        %8313 = vmatprep.subr.mxu0 0.0
        %8314 = vmatpush1.msra.mxu0 %v7578
        %8315 = vmatprep.subr.mxu0 0.0
        %8316 = vmatpush1.msra.mxu0 %v7577
        %8317 = vmatprep.subr.mxu0 0.0
        %8318 = vmatpush2.msra.mxu0 %v7608
        %8319 = vmatprep.subr.mxu0 0.0
        %8320 = vmatpush2.msra.mxu0 %v7607
        %8321 = vmatprep.subr.mxu0 0.0
        %8322 = vmatpush2.msra.mxu0 %v7606
        %8323 = vmatprep.subr.mxu0 0.0
        %8324 = vmatpush2.msra.mxu0 %v7605
        %8325 = vmatprep.subr.mxu0 0.0
        %8326 = vmatpush2.msra.mxu0 %v7604
        %8327 = vmatprep.subr.mxu0 0.0
        %8328 = vmatpush2.msra.mxu0 %v7603
        %8329 = vmatprep.subr.mxu0 0.0
        %8330 = vmatpush2.msra.mxu0 %v7602
        %8331 = vmatprep.subr.mxu0 0.0
        %8332 = vmatpush2.msra.mxu0 %v7601
        %8333 = vmatprep.subr.mxu0 0.0
        %8334 = vmatpush2.msra.mxu0 %v7600
        %8335 = vmatprep.subr.mxu0 0.0
        %8336 = vmatpush2.msra.mxu0 %v7599
        %8337 = vmatprep.subr.mxu0 0.0
        %8338 = vmatpush2.msra.mxu0 %v7598
        %8339 = vmatprep.subr.mxu0 0.0
        %8340 = vmatpush2.msra.mxu0 %v7597
        %8341 = vmatprep.subr.mxu0 0.0
        %8342 = vmatpush2.msra.mxu0 %v7596
        %8343 = vmatprep.subr.mxu0 0.0
        %8344 = vmatpush2.msra.mxu0 %v7595
        %8345 = vmatprep.subr.mxu0 0.0
        %8346 = vmatpush2.msra.mxu0 %v7594
        %8347 = vmatprep.subr.mxu0 0.0
        %8348 = vmatpush2.msra.mxu0 %v7593
        %8349 = vmatprep.mubr.f32.mxu0 %v7202
        %8350 = vmatmul.mubr.f32.gmra.mxu0 %v7201
        %v8351 = vpop.f32.mrf.mxu0
        %v8352 = vadd.f32 %v8207, %v8351
        %v8353 = vpop.f32.mrf.mxu0
        %8354 = vmatprep.mubr.f32.mxu0 %v7218
        %8355 = vmatmul.mubr.f32.gmra.mxu0 %v7217
        %v8356 = vpop.f32.mrf.mxu0
        %v8357 = vadd.f32 %v8212, %v8356
        %v8358 = vpop.f32.mrf.mxu0
        %8359 = vmatprep.mubr.f32.mxu0 %v7234
        %8360 = vmatmul.mubr.f32.gmra.mxu0 %v7233
        %v8361 = vpop.f32.mrf.mxu0
        %v8362 = vadd.f32 %v8217, %v8361
        %v8363 = vpop.f32.mrf.mxu0
        %8364 = vmatprep.mubr.f32.mxu0 %v7250
        %8365 = vmatmul.mubr.f32.gmra.mxu0 %v7249
        %v8366 = vpop.f32.mrf.mxu0
        %v8367 = vadd.f32 %v8222, %v8366
        %v8368 = vpop.f32.mrf.mxu0
        %8369 = vmatprep.mubr.f32.mxu0 %v7266
        %8370 = vmatmul.mubr.f32.gmra.mxu0 %v7265
        %v8371 = vpop.f32.mrf.mxu0
        %v8372 = vadd.f32 %v8227, %v8371
        %v8373 = vpop.f32.mrf.mxu0
        %8374 = vmatprep.mubr.f32.mxu0 %v7282
        %8375 = vmatmul.mubr.f32.gmra.mxu0 %v7281
        %v8376 = vpop.f32.mrf.mxu0
        %v8377 = vadd.f32 %v8232, %v8376
        %v8378 = vpop.f32.mrf.mxu0
        %8379 = vmatprep.mubr.f32.mxu0 %v7298
        %8380 = vmatmul.mubr.f32.gmra.mxu0 %v7297
        %v8381 = vpop.f32.mrf.mxu0
        %v8382 = vadd.f32 %v8237, %v8381
        %v8383 = vpop.f32.mrf.mxu0
        %8384 = vmatprep.mubr.f32.mxu0 %v7314
        %8385 = vmatmul.mubr.f32.gmra.mxu0 %v7313
        %v8386 = vpop.f32.mrf.mxu0
        %v8387 = vadd.f32 %v8242, %v8386
        %v8388 = vpop.f32.mrf.mxu0
        %8389 = vmatprep.mubr.f32.mxu0 %v7330
        %8390 = vmatmul.mubr.f32.gmra.mxu0 %v7329
        %v8391 = vpop.f32.mrf.mxu0
        %v8392 = vadd.f32 %v8247, %v8391
        %v8393 = vpop.f32.mrf.mxu0
        %8394 = vmatprep.mubr.f32.mxu0 %v7346
        %8395 = vmatmul.mubr.f32.gmra.mxu0 %v7345
        %v8396 = vpop.f32.mrf.mxu0
        %v8397 = vadd.f32 %v8252, %v8396
        %v8398 = vpop.f32.mrf.mxu0
        %8399 = vmatprep.mubr.f32.mxu0 %v7362
        %8400 = vmatmul.mubr.f32.gmra.mxu0 %v7361
        %v8401 = vpop.f32.mrf.mxu0
        %v8402 = vadd.f32 %v8257, %v8401
        %v8403 = vpop.f32.mrf.mxu0
        %8404 = vmatprep.mubr.f32.mxu0 %v7378
        %8405 = vmatmul.mubr.f32.gmra.mxu0 %v7377
        %v8406 = vpop.f32.mrf.mxu0
        %v8407 = vadd.f32 %v8262, %v8406
        %v8408 = vpop.f32.mrf.mxu0
        %8409 = vmatprep.mubr.f32.mxu0 %v7394
        %8410 = vmatmul.mubr.f32.gmra.mxu0 %v7393
        %v8411 = vpop.f32.mrf.mxu0
        %v8412 = vadd.f32 %v8267, %v8411
        %v8413 = vpop.f32.mrf.mxu0
        %8414 = vmatprep.mubr.f32.mxu0 %v7410
        %8415 = vmatmul.mubr.f32.gmra.mxu0 %v7409
        %v8416 = vpop.f32.mrf.mxu0
        %v8417 = vadd.f32 %v8272, %v8416
        %v8418 = vpop.f32.mrf.mxu0
        %8419 = vmatprep.mubr.f32.mxu0 %v7426
        %8420 = vmatmul.mubr.f32.gmra.mxu0 %v7425
        %v8421 = vpop.f32.mrf.mxu0
        %v8422 = vadd.f32 %v8277, %v8421
        %v8423 = vpop.f32.mrf.mxu0
        %8424 = vmatprep.mubr.f32.mxu0 %v7442
        %8425 = vmatmul.mubr.f32.gmra.mxu0 %v7441
        %v8426 = vpop.f32.mrf.mxu0
        %v8427 = vadd.f32 %v8282, %v8426
        %v8428 = vpop.f32.mrf.mxu0
        %8429 = vdwg.mxu0
        %8430 = vmatprep.subr.mxu0 0.0
        %8431 = vmatpush1.msra.mxu0 %v7624
        %8432 = vmatprep.subr.mxu0 0.0
        %8433 = vmatpush1.msra.mxu0 %v7623
        %8434 = vmatprep.subr.mxu0 0.0
        %8435 = vmatpush1.msra.mxu0 %v7622
        %8436 = vmatprep.subr.mxu0 0.0
        %8437 = vmatpush1.msra.mxu0 %v7621
        %8438 = vmatprep.subr.mxu0 0.0
        %8439 = vmatpush1.msra.mxu0 %v7620
        %8440 = vmatprep.subr.mxu0 0.0
        %8441 = vmatpush1.msra.mxu0 %v7619
        %8442 = vmatprep.subr.mxu0 0.0
        %8443 = vmatpush1.msra.mxu0 %v7618
        %8444 = vmatprep.subr.mxu0 0.0
        %8445 = vmatpush1.msra.mxu0 %v7617
        %8446 = vmatprep.subr.mxu0 0.0
        %8447 = vmatpush1.msra.mxu0 %v7616
        %8448 = vmatprep.subr.mxu0 0.0
        %8449 = vmatpush1.msra.mxu0 %v7615
        %8450 = vmatprep.subr.mxu0 0.0
        %8451 = vmatpush1.msra.mxu0 %v7614
        %8452 = vmatprep.subr.mxu0 0.0
        %8453 = vmatpush1.msra.mxu0 %v7613
        %8454 = vmatprep.subr.mxu0 0.0
        %8455 = vmatpush1.msra.mxu0 %v7612
        %8456 = vmatprep.subr.mxu0 0.0
        %8457 = vmatpush1.msra.mxu0 %v7611
        %8458 = vmatprep.subr.mxu0 0.0
        %8459 = vmatpush1.msra.mxu0 %v7610
        %8460 = vmatprep.subr.mxu0 0.0
        %8461 = vmatpush1.msra.mxu0 %v7609
        %8462 = vmatprep.subr.mxu0 0.0
        %8463 = vmatpush2.msra.mxu0 %v7640
        %8464 = vmatprep.subr.mxu0 0.0
        %8465 = vmatpush2.msra.mxu0 %v7639
        %8466 = vmatprep.subr.mxu0 0.0
        %8467 = vmatpush2.msra.mxu0 %v7638
        %8468 = vmatprep.subr.mxu0 0.0
        %8469 = vmatpush2.msra.mxu0 %v7637
        %8470 = vmatprep.subr.mxu0 0.0
        %8471 = vmatpush2.msra.mxu0 %v7636
        %8472 = vmatprep.subr.mxu0 0.0
        %8473 = vmatpush2.msra.mxu0 %v7635
        %8474 = vmatprep.subr.mxu0 0.0
        %8475 = vmatpush2.msra.mxu0 %v7634
        %8476 = vmatprep.subr.mxu0 0.0
        %8477 = vmatpush2.msra.mxu0 %v7633
        %8478 = vmatprep.subr.mxu0 0.0
        %8479 = vmatpush2.msra.mxu0 %v7632
        %8480 = vmatprep.subr.mxu0 0.0
        %8481 = vmatpush2.msra.mxu0 %v7631
        %8482 = vmatprep.subr.mxu0 0.0
        %8483 = vmatpush2.msra.mxu0 %v7630
        %8484 = vmatprep.subr.mxu0 0.0
        %8485 = vmatpush2.msra.mxu0 %v7629
        %8486 = vmatprep.subr.mxu0 0.0
        %8487 = vmatpush2.msra.mxu0 %v7628
        %8488 = vmatprep.subr.mxu0 0.0
        %8489 = vmatpush2.msra.mxu0 %v7627
        %8490 = vmatprep.subr.mxu0 0.0
        %8491 = vmatpush2.msra.mxu0 %v7626
        %8492 = vmatprep.subr.mxu0 0.0
        %8493 = vmatpush2.msra.mxu0 %v7625
        %8494 = vmatprep.mubr.f32.mxu0 %v7204
        %8495 = vmatmul.mubr.f32.gmra.mxu0 %v7203
        %v8496 = vpop.f32.mrf.mxu0
        %v8497 = vadd.f32 %v8352, %v8496
        %v8498 = vpop.f32.mrf.mxu0
        %8499 = vmatprep.mubr.f32.mxu0 %v7220
        %8500 = vmatmul.mubr.f32.gmra.mxu0 %v7219
        %v8501 = vpop.f32.mrf.mxu0
        %v8502 = vadd.f32 %v8357, %v8501
        %v8503 = vpop.f32.mrf.mxu0
        %8504 = vmatprep.mubr.f32.mxu0 %v7236
        %8505 = vmatmul.mubr.f32.gmra.mxu0 %v7235
        %v8506 = vpop.f32.mrf.mxu0
        %v8507 = vadd.f32 %v8362, %v8506
        %v8508 = vpop.f32.mrf.mxu0
        %8509 = vmatprep.mubr.f32.mxu0 %v7252
        %8510 = vmatmul.mubr.f32.gmra.mxu0 %v7251
        %v8511 = vpop.f32.mrf.mxu0
        %v8512 = vadd.f32 %v8367, %v8511
        %v8513 = vpop.f32.mrf.mxu0
        %8514 = vmatprep.mubr.f32.mxu0 %v7268
        %8515 = vmatmul.mubr.f32.gmra.mxu0 %v7267
        %v8516 = vpop.f32.mrf.mxu0
        %v8517 = vadd.f32 %v8372, %v8516
        %v8518 = vpop.f32.mrf.mxu0
        %8519 = vmatprep.mubr.f32.mxu0 %v7284
        %8520 = vmatmul.mubr.f32.gmra.mxu0 %v7283
        %v8521 = vpop.f32.mrf.mxu0
        %v8522 = vadd.f32 %v8377, %v8521
        %v8523 = vpop.f32.mrf.mxu0
        %8524 = vmatprep.mubr.f32.mxu0 %v7300
        %8525 = vmatmul.mubr.f32.gmra.mxu0 %v7299
        %v8526 = vpop.f32.mrf.mxu0
        %v8527 = vadd.f32 %v8382, %v8526
        %v8528 = vpop.f32.mrf.mxu0
        %8529 = vmatprep.mubr.f32.mxu0 %v7316
        %8530 = vmatmul.mubr.f32.gmra.mxu0 %v7315
        %v8531 = vpop.f32.mrf.mxu0
        %v8532 = vadd.f32 %v8387, %v8531
        %v8533 = vpop.f32.mrf.mxu0
        %8534 = vmatprep.mubr.f32.mxu0 %v7332
        %8535 = vmatmul.mubr.f32.gmra.mxu0 %v7331
        %v8536 = vpop.f32.mrf.mxu0
        %v8537 = vadd.f32 %v8392, %v8536
        %v8538 = vpop.f32.mrf.mxu0
        %8539 = vmatprep.mubr.f32.mxu0 %v7348
        %8540 = vmatmul.mubr.f32.gmra.mxu0 %v7347
        %v8541 = vpop.f32.mrf.mxu0
        %v8542 = vadd.f32 %v8397, %v8541
        %v8543 = vpop.f32.mrf.mxu0
        %8544 = vmatprep.mubr.f32.mxu0 %v7364
        %8545 = vmatmul.mubr.f32.gmra.mxu0 %v7363
        %v8546 = vpop.f32.mrf.mxu0
        %v8547 = vadd.f32 %v8402, %v8546
        %v8548 = vpop.f32.mrf.mxu0
        %8549 = vmatprep.mubr.f32.mxu0 %v7380
        %8550 = vmatmul.mubr.f32.gmra.mxu0 %v7379
        %v8551 = vpop.f32.mrf.mxu0
        %v8552 = vadd.f32 %v8407, %v8551
        %v8553 = vpop.f32.mrf.mxu0
        %8554 = vmatprep.mubr.f32.mxu0 %v7396
        %8555 = vmatmul.mubr.f32.gmra.mxu0 %v7395
        %v8556 = vpop.f32.mrf.mxu0
        %v8557 = vadd.f32 %v8412, %v8556
        %v8558 = vpop.f32.mrf.mxu0
        %8559 = vmatprep.mubr.f32.mxu0 %v7412
        %8560 = vmatmul.mubr.f32.gmra.mxu0 %v7411
        %v8561 = vpop.f32.mrf.mxu0
        %v8562 = vadd.f32 %v8417, %v8561
        %v8563 = vpop.f32.mrf.mxu0
        %8564 = vmatprep.mubr.f32.mxu0 %v7428
        %8565 = vmatmul.mubr.f32.gmra.mxu0 %v7427
        %v8566 = vpop.f32.mrf.mxu0
        %v8567 = vadd.f32 %v8422, %v8566
        %v8568 = vpop.f32.mrf.mxu0
        %8569 = vmatprep.mubr.f32.mxu0 %v7444
        %8570 = vmatmul.mubr.f32.gmra.mxu0 %v7443
        %v8571 = vpop.f32.mrf.mxu0
        %v8572 = vadd.f32 %v8427, %v8571
        %v8573 = vpop.f32.mrf.mxu0
        %8574 = vdwg.mxu0
        %8575 = vmatprep.subr.mxu0 0.0
        %8576 = vmatpush1.msra.mxu0 %v7656
        %8577 = vmatprep.subr.mxu0 0.0
        %8578 = vmatpush1.msra.mxu0 %v7655
        %8579 = vmatprep.subr.mxu0 0.0
        %8580 = vmatpush1.msra.mxu0 %v7654
        %8581 = vmatprep.subr.mxu0 0.0
        %8582 = vmatpush1.msra.mxu0 %v7653
        %8583 = vmatprep.subr.mxu0 0.0
        %8584 = vmatpush1.msra.mxu0 %v7652
        %8585 = vmatprep.subr.mxu0 0.0
        %8586 = vmatpush1.msra.mxu0 %v7651
        %8587 = vmatprep.subr.mxu0 0.0
        %8588 = vmatpush1.msra.mxu0 %v7650
        %8589 = vmatprep.subr.mxu0 0.0
        %8590 = vmatpush1.msra.mxu0 %v7649
        %8591 = vmatprep.subr.mxu0 0.0
        %8592 = vmatpush1.msra.mxu0 %v7648
        %8593 = vmatprep.subr.mxu0 0.0
        %8594 = vmatpush1.msra.mxu0 %v7647
        %8595 = vmatprep.subr.mxu0 0.0
        %8596 = vmatpush1.msra.mxu0 %v7646
        %8597 = vmatprep.subr.mxu0 0.0
        %8598 = vmatpush1.msra.mxu0 %v7645
        %8599 = vmatprep.subr.mxu0 0.0
        %8600 = vmatpush1.msra.mxu0 %v7644
        %8601 = vmatprep.subr.mxu0 0.0
        %8602 = vmatpush1.msra.mxu0 %v7643
        %8603 = vmatprep.subr.mxu0 0.0
        %8604 = vmatpush1.msra.mxu0 %v7642
        %8605 = vmatprep.subr.mxu0 0.0
        %8606 = vmatpush1.msra.mxu0 %v7641
        %8607 = vmatprep.subr.mxu0 0.0
        %8608 = vmatpush2.msra.mxu0 %v7672
        %8609 = vmatprep.subr.mxu0 0.0
        %8610 = vmatpush2.msra.mxu0 %v7671
        %8611 = vmatprep.subr.mxu0 0.0
        %8612 = vmatpush2.msra.mxu0 %v7670
        %8613 = vmatprep.subr.mxu0 0.0
        %8614 = vmatpush2.msra.mxu0 %v7669
        %8615 = vmatprep.subr.mxu0 0.0
        %8616 = vmatpush2.msra.mxu0 %v7668
        %8617 = vmatprep.subr.mxu0 0.0
        %8618 = vmatpush2.msra.mxu0 %v7667
        %8619 = vmatprep.subr.mxu0 0.0
        %8620 = vmatpush2.msra.mxu0 %v7666
        %8621 = vmatprep.subr.mxu0 0.0
        %8622 = vmatpush2.msra.mxu0 %v7665
        %8623 = vmatprep.subr.mxu0 0.0
        %8624 = vmatpush2.msra.mxu0 %v7664
        %8625 = vmatprep.subr.mxu0 0.0
        %8626 = vmatpush2.msra.mxu0 %v7663
        %8627 = vmatprep.subr.mxu0 0.0
        %8628 = vmatpush2.msra.mxu0 %v7662
        %8629 = vmatprep.subr.mxu0 0.0
        %8630 = vmatpush2.msra.mxu0 %v7661
        %8631 = vmatprep.subr.mxu0 0.0
        %8632 = vmatpush2.msra.mxu0 %v7660
        %8633 = vmatprep.subr.mxu0 0.0
        %8634 = vmatpush2.msra.mxu0 %v7659
        %8635 = vmatprep.subr.mxu0 0.0
        %8636 = vmatpush2.msra.mxu0 %v7658
        %8637 = vmatprep.subr.mxu0 0.0
        %8638 = vmatpush2.msra.mxu0 %v7657
        %8639 = vmatprep.mubr.f32.mxu0 %v7206
        %8640 = vmatmul.mubr.f32.gmra.mxu0 %v7205
        %v8641 = vpop.f32.mrf.mxu0
        %v8642 = vadd.f32 %v8497, %v8641
        %v8643 = vpop.f32.mrf.mxu0
        %8644 = vmatprep.mubr.f32.mxu0 %v7222
        %8645 = vmatmul.mubr.f32.gmra.mxu0 %v7221
        %v8646 = vpop.f32.mrf.mxu0
        %v8647 = vadd.f32 %v8502, %v8646
        %v8648 = vpop.f32.mrf.mxu0
        %8649 = vmatprep.mubr.f32.mxu0 %v7238
        %8650 = vmatmul.mubr.f32.gmra.mxu0 %v7237
        %v8651 = vpop.f32.mrf.mxu0
        %v8652 = vadd.f32 %v8507, %v8651
        %v8653 = vpop.f32.mrf.mxu0
        %8654 = vmatprep.mubr.f32.mxu0 %v7254
        %8655 = vmatmul.mubr.f32.gmra.mxu0 %v7253
        %v8656 = vpop.f32.mrf.mxu0
        %v8657 = vadd.f32 %v8512, %v8656
        %v8658 = vpop.f32.mrf.mxu0
        %8659 = vmatprep.mubr.f32.mxu0 %v7270
        %8660 = vmatmul.mubr.f32.gmra.mxu0 %v7269
        %v8661 = vpop.f32.mrf.mxu0
        %v8662 = vadd.f32 %v8517, %v8661
        %v8663 = vpop.f32.mrf.mxu0
        %8664 = vmatprep.mubr.f32.mxu0 %v7286
        %8665 = vmatmul.mubr.f32.gmra.mxu0 %v7285
        %v8666 = vpop.f32.mrf.mxu0
        %v8667 = vadd.f32 %v8522, %v8666
        %v8668 = vpop.f32.mrf.mxu0
        %8669 = vmatprep.mubr.f32.mxu0 %v7302
        %8670 = vmatmul.mubr.f32.gmra.mxu0 %v7301
        %v8671 = vpop.f32.mrf.mxu0
        %v8672 = vadd.f32 %v8527, %v8671
        %v8673 = vpop.f32.mrf.mxu0
        %8674 = vmatprep.mubr.f32.mxu0 %v7318
        %8675 = vmatmul.mubr.f32.gmra.mxu0 %v7317
        %v8676 = vpop.f32.mrf.mxu0
        %v8677 = vadd.f32 %v8532, %v8676
        %v8678 = vpop.f32.mrf.mxu0
        %8679 = vmatprep.mubr.f32.mxu0 %v7334
        %8680 = vmatmul.mubr.f32.gmra.mxu0 %v7333
        %v8681 = vpop.f32.mrf.mxu0
        %v8682 = vadd.f32 %v8537, %v8681
        %v8683 = vpop.f32.mrf.mxu0
        %8684 = vmatprep.mubr.f32.mxu0 %v7350
        %8685 = vmatmul.mubr.f32.gmra.mxu0 %v7349
        %v8686 = vpop.f32.mrf.mxu0
        %v8687 = vadd.f32 %v8542, %v8686
        %v8688 = vpop.f32.mrf.mxu0
        %8689 = vmatprep.mubr.f32.mxu0 %v7366
        %8690 = vmatmul.mubr.f32.gmra.mxu0 %v7365
        %v8691 = vpop.f32.mrf.mxu0
        %v8692 = vadd.f32 %v8547, %v8691
        %v8693 = vpop.f32.mrf.mxu0
        %8694 = vmatprep.mubr.f32.mxu0 %v7382
        %8695 = vmatmul.mubr.f32.gmra.mxu0 %v7381
        %v8696 = vpop.f32.mrf.mxu0
        %v8697 = vadd.f32 %v8552, %v8696
        %v8698 = vpop.f32.mrf.mxu0
        %8699 = vmatprep.mubr.f32.mxu0 %v7398
        %8700 = vmatmul.mubr.f32.gmra.mxu0 %v7397
        %v8701 = vpop.f32.mrf.mxu0
        %v8702 = vadd.f32 %v8557, %v8701
        %v8703 = vpop.f32.mrf.mxu0
        %8704 = vmatprep.mubr.f32.mxu0 %v7414
        %8705 = vmatmul.mubr.f32.gmra.mxu0 %v7413
        %v8706 = vpop.f32.mrf.mxu0
        %v8707 = vadd.f32 %v8562, %v8706
        %v8708 = vpop.f32.mrf.mxu0
        %8709 = vmatprep.mubr.f32.mxu0 %v7430
        %8710 = vmatmul.mubr.f32.gmra.mxu0 %v7429
        %v8711 = vpop.f32.mrf.mxu0
        %v8712 = vadd.f32 %v8567, %v8711
        %v8713 = vpop.f32.mrf.mxu0
        %8714 = vmatprep.mubr.f32.mxu0 %v7446
        %8715 = vmatmul.mubr.f32.gmra.mxu0 %v7445
        %v8716 = vpop.f32.mrf.mxu0
        %v8717 = vadd.f32 %v8572, %v8716
        %v8718 = vpop.f32.mrf.mxu0
        %8719 = vdwg.mxu0
        %8720 = vmatprep.subr.mxu0 0.0
        %8721 = vmatpush1.msra.mxu0 %v7688
        %8722 = vmatprep.subr.mxu0 0.0
        %8723 = vmatpush1.msra.mxu0 %v7687
        %8724 = vmatprep.subr.mxu0 0.0
        %8725 = vmatpush1.msra.mxu0 %v7686
        %8726 = vmatprep.subr.mxu0 0.0
        %8727 = vmatpush1.msra.mxu0 %v7685
        %8728 = vmatprep.subr.mxu0 0.0
        %8729 = vmatpush1.msra.mxu0 %v7684
        %8730 = vmatprep.subr.mxu0 0.0
        %8731 = vmatpush1.msra.mxu0 %v7683
        %8732 = vmatprep.subr.mxu0 0.0
        %8733 = vmatpush1.msra.mxu0 %v7682
        %8734 = vmatprep.subr.mxu0 0.0
        %8735 = vmatpush1.msra.mxu0 %v7681
        %8736 = vmatprep.subr.mxu0 0.0
        %8737 = vmatpush1.msra.mxu0 %v7680
        %8738 = vmatprep.subr.mxu0 0.0
        %8739 = vmatpush1.msra.mxu0 %v7679
        %8740 = vmatprep.subr.mxu0 0.0
        %8741 = vmatpush1.msra.mxu0 %v7678
        %8742 = vmatprep.subr.mxu0 0.0
        %8743 = vmatpush1.msra.mxu0 %v7677
        %8744 = vmatprep.subr.mxu0 0.0
        %8745 = vmatpush1.msra.mxu0 %v7676
        %8746 = vmatprep.subr.mxu0 0.0
        %8747 = vmatpush1.msra.mxu0 %v7675
        %8748 = vmatprep.subr.mxu0 0.0
        %8749 = vmatpush1.msra.mxu0 %v7674
        %8750 = vmatprep.subr.mxu0 0.0
        %8751 = vmatpush1.msra.mxu0 %v7673
        %8752 = vmatprep.subr.mxu0 0.0
        %8753 = vmatpush2.msra.mxu0 %v7704
        %8754 = vmatprep.subr.mxu0 0.0
        %8755 = vmatpush2.msra.mxu0 %v7703
        %8756 = vmatprep.subr.mxu0 0.0
        %8757 = vmatpush2.msra.mxu0 %v7702
        %8758 = vmatprep.subr.mxu0 0.0
        %8759 = vmatpush2.msra.mxu0 %v7701
        %8760 = vmatprep.subr.mxu0 0.0
        %8761 = vmatpush2.msra.mxu0 %v7700
        %8762 = vmatprep.subr.mxu0 0.0
        %8763 = vmatpush2.msra.mxu0 %v7699
        %8764 = vmatprep.subr.mxu0 0.0
        %8765 = vmatpush2.msra.mxu0 %v7698
        %8766 = vmatprep.subr.mxu0 0.0
        %8767 = vmatpush2.msra.mxu0 %v7697
        %8768 = vmatprep.subr.mxu0 0.0
        %8769 = vmatpush2.msra.mxu0 %v7696
        %8770 = vmatprep.subr.mxu0 0.0
        %8771 = vmatpush2.msra.mxu0 %v7695
        %8772 = vmatprep.subr.mxu0 0.0
        %8773 = vmatpush2.msra.mxu0 %v7694
        %8774 = vmatprep.subr.mxu0 0.0
        %8775 = vmatpush2.msra.mxu0 %v7693
        %8776 = vmatprep.subr.mxu0 0.0
        %8777 = vmatpush2.msra.mxu0 %v7692
        %8778 = vmatprep.subr.mxu0 0.0
        %8779 = vmatpush2.msra.mxu0 %v7691
        %8780 = vmatprep.subr.mxu0 0.0
        %8781 = vmatpush2.msra.mxu0 %v7690
        %8782 = vmatprep.subr.mxu0 0.0
        %8783 = vmatpush2.msra.mxu0 %v7689
        %8784 = vmatprep.mubr.f32.mxu0 %v7208
        %8785 = vmatmul.mubr.f32.gmra.mxu0 %v7207
        %v8786 = vpop.f32.mrf.mxu0
        %v8787 = vadd.f32 %v8642, %v8786
        %v8788 = vpop.f32.mrf.mxu0
        %8789 = vmatprep.mubr.f32.mxu0 %v7224
        %8790 = vmatmul.mubr.f32.gmra.mxu0 %v7223
        %v8791 = vpop.f32.mrf.mxu0
        %v8792 = vadd.f32 %v8647, %v8791
        %v8793 = vpop.f32.mrf.mxu0
        %8794 = vmatprep.mubr.f32.mxu0 %v7240
        %8795 = vmatmul.mubr.f32.gmra.mxu0 %v7239
        %v8796 = vpop.f32.mrf.mxu0
        %v8797 = vadd.f32 %v8652, %v8796
        %v8798 = vpop.f32.mrf.mxu0
        %8799 = vmatprep.mubr.f32.mxu0 %v7256
        %8800 = vmatmul.mubr.f32.gmra.mxu0 %v7255
        %v8801 = vpop.f32.mrf.mxu0
        %v8802 = vadd.f32 %v8657, %v8801
        %v8803 = vpop.f32.mrf.mxu0
        %8804 = vmatprep.mubr.f32.mxu0 %v7272
        %8805 = vmatmul.mubr.f32.gmra.mxu0 %v7271
        %v8806 = vpop.f32.mrf.mxu0
        %v8807 = vadd.f32 %v8662, %v8806
        %v8808 = vpop.f32.mrf.mxu0
        %8809 = vmatprep.mubr.f32.mxu0 %v7288
        %8810 = vmatmul.mubr.f32.gmra.mxu0 %v7287
        %v8811 = vpop.f32.mrf.mxu0
        %v8812 = vadd.f32 %v8667, %v8811
        %v8813 = vpop.f32.mrf.mxu0
        %8814 = vmatprep.mubr.f32.mxu0 %v7304
        %8815 = vmatmul.mubr.f32.gmra.mxu0 %v7303
        %v8816 = vpop.f32.mrf.mxu0
        %v8817 = vadd.f32 %v8672, %v8816
        %v8818 = vpop.f32.mrf.mxu0
        %8819 = vmatprep.mubr.f32.mxu0 %v7320
        %8820 = vmatmul.mubr.f32.gmra.mxu0 %v7319
        %v8821 = vpop.f32.mrf.mxu0
        %v8822 = vadd.f32 %v8677, %v8821
        %v8823 = vpop.f32.mrf.mxu0
        %8824 = vmatprep.mubr.f32.mxu0 %v7336
        %8825 = vmatmul.mubr.f32.gmra.mxu0 %v7335
        %v8826 = vpop.f32.mrf.mxu0
        %v8827 = vadd.f32 %v8682, %v8826
        %v8828 = vpop.f32.mrf.mxu0
        %8829 = vmatprep.mubr.f32.mxu0 %v7352
        %8830 = vmatmul.mubr.f32.gmra.mxu0 %v7351
        %v8831 = vpop.f32.mrf.mxu0
        %v8832 = vadd.f32 %v8687, %v8831
        %v8833 = vpop.f32.mrf.mxu0
        %8834 = vmatprep.mubr.f32.mxu0 %v7368
        %8835 = vmatmul.mubr.f32.gmra.mxu0 %v7367
        %v8836 = vpop.f32.mrf.mxu0
        %v8837 = vadd.f32 %v8692, %v8836
        %v8838 = vpop.f32.mrf.mxu0
        %8839 = vmatprep.mubr.f32.mxu0 %v7384
        %8840 = vmatmul.mubr.f32.gmra.mxu0 %v7383
        %v8841 = vpop.f32.mrf.mxu0
        %v8842 = vadd.f32 %v8697, %v8841
        %v8843 = vpop.f32.mrf.mxu0
        %8844 = vmatprep.mubr.f32.mxu0 %v7400
        %8845 = vmatmul.mubr.f32.gmra.mxu0 %v7399
        %v8846 = vpop.f32.mrf.mxu0
        %v8847 = vadd.f32 %v8702, %v8846
        %v8848 = vpop.f32.mrf.mxu0
        %8849 = vmatprep.mubr.f32.mxu0 %v7416
        %8850 = vmatmul.mubr.f32.gmra.mxu0 %v7415
        %v8851 = vpop.f32.mrf.mxu0
        %v8852 = vadd.f32 %v8707, %v8851
        %v8853 = vpop.f32.mrf.mxu0
        %8854 = vmatprep.mubr.f32.mxu0 %v7432
        %8855 = vmatmul.mubr.f32.gmra.mxu0 %v7431
        %v8856 = vpop.f32.mrf.mxu0
        %v8857 = vadd.f32 %v8712, %v8856
        %v8858 = vpop.f32.mrf.mxu0
        %8859 = vmatprep.mubr.f32.mxu0 %v7448
        %8860 = vmatmul.mubr.f32.gmra.mxu0 %v7447
        %v8861 = vpop.f32.mrf.mxu0
        %v8862 = vadd.f32 %v8717, %v8861
        %v8863 = vpop.f32.mrf.mxu0
        %8864 = vdwg.mxu0
        %8865 = vxpose.xlu0.b32.start [1/16] %v8787, 128
        %8866 = vxpose.xlu0.b32.cont [2/16] %v8792, 128
        %8867 = vxpose.xlu0.b32.cont [3/16] %v8797, 128
        %8868 = vxpose.xlu0.b32.cont [4/16] %v8802, 128
        %8869 = vxpose.xlu0.b32.cont [5/16] %v8807, 128
        %8870 = vxpose.xlu0.b32.cont [6/16] %v8812, 128
        %8871 = vxpose.xlu0.b32.cont [7/16] %v8817, 128
        %8872 = vxpose.xlu0.b32.cont [8/16] %v8822, 128
        %8873 = vxpose.xlu0.b32.cont [9/16] %v8827, 128
        %8874 = vxpose.xlu0.b32.cont [10/16] %v8832, 128
        %8875 = vxpose.xlu0.b32.cont [11/16] %v8837, 128
        %8876 = vxpose.xlu0.b32.cont [12/16] %v8842, 128
        %8877 = vxpose.xlu0.b32.cont [13/16] %v8847, 128
        %8878 = vxpose.xlu0.b32.cont [14/16] %v8852, 128
        %8879 = vxpose.xlu0.b32.cont [15/16] %v8857, 128
        %8880 = vxpose.xlu0.b32.end [16/16] %v8862, 128
        %v8881 = vpop.trf.xlu0
        %v8882 = vpop.trf.xlu0
        %v8883 = vpop.trf.xlu0
        %v8884 = vpop.trf.xlu0
        %v8885 = vpop.trf.xlu0
        %v8886 = vpop.trf.xlu0
        %v8887 = vpop.trf.xlu0
        %v8888 = vpop.trf.xlu0
        %v8889 = vpop.trf.xlu0
        %v8890 = vpop.trf.xlu0
        %v8891 = vpop.trf.xlu0
        %v8892 = vpop.trf.xlu0
        %v8893 = vpop.trf.xlu0
        %v8894 = vpop.trf.xlu0
        %v8895 = vpop.trf.xlu0
        %v8896 = vpop.trf.xlu0
        %8897 = vadd.xlane.f32.xlu0 %v8881
        %v8898 = vpop.xlane.xlu0 %8897
        %v8899 = vmul.f32 %v8898, 0.0078125
        %v8900 = vsub.f32 %v8881, %v8899
        %v8901 = vmul.f32 %v8900, %v8900
        %8902 = vadd.xlane.f32.xlu0 %v8901
        %v8903 = vpop.xlane.xlu0 %8902
        %v8904 = vmul.f32 %v8903, 0.007874016
        %v8905 = vrsqrt.pop %v8904
        %v8906 = vmul.f32 %v8904, %v8905
        %vm8907 = vcmp.eq.f32.partialorder %v8904, inf
        %v8908 = vsel %vm8907, %v8904, %v8906
        %vm8909 = vcmp.eq.f32.partialorder %v8904, 0.0
        %v8910 = vand.u32 %v8904, 2147483648
        %v8911 = vsel %vm8909, %v8910, %v8908
        %v8912 = vadd.f32 %v8911, 1e-06
        %v8913 = vrcp.pop %v8912
        %v8914 = vmul.f32 %v8900, %v8913
        %v8915 = vld [vmem:[%s4] sm:$0xff]
        %v8916 = vld [vmem:[%s4 + $0x8] sm:$0xff]
        %v8917 = vld [vmem:[%s4 + $0x10] sm:$0xff]
        %v8918 = vld [vmem:[%s4 + $0x18] sm:$0xff]
        %v8919 = vld [vmem:[%s4 + $0x20] sm:$0xff]
        %v8920 = vld [vmem:[%s4 + $0x28] sm:$0xff]
        %v8921 = vld [vmem:[%s4 + $0x30] sm:$0xff]
        %v8922 = vld [vmem:[%s4 + $0x38] sm:$0xff]
        %v8923 = vld [vmem:[%s4 + $0x40] sm:$0xff]
        %v8924 = vld [vmem:[%s4 + $0x48] sm:$0xff]
        %v8925 = vld [vmem:[%s4 + $0x50] sm:$0xff]
        %v8926 = vld [vmem:[%s4 + $0x58] sm:$0xff]
        %v8927 = vld [vmem:[%s4 + $0x60] sm:$0xff]
        %v8928 = vld [vmem:[%s4 + $0x68] sm:$0xff]
        %v8929 = vld [vmem:[%s4 + $0x70] sm:$0xff]
        %v8930 = vld [vmem:[%s4 + $0x78] sm:$0xff]
        %v8931 = vld [vmem:[%s5] sm:$0x1]
        %v8933 = vlaneseq
        %v8934 = vshrl.u32 %v8933, 7
        %v8935 = vsub.s32 0, %v8934
        %v8936 = vrot.slane %v8931, %v8935
        %8938 = vmatprep.subr.mxu0 0.0
        %8939 = vmatpush1.msra.mxu0 %v8930
        %8940 = vmatprep.subr.mxu0 0.0
        %8941 = vmatpush1.msra.mxu0 %v8929
        %8942 = vmatprep.subr.mxu0 0.0
        %8943 = vmatpush1.msra.mxu0 %v8928
        %8944 = vmatprep.subr.mxu0 0.0
        %8945 = vmatpush1.msra.mxu0 %v8927
        %8946 = vmatprep.subr.mxu0 0.0
        %8947 = vmatpush1.msra.mxu0 %v8926
        %8948 = vmatprep.subr.mxu0 0.0
        %8949 = vmatpush1.msra.mxu0 %v8925
        %8950 = vmatprep.subr.mxu0 0.0
        %8951 = vmatpush1.msra.mxu0 %v8924
        %8952 = vmatprep.subr.mxu0 0.0
        %8953 = vmatpush1.msra.mxu0 %v8923
        %8954 = vmatprep.subr.mxu0 0.0
        %8955 = vmatpush1.msra.mxu0 %v8922
        %8956 = vmatprep.subr.mxu0 0.0
        %8957 = vmatpush1.msra.mxu0 %v8921
        %8958 = vmatprep.subr.mxu0 0.0
        %8959 = vmatpush1.msra.mxu0 %v8920
        %8960 = vmatprep.subr.mxu0 0.0
        %8961 = vmatpush1.msra.mxu0 %v8919
        %8962 = vmatprep.subr.mxu0 0.0
        %8963 = vmatpush1.msra.mxu0 %v8918
        %8964 = vmatprep.subr.mxu0 0.0
        %8965 = vmatpush1.msra.mxu0 %v8917
        %8966 = vmatprep.subr.mxu0 0.0
        %8967 = vmatpush1.msra.mxu0 %v8916
        %8968 = vmatprep.subr.mxu0 0.0
        %8969 = vmatpush1.msra.mxu0 %v8915
        %8970 = vmatprep.subr.mxu0 0.0
        %8971 = vmatpush2.msra.mxu0 0.0
        %8972 = vmatprep.subr.mxu0 0.0
        %8973 = vmatpush2.msra.mxu0 0.0
        %8974 = vmatprep.subr.mxu0 0.0
        %8975 = vmatpush2.msra.mxu0 0.0
        %8976 = vmatprep.subr.mxu0 0.0
        %8977 = vmatpush2.msra.mxu0 0.0
        %8978 = vmatprep.subr.mxu0 0.0
        %8979 = vmatpush2.msra.mxu0 0.0
        %8980 = vmatprep.subr.mxu0 0.0
        %8981 = vmatpush2.msra.mxu0 0.0
        %8982 = vmatprep.subr.mxu0 0.0
        %8983 = vmatpush2.msra.mxu0 0.0
        %8984 = vmatprep.subr.mxu0 0.0
        %8985 = vmatpush2.msra.mxu0 0.0
        %8986 = vmatprep.subr.mxu0 0.0
        %8987 = vmatpush2.msra.mxu0 0.0
        %8988 = vmatprep.subr.mxu0 0.0
        %8989 = vmatpush2.msra.mxu0 0.0
        %8990 = vmatprep.subr.mxu0 0.0
        %8991 = vmatpush2.msra.mxu0 0.0
        %8992 = vmatprep.subr.mxu0 0.0
        %8993 = vmatpush2.msra.mxu0 0.0
        %8994 = vmatprep.subr.mxu0 0.0
        %8995 = vmatpush2.msra.mxu0 0.0
        %8996 = vmatprep.subr.mxu0 0.0
        %8997 = vmatpush2.msra.mxu0 0.0
        %8998 = vmatprep.subr.mxu0 0.0
        %8999 = vmatpush2.msra.mxu0 0.0
        %9000 = vmatprep.subr.mxu0 0.0
        %9001 = vmatpush2.msra.mxu0 0.0
        %9002 = vmatprep.mubr.f32.mxu0 0.0
        %9003 = vmatmul.mubr.f32.gmra.mxu0 %v8914
        %v9004 = vpop.f32.mrf.mxu0
        %v9005 = vadd.f32 %v8936, %v9004
        %v9006 = vpop.f32.mrf.mxu0
        %9007 = vdwg.mxu0
        %v9008 = vmax.f32 %v9005, 0.0
        %9009 = vst [vmem:[%s284] sm:$0xff] %v9008
        %s9010 = sand.u32 %s182, 1
        %s9011 = scalar_lea.sflag [#allocation4], %s9010
        %s9012 = sand.u32 %s182, 1
        %s9013 = smul.addr %s9012, 8
        %s9014 = scalar_lea.vmem [#allocation5], %s9013
        // Predicated region
        $region53: #{tpu_custom_call.1} parent=47 // pred_check
          %p9015 = pneg %p192
        $region54: #{tpu_custom_call.1} parent=47 // pred_check_branch
          %9017 = sbr.rel (%p9015) target = $region56
        $region55: #{tpu_custom_call.1} parent=47 // pred_region
          %s9019 = ssub.s32 128, 128
          %9020 = vsyncadd %s9011, %s9019
          %s9021 = smul.addr %s22, 128
          %s9022 = scalar_lea.hbm %s7, %s9021
          %s9024 = sshll.u32 %s9014, 4
          %s9025 = int_to_ptr.vmem [resolvable:$true] %s9024
          %9027 = dma.vmem_to_hbm [thread:$0]  %s9025, 128, %s9022, %s9011
        $region56: #{tpu_custom_call.1} parent=47 // pred_fallthru
          _
      $region48: #{tpu_custom_call.1} parent=5 // pred_fallthru
        _
      %p9028 = scmp.le.s32.totalorder 2, %s17
      // Predicated region
      $region57: #{tpu_custom_call.1} parent=5 // pred_check
        %p9029 = pneg %p9028
      $region58: #{tpu_custom_call.1} parent=5 // pred_check_branch
        %9031 = sbr.rel (%p9029) target = $region60
      $region59: #{tpu_custom_call.1} parent=5 // pred_region
        %s9032 = ssub.s32 %s17, 2
        // Predicated region
        $region61: #{tpu_custom_call.1} parent=59 // pred_check
          %p9033 = pneg %p198
        $region62: #{tpu_custom_call.1} parent=59 // pred_check_branch
          %9035 = sbr.rel (%p9033) target = $region64
        $region63: #{tpu_custom_call.1} parent=59 // pred_region
          %s9036 = sand.u32 %s183, 1
          %s9037 = scalar_lea.sflag [#allocation4], %s9036
          %s9038 = sand.u32 %s183, 1
          %s9039 = smul.addr %s9038, 8
          %s9040 = scalar_lea.vmem [#allocation5], %s9039
          %9041 = dma.done %s9037, 128
        $region64: #{tpu_custom_call.1} parent=59 // pred_fallthru
          _
      $region60: #{tpu_custom_call.1} parent=5 // pred_fallthru
        _
    $region6: #{tpu_custom_call.1} parent=1 // loop_footer
      %s21 = sadd.s32 1, %s17
    $region7: #{tpu_custom_call.1} parent=1 // loop_footer_branch
      %16 = sbr.rel target = $region3
    $region8: #{tpu_custom_call.1} parent=1 // loop_exit
      _
    %9042 = vsyncpa [#allocation3], 1
    %s9043 = scalar_lea.sflag [#allocation3], 1
    %9044 = vsyncpa %s9043, 1
    %9045 = vsyncpa [#allocation4], 1
    %s9046 = scalar_lea.sflag [#allocation4], 1
    %9047 = vsyncpa %s9046, 1

</llo_original>
